<compile_context>
chip_gen: v6e
topology: v6e:2x2x1
jax: 0.10.0
libtpu: 0.0.40
codegen_flags: <defaults>
</compile_context>

<pallas_src>
import functools

import jax
import jax.numpy as jnp
from jax.experimental import pallas as pl
from jax.experimental.pallas import tpu as pltpu

LANE = 128


def _round_up(x, m):
    return (x + m - 1) // m * m


# ----------------------------------------------------------------------------
# Fused Pallas kernel: Head (3x3 conv + ReLU stack) + Output (fused 1x1 convs)
# ----------------------------------------------------------------------------
def _fused_uv_kernel(*refs, H, W, num_convs, cin0_pad, cmid_pad, row_tile,
                     compute_dtype):
    """Processes one image (grid step) end-to-end with VMEM-resident activations.

    refs layout (set up by uv_fused_forward):
      refs[0]                        x_ref   (H, W, cin0_pad)        input
      refs[1+2l], refs[2+2l]         w_l     (9*cin_pad_l, cmid_pad)
                                     b_l     (1, cmid_pad)  f32
      refs[1+2*num_convs]            wo_ref  (cmid_pad, cout_pad)
      refs[2+2*num_convs]            bo_ref  (1, cout_pad)  f32
      refs[3+2*num_convs]            o_ref   (H*W, cout_pad) f32 output
      refs[4+2*num_convs]            xa_ref  (H+2, W+2, ca_pad)  ping scratch
      refs[5+2*num_convs]            xb_ref  (H+2, W+2, cmid_pad) pong scratch
    """
    x_ref = refs[0]
    head_refs = refs[1:1 + 2 * num_convs]
    wo_ref = refs[1 + 2 * num_convs]
    bo_ref = refs[2 + 2 * num_convs]
    o_ref = refs[3 + 2 * num_convs]
    xa_ref = refs[4 + 2 * num_convs]
    xb_ref = refs[5 + 2 * num_convs]

    # --- Halo handling: zero only the 1-px border strips (not the interior).
    # Re-done every grid step so correctness does not depend on which core of
    # a megacore executes which batch element.  Channel counts are lane
    # multiples, so these stores are lane-dense.
    def zero_border(buf):
        c = buf.shape[-1]
        zrow = jnp.zeros((1, W + 2, c), compute_dtype)
        buf[0:1, :, :] = zrow
        buf[H + 1:H + 2, :, :] = zrow
        zcol = jnp.zeros((H, 1, c), compute_dtype)
        buf[1:H + 1, 0:1, :] = zcol
        buf[1:H + 1, W + 1:W + 2, :] = zcol

    zero_border(xa_ref)
    if num_convs > 1:
        zero_border(xb_ref)

    # Input (already channel-padded to cin0_pad in the wrapper) -> ping buffer.
    xa_ref[1:H + 1, 1:W + 1, :cin0_pad] = x_ref[...]

    bufs = (xa_ref, xb_ref)
    for layer in range(num_convs):
        w_ref = head_refs[2 * layer]
        b_ref = head_refs[2 * layer + 1]
        src = bufs[layer % 2]          # previous layer's padded activations
        dst = bufs[1 - layer % 2]      # this layer's padded activations
        cin_pad = cin0_pad if layer == 0 else cmid_pad
        last = (layer == num_convs - 1)

        # Row-chunked so the f32 accumulator stays ~vreg-file sized even at
        # production P; ping-pong buffers keep cross-chunk halo rows valid.
        for h0 in range(0, H, row_tile):
            rows = min(row_tile, H - h0)
            M = rows * W

            # 3x3 conv = 9 accumulating dots from shifted views (no im2col
            # slab).  Tap order (dy, dx, cin) matches the weight packing.
            acc = None
            for dy in range(3):
                for dx in range(3):
                    t = dy * 3 + dx
                    tap = src[dy + h0:dy + h0 + rows, dx:dx + W, :cin_pad]
                    tap = tap.reshape(M, cin_pad)
                    w_tap = w_ref[t * cin_pad:(t + 1) * cin_pad, :]
                    part = jnp.dot(tap, w_tap,
                                   preferred_element_type=jnp.float32)
                    acc = part if acc is None else acc + part

            act = jnp.maximum(acc + b_ref[...], 0.0)   # bias + ReLU in f32

            if not last:
                # Inter-layer writeback stays in VMEM (lane-dense store).
                dst[1 + h0:1 + h0 + rows, 1:W + 1, :cmid_pad] = (
                    act.astype(compute_dtype).reshape(rows, W, cmid_pad))
            else:
                # Fuse the four per-task 1x1 output convs into one lane-dense
                # (M, cout_pad) matmul; output store is unmasked (cout_pad%128==0).
                out = jnp.dot(act.astype(compute_dtype), wo_ref[...],
                              preferred_element_type=jnp.float32) + bo_ref[...]
                o_ref[h0 * W:(h0 + rows) * W, :] = out.astype(o_ref.dtype)


# ----------------------------------------------------------------------------
# One-time weight packing (reshape + zero-pad + cast) — review item 10
# ----------------------------------------------------------------------------
def pack_uv_params(params, compute_dtype=jnp.bfloat16):
    head = params["head"]
    num_convs = len(head)
    assert num_convs >= 1
    cmid = head[0][0].shape[-1]
    for w, _ in head:
        assert w.shape[:2] == (3, 3), "UV head expects 3x3 convs"
        assert w.shape[-1] == cmid, "heterogeneous head widths not supported"
    cin0 = head[0][0].shape[2]

    cin0_pad = _round_up(cin0, LANE)
    cmid_pad = _round_up(cmid, LANE)

    packed_head = []
    for (w, b) in head:
        c_in = w.shape[2]
        c_in_pad = _round_up(c_in, LANE)
        # (3,3,Cin,Cout) -> (9, Cin_pad, Cmid_pad), padded rows/cols are ZERO
        # so padded activation channels stay exactly zero through the stack.
        wp = jnp.zeros((9, c_in_pad, cmid_pad), compute_dtype)
        wp = wp.at[:, :c_in, :cmid].set(
            w.reshape(9, c_in, cmid).astype(compute_dtype))
        wp = wp.reshape(9 * c_in_pad, cmid_pad)
        bp = jnp.zeros((1, cmid_pad), jnp.float32).at[:, :cmid].set(
            b.reshape(1, cmid).astype(jnp.float32))
        packed_head.append((wp, bp))

    wo, bo = params["output"]
    cout_total = wo.shape[-1]
    cout_pad = _round_up(cout_total, LANE)
    wo_p = jnp.zeros((cmid_pad, cout_pad), compute_dtype)
    wo_p = wo_p.at[:cmid, :cout_total].set(wo.astype(compute_dtype))
    bo_p = jnp.zeros((1, cout_pad), jnp.float32).at[:, :cout_total].set(
        bo.reshape(1, cout_total).astype(jnp.float32))

    return dict(
        head=packed_head,
        output=(wo_p, bo_p),
        splits=params["splits"],
        meta=dict(cin0=cin0, cin0_pad=cin0_pad, cmid_pad=cmid_pad,
                  cout_total=cout_total, cout_pad=cout_pad,
                  num_convs=num_convs, compute_dtype=compute_dtype),
    )


# ----------------------------------------------------------------------------
# Wrapper: single pallas_call for the whole Head + Output
# ----------------------------------------------------------------------------
def uv_fused_forward(packed, x_nhwc):
    """Runs Head + Output in one pallas_call.

    x_nhwc: (N, H, W, dim_in).  Returns (N, H*W, cout_pad) float32 logits with
    the real channels in [..., :cout_total] (the rest is zero padding).
    """
    meta = packed["meta"]
    compute_dtype = meta["compute_dtype"]
    cin0, cin0_pad = meta["cin0"], meta["cin0_pad"]
    cmid_pad, cout_pad = meta["cmid_pad"], meta["cout_pad"]
    num_convs = meta["num_convs"]

    N, H, W, c = x_nhwc.shape
    assert c == cin0
    P = H * W

    # Lane-pad the input channels once (zero fill) so every kernel-side load
    # and store is lane-dense.
    xc = x_nhwc.astype(compute_dtype)
    if cin0_pad != cin0:
        xc = jnp.zeros((N, H, W, cin0_pad), compute_dtype).at[
            ..., :cin0].set(xc)

    args = [xc]
    in_specs = [pl.BlockSpec((None, H, W, cin0_pad), lambda n: (n, 0, 0, 0))]
    for (wp, bp) in packed["head"]:
        args += [wp, bp]
        in_specs += [pl.BlockSpec(wp.shape, lambda n: (0, 0)),
                     pl.BlockSpec(bp.shape, lambda n: (0, 0))]
    wo_p, bo_p = packed["output"]
    args += [wo_p, bo_p]
    in_specs += [pl.BlockSpec(wo_p.shape, lambda n: (0, 0)),
                 pl.BlockSpec(bo_p.shape, lambda n: (0, 0))]

    ca_pad = max(cin0_pad, cmid_pad)
    # ~256 matmul rows per chunk keeps the f32 accumulator register-sized.
    row_tile = max(1, min(H, 256 // max(1, W)))

    kernel = functools.partial(
        _fused_uv_kernel, H=H, W=W, num_convs=num_convs,
        cin0_pad=cin0_pad, cmid_pad=cmid_pad, row_tile=row_tile,
        compute_dtype=compute_dtype)

    return pl.pallas_call(
        kernel,
        out_shape=jax.ShapeDtypeStruct((N, P, cout_pad), jnp.float32),
        grid=(N,),
        in_specs=in_specs,
        out_specs=pl.BlockSpec((None, P, cout_pad), lambda n: (n, 0, 0)),
        scratch_shapes=[
            pltpu.VMEM((H + 2, W + 2, ca_pad), compute_dtype),   # ping buffer
            pltpu.VMEM((H + 2, W + 2, cmid_pad), compute_dtype),  # pong buffer
        ],
        compiler_params=pltpu.CompilerParams(
            dimension_semantics=("parallel",)),
    )(*args)


# ----------------------------------------------------------------------------
# UV module (eval / _forward_test path)
# ----------------------------------------------------------------------------
def init_uv_params(key, dim_in, head_dim, num_convs,
                   n_ann=15, n_patches_plus1=25):
    ks = jax.random.split(key, num_convs + 1)
    params = {"head": []}
    cin = dim_in
    for i in range(num_convs):
        w = jax.random.normal(ks[i], (3, 3, cin, head_dim), jnp.float32) * 0.05
        b = jnp.zeros((head_dim,), jnp.float32)
        params["head"].append((w, b))
        cin = head_dim
    # Output: four 1x1 convs fused into one matmul (split afterwards).
    cout_total = n_ann + 3 * n_patches_plus1
    wo = jax.random.normal(ks[-1], (cin, cout_total), jnp.float32) * 0.05
    bo = jnp.zeros((cout_total,), jnp.float32)
    params["output"] = (wo, bo)
    params["splits"] = (n_ann, n_patches_plus1, n_patches_plus1, n_patches_plus1)
    return params


def uv_forward_test(packed, conv_features_nchw):
    """Mirrors UV._forward_test.  Input is NCHW (PyTorch convention)."""
    x = jnp.transpose(conv_features_nchw, (0, 2, 3, 1))     # NCHW -> NHWC
    N, H, W, _ = x.shape
    n_ann, n_i, n_u, n_v = packed["splits"]
    cout_total = n_ann + n_i + n_u + n_v

    out = uv_fused_forward(packed, x)                        # (N, P, cout_pad)
    logits_all = out[:, :, :cout_total].reshape(N, H, W, cout_total)

    s0, s1, s2 = n_ann, n_ann + n_i, n_ann + n_i + n_u
    to_nchw = lambda t: jnp.transpose(t, (0, 3, 1, 2))       # back to NCHW
    uv_logits = (to_nchw(logits_all[..., :s0]),
                 to_nchw(logits_all[..., s0:s1]),
                 to_nchw(logits_all[..., s1:s2]),
                 to_nchw(logits_all[..., s2:]))
    uv_iou_scores = jnp.ones((N,), dtype=jnp.float32)
    return dict(probs=uv_logits, uv_iou_scores=uv_iou_scores), {}


# ----------------------------------------------------------------------------
# Pure-JAX reference for correctness check
# ----------------------------------------------------------------------------
def _ref_forward(params, x_nchw):
    x = jnp.transpose(x_nchw, (0, 2, 3, 1))
    for w, b in params["head"]:
        y = jax.lax.conv_general_dilated(
            x, w, window_strides=(1, 1), padding="SAME",
            dimension_numbers=("NHWC", "HWIO", "NHWC"))
        x = jnp.maximum(y + b, 0.0)
    wo, bo = params["output"]
    return jnp.einsum("nhwc,cd->nhwd", x, wo) + bo


def _cat_probs_nhwc(result):
    return jnp.concatenate(
        [jnp.transpose(t, (0, 2, 3, 1)) for t in result["probs"]], axis=-1)


if __name__ == "__main__":
    key = jax.random.PRNGKey(0)
    k_in, k_par = jax.random.split(key)

    # Small shapes: batch=2, dim_in=4, spatial 16x16 RoI features.
    N, DIM_IN, S = 2, 4, 16
    HEAD_DIM, NUM_CONVS = 32, 2

    conv_features = jax.random.normal(k_in, (N, DIM_IN, S, S), jnp.float32)
    params = init_uv_params(k_par, DIM_IN, HEAD_DIM, NUM_CONVS)
    ref_all = _ref_forward(params, conv_features)

    # Default path: bf16 MXU operands, f32 accumulation/epilogue/output.
    packed_bf16 = pack_uv_params(params, compute_dtype=jnp.bfloat16)
    result, _ = uv_forward_test(packed_bf16, conv_features)
    jax.block_until_ready(result)
    got_bf16 = _cat_probs_nhwc(result)
    assert jnp.allclose(got_bf16, ref_all, rtol=2e-2, atol=2e-2), (
        "bf16 path mismatch")
    assert result["uv_iou_scores"].shape == (N,)

    # f32 path: tight check of the kernel logic itself.
    packed_f32 = pack_uv_params(params, compute_dtype=jnp.float32)
    result_f32, _ = uv_forward_test(packed_f32, conv_features)
    jax.block_until_ready(result_f32)
    got_f32 = _cat_probs_nhwc(result_f32)
    assert jnp.allclose(got_f32, ref_all, rtol=1e-4, atol=1e-4), (
        "f32 path mismatch")

    print("KERNEL_OK")
</pallas_src>

<mosaic_0001>
module attributes {stable_mosaic.version = 11 : i64} {
  func.func @_fused_uv_kernel(%arg0: i32, %arg1: memref<1x16x16x128xbf16, #tpu.memory_space<vmem>>, %arg2: memref<1152x128xbf16, #tpu.memory_space<vmem>>, %arg3: memref<1x128xf32, #tpu.memory_space<vmem>>, %arg4: memref<1152x128xbf16, #tpu.memory_space<vmem>>, %arg5: memref<1x128xf32, #tpu.memory_space<vmem>>, %arg6: memref<128x128xbf16, #tpu.memory_space<vmem>>, %arg7: memref<1x128xf32, #tpu.memory_space<vmem>>, %arg8: memref<1x256x128xf32, #tpu.memory_space<vmem>>, %arg9: memref<18x18x128xbf16, #tpu.memory_space<vmem>>, %arg10: memref<18x18x128xbf16, #tpu.memory_space<vmem>>) attributes {dimension_semantics = [#tpu.dimension_semantics<parallel>], iteration_bounds = array<i64: 2>, scalar_prefetch = 0 : i64, scratch_operands = 2 : i64, tpu.core_type = #tpu.core_type<tc>, window_params = [{transform_indices = @transform_0, window_bounds = array<i64: 1, 16, 16, 128>}, {pipeline_mode = #tpu.pipeline_mode<synchronous>, transform_indices = @transform_1, window_bounds = array<i64: 1152, 128>}, {pipeline_mode = #tpu.pipeline_mode<synchronous>, transform_indices = @transform_2, window_bounds = array<i64: 1, 128>}, {pipeline_mode = #tpu.pipeline_mode<synchronous>, transform_indices = @transform_3, window_bounds = array<i64: 1152, 128>}, {pipeline_mode = #tpu.pipeline_mode<synchronous>, transform_indices = @transform_4, window_bounds = array<i64: 1, 128>}, {pipeline_mode = #tpu.pipeline_mode<synchronous>, transform_indices = @transform_5, window_bounds = array<i64: 128, 128>}, {pipeline_mode = #tpu.pipeline_mode<synchronous>, transform_indices = @transform_6, window_bounds = array<i64: 1, 128>}, {transform_indices = @transform_7, window_bounds = array<i64: 1, 256, 128>}]} {
    %cst = arith.constant 0.000000e+00 : bf16
    %0 = vector.broadcast %cst : bf16 to vector<1x18x128xbf16>
    %c0 = arith.constant 0 : index
    %c0_0 = arith.constant 0 : index
    %c0_1 = arith.constant 0 : index
    %1 = vector.load %arg9[%c0, %c0_0, %c0_1] : memref<18x18x128xbf16, #tpu.memory_space<vmem>>, vector<1x18x128xbf16>
    tpu.vector_store %arg9[%c0, %c0_0, %c0_1], %0 {strides = array<i32>} : memref<18x18x128xbf16, #tpu.memory_space<vmem>>, vector<1x18x128xbf16>,
    %c17 = arith.constant 17 : index
    %c0_2 = arith.constant 0 : index
    %c0_3 = arith.constant 0 : index
    %2 = vector.load %arg9[%c17, %c0_2, %c0_3] : memref<18x18x128xbf16, #tpu.memory_space<vmem>>, vector<1x18x128xbf16>
    tpu.vector_store %arg9[%c17, %c0_2, %c0_3], %0 {strides = array<i32>} : memref<18x18x128xbf16, #tpu.memory_space<vmem>>, vector<1x18x128xbf16>,
    %cst_4 = arith.constant 0.000000e+00 : bf16
    %3 = vector.broadcast %cst_4 : bf16 to vector<16x1x128xbf16>
    %c1 = arith.constant 1 : index
    %c0_5 = arith.constant 0 : index
    %c0_6 = arith.constant 0 : index
    %4 = vector.load %arg9[%c1, %c0_5, %c0_6] : memref<18x18x128xbf16, #tpu.memory_space<vmem>>, vector<16x1x128xbf16>
    tpu.vector_store %arg9[%c1, %c0_5, %c0_6], %3 {strides = array<i32>} : memref<18x18x128xbf16, #tpu.memory_space<vmem>>, vector<16x1x128xbf16>,
    %c1_7 = arith.constant 1 : index
    %c17_8 = arith.constant 17 : index
    %c0_9 = arith.constant 0 : index
    %5 = vector.load %arg9[%c1_7, %c17_8, %c0_9] : memref<18x18x128xbf16, #tpu.memory_space<vmem>>, vector<16x1x128xbf16>
    tpu.vector_store %arg9[%c1_7, %c17_8, %c0_9], %3 {strides = array<i32>} : memref<18x18x128xbf16, #tpu.memory_space<vmem>>, vector<16x1x128xbf16>,
    %cst_10 = arith.constant 0.000000e+00 : bf16
    %6 = vector.broadcast %cst_10 : bf16 to vector<1x18x128xbf16>
    %c0_11 = arith.constant 0 : index
    %c0_12 = arith.constant 0 : index
    %c0_13 = arith.constant 0 : index
    %7 = vector.load %arg10[%c0_11, %c0_12, %c0_13] : memref<18x18x128xbf16, #tpu.memory_space<vmem>>, vector<1x18x128xbf16>
    tpu.vector_store %arg10[%c0_11, %c0_12, %c0_13], %6 {strides = array<i32>} : memref<18x18x128xbf16, #tpu.memory_space<vmem>>, vector<1x18x128xbf16>,
    %c17_14 = arith.constant 17 : index
    %c0_15 = arith.constant 0 : index
    %c0_16 = arith.constant 0 : index
    %8 = vector.load %arg10[%c17_14, %c0_15, %c0_16] : memref<18x18x128xbf16, #tpu.memory_space<vmem>>, vector<1x18x128xbf16>
    tpu.vector_store %arg10[%c17_14, %c0_15, %c0_16], %6 {strides = array<i32>} : memref<18x18x128xbf16, #tpu.memory_space<vmem>>, vector<1x18x128xbf16>,
    %cst_17 = arith.constant 0.000000e+00 : bf16
    %9 = vector.broadcast %cst_17 : bf16 to vector<16x1x128xbf16>
    %c1_18 = arith.constant 1 : index
    %c0_19 = arith.constant 0 : index
    %c0_20 = arith.constant 0 : index
    %10 = vector.load %arg10[%c1_18, %c0_19, %c0_20] : memref<18x18x128xbf16, #tpu.memory_space<vmem>>, vector<16x1x128xbf16>
    tpu.vector_store %arg10[%c1_18, %c0_19, %c0_20], %9 {strides = array<i32>} : memref<18x18x128xbf16, #tpu.memory_space<vmem>>, vector<16x1x128xbf16>,
    %c1_21 = arith.constant 1 : index
    %c17_22 = arith.constant 17 : index
    %c0_23 = arith.constant 0 : index
    %11 = vector.load %arg10[%c1_21, %c17_22, %c0_23] : memref<18x18x128xbf16, #tpu.memory_space<vmem>>, vector<16x1x128xbf16>
    tpu.vector_store %arg10[%c1_21, %c17_22, %c0_23], %9 {strides = array<i32>} : memref<18x18x128xbf16, #tpu.memory_space<vmem>>, vector<16x1x128xbf16>,
    %c0_24 = arith.constant 0 : index
    %c0_25 = arith.constant 0 : index
    %c0_26 = arith.constant 0 : index
    %c0_27 = arith.constant 0 : index
    %12 = vector.load %arg1[%c0_24, %c0_25, %c0_26, %c0_27] : memref<1x16x16x128xbf16, #tpu.memory_space<vmem>>, vector<1x16x16x128xbf16>
    %13 = vector.shape_cast %12 : vector<1x16x16x128xbf16> to vector<16x16x128xbf16>
    %c1_28 = arith.constant 1 : index
    %c1_29 = arith.constant 1 : index
    %c0_30 = arith.constant 0 : index
    %14 = vector.load %arg9[%c1_28, %c1_29, %c0_30] : memref<18x18x128xbf16, #tpu.memory_space<vmem>>, vector<16x16x128xbf16>
    tpu.vector_store %arg9[%c1_28, %c1_29, %c0_30], %13 {strides = array<i32>} : memref<18x18x128xbf16, #tpu.memory_space<vmem>>, vector<16x16x128xbf16>,
    %c0_31 = arith.constant 0 : index
    %c0_32 = arith.constant 0 : index
    %c0_33 = arith.constant 0 : index
    %15 = vector.load %arg9[%c0_31, %c0_32, %c0_33] : memref<18x18x128xbf16, #tpu.memory_space<vmem>>, vector<16x16x128xbf16>
    %16 = vector.shape_cast %15 : vector<16x16x128xbf16> to vector<256x128xbf16>
    %c0_34 = arith.constant 0 : index
    %c0_35 = arith.constant 0 : index
    %17 = vector.load %arg2[%c0_34, %c0_35] : memref<1152x128xbf16, #tpu.memory_space<vmem>>, vector<128x128xbf16>
    %cst_36 = arith.constant dense<0.000000e+00> : vector<256x128xf32>
    %18 = tpu.matmul %16, %17, %cst_36 {dimension_numbers = #tpu.dot_dimension_numbers<[1], [0], [0], [1], [0, 0, 1, 1], [], []>} : vector<256x128xbf16>, vector<128x128xbf16>, vector<256x128xf32> -> vector<256x128xf32>
    %c0_37 = arith.constant 0 : index
    %c1_38 = arith.constant 1 : index
    %c0_39 = arith.constant 0 : index
    %19 = vector.load %arg9[%c0_37, %c1_38, %c0_39] : memref<18x18x128xbf16, #tpu.memory_space<vmem>>, vector<16x16x128xbf16>
    %20 = vector.shape_cast %19 : vector<16x16x128xbf16> to vector<256x128xbf16>
    %c128 = arith.constant 128 : index
    %c0_40 = arith.constant 0 : index
    %21 = vector.load %arg2[%c128, %c0_40] : memref<1152x128xbf16, #tpu.memory_space<vmem>>, vector<128x128xbf16>
    %cst_41 = arith.constant dense<0.000000e+00> : vector<256x128xf32>
    %22 = tpu.matmul %20, %21, %cst_41 {dimension_numbers = #tpu.dot_dimension_numbers<[1], [0], [0], [1], [0, 0, 1, 1], [], []>} : vector<256x128xbf16>, vector<128x128xbf16>, vector<256x128xf32> -> vector<256x128xf32>
    %23 = arith.addf %18, %22 : vector<256x128xf32>
    %c0_42 = arith.constant 0 : index
    %c2 = arith.constant 2 : index
    %c0_43 = arith.constant 0 : index
    %24 = vector.load %arg9[%c0_42, %c2, %c0_43] : memref<18x18x128xbf16, #tpu.memory_space<vmem>>, vector<16x16x128xbf16>
    %25 = vector.shape_cast %24 : vector<16x16x128xbf16> to vector<256x128xbf16>
    %c256 = arith.constant 256 : index
    %c0_44 = arith.constant 0 : index
    %26 = vector.load %arg2[%c256, %c0_44] : memref<1152x128xbf16, #tpu.memory_space<vmem>>, vector<128x128xbf16>
    %cst_45 = arith.constant dense<0.000000e+00> : vector<256x128xf32>
    %27 = tpu.matmul %25, %26, %cst_45 {dimension_numbers = #tpu.dot_dimension_numbers<[1], [0], [0], [1], [0, 0, 1, 1], [], []>} : vector<256x128xbf16>, vector<128x128xbf16>, vector<256x128xf32> -> vector<256x128xf32>
    %28 = arith.addf %23, %27 : vector<256x128xf32>
    %c1_46 = arith.constant 1 : index
    %c0_47 = arith.constant 0 : index
    %c0_48 = arith.constant 0 : index
    %29 = vector.load %arg9[%c1_46, %c0_47, %c0_48] : memref<18x18x128xbf16, #tpu.memory_space<vmem>>, vector<16x16x128xbf16>
    %30 = vector.shape_cast %29 : vector<16x16x128xbf16> to vector<256x128xbf16>
    %c384 = arith.constant 384 : index
    %c0_49 = arith.constant 0 : index
    %31 = vector.load %arg2[%c384, %c0_49] : memref<1152x128xbf16, #tpu.memory_space<vmem>>, vector<128x128xbf16>
    %cst_50 = arith.constant dense<0.000000e+00> : vector<256x128xf32>
    %32 = tpu.matmul %30, %31, %cst_50 {dimension_numbers = #tpu.dot_dimension_numbers<[1], [0], [0], [1], [0, 0, 1, 1], [], []>} : vector<256x128xbf16>, vector<128x128xbf16>, vector<256x128xf32> -> vector<256x128xf32>
    %33 = arith.addf %28, %32 : vector<256x128xf32>
    %c1_51 = arith.constant 1 : index
    %c1_52 = arith.constant 1 : index
    %c0_53 = arith.constant 0 : index
    %34 = vector.load %arg9[%c1_51, %c1_52, %c0_53] : memref<18x18x128xbf16, #tpu.memory_space<vmem>>, vector<16x16x128xbf16>
    %35 = vector.shape_cast %34 : vector<16x16x128xbf16> to vector<256x128xbf16>
    %c512 = arith.constant 512 : index
    %c0_54 = arith.constant 0 : index
    %36 = vector.load %arg2[%c512, %c0_54] : memref<1152x128xbf16, #tpu.memory_space<vmem>>, vector<128x128xbf16>
    %cst_55 = arith.constant dense<0.000000e+00> : vector<256x128xf32>
    %37 = tpu.matmul %35, %36, %cst_55 {dimension_numbers = #tpu.dot_dimension_numbers<[1], [0], [0], [1], [0, 0, 1, 1], [], []>} : vector<256x128xbf16>, vector<128x128xbf16>, vector<256x128xf32> -> vector<256x128xf32>
    %38 = arith.addf %33, %37 : vector<256x128xf32>
    %c1_56 = arith.constant 1 : index
    %c2_57 = arith.constant 2 : index
    %c0_58 = arith.constant 0 : index
    %39 = vector.load %arg9[%c1_56, %c2_57, %c0_58] : memref<18x18x128xbf16, #tpu.memory_space<vmem>>, vector<16x16x128xbf16>
    %40 = vector.shape_cast %39 : vector<16x16x128xbf16> to vector<256x128xbf16>
    %c640 = arith.constant 640 : index
    %c0_59 = arith.constant 0 : index
    %41 = vector.load %arg2[%c640, %c0_59] : memref<1152x128xbf16, #tpu.memory_space<vmem>>, vector<128x128xbf16>
    %cst_60 = arith.constant dense<0.000000e+00> : vector<256x128xf32>
    %42 = tpu.matmul %40, %41, %cst_60 {dimension_numbers = #tpu.dot_dimension_numbers<[1], [0], [0], [1], [0, 0, 1, 1], [], []>} : vector<256x128xbf16>, vector<128x128xbf16>, vector<256x128xf32> -> vector<256x128xf32>
    %43 = arith.addf %38, %42 : vector<256x128xf32>
    %c2_61 = arith.constant 2 : index
    %c0_62 = arith.constant 0 : index
    %c0_63 = arith.constant 0 : index
    %44 = vector.load %arg9[%c2_61, %c0_62, %c0_63] : memref<18x18x128xbf16, #tpu.memory_space<vmem>>, vector<16x16x128xbf16>
    %45 = vector.shape_cast %44 : vector<16x16x128xbf16> to vector<256x128xbf16>
    %c768 = arith.constant 768 : index
    %c0_64 = arith.constant 0 : index
    %46 = vector.load %arg2[%c768, %c0_64] : memref<1152x128xbf16, #tpu.memory_space<vmem>>, vector<128x128xbf16>
    %cst_65 = arith.constant dense<0.000000e+00> : vector<256x128xf32>
    %47 = tpu.matmul %45, %46, %cst_65 {dimension_numbers = #tpu.dot_dimension_numbers<[1], [0], [0], [1], [0, 0, 1, 1], [], []>} : vector<256x128xbf16>, vector<128x128xbf16>, vector<256x128xf32> -> vector<256x128xf32>
    %48 = arith.addf %43, %47 : vector<256x128xf32>
    %c2_66 = arith.constant 2 : index
    %c1_67 = arith.constant 1 : index
    %c0_68 = arith.constant 0 : index
    %49 = vector.load %arg9[%c2_66, %c1_67, %c0_68] : memref<18x18x128xbf16, #tpu.memory_space<vmem>>, vector<16x16x128xbf16>
    %50 = vector.shape_cast %49 : vector<16x16x128xbf16> to vector<256x128xbf16>
    %c896 = arith.constant 896 : index
    %c0_69 = arith.constant 0 : index
    %51 = vector.load %arg2[%c896, %c0_69] : memref<1152x128xbf16, #tpu.memory_space<vmem>>, vector<128x128xbf16>
    %cst_70 = arith.constant dense<0.000000e+00> : vector<256x128xf32>
    %52 = tpu.matmul %50, %51, %cst_70 {dimension_numbers = #tpu.dot_dimension_numbers<[1], [0], [0], [1], [0, 0, 1, 1], [], []>} : vector<256x128xbf16>, vector<128x128xbf16>, vector<256x128xf32> -> vector<256x128xf32>
    %53 = arith.addf %48, %52 : vector<256x128xf32>
    %c2_71 = arith.constant 2 : index
    %c2_72 = arith.constant 2 : index
    %c0_73 = arith.constant 0 : index
    %54 = vector.load %arg9[%c2_71, %c2_72, %c0_73] : memref<18x18x128xbf16, #tpu.memory_space<vmem>>, vector<16x16x128xbf16>
    %55 = vector.shape_cast %54 : vector<16x16x128xbf16> to vector<256x128xbf16>
    %c1024 = arith.constant 1024 : index
    %c0_74 = arith.constant 0 : index
    %56 = vector.load %arg2[%c1024, %c0_74] : memref<1152x128xbf16, #tpu.memory_space<vmem>>, vector<128x128xbf16>
    %cst_75 = arith.constant dense<0.000000e+00> : vector<256x128xf32>
    %57 = tpu.matmul %55, %56, %cst_75 {dimension_numbers = #tpu.dot_dimension_numbers<[1], [0], [0], [1], [0, 0, 1, 1], [], []>} : vector<256x128xbf16>, vector<128x128xbf16>, vector<256x128xf32> -> vector<256x128xf32>
    %58 = arith.addf %53, %57 : vector<256x128xf32>
    %c0_76 = arith.constant 0 : index
    %c0_77 = arith.constant 0 : index
    %59 = vector.load %arg3[%c0_76, %c0_77] : memref<1x128xf32, #tpu.memory_space<vmem>>, vector<1x128xf32>
    %60 = vector.broadcast %59 : vector<1x128xf32> to vector<256x128xf32>
    %61 = arith.addf %58, %60 : vector<256x128xf32>
    %cst_78 = arith.constant 0.000000e+00 : f32
    %62 = vector.broadcast %cst_78 : f32 to vector<256x128xf32>
    %63 = arith.maximumf %61, %62 : vector<256x128xf32>
    %64 = arith.truncf %63 : vector<256x128xf32> to vector<256x128xbf16>
    %65 = vector.shape_cast %64 : vector<256x128xbf16> to vector<16x16x128xbf16>
    %c1_79 = arith.constant 1 : index
    %c1_80 = arith.constant 1 : index
    %c0_81 = arith.constant 0 : index
    %66 = vector.load %arg10[%c1_79, %c1_80, %c0_81] : memref<18x18x128xbf16, #tpu.memory_space<vmem>>, vector<16x16x128xbf16>
    tpu.vector_store %arg10[%c1_79, %c1_80, %c0_81], %65 {strides = array<i32>} : memref<18x18x128xbf16, #tpu.memory_space<vmem>>, vector<16x16x128xbf16>,
    %c0_82 = arith.constant 0 : index
    %c0_83 = arith.constant 0 : index
    %c0_84 = arith.constant 0 : index
    %67 = vector.load %arg10[%c0_82, %c0_83, %c0_84] : memref<18x18x128xbf16, #tpu.memory_space<vmem>>, vector<16x16x128xbf16>
    %68 = vector.shape_cast %67 : vector<16x16x128xbf16> to vector<256x128xbf16>
    %c0_85 = arith.constant 0 : index
    %c0_86 = arith.constant 0 : index
    %69 = vector.load %arg4[%c0_85, %c0_86] : memref<1152x128xbf16, #tpu.memory_space<vmem>>, vector<128x128xbf16>
    %cst_87 = arith.constant dense<0.000000e+00> : vector<256x128xf32>
    %70 = tpu.matmul %68, %69, %cst_87 {dimension_numbers = #tpu.dot_dimension_numbers<[1], [0], [0], [1], [0, 0, 1, 1], [], []>} : vector<256x128xbf16>, vector<128x128xbf16>, vector<256x128xf32> -> vector<256x128xf32>
    %c0_88 = arith.constant 0 : index
    %c1_89 = arith.constant 1 : index
    %c0_90 = arith.constant 0 : index
    %71 = vector.load %arg10[%c0_88, %c1_89, %c0_90] : memref<18x18x128xbf16, #tpu.memory_space<vmem>>, vector<16x16x128xbf16>
    %72 = vector.shape_cast %71 : vector<16x16x128xbf16> to vector<256x128xbf16>
    %c128_91 = arith.constant 128 : index
    %c0_92 = arith.constant 0 : index
    %73 = vector.load %arg4[%c128_91, %c0_92] : memref<1152x128xbf16, #tpu.memory_space<vmem>>, vector<128x128xbf16>
    %cst_93 = arith.constant dense<0.000000e+00> : vector<256x128xf32>
    %74 = tpu.matmul %72, %73, %cst_93 {dimension_numbers = #tpu.dot_dimension_numbers<[1], [0], [0], [1], [0, 0, 1, 1], [], []>} : vector<256x128xbf16>, vector<128x128xbf16>, vector<256x128xf32> -> vector<256x128xf32>
    %75 = arith.addf %70, %74 : vector<256x128xf32>
    %c0_94 = arith.constant 0 : index
    %c2_95 = arith.constant 2 : index
    %c0_96 = arith.constant 0 : index
    %76 = vector.load %arg10[%c0_94, %c2_95, %c0_96] : memref<18x18x128xbf16, #tpu.memory_space<vmem>>, vector<16x16x128xbf16>
    %77 = vector.shape_cast %76 : vector<16x16x128xbf16> to vector<256x128xbf16>
    %c256_97 = arith.constant 256 : index
    %c0_98 = arith.constant 0 : index
    %78 = vector.load %arg4[%c256_97, %c0_98] : memref<1152x128xbf16, #tpu.memory_space<vmem>>, vector<128x128xbf16>
    %cst_99 = arith.constant dense<0.000000e+00> : vector<256x128xf32>
    %79 = tpu.matmul %77, %78, %cst_99 {dimension_numbers = #tpu.dot_dimension_numbers<[1], [0], [0], [1], [0, 0, 1, 1], [], []>} : vector<256x128xbf16>, vector<128x128xbf16>, vector<256x128xf32> -> vector<256x128xf32>
    %80 = arith.addf %75, %79 : vector<256x128xf32>
    %c1_100 = arith.constant 1 : index
    %c0_101 = arith.constant 0 : index
    %c0_102 = arith.constant 0 : index
    %81 = vector.load %arg10[%c1_100, %c0_101, %c0_102] : memref<18x18x128xbf16, #tpu.memory_space<vmem>>, vector<16x16x128xbf16>
    %82 = vector.shape_cast %81 : vector<16x16x128xbf16> to vector<256x128xbf16>
    %c384_103 = arith.constant 384 : index
    %c0_104 = arith.constant 0 : index
    %83 = vector.load %arg4[%c384_103, %c0_104] : memref<1152x128xbf16, #tpu.memory_space<vmem>>, vector<128x128xbf16>
    %cst_105 = arith.constant dense<0.000000e+00> : vector<256x128xf32>
    %84 = tpu.matmul %82, %83, %cst_105 {dimension_numbers = #tpu.dot_dimension_numbers<[1], [0], [0], [1], [0, 0, 1, 1], [], []>} : vector<256x128xbf16>, vector<128x128xbf16>, vector<256x128xf32> -> vector<256x128xf32>
    %85 = arith.addf %80, %84 : vector<256x128xf32>
    %c1_106 = arith.constant 1 : index
    %c1_107 = arith.constant 1 : index
    %c0_108 = arith.constant 0 : index
    %86 = vector.load %arg10[%c1_106, %c1_107, %c0_108] : memref<18x18x128xbf16, #tpu.memory_space<vmem>>, vector<16x16x128xbf16>
    %87 = vector.shape_cast %86 : vector<16x16x128xbf16> to vector<256x128xbf16>
    %c512_109 = arith.constant 512 : index
    %c0_110 = arith.constant 0 : index
    %88 = vector.load %arg4[%c512_109, %c0_110] : memref<1152x128xbf16, #tpu.memory_space<vmem>>, vector<128x128xbf16>
    %cst_111 = arith.constant dense<0.000000e+00> : vector<256x128xf32>
    %89 = tpu.matmul %87, %88, %cst_111 {dimension_numbers = #tpu.dot_dimension_numbers<[1], [0], [0], [1], [0, 0, 1, 1], [], []>} : vector<256x128xbf16>, vector<128x128xbf16>, vector<256x128xf32> -> vector<256x128xf32>
    %90 = arith.addf %85, %89 : vector<256x128xf32>
    %c1_112 = arith.constant 1 : index
    %c2_113 = arith.constant 2 : index
    %c0_114 = arith.constant 0 : index
    %91 = vector.load %arg10[%c1_112, %c2_113, %c0_114] : memref<18x18x128xbf16, #tpu.memory_space<vmem>>, vector<16x16x128xbf16>
    %92 = vector.shape_cast %91 : vector<16x16x128xbf16> to vector<256x128xbf16>
    %c640_115 = arith.constant 640 : index
    %c0_116 = arith.constant 0 : index
    %93 = vector.load %arg4[%c640_115, %c0_116] : memref<1152x128xbf16, #tpu.memory_space<vmem>>, vector<128x128xbf16>
    %cst_117 = arith.constant dense<0.000000e+00> : vector<256x128xf32>
    %94 = tpu.matmul %92, %93, %cst_117 {dimension_numbers = #tpu.dot_dimension_numbers<[1], [0], [0], [1], [0, 0, 1, 1], [], []>} : vector<256x128xbf16>, vector<128x128xbf16>, vector<256x128xf32> -> vector<256x128xf32>
    %95 = arith.addf %90, %94 : vector<256x128xf32>
    %c2_118 = arith.constant 2 : index
    %c0_119 = arith.constant 0 : index
    %c0_120 = arith.constant 0 : index
    %96 = vector.load %arg10[%c2_118, %c0_119, %c0_120] : memref<18x18x128xbf16, #tpu.memory_space<vmem>>, vector<16x16x128xbf16>
    %97 = vector.shape_cast %96 : vector<16x16x128xbf16> to vector<256x128xbf16>
    %c768_121 = arith.constant 768 : index
    %c0_122 = arith.constant 0 : index
    %98 = vector.load %arg4[%c768_121, %c0_122] : memref<1152x128xbf16, #tpu.memory_space<vmem>>, vector<128x128xbf16>
    %cst_123 = arith.constant dense<0.000000e+00> : vector<256x128xf32>
    %99 = tpu.matmul %97, %98, %cst_123 {dimension_numbers = #tpu.dot_dimension_numbers<[1], [0], [0], [1], [0, 0, 1, 1], [], []>} : vector<256x128xbf16>, vector<128x128xbf16>, vector<256x128xf32> -> vector<256x128xf32>
    %100 = arith.addf %95, %99 : vector<256x128xf32>
    %c2_124 = arith.constant 2 : index
    %c1_125 = arith.constant 1 : index
    %c0_126 = arith.constant 0 : index
    %101 = vector.load %arg10[%c2_124, %c1_125, %c0_126] : memref<18x18x128xbf16, #tpu.memory_space<vmem>>, vector<16x16x128xbf16>
    %102 = vector.shape_cast %101 : vector<16x16x128xbf16> to vector<256x128xbf16>
    %c896_127 = arith.constant 896 : index
    %c0_128 = arith.constant 0 : index
    %103 = vector.load %arg4[%c896_127, %c0_128] : memref<1152x128xbf16, #tpu.memory_space<vmem>>, vector<128x128xbf16>
    %cst_129 = arith.constant dense<0.000000e+00> : vector<256x128xf32>
    %104 = tpu.matmul %102, %103, %cst_129 {dimension_numbers = #tpu.dot_dimension_numbers<[1], [0], [0], [1], [0, 0, 1, 1], [], []>} : vector<256x128xbf16>, vector<128x128xbf16>, vector<256x128xf32> -> vector<256x128xf32>
    %105 = arith.addf %100, %104 : vector<256x128xf32>
    %c2_130 = arith.constant 2 : index
    %c2_131 = arith.constant 2 : index
    %c0_132 = arith.constant 0 : index
    %106 = vector.load %arg10[%c2_130, %c2_131, %c0_132] : memref<18x18x128xbf16, #tpu.memory_space<vmem>>, vector<16x16x128xbf16>
    %107 = vector.shape_cast %106 : vector<16x16x128xbf16> to vector<256x128xbf16>
    %c1024_133 = arith.constant 1024 : index
    %c0_134 = arith.constant 0 : index
    %108 = vector.load %arg4[%c1024_133, %c0_134] : memref<1152x128xbf16, #tpu.memory_space<vmem>>, vector<128x128xbf16>
    %cst_135 = arith.constant dense<0.000000e+00> : vector<256x128xf32>
    %109 = tpu.matmul %107, %108, %cst_135 {dimension_numbers = #tpu.dot_dimension_numbers<[1], [0], [0], [1], [0, 0, 1, 1], [], []>} : vector<256x128xbf16>, vector<128x128xbf16>, vector<256x128xf32> -> vector<256x128xf32>
    %110 = arith.addf %105, %109 : vector<256x128xf32>
    %c0_136 = arith.constant 0 : index
    %c0_137 = arith.constant 0 : index
    %111 = vector.load %arg5[%c0_136, %c0_137] : memref<1x128xf32, #tpu.memory_space<vmem>>, vector<1x128xf32>
    %112 = vector.broadcast %111 : vector<1x128xf32> to vector<256x128xf32>
    %113 = arith.addf %110, %112 : vector<256x128xf32>
    %cst_138 = arith.constant 0.000000e+00 : f32
    %114 = vector.broadcast %cst_138 : f32 to vector<256x128xf32>
    %115 = arith.maximumf %113, %114 : vector<256x128xf32>
    %116 = arith.truncf %115 : vector<256x128xf32> to vector<256x128xbf16>
    %c0_139 = arith.constant 0 : index
    %c0_140 = arith.constant 0 : index
    %117 = vector.load %arg6[%c0_139, %c0_140] : memref<128x128xbf16, #tpu.memory_space<vmem>>, vector<128x128xbf16>
    %cst_141 = arith.constant dense<0.000000e+00> : vector<256x128xf32>
    %118 = tpu.matmul %116, %117, %cst_141 {dimension_numbers = #tpu.dot_dimension_numbers<[1], [0], [0], [1], [0, 0, 1, 1], [], []>} : vector<256x128xbf16>, vector<128x128xbf16>, vector<256x128xf32> -> vector<256x128xf32>
    %c0_142 = arith.constant 0 : index
    %c0_143 = arith.constant 0 : index
    %119 = vector.load %arg7[%c0_142, %c0_143] : memref<1x128xf32, #tpu.memory_space<vmem>>, vector<1x128xf32>
    %120 = vector.broadcast %119 : vector<1x128xf32> to vector<256x128xf32>
    %121 = arith.addf %118, %120 : vector<256x128xf32>
    %c0_144 = arith.constant 0 : index
    %c0_145 = arith.constant 0 : index
    %c0_146 = arith.constant 0 : index
    %122 = vector.load %arg8[%c0_144, %c0_145, %c0_146] : memref<1x256x128xf32, #tpu.memory_space<vmem>>, vector<1x256x128xf32>
    %123 = vector.shape_cast %122 : vector<1x256x128xf32> to vector<256x128xf32>
    %124 = vector.shape_cast %121 : vector<256x128xf32> to vector<1x256x128xf32>
    tpu.vector_store %arg8[%c0_144, %c0_145, %c0_146], %124 {strides = array<i32>} : memref<1x256x128xf32, #tpu.memory_space<vmem>>, vector<1x256x128xf32>,
    return
  }
  func.func @transform_0(%arg0: i32) -> (i32, i32, i32, i32) {
    %c0_i32 = arith.constant 0 : i32
    %c0_i32_0 = arith.constant 0 : i32
    %c0_i32_1 = arith.constant 0 : i32
    %c0_i32_2 = arith.constant 0 : i32
    return %arg0, %c0_i32, %c0_i32_0, %c0_i32_1 : i32, i32, i32, i32
  }
  func.func @transform_1(%arg0: i32) -> (i32, i32) {
    %c0_i32 = arith.constant 0 : i32
    %c0_i32_0 = arith.constant 0 : i32
    %c0_i32_1 = arith.constant 0 : i32
    return %c0_i32, %c0_i32_0 : i32, i32
  }
  func.func @transform_2(%arg0: i32) -> (i32, i32) {
    %c0_i32 = arith.constant 0 : i32
    %c0_i32_0 = arith.constant 0 : i32
    %c0_i32_1 = arith.constant 0 : i32
    return %c0_i32, %c0_i32_0 : i32, i32
  }
  func.func @transform_3(%arg0: i32) -> (i32, i32) {
    %c0_i32 = arith.constant 0 : i32
    %c0_i32_0 = arith.constant 0 : i32
    %c0_i32_1 = arith.constant 0 : i32
    return %c0_i32, %c0_i32_0 : i32, i32
  }
  func.func @transform_4(%arg0: i32) -> (i32, i32) {
    %c0_i32 = arith.constant 0 : i32
    %c0_i32_0 = arith.constant 0 : i32
    %c0_i32_1 = arith.constant 0 : i32
    return %c0_i32, %c0_i32_0 : i32, i32
  }
  func.func @transform_5(%arg0: i32) -> (i32, i32) {
    %c0_i32 = arith.constant 0 : i32
    %c0_i32_0 = arith.constant 0 : i32
    %c0_i32_1 = arith.constant 0 : i32
    return %c0_i32, %c0_i32_0 : i32, i32
  }
  func.func @transform_6(%arg0: i32) -> (i32, i32) {
    %c0_i32 = arith.constant 0 : i32
    %c0_i32_0 = arith.constant 0 : i32
    %c0_i32_1 = arith.constant 0 : i32
    return %c0_i32, %c0_i32_0 : i32, i32
  }
  func.func @transform_7(%arg0: i32) -> (i32, i32, i32) {
    %c0_i32 = arith.constant 0 : i32
    %c0_i32_0 = arith.constant 0 : i32
    %c0_i32_1 = arith.constant 0 : i32
    return %arg0, %c0_i32, %c0_i32_0 : i32, i32, i32
  }
}

</mosaic_0001>

<llo_original>
// kernel: tpu_custom_call.1
$region0: #{tpu_custom_call.1}
  #allocation0 [shape = 'u32[]', space=smem, size = 0x4, offset = 0x4, fixed_abs, tag = 'smem constant byte address 0x4 - core index']
  #allocation1 [shape = 'u32[144,128]{1,0:T(1,128)}', space=vmem, size = 0x12000, scoped, tag = 'internal scratch']
  #allocation2 [shape = 'bf16[18,18,128]{2,1,0:T(8,128)(2,1)}', space=vmem, size = 0x1b000, scoped, tag = 'scratch operand']
  #allocation3 [shape = 'bf16[18,18,128]{2,1,0:T(8,128)(2,1)}', space=vmem, size = 0x1b000, scoped, tag = 'scratch operand']
  %s0 = inlined_call_operand.hbm [shape: bf16[2,16,16,128], index: 0, kind: input, shape index: {}]
  %s1 = inlined_call_operand.hbm [shape: bf16[1152,128], index: 1, kind: input, shape index: {}]
  %s2 = inlined_call_operand.vmem [shape: f32[1,128], index: 2, kind: input, shape index: {}]
  %s3 = inlined_call_operand.hbm [shape: bf16[1152,128], index: 3, kind: input, shape index: {}]
  %s4 = inlined_call_operand.vmem [shape: f32[1,128], index: 4, kind: input, shape index: {}]
  %s5 = inlined_call_operand.hbm [shape: bf16[128,128], index: 5, kind: input, shape index: {}]
  %s6 = inlined_call_operand.vmem [shape: f32[1,128], index: 6, kind: input, shape index: {}]
  %s7 = inlined_call_operand.hbm [shape: f32[2,256,128], index: 7, kind: output, shape index: {}]
  %s8 = sld [smem:[#allocation0]]
  $region77: #{tpu_custom_call.1} parent=0
    _
  %s10 = ssub.s32 1, %s8
  %s11 = scalar_select 0, %s10, %s8
  $region1: #{tpu_custom_call.1} parent=0
    #allocation4 [shape = 'u8[131072]{0}', space=vmem, size = 0x20000, scoped, tag = 'input window, operand 0']
    #allocation5 [shape = 's32[2]{0}', space=sflag, size = 0x8, scoped, tag = 'scoped memory for tpu_custom_call.1']
    #allocation6 [shape = 's32[2]{0}', space=sflag, size = 0x8, scoped, tag = 'scoped memory for tpu_custom_call.1']
    #allocation7 [shape = 'u8[294912]{0}', space=vmem, size = 0x48000, scoped, tag = 'input window, operand 1, single buffered']
    #allocation8 [shape = 's32[1]{0}', space=sflag, size = 0x4, scoped, tag = 'scoped memory for tpu_custom_call.1']
    #allocation9 [shape = 'u8[294912]{0}', space=vmem, size = 0x48000, scoped, tag = 'input window, operand 3, single buffered']
    #allocation10 [shape = 'u8[32768]{0}', space=vmem, size = 0x8000, scoped, tag = 'input window, operand 5, single buffered']
    #allocation11 [shape = 's32[1]{0}', space=sflag, size = 0x4, scoped, tag = 'scoped memory for tpu_custom_call.1']
    #allocation12 [shape = 'u8[262144]{0}', space=vmem, size = 0x40000, scoped, tag = 'output window, operand 0']
    %12 = vsyncpa [#allocation5], 0
    %s13 = scalar_lea.sflag [#allocation5], 1
    %14 = vsyncpa %s13, 0
    %15 = vsyncpa [#allocation8], 0
    %16 = vsyncpa [#allocation11], 0
    %17 = vsyncpa [#allocation6], 0
    %s18 = scalar_lea.sflag [#allocation6], 1
    %19 = vsyncpa %s18, 0
    loop: start=0, step=1, limit=4
    $region2: #{tpu_custom_call.1} parent=1 // loop_pre_header
      _
    $region3: #{tpu_custom_call.1} parent=1 // loop_header
      %s21 = sphi 0, %s25
      %p22 = scmp.ge.s32.totalorder %s21, 4
      %s31 = sphi 0, %s33
      %s34 = sphi 0, %s31
      %s35 = sphi 0, %s34
      %s51 = sphi 0, %s35
      %s55 = sphi 0, %s55
      %s57 = sphi 0, %s55
      %s58 = sphi 0, %s57
      %s72 = sphi 0, %s58
      %s76 = sphi 0, %s76
      %s78 = sphi 0, %s76
      %s79 = sphi 0, %s78
      %s93 = sphi 0, %s79
      %s97 = sphi 0, %s97
      %s99 = sphi 0, %s97
      %s100 = sphi 0, %s99
      %s114 = sphi 0, %s100
      %s118 = sphi 0, %s118
      %s120 = sphi 0, %s118
      %s121 = sphi 0, %s120
      %s135 = sphi 0, %s121
      %s139 = sphi 0, %s139
      %s141 = sphi 0, %s139
      %s142 = sphi 0, %s141
      %s156 = sphi 0, %s142
      %s160 = sphi 0, %s160
      %s162 = sphi 0, %s160
      %s163 = sphi 0, %s162
      %s177 = sphi 0, %s163
      %s183 = sphi 0, %s185
      %s186 = sphi 0, %s183
      %s187 = sphi 0, %s186
      %s203 = sphi 0, %s187
    $region4: #{tpu_custom_call.1} parent=1 // loop_header_branch
      %24 = sbr.rel (%p22) target = $region8
    $region5: #{tpu_custom_call.1} parent=1 // loop_body
      %s26 = ssub.s32 %s21, 1
      %s27 = ssub.s32 %s21, 2
      %s28 = sadd.s32 %s21, 1
      %s29 = ssub.s32 %s21, %s28
      %p30 = scmp.eq.s32.totalorder %s29, 0
      %s32 = sadd.s32 %s31, 1
      %s33 = scalar_select %p30, %s31, %s32
      %p36 = pneg %p30
      %p37 = scmp.eq.s32.totalorder %s21, 1
      %p38 = por %p36, %p37
      %p39 = scmp.ne.s32.totalorder %s31, %s34
      %p40 = scmp.eq.s32.totalorder %s21, 0
      %p41 = por %p39, %p40
      %p42 = scmp.ne.s32.totalorder %s31, %s34
      %p43 = scmp.eq.s32.totalorder %s26, 1
      %p44 = por %p42, %p43
      %p45 = scmp.ne.s32.totalorder %s34, %s35
      %p46 = scmp.eq.s32.totalorder %s26, 0
      %p47 = por %p45, %p46
      %p48 = scmp.ne.s32.totalorder %s34, %s35
      %p49 = scmp.eq.s32.totalorder %s27, 1
      %p50 = por %p48, %p49
      %p52 = scmp.ne.s32.totalorder %s35, %s51
      %p53 = scmp.eq.s32.totalorder %s27, 0
      %p54 = por %p52, %p53
      %s56 = sadd.s32 %s55, 1
      %p59 = scmp.eq.s32.totalorder %s21, 1
      %p60 = scmp.ne.s32.totalorder %s55, %s57
      %p61 = scmp.eq.s32.totalorder %s21, 0
      %p62 = por %p60, %p61
      %p63 = scmp.ne.s32.totalorder %s55, %s57
      %p64 = scmp.eq.s32.totalorder %s26, 1
      %p65 = por %p63, %p64
      %p66 = scmp.ne.s32.totalorder %s57, %s58
      %p67 = scmp.eq.s32.totalorder %s26, 0
      %p68 = por %p66, %p67
      %p69 = scmp.ne.s32.totalorder %s57, %s58
      %p70 = scmp.eq.s32.totalorder %s27, 1
      %p71 = por %p69, %p70
      %p73 = scmp.ne.s32.totalorder %s58, %s72
      %p74 = scmp.eq.s32.totalorder %s27, 0
      %p75 = por %p73, %p74
      %s77 = sadd.s32 %s76, 1
      %p80 = scmp.eq.s32.totalorder %s21, 1
      %p81 = scmp.ne.s32.totalorder %s76, %s78
      %p82 = scmp.eq.s32.totalorder %s21, 0
      %p83 = por %p81, %p82
      %p84 = scmp.ne.s32.totalorder %s76, %s78
      %p85 = scmp.eq.s32.totalorder %s26, 1
      %p86 = por %p84, %p85
      %p87 = scmp.ne.s32.totalorder %s78, %s79
      %p88 = scmp.eq.s32.totalorder %s26, 0
      %p89 = por %p87, %p88
      %p90 = scmp.ne.s32.totalorder %s78, %s79
      %p91 = scmp.eq.s32.totalorder %s27, 1
      %p92 = por %p90, %p91
      %p94 = scmp.ne.s32.totalorder %s79, %s93
      %p95 = scmp.eq.s32.totalorder %s27, 0
      %p96 = por %p94, %p95
      %s98 = sadd.s32 %s97, 1
      %p101 = scmp.eq.s32.totalorder %s21, 1
      %p102 = scmp.ne.s32.totalorder %s97, %s99
      %p103 = scmp.eq.s32.totalorder %s21, 0
      %p104 = por %p102, %p103
      %p105 = scmp.ne.s32.totalorder %s97, %s99
      %p106 = scmp.eq.s32.totalorder %s26, 1
      %p107 = por %p105, %p106
      %p108 = scmp.ne.s32.totalorder %s99, %s100
      %p109 = scmp.eq.s32.totalorder %s26, 0
      %p110 = por %p108, %p109
      %p111 = scmp.ne.s32.totalorder %s99, %s100
      %p112 = scmp.eq.s32.totalorder %s27, 1
      %p113 = por %p111, %p112
      %p115 = scmp.ne.s32.totalorder %s100, %s114
      %p116 = scmp.eq.s32.totalorder %s27, 0
      %p117 = por %p115, %p116
      %s119 = sadd.s32 %s118, 1
      %p122 = scmp.eq.s32.totalorder %s21, 1
      %p123 = scmp.ne.s32.totalorder %s118, %s120
      %p124 = scmp.eq.s32.totalorder %s21, 0
      %p125 = por %p123, %p124
      %p126 = scmp.ne.s32.totalorder %s118, %s120
      %p127 = scmp.eq.s32.totalorder %s26, 1
      %p128 = por %p126, %p127
      %p129 = scmp.ne.s32.totalorder %s120, %s121
      %p130 = scmp.eq.s32.totalorder %s26, 0
      %p131 = por %p129, %p130
      %p132 = scmp.ne.s32.totalorder %s120, %s121
      %p133 = scmp.eq.s32.totalorder %s27, 1
      %p134 = por %p132, %p133
      %p136 = scmp.ne.s32.totalorder %s121, %s135
      %p137 = scmp.eq.s32.totalorder %s27, 0
      %p138 = por %p136, %p137
      %s140 = sadd.s32 %s139, 1
      %p143 = scmp.eq.s32.totalorder %s21, 1
      %p144 = scmp.ne.s32.totalorder %s139, %s141
      %p145 = scmp.eq.s32.totalorder %s21, 0
      %p146 = por %p144, %p145
      %p147 = scmp.ne.s32.totalorder %s139, %s141
      %p148 = scmp.eq.s32.totalorder %s26, 1
      %p149 = por %p147, %p148
      %p150 = scmp.ne.s32.totalorder %s141, %s142
      %p151 = scmp.eq.s32.totalorder %s26, 0
      %p152 = por %p150, %p151
      %p153 = scmp.ne.s32.totalorder %s141, %s142
      %p154 = scmp.eq.s32.totalorder %s27, 1
      %p155 = por %p153, %p154
      %p157 = scmp.ne.s32.totalorder %s142, %s156
      %p158 = scmp.eq.s32.totalorder %s27, 0
      %p159 = por %p157, %p158
      %s161 = sadd.s32 %s160, 1
      %p164 = scmp.eq.s32.totalorder %s21, 1
      %p165 = scmp.ne.s32.totalorder %s160, %s162
      %p166 = scmp.eq.s32.totalorder %s21, 0
      %p167 = por %p165, %p166
      %p168 = scmp.ne.s32.totalorder %s160, %s162
      %p169 = scmp.eq.s32.totalorder %s26, 1
      %p170 = por %p168, %p169
      %p171 = scmp.ne.s32.totalorder %s162, %s163
      %p172 = scmp.eq.s32.totalorder %s26, 0
      %p173 = por %p171, %p172
      %p174 = scmp.ne.s32.totalorder %s162, %s163
      %p175 = scmp.eq.s32.totalorder %s27, 1
      %p176 = por %p174, %p175
      %p178 = scmp.ne.s32.totalorder %s163, %s177
      %p179 = scmp.eq.s32.totalorder %s27, 0
      %p180 = por %p178, %p179
      %s181 = ssub.s32 %s21, %s28
      %p182 = scmp.eq.s32.totalorder %s181, 0
      %s184 = sadd.s32 %s183, 1
      %s185 = scalar_select %p182, %s183, %s184
      %p188 = pneg %p182
      %p189 = scmp.eq.s32.totalorder %s21, 1
      %p190 = por %p188, %p189
      %p191 = scmp.ne.s32.totalorder %s183, %s186
      %p192 = scmp.eq.s32.totalorder %s21, 0
      %p193 = por %p191, %p192
      %p194 = scmp.ne.s32.totalorder %s183, %s186
      %p195 = scmp.eq.s32.totalorder %s26, 1
      %p196 = por %p194, %p195
      %p197 = scmp.ne.s32.totalorder %s186, %s187
      %p198 = scmp.eq.s32.totalorder %s26, 0
      %p199 = por %p197, %p198
      %p200 = scmp.ne.s32.totalorder %s186, %s187
      %p201 = scmp.eq.s32.totalorder %s27, 1
      %p202 = por %p200, %p201
      %p204 = scmp.ne.s32.totalorder %s187, %s203
      %p205 = scmp.eq.s32.totalorder %s27, 0
      %p206 = por %p204, %p205
      %p207 = scmp.le.s32.totalorder 1, %s21
      %p208 = scmp.lt.s32.totalorder %s21, 3
      %p209 = pnand %p207, %p208
      %p210 = pneg %p209
      // Predicated region
      $region9: #{tpu_custom_call.1} parent=5 // pred_check
        _
      $region10: #{tpu_custom_call.1} parent=5 // pred_check_branch
        %212 = sbr.rel (%p209) target = $region12
      $region11: #{tpu_custom_call.1} parent=5 // pred_region
        %s213 = ssub.s32 %s21, 1
        // Predicated region
        $region13: #{tpu_custom_call.1} parent=11 // pred_check
          %p214 = pneg %p68
        $region14: #{tpu_custom_call.1} parent=11 // pred_check_branch
          %216 = sbr.rel (%p214) target = $region16
        $region15: #{tpu_custom_call.1} parent=11 // pred_region
          %s218 = ssub.s32 9216, 9216
          %219 = vsyncadd [#allocation8], %s218
          %s220 = sshll.u32 [#allocation7], 4
          %s221 = int_to_ptr.vmem [resolvable:$true] %s220
          %226 = dma.hbm_to_vmem [thread:$0]  %s1, 9216, %s221, [#allocation8], 64, 64, 4
        $region16: #{tpu_custom_call.1} parent=11 // pred_fallthru
          _
        // Predicated region
        $region17: #{tpu_custom_call.1} parent=11 // pred_check
          %p227 = pneg %p89
        $region18: #{tpu_custom_call.1} parent=11 // pred_check_branch
          %229 = sbr.rel (%p227) target = $region20
        $region19: #{tpu_custom_call.1} parent=11 // pred_region
          _
        $region20: #{tpu_custom_call.1} parent=11 // pred_fallthru
          _
        // Predicated region
        $region21: #{tpu_custom_call.1} parent=11 // pred_check
          %p230 = pneg %p110
        $region22: #{tpu_custom_call.1} parent=11 // pred_check_branch
          %232 = sbr.rel (%p230) target = $region24
        $region23: #{tpu_custom_call.1} parent=11 // pred_region
          %s234 = ssub.s32 9216, 9216
          %235 = vsyncadd [#allocation8], %s234
          %s236 = sshll.u32 [#allocation9], 4
          %s237 = int_to_ptr.vmem [resolvable:$true] %s236
          %242 = dma.hbm_to_vmem [thread:$0]  %s3, 9216, %s237, [#allocation8], 64, 64, 4
        $region24: #{tpu_custom_call.1} parent=11 // pred_fallthru
          _
        // Predicated region
        $region25: #{tpu_custom_call.1} parent=11 // pred_check
          %p243 = pneg %p131
        $region26: #{tpu_custom_call.1} parent=11 // pred_check_branch
          %245 = sbr.rel (%p243) target = $region28
        $region27: #{tpu_custom_call.1} parent=11 // pred_region
          _
        $region28: #{tpu_custom_call.1} parent=11 // pred_fallthru
          _
        // Predicated region
        $region29: #{tpu_custom_call.1} parent=11 // pred_check
          %p246 = pneg %p152
        $region30: #{tpu_custom_call.1} parent=11 // pred_check_branch
          %248 = sbr.rel (%p246) target = $region32
        $region31: #{tpu_custom_call.1} parent=11 // pred_region
          %s250 = ssub.s32 1024, 1024
          %251 = vsyncadd [#allocation11], %s250
          %s252 = sshll.u32 [#allocation10], 4
          %s253 = int_to_ptr.vmem [resolvable:$true] %s252
          %258 = dma.hbm_to_vmem [thread:$0]  %s5, 1024, %s253, [#allocation11], 64, 64, 4
        $region32: #{tpu_custom_call.1} parent=11 // pred_fallthru
          _
        // Predicated region
        $region33: #{tpu_custom_call.1} parent=11 // pred_check
          %p259 = pneg %p173
        $region34: #{tpu_custom_call.1} parent=11 // pred_check_branch
          %261 = sbr.rel (%p259) target = $region36
        $region35: #{tpu_custom_call.1} parent=11 // pred_region
          _
        $region36: #{tpu_custom_call.1} parent=11 // pred_fallthru
          _
      $region12: #{tpu_custom_call.1} parent=5 // pred_fallthru
        _
      %p262 = scmp.lt.s32.totalorder %s21, 2
      // Predicated region
      $region37: #{tpu_custom_call.1} parent=5 // pred_check
        %p263 = pneg %p262
      $region38: #{tpu_custom_call.1} parent=5 // pred_check_branch
        %265 = sbr.rel (%p263) target = $region40
      $region39: #{tpu_custom_call.1} parent=5 // pred_region
        // Predicated region
        $region41: #{tpu_custom_call.1} parent=39 // pred_check
          %p266 = pneg %p41
        $region42: #{tpu_custom_call.1} parent=39 // pred_check_branch
          %268 = sbr.rel (%p266) target = $region44
        $region43: #{tpu_custom_call.1} parent=39 // pred_region
          %s269 = sand.u32 %s31, 1
          %s270 = scalar_lea.sflag [#allocation5], %s269
          %s271 = sand.u32 %s31, 1
          %s272 = smul.addr %s271, 128
          %s273 = scalar_lea.vmem [#allocation4], %s272
          %s275 = ssub.s32 2048, 2048
          %276 = vsyncadd %s270, %s275
          %s277 = smul.addr %s21, 32
          %s278 = smul.addr %s277, 64
          %s279 = scalar_lea.hbm %s0, %s278
          %s280 = sshll.u32 %s273, 4
          %s281 = int_to_ptr.vmem [resolvable:$true] %s280
          %286 = dma.hbm_to_vmem [thread:$0]  %s279, 2048, %s281, %s270, 64, 64, 4
        $region44: #{tpu_custom_call.1} parent=39 // pred_fallthru
          _
      $region40: #{tpu_custom_call.1} parent=5 // pred_fallthru
        _
      %p287 = scmp.le.s32.totalorder 1, %s21
      %p288 = scmp.lt.s32.totalorder %s21, 3
      %p289 = pnand %p287, %p288
      %p290 = pneg %p289
      // Predicated region
      $region45: #{tpu_custom_call.1} parent=5 // pred_check
        _
      $region46: #{tpu_custom_call.1} parent=5 // pred_check_branch
        %292 = sbr.rel (%p289) target = $region48
      $region47: #{tpu_custom_call.1} parent=5 // pred_region
        %s293 = ssub.s32 %s21, 1
        %s294 = sand.u32 %s34, 1
        %s295 = scalar_lea.sflag [#allocation5], %s294
        %s296 = sand.u32 %s34, 1
        %s297 = smul.addr %s296, 128
        %s298 = scalar_lea.vmem [#allocation4], %s297
        // Predicated region
        $region49: #{tpu_custom_call.1} parent=47 // pred_check
          %p299 = pneg %p47
        $region50: #{tpu_custom_call.1} parent=47 // pred_check_branch
          %301 = sbr.rel (%p299) target = $region52
        $region51: #{tpu_custom_call.1} parent=47 // pred_region
          %302 = dma.done %s295, 2048
        $region52: #{tpu_custom_call.1} parent=47 // pred_fallthru
          _
        // Predicated region
        $region53: #{tpu_custom_call.1} parent=47 // pred_check
          %p303 = pneg %p68
        $region54: #{tpu_custom_call.1} parent=47 // pred_check_branch
          %305 = sbr.rel (%p303) target = $region56
        $region55: #{tpu_custom_call.1} parent=47 // pred_region
          %306 = dma.done [#allocation8], 9216
        $region56: #{tpu_custom_call.1} parent=47 // pred_fallthru
          _
        // Predicated region
        $region57: #{tpu_custom_call.1} parent=47 // pred_check
          %p307 = pneg %p110
        $region58: #{tpu_custom_call.1} parent=47 // pred_check_branch
          %309 = sbr.rel (%p307) target = $region60
        $region59: #{tpu_custom_call.1} parent=47 // pred_region
          %310 = dma.done [#allocation8], 9216
        $region60: #{tpu_custom_call.1} parent=47 // pred_fallthru
          _
        // Predicated region
        $region61: #{tpu_custom_call.1} parent=47 // pred_check
          %p311 = pneg %p152
        $region62: #{tpu_custom_call.1} parent=47 // pred_check_branch
          %313 = sbr.rel (%p311) target = $region64
        $region63: #{tpu_custom_call.1} parent=47 // pred_region
          %314 = dma.done [#allocation11], 1024
        $region64: #{tpu_custom_call.1} parent=47 // pred_fallthru
          _
        %s315 = sand.u32 %s34, 1
        %s316 = scalar_lea.sflag [#allocation5], %s315
        %s317 = sand.u32 %s34, 1
        %s318 = smul.addr %s317, 128
        %s319 = scalar_lea.vmem [#allocation4], %s318
        %p320 = pneg %p47
        %p321 = pneg %p44
        %p322 = pneg %p68
        %p323 = pneg %p65
        %p324 = pneg %p89
        %p325 = pneg %p86
        %p326 = pneg %p110
        %p327 = pneg %p107
        %p328 = pneg %p131
        %p329 = pneg %p128
        %p330 = pneg %p152
        %p331 = pneg %p149
        %p332 = pneg %p173
        %p333 = pneg %p170
        %p334 = pneg %p199
        %p335 = pneg %p196
        %s336 = sand.u32 %s186, 1
        %s337 = scalar_lea.sflag [#allocation6], %s336
        %s338 = sand.u32 %s186, 1
        %s339 = smul.addr %s338, 256
        %s340 = scalar_lea.vmem [#allocation12], %s339
        %342 = vst [vmem:[#allocation2] sm:$0xf] 0
        %343 = vst [vmem:[#allocation2 + $0x4] sm:$0xf] 0
        %344 = vst [vmem:[#allocation2 + $0x8] sm:$0x1] 0
        %s345 = scalar_lea.vmem [#allocation2], 204
        %346 = vst [vmem:[%s345] sm:$0xf] 0
        %347 = vst [vmem:[%s345 + $0x4] sm:$0xf] 0
        %348 = vst [vmem:[%s345 + $0x8] sm:$0x1] 0
        %s349 = scalar_lea.vmem [#allocation2], 12
        %vm350 = vcmask 1040384
        %vm351 = vsmask.f32 256
        %vm352 = vmand %vm350, %vm351
        %v353 = vld [vmem:[%s349] sm:$0x1]
        %v354 = vsel %vm352, 0, %v353
        %355 = vst [vmem:[%s349] sm:$0x1] %v354
        %v356 = vld [vmem:[%s349 + $0xc] sm:$0x1]
        %v357 = vsel %vm352, 0, %v356
        %358 = vst [vmem:[%s349 + $0xc] sm:$0x1] %v357
        %v359 = vld [vmem:[%s349 + $0x18] sm:$0x1]
        %v360 = vsel %vm352, 0, %v359
        %361 = vst [vmem:[%s349 + $0x18] sm:$0x1] %v360
        %v362 = vld [vmem:[%s349 + $0x24] sm:$0x1]
        %v363 = vsel %vm352, 0, %v362
        %364 = vst [vmem:[%s349 + $0x24] sm:$0x1] %v363
        %v365 = vld [vmem:[%s349 + $0x30] sm:$0x1]
        %v366 = vsel %vm352, 0, %v365
        %367 = vst [vmem:[%s349 + $0x30] sm:$0x1] %v366
        %v368 = vld [vmem:[%s349 + $0x3c] sm:$0x1]
        %v369 = vsel %vm352, 0, %v368
        %370 = vst [vmem:[%s349 + $0x3c] sm:$0x1] %v369
        %v371 = vld [vmem:[%s349 + $0x48] sm:$0x1]
        %v372 = vsel %vm352, 0, %v371
        %373 = vst [vmem:[%s349 + $0x48] sm:$0x1] %v372
        %v374 = vld [vmem:[%s349 + $0x54] sm:$0x1]
        %v375 = vsel %vm352, 0, %v374
        %376 = vst [vmem:[%s349 + $0x54] sm:$0x1] %v375
        %v377 = vld [vmem:[%s349 + $0x60] sm:$0x1]
        %v378 = vsel %vm352, 0, %v377
        %379 = vst [vmem:[%s349 + $0x60] sm:$0x1] %v378
        %v380 = vld [vmem:[%s349 + $0x6c] sm:$0x1]
        %v381 = vsel %vm352, 0, %v380
        %382 = vst [vmem:[%s349 + $0x6c] sm:$0x1] %v381
        %v383 = vld [vmem:[%s349 + $0x78] sm:$0x1]
        %v384 = vsel %vm352, 0, %v383
        %385 = vst [vmem:[%s349 + $0x78] sm:$0x1] %v384
        %v386 = vld [vmem:[%s349 + $0x84] sm:$0x1]
        %v387 = vsel %vm352, 0, %v386
        %388 = vst [vmem:[%s349 + $0x84] sm:$0x1] %v387
        %v389 = vld [vmem:[%s349 + $0x90] sm:$0x1]
        %v390 = vsel %vm352, 0, %v389
        %391 = vst [vmem:[%s349 + $0x90] sm:$0x1] %v390
        %v392 = vld [vmem:[%s349 + $0x9c] sm:$0x1]
        %v393 = vsel %vm352, 0, %v392
        %394 = vst [vmem:[%s349 + $0x9c] sm:$0x1] %v393
        %v395 = vld [vmem:[%s349 + $0xa8] sm:$0x1]
        %v396 = vsel %vm352, 0, %v395
        %397 = vst [vmem:[%s349 + $0xa8] sm:$0x1] %v396
        %v398 = vld [vmem:[%s349 + $0xb4] sm:$0x1]
        %v399 = vsel %vm352, 0, %v398
        %400 = vst [vmem:[%s349 + $0xb4] sm:$0x1] %v399
        %vm401 = vsmask.f32 7938
        %vm402 = vmand %vm350, %vm401
        %v403 = vld [vmem:[%s349 + $0x8] sm:$0x1]
        %v404 = vsel %vm402, 0, %v403
        %405 = vst [vmem:[%s349 + $0x8] sm:$0x1] %v404
        %v406 = vld [vmem:[%s349 + $0x14] sm:$0x1]
        %v407 = vsel %vm402, 0, %v406
        %408 = vst [vmem:[%s349 + $0x14] sm:$0x1] %v407
        %v409 = vld [vmem:[%s349 + $0x20] sm:$0x1]
        %v410 = vsel %vm402, 0, %v409
        %411 = vst [vmem:[%s349 + $0x20] sm:$0x1] %v410
        %v412 = vld [vmem:[%s349 + $0x2c] sm:$0x1]
        %v413 = vsel %vm402, 0, %v412
        %414 = vst [vmem:[%s349 + $0x2c] sm:$0x1] %v413
        %v415 = vld [vmem:[%s349 + $0x38] sm:$0x1]
        %v416 = vsel %vm402, 0, %v415
        %417 = vst [vmem:[%s349 + $0x38] sm:$0x1] %v416
        %v418 = vld [vmem:[%s349 + $0x44] sm:$0x1]
        %v419 = vsel %vm402, 0, %v418
        %420 = vst [vmem:[%s349 + $0x44] sm:$0x1] %v419
        %v421 = vld [vmem:[%s349 + $0x50] sm:$0x1]
        %v422 = vsel %vm402, 0, %v421
        %423 = vst [vmem:[%s349 + $0x50] sm:$0x1] %v422
        %v424 = vld [vmem:[%s349 + $0x5c] sm:$0x1]
        %v425 = vsel %vm402, 0, %v424
        %426 = vst [vmem:[%s349 + $0x5c] sm:$0x1] %v425
        %v427 = vld [vmem:[%s349 + $0x68] sm:$0x1]
        %v428 = vsel %vm402, 0, %v427
        %429 = vst [vmem:[%s349 + $0x68] sm:$0x1] %v428
        %v430 = vld [vmem:[%s349 + $0x74] sm:$0x1]
        %v431 = vsel %vm402, 0, %v430
        %432 = vst [vmem:[%s349 + $0x74] sm:$0x1] %v431
        %v433 = vld [vmem:[%s349 + $0x80] sm:$0x1]
        %v434 = vsel %vm402, 0, %v433
        %435 = vst [vmem:[%s349 + $0x80] sm:$0x1] %v434
        %v436 = vld [vmem:[%s349 + $0x8c] sm:$0x1]
        %v437 = vsel %vm402, 0, %v436
        %438 = vst [vmem:[%s349 + $0x8c] sm:$0x1] %v437
        %v439 = vld [vmem:[%s349 + $0x98] sm:$0x1]
        %v440 = vsel %vm402, 0, %v439
        %441 = vst [vmem:[%s349 + $0x98] sm:$0x1] %v440
        %v442 = vld [vmem:[%s349 + $0xa4] sm:$0x1]
        %v443 = vsel %vm402, 0, %v442
        %444 = vst [vmem:[%s349 + $0xa4] sm:$0x1] %v443
        %v445 = vld [vmem:[%s349 + $0xb0] sm:$0x1]
        %v446 = vsel %vm402, 0, %v445
        %447 = vst [vmem:[%s349 + $0xb0] sm:$0x1] %v446
        %v448 = vld [vmem:[%s349 + $0xbc] sm:$0x1]
        %v449 = vsel %vm402, 0, %v448
        %450 = vst [vmem:[%s349 + $0xbc] sm:$0x1] %v449
        %451 = vst [vmem:[#allocation3] sm:$0xf] 0
        %452 = vst [vmem:[#allocation3 + $0x4] sm:$0xf] 0
        %453 = vst [vmem:[#allocation3 + $0x8] sm:$0x1] 0
        %s454 = scalar_lea.vmem [#allocation3], 204
        %455 = vst [vmem:[%s454] sm:$0xf] 0
        %456 = vst [vmem:[%s454 + $0x4] sm:$0xf] 0
        %457 = vst [vmem:[%s454 + $0x8] sm:$0x1] 0
        %s458 = scalar_lea.vmem [#allocation3], 12
        %v459 = vld [vmem:[%s458] sm:$0x1]
        %v460 = vsel %vm352, 0, %v459
        %461 = vst [vmem:[%s458] sm:$0x1] %v460
        %v462 = vld [vmem:[%s458 + $0xc] sm:$0x1]
        %v463 = vsel %vm352, 0, %v462
        %464 = vst [vmem:[%s458 + $0xc] sm:$0x1] %v463
        %v465 = vld [vmem:[%s458 + $0x18] sm:$0x1]
        %v466 = vsel %vm352, 0, %v465
        %467 = vst [vmem:[%s458 + $0x18] sm:$0x1] %v466
        %v468 = vld [vmem:[%s458 + $0x24] sm:$0x1]
        %v469 = vsel %vm352, 0, %v468
        %470 = vst [vmem:[%s458 + $0x24] sm:$0x1] %v469
        %v471 = vld [vmem:[%s458 + $0x30] sm:$0x1]
        %v472 = vsel %vm352, 0, %v471
        %473 = vst [vmem:[%s458 + $0x30] sm:$0x1] %v472
        %v474 = vld [vmem:[%s458 + $0x3c] sm:$0x1]
        %v475 = vsel %vm352, 0, %v474
        %476 = vst [vmem:[%s458 + $0x3c] sm:$0x1] %v475
        %v477 = vld [vmem:[%s458 + $0x48] sm:$0x1]
        %v478 = vsel %vm352, 0, %v477
        %479 = vst [vmem:[%s458 + $0x48] sm:$0x1] %v478
        %v480 = vld [vmem:[%s458 + $0x54] sm:$0x1]
        %v481 = vsel %vm352, 0, %v480
        %482 = vst [vmem:[%s458 + $0x54] sm:$0x1] %v481
        %v483 = vld [vmem:[%s458 + $0x60] sm:$0x1]
        %v484 = vsel %vm352, 0, %v483
        %485 = vst [vmem:[%s458 + $0x60] sm:$0x1] %v484
        %v486 = vld [vmem:[%s458 + $0x6c] sm:$0x1]
        %v487 = vsel %vm352, 0, %v486
        %488 = vst [vmem:[%s458 + $0x6c] sm:$0x1] %v487
        %v489 = vld [vmem:[%s458 + $0x78] sm:$0x1]
        %v490 = vsel %vm352, 0, %v489
        %491 = vst [vmem:[%s458 + $0x78] sm:$0x1] %v490
        %v492 = vld [vmem:[%s458 + $0x84] sm:$0x1]
        %v493 = vsel %vm352, 0, %v492
        %494 = vst [vmem:[%s458 + $0x84] sm:$0x1] %v493
        %v495 = vld [vmem:[%s458 + $0x90] sm:$0x1]
        %v496 = vsel %vm352, 0, %v495
        %497 = vst [vmem:[%s458 + $0x90] sm:$0x1] %v496
        %v498 = vld [vmem:[%s458 + $0x9c] sm:$0x1]
        %v499 = vsel %vm352, 0, %v498
        %500 = vst [vmem:[%s458 + $0x9c] sm:$0x1] %v499
        %v501 = vld [vmem:[%s458 + $0xa8] sm:$0x1]
        %v502 = vsel %vm352, 0, %v501
        %503 = vst [vmem:[%s458 + $0xa8] sm:$0x1] %v502
        %v504 = vld [vmem:[%s458 + $0xb4] sm:$0x1]
        %v505 = vsel %vm352, 0, %v504
        %506 = vst [vmem:[%s458 + $0xb4] sm:$0x1] %v505
        %v507 = vld [vmem:[%s458 + $0x8] sm:$0x1]
        %v508 = vsel %vm402, 0, %v507
        %509 = vst [vmem:[%s458 + $0x8] sm:$0x1] %v508
        %v510 = vld [vmem:[%s458 + $0x14] sm:$0x1]
        %v511 = vsel %vm402, 0, %v510
        %512 = vst [vmem:[%s458 + $0x14] sm:$0x1] %v511
        %v513 = vld [vmem:[%s458 + $0x20] sm:$0x1]
        %v514 = vsel %vm402, 0, %v513
        %515 = vst [vmem:[%s458 + $0x20] sm:$0x1] %v514
        %v516 = vld [vmem:[%s458 + $0x2c] sm:$0x1]
        %v517 = vsel %vm402, 0, %v516
        %518 = vst [vmem:[%s458 + $0x2c] sm:$0x1] %v517
        %v519 = vld [vmem:[%s458 + $0x38] sm:$0x1]
        %v520 = vsel %vm402, 0, %v519
        %521 = vst [vmem:[%s458 + $0x38] sm:$0x1] %v520
        %v522 = vld [vmem:[%s458 + $0x44] sm:$0x1]
        %v523 = vsel %vm402, 0, %v522
        %524 = vst [vmem:[%s458 + $0x44] sm:$0x1] %v523
        %v525 = vld [vmem:[%s458 + $0x50] sm:$0x1]
        %v526 = vsel %vm402, 0, %v525
        %527 = vst [vmem:[%s458 + $0x50] sm:$0x1] %v526
        %v528 = vld [vmem:[%s458 + $0x5c] sm:$0x1]
        %v529 = vsel %vm402, 0, %v528
        %530 = vst [vmem:[%s458 + $0x5c] sm:$0x1] %v529
        %v531 = vld [vmem:[%s458 + $0x68] sm:$0x1]
        %v532 = vsel %vm402, 0, %v531
        %533 = vst [vmem:[%s458 + $0x68] sm:$0x1] %v532
        %v534 = vld [vmem:[%s458 + $0x74] sm:$0x1]
        %v535 = vsel %vm402, 0, %v534
        %536 = vst [vmem:[%s458 + $0x74] sm:$0x1] %v535
        %v537 = vld [vmem:[%s458 + $0x80] sm:$0x1]
        %v538 = vsel %vm402, 0, %v537
        %539 = vst [vmem:[%s458 + $0x80] sm:$0x1] %v538
        %v540 = vld [vmem:[%s458 + $0x8c] sm:$0x1]
        %v541 = vsel %vm402, 0, %v540
        %542 = vst [vmem:[%s458 + $0x8c] sm:$0x1] %v541
        %v543 = vld [vmem:[%s458 + $0x98] sm:$0x1]
        %v544 = vsel %vm402, 0, %v543
        %545 = vst [vmem:[%s458 + $0x98] sm:$0x1] %v544
        %v546 = vld [vmem:[%s458 + $0xa4] sm:$0x1]
        %v547 = vsel %vm402, 0, %v546
        %548 = vst [vmem:[%s458 + $0xa4] sm:$0x1] %v547
        %v549 = vld [vmem:[%s458 + $0xb0] sm:$0x1]
        %v550 = vsel %vm402, 0, %v549
        %551 = vst [vmem:[%s458 + $0xb0] sm:$0x1] %v550
        %v552 = vld [vmem:[%s458 + $0xbc] sm:$0x1]
        %v553 = vsel %vm402, 0, %v552
        %554 = vst [vmem:[%s458 + $0xbc] sm:$0x1] %v553
        %v555 = vld [vmem:[%s298] sm:$0xf]
        %v556 = vld [vmem:[%s298 + $0x4] sm:$0xf]
        %v557 = vld [vmem:[%s298 + $0x8] sm:$0xf]
        %v558 = vld [vmem:[%s298 + $0xc] sm:$0xf]
        %v559 = vld [vmem:[%s298 + $0x10] sm:$0xf]
        %v560 = vld [vmem:[%s298 + $0x14] sm:$0xf]
        %v561 = vld [vmem:[%s298 + $0x18] sm:$0xf]
        %v562 = vld [vmem:[%s298 + $0x1c] sm:$0xf]
        %v563 = vld [vmem:[%s298 + $0x20] sm:$0xf]
        %v564 = vld [vmem:[%s298 + $0x24] sm:$0xf]
        %v565 = vld [vmem:[%s298 + $0x28] sm:$0xf]
        %v566 = vld [vmem:[%s298 + $0x2c] sm:$0xf]
        %v567 = vld [vmem:[%s298 + $0x30] sm:$0xf]
        %v568 = vld [vmem:[%s298 + $0x34] sm:$0xf]
        %v569 = vld [vmem:[%s298 + $0x38] sm:$0xf]
        %v570 = vld [vmem:[%s298 + $0x3c] sm:$0xf]
        %v571 = vld [vmem:[%s298 + $0x40] sm:$0xf]
        %v572 = vld [vmem:[%s298 + $0x44] sm:$0xf]
        %v573 = vld [vmem:[%s298 + $0x48] sm:$0xf]
        %v574 = vld [vmem:[%s298 + $0x4c] sm:$0xf]
        %v575 = vld [vmem:[%s298 + $0x50] sm:$0xf]
        %v576 = vld [vmem:[%s298 + $0x54] sm:$0xf]
        %v577 = vld [vmem:[%s298 + $0x58] sm:$0xf]
        %v578 = vld [vmem:[%s298 + $0x5c] sm:$0xf]
        %v579 = vld [vmem:[%s298 + $0x60] sm:$0xf]
        %v580 = vld [vmem:[%s298 + $0x64] sm:$0xf]
        %v581 = vld [vmem:[%s298 + $0x68] sm:$0xf]
        %v582 = vld [vmem:[%s298 + $0x6c] sm:$0xf]
        %v583 = vld [vmem:[%s298 + $0x70] sm:$0xf]
        %v584 = vld [vmem:[%s298 + $0x74] sm:$0xf]
        %v585 = vld [vmem:[%s298 + $0x78] sm:$0xf]
        %v586 = vld [vmem:[%s298 + $0x7c] sm:$0xf]
        %vm587 = vsmask.f32 4368
        %vm588 = vmor %vm351, %vm587
        %v590 = vshrl.u32 %v555, 16
        %v592 = vrot.slane %v590, 7
        %v593 = vshll.u32 %v555, 16
        %v595 = vor.u32 %v592, %v593
        %v596 = vrot.slane %v592, 4
        %v598 = vshrl.u32 %v556, 16
        %v600 = vrot.slane %v598, 7
        %v601 = vshll.u32 %v556, 16
        %v603 = vor.u32 %v600, %v601
        %v604 = vsel %vm588, %v596, %v603
        %v605 = vrot.slane %v600, 4
        %v607 = vshrl.u32 %v557, 16
        %v609 = vrot.slane %v607, 7
        %v610 = vshll.u32 %v557, 16
        %v612 = vor.u32 %v609, %v610
        %v613 = vrot.slane %v609, 4
        %v615 = vshrl.u32 %v558, 16
        %v617 = vrot.slane %v615, 7
        %v618 = vshll.u32 %v558, 16
        %v620 = vor.u32 %v617, %v618
        %v621 = vsel %vm588, %v613, %v620
        %v622 = vrot.slane %v617, 4
        %v624 = vshrl.u32 %v559, 16
        %v626 = vrot.slane %v624, 7
        %v627 = vshll.u32 %v559, 16
        %v629 = vor.u32 %v626, %v627
        %v630 = vrot.slane %v626, 4
        %v632 = vshrl.u32 %v560, 16
        %v634 = vrot.slane %v632, 7
        %v635 = vshll.u32 %v560, 16
        %v637 = vor.u32 %v634, %v635
        %v638 = vsel %vm588, %v630, %v637
        %v639 = vrot.slane %v634, 4
        %v641 = vshrl.u32 %v561, 16
        %v643 = vrot.slane %v641, 7
        %v644 = vshll.u32 %v561, 16
        %v646 = vor.u32 %v643, %v644
        %v647 = vrot.slane %v643, 4
        %v649 = vshrl.u32 %v562, 16
        %v651 = vrot.slane %v649, 7
        %v652 = vshll.u32 %v562, 16
        %v654 = vor.u32 %v651, %v652
        %v655 = vsel %vm588, %v647, %v654
        %v656 = vrot.slane %v651, 4
        %v658 = vshrl.u32 %v563, 16
        %v660 = vrot.slane %v658, 7
        %v661 = vshll.u32 %v563, 16
        %v663 = vor.u32 %v660, %v661
        %v664 = vrot.slane %v660, 4
        %v666 = vshrl.u32 %v564, 16
        %v668 = vrot.slane %v666, 7
        %v669 = vshll.u32 %v564, 16
        %v671 = vor.u32 %v668, %v669
        %v672 = vsel %vm588, %v664, %v671
        %v673 = vrot.slane %v668, 4
        %v675 = vshrl.u32 %v565, 16
        %v677 = vrot.slane %v675, 7
        %v678 = vshll.u32 %v565, 16
        %v680 = vor.u32 %v677, %v678
        %v681 = vrot.slane %v677, 4
        %v683 = vshrl.u32 %v566, 16
        %v685 = vrot.slane %v683, 7
        %v686 = vshll.u32 %v566, 16
        %v688 = vor.u32 %v685, %v686
        %v689 = vsel %vm588, %v681, %v688
        %v690 = vrot.slane %v685, 4
        %v692 = vshrl.u32 %v567, 16
        %v694 = vrot.slane %v692, 7
        %v695 = vshll.u32 %v567, 16
        %v697 = vor.u32 %v694, %v695
        %v698 = vrot.slane %v694, 4
        %v700 = vshrl.u32 %v568, 16
        %v702 = vrot.slane %v700, 7
        %v703 = vshll.u32 %v568, 16
        %v705 = vor.u32 %v702, %v703
        %v706 = vsel %vm588, %v698, %v705
        %v707 = vrot.slane %v702, 4
        %v709 = vshrl.u32 %v569, 16
        %v711 = vrot.slane %v709, 7
        %v712 = vshll.u32 %v569, 16
        %v714 = vor.u32 %v711, %v712
        %v715 = vrot.slane %v711, 4
        %v717 = vshrl.u32 %v570, 16
        %v719 = vrot.slane %v717, 7
        %v720 = vshll.u32 %v570, 16
        %v722 = vor.u32 %v719, %v720
        %v723 = vsel %vm588, %v715, %v722
        %v724 = vrot.slane %v719, 4
        %v726 = vshrl.u32 %v571, 16
        %v728 = vrot.slane %v726, 7
        %v729 = vshll.u32 %v571, 16
        %v731 = vor.u32 %v728, %v729
        %v732 = vrot.slane %v728, 4
        %v734 = vshrl.u32 %v572, 16
        %v736 = vrot.slane %v734, 7
        %v737 = vshll.u32 %v572, 16
        %v739 = vor.u32 %v736, %v737
        %v740 = vsel %vm588, %v732, %v739
        %v741 = vrot.slane %v736, 4
        %v743 = vshrl.u32 %v573, 16
        %v745 = vrot.slane %v743, 7
        %v746 = vshll.u32 %v573, 16
        %v748 = vor.u32 %v745, %v746
        %v749 = vrot.slane %v745, 4
        %v751 = vshrl.u32 %v574, 16
        %v753 = vrot.slane %v751, 7
        %v754 = vshll.u32 %v574, 16
        %v756 = vor.u32 %v753, %v754
        %v757 = vsel %vm588, %v749, %v756
        %v758 = vrot.slane %v753, 4
        %v760 = vshrl.u32 %v575, 16
        %v762 = vrot.slane %v760, 7
        %v763 = vshll.u32 %v575, 16
        %v765 = vor.u32 %v762, %v763
        %v766 = vrot.slane %v762, 4
        %v768 = vshrl.u32 %v576, 16
        %v770 = vrot.slane %v768, 7
        %v771 = vshll.u32 %v576, 16
        %v773 = vor.u32 %v770, %v771
        %v774 = vsel %vm588, %v766, %v773
        %v775 = vrot.slane %v770, 4
        %v777 = vshrl.u32 %v577, 16
        %v779 = vrot.slane %v777, 7
        %v780 = vshll.u32 %v577, 16
        %v782 = vor.u32 %v779, %v780
        %v783 = vrot.slane %v779, 4
        %v785 = vshrl.u32 %v578, 16
        %v787 = vrot.slane %v785, 7
        %v788 = vshll.u32 %v578, 16
        %v790 = vor.u32 %v787, %v788
        %v791 = vsel %vm588, %v783, %v790
        %v792 = vrot.slane %v787, 4
        %v794 = vshrl.u32 %v579, 16
        %v796 = vrot.slane %v794, 7
        %v797 = vshll.u32 %v579, 16
        %v799 = vor.u32 %v796, %v797
        %v800 = vrot.slane %v796, 4
        %v802 = vshrl.u32 %v580, 16
        %v804 = vrot.slane %v802, 7
        %v805 = vshll.u32 %v580, 16
        %v807 = vor.u32 %v804, %v805
        %v808 = vsel %vm588, %v800, %v807
        %v809 = vrot.slane %v804, 4
        %v811 = vshrl.u32 %v581, 16
        %v813 = vrot.slane %v811, 7
        %v814 = vshll.u32 %v581, 16
        %v816 = vor.u32 %v813, %v814
        %v817 = vrot.slane %v813, 4
        %v819 = vshrl.u32 %v582, 16
        %v821 = vrot.slane %v819, 7
        %v822 = vshll.u32 %v582, 16
        %v824 = vor.u32 %v821, %v822
        %v825 = vsel %vm588, %v817, %v824
        %v826 = vrot.slane %v821, 4
        %v828 = vshrl.u32 %v583, 16
        %v830 = vrot.slane %v828, 7
        %v831 = vshll.u32 %v583, 16
        %v833 = vor.u32 %v830, %v831
        %v834 = vrot.slane %v830, 4
        %v836 = vshrl.u32 %v584, 16
        %v838 = vrot.slane %v836, 7
        %v839 = vshll.u32 %v584, 16
        %v841 = vor.u32 %v838, %v839
        %v842 = vsel %vm588, %v834, %v841
        %v843 = vrot.slane %v838, 4
        %v845 = vshrl.u32 %v585, 16
        %v847 = vrot.slane %v845, 7
        %v848 = vshll.u32 %v585, 16
        %v850 = vor.u32 %v847, %v848
        %v851 = vrot.slane %v847, 4
        %v853 = vshrl.u32 %v586, 16
        %v855 = vrot.slane %v853, 7
        %v856 = vshll.u32 %v586, 16
        %v858 = vor.u32 %v855, %v856
        %v859 = vsel %vm588, %v851, %v858
        %v860 = vrot.slane %v855, 4
        %vm909 = vcmask 1043456
        %vm910 = vmand %vm909, %vm401
        %v911 = vld [vmem:[%s349] sm:$0xf]
        %v912 = vsel %vm910, %v595, %v911
        %913 = vst [vmem:[%s349] sm:$0xf] %v912
        %914 = vst [vmem:[%s349 + $0x4] sm:$0xf] %v604
        %v915 = vld [vmem:[%s349 + $0x8] sm:$0x1]
        %v916 = vsel %vm352, %v605, %v915
        %917 = vst [vmem:[%s349 + $0x8] sm:$0x1] %v916
        %v918 = vld [vmem:[%s349 + $0xc] sm:$0xf]
        %v919 = vsel %vm910, %v612, %v918
        %920 = vst [vmem:[%s349 + $0xc] sm:$0xf] %v919
        %921 = vst [vmem:[%s349 + $0x10] sm:$0xf] %v621
        %v922 = vld [vmem:[%s349 + $0x14] sm:$0x1]
        %v923 = vsel %vm352, %v622, %v922
        %924 = vst [vmem:[%s349 + $0x14] sm:$0x1] %v923
        %v925 = vld [vmem:[%s349 + $0x18] sm:$0xf]
        %v926 = vsel %vm910, %v629, %v925
        %927 = vst [vmem:[%s349 + $0x18] sm:$0xf] %v926
        %928 = vst [vmem:[%s349 + $0x1c] sm:$0xf] %v638
        %v929 = vld [vmem:[%s349 + $0x20] sm:$0x1]
        %v930 = vsel %vm352, %v639, %v929
        %931 = vst [vmem:[%s349 + $0x20] sm:$0x1] %v930
        %v932 = vld [vmem:[%s349 + $0x24] sm:$0xf]
        %v933 = vsel %vm910, %v646, %v932
        %934 = vst [vmem:[%s349 + $0x24] sm:$0xf] %v933
        %935 = vst [vmem:[%s349 + $0x28] sm:$0xf] %v655
        %v936 = vld [vmem:[%s349 + $0x2c] sm:$0x1]
        %v937 = vsel %vm352, %v656, %v936
        %938 = vst [vmem:[%s349 + $0x2c] sm:$0x1] %v937
        %v939 = vld [vmem:[%s349 + $0x30] sm:$0xf]
        %v940 = vsel %vm910, %v663, %v939
        %941 = vst [vmem:[%s349 + $0x30] sm:$0xf] %v940
        %942 = vst [vmem:[%s349 + $0x34] sm:$0xf] %v672
        %v943 = vld [vmem:[%s349 + $0x38] sm:$0x1]
        %v944 = vsel %vm352, %v673, %v943
        %945 = vst [vmem:[%s349 + $0x38] sm:$0x1] %v944
        %v946 = vld [vmem:[%s349 + $0x3c] sm:$0xf]
        %v947 = vsel %vm910, %v680, %v946
        %948 = vst [vmem:[%s349 + $0x3c] sm:$0xf] %v947
        %949 = vst [vmem:[%s349 + $0x40] sm:$0xf] %v689
        %v950 = vld [vmem:[%s349 + $0x44] sm:$0x1]
        %v951 = vsel %vm352, %v690, %v950
        %952 = vst [vmem:[%s349 + $0x44] sm:$0x1] %v951
        %v953 = vld [vmem:[%s349 + $0x48] sm:$0xf]
        %v954 = vsel %vm910, %v697, %v953
        %955 = vst [vmem:[%s349 + $0x48] sm:$0xf] %v954
        %956 = vst [vmem:[%s349 + $0x4c] sm:$0xf] %v706
        %v957 = vld [vmem:[%s349 + $0x50] sm:$0x1]
        %v958 = vsel %vm352, %v707, %v957
        %959 = vst [vmem:[%s349 + $0x50] sm:$0x1] %v958
        %v960 = vld [vmem:[%s349 + $0x54] sm:$0xf]
        %v961 = vsel %vm910, %v714, %v960
        %962 = vst [vmem:[%s349 + $0x54] sm:$0xf] %v961
        %963 = vst [vmem:[%s349 + $0x58] sm:$0xf] %v723
        %v964 = vld [vmem:[%s349 + $0x5c] sm:$0x1]
        %v965 = vsel %vm352, %v724, %v964
        %966 = vst [vmem:[%s349 + $0x5c] sm:$0x1] %v965
        %v967 = vld [vmem:[%s349 + $0x60] sm:$0xf]
        %v968 = vsel %vm910, %v731, %v967
        %969 = vst [vmem:[%s349 + $0x60] sm:$0xf] %v968
        %970 = vst [vmem:[%s349 + $0x64] sm:$0xf] %v740
        %v971 = vld [vmem:[%s349 + $0x68] sm:$0x1]
        %v972 = vsel %vm352, %v741, %v971
        %973 = vst [vmem:[%s349 + $0x68] sm:$0x1] %v972
        %v974 = vld [vmem:[%s349 + $0x6c] sm:$0xf]
        %v975 = vsel %vm910, %v748, %v974
        %976 = vst [vmem:[%s349 + $0x6c] sm:$0xf] %v975
        %977 = vst [vmem:[%s349 + $0x70] sm:$0xf] %v757
        %v978 = vld [vmem:[%s349 + $0x74] sm:$0x1]
        %v979 = vsel %vm352, %v758, %v978
        %980 = vst [vmem:[%s349 + $0x74] sm:$0x1] %v979
        %v981 = vld [vmem:[%s349 + $0x78] sm:$0xf]
        %v982 = vsel %vm910, %v765, %v981
        %983 = vst [vmem:[%s349 + $0x78] sm:$0xf] %v982
        %984 = vst [vmem:[%s349 + $0x7c] sm:$0xf] %v774
        %v985 = vld [vmem:[%s349 + $0x80] sm:$0x1]
        %v986 = vsel %vm352, %v775, %v985
        %987 = vst [vmem:[%s349 + $0x80] sm:$0x1] %v986
        %v988 = vld [vmem:[%s349 + $0x84] sm:$0xf]
        %v989 = vsel %vm910, %v782, %v988
        %990 = vst [vmem:[%s349 + $0x84] sm:$0xf] %v989
        %991 = vst [vmem:[%s349 + $0x88] sm:$0xf] %v791
        %v992 = vld [vmem:[%s349 + $0x8c] sm:$0x1]
        %v993 = vsel %vm352, %v792, %v992
        %994 = vst [vmem:[%s349 + $0x8c] sm:$0x1] %v993
        %v995 = vld [vmem:[%s349 + $0x90] sm:$0xf]
        %v996 = vsel %vm910, %v799, %v995
        %997 = vst [vmem:[%s349 + $0x90] sm:$0xf] %v996
        %998 = vst [vmem:[%s349 + $0x94] sm:$0xf] %v808
        %v999 = vld [vmem:[%s349 + $0x98] sm:$0x1]
        %v1000 = vsel %vm352, %v809, %v999
        %1001 = vst [vmem:[%s349 + $0x98] sm:$0x1] %v1000
        %v1002 = vld [vmem:[%s349 + $0x9c] sm:$0xf]
        %v1003 = vsel %vm910, %v816, %v1002
        %1004 = vst [vmem:[%s349 + $0x9c] sm:$0xf] %v1003
        %1005 = vst [vmem:[%s349 + $0xa0] sm:$0xf] %v825
        %v1006 = vld [vmem:[%s349 + $0xa4] sm:$0x1]
        %v1007 = vsel %vm352, %v826, %v1006
        %1008 = vst [vmem:[%s349 + $0xa4] sm:$0x1] %v1007
        %v1009 = vld [vmem:[%s349 + $0xa8] sm:$0xf]
        %v1010 = vsel %vm910, %v833, %v1009
        %1011 = vst [vmem:[%s349 + $0xa8] sm:$0xf] %v1010
        %1012 = vst [vmem:[%s349 + $0xac] sm:$0xf] %v842
        %v1013 = vld [vmem:[%s349 + $0xb0] sm:$0x1]
        %v1014 = vsel %vm352, %v843, %v1013
        %1015 = vst [vmem:[%s349 + $0xb0] sm:$0x1] %v1014
        %v1016 = vld [vmem:[%s349 + $0xb4] sm:$0xf]
        %v1017 = vsel %vm910, %v850, %v1016
        %1018 = vst [vmem:[%s349 + $0xb4] sm:$0xf] %v1017
        %1019 = vst [vmem:[%s349 + $0xb8] sm:$0xf] %v859
        %v1020 = vld [vmem:[%s349 + $0xbc] sm:$0x1]
        %v1021 = vsel %vm352, %v860, %v1020
        %1022 = vst [vmem:[%s349 + $0xbc] sm:$0x1] %v1021
        %v1023 = vld [vmem:[#allocation2] sm:$0xf]
        %v1024 = vld [vmem:[#allocation2 + $0x4] sm:$0xf]
        %v1025 = vld [vmem:[#allocation2 + $0xc] sm:$0xf]
        %v1026 = vld [vmem:[#allocation2 + $0x10] sm:$0xf]
        %v1027 = vld [vmem:[#allocation2 + $0x18] sm:$0xf]
        %v1028 = vld [vmem:[#allocation2 + $0x1c] sm:$0xf]
        %v1029 = vld [vmem:[#allocation2 + $0x24] sm:$0xf]
        %v1030 = vld [vmem:[#allocation2 + $0x28] sm:$0xf]
        %v1031 = vld [vmem:[#allocation2 + $0x30] sm:$0xf]
        %v1032 = vld [vmem:[#allocation2 + $0x34] sm:$0xf]
        %v1033 = vld [vmem:[#allocation2 + $0x3c] sm:$0xf]
        %v1034 = vld [vmem:[#allocation2 + $0x40] sm:$0xf]
        %v1035 = vld [vmem:[#allocation2 + $0x48] sm:$0xf]
        %v1036 = vld [vmem:[#allocation2 + $0x4c] sm:$0xf]
        %v1037 = vld [vmem:[#allocation2 + $0x54] sm:$0xf]
        %v1038 = vld [vmem:[#allocation2 + $0x58] sm:$0xf]
        %v1039 = vld [vmem:[#allocation2 + $0x60] sm:$0xf]
        %v1040 = vld [vmem:[#allocation2 + $0x64] sm:$0xf]
        %v1041 = vld [vmem:[#allocation2 + $0x6c] sm:$0xf]
        %v1042 = vld [vmem:[#allocation2 + $0x70] sm:$0xf]
        %v1043 = vld [vmem:[#allocation2 + $0x78] sm:$0xf]
        %v1044 = vld [vmem:[#allocation2 + $0x7c] sm:$0xf]
        %v1045 = vld [vmem:[#allocation2 + $0x84] sm:$0xf]
        %v1046 = vld [vmem:[#allocation2 + $0x88] sm:$0xf]
        %v1047 = vld [vmem:[#allocation2 + $0x90] sm:$0xf]
        %v1048 = vld [vmem:[#allocation2 + $0x94] sm:$0xf]
        %v1049 = vld [vmem:[#allocation2 + $0x9c] sm:$0xf]
        %v1050 = vld [vmem:[#allocation2 + $0xa0] sm:$0xf]
        %v1051 = vld [vmem:[#allocation2 + $0xa8] sm:$0xf]
        %v1052 = vld [vmem:[#allocation2 + $0xac] sm:$0xf]
        %v1053 = vld [vmem:[#allocation2 + $0xb4] sm:$0xf]
        %v1054 = vld [vmem:[#allocation2 + $0xb8] sm:$0xf]
        %v1055 = vld [vmem:[#allocation7] sm:$0xf]
        %v1056 = vld [vmem:[#allocation7 + $0x4] sm:$0xf]
        %v1057 = vld [vmem:[#allocation7 + $0x8] sm:$0xf]
        %v1058 = vld [vmem:[#allocation7 + $0xc] sm:$0xf]
        %v1059 = vld [vmem:[#allocation7 + $0x10] sm:$0xf]
        %v1060 = vld [vmem:[#allocation7 + $0x14] sm:$0xf]
        %v1061 = vld [vmem:[#allocation7 + $0x18] sm:$0xf]
        %v1062 = vld [vmem:[#allocation7 + $0x1c] sm:$0xf]
        %v1063 = vld [vmem:[#allocation7 + $0x20] sm:$0xf]
        %v1064 = vld [vmem:[#allocation7 + $0x24] sm:$0xf]
        %v1065 = vld [vmem:[#allocation7 + $0x28] sm:$0xf]
        %v1066 = vld [vmem:[#allocation7 + $0x2c] sm:$0xf]
        %v1067 = vld [vmem:[#allocation7 + $0x30] sm:$0xf]
        %v1068 = vld [vmem:[#allocation7 + $0x34] sm:$0xf]
        %v1069 = vld [vmem:[#allocation7 + $0x38] sm:$0xf]
        %v1070 = vld [vmem:[#allocation7 + $0x3c] sm:$0xf]
        %v1071 = vld [vmem:[#allocation2 + $0x8] sm:$0x1]
        %v1072 = vld [vmem:[#allocation2 + $0x14] sm:$0x1]
        %v1073 = vld [vmem:[#allocation2 + $0x20] sm:$0x1]
        %v1074 = vld [vmem:[#allocation2 + $0x2c] sm:$0x1]
        %v1075 = vld [vmem:[#allocation2 + $0x38] sm:$0x1]
        %v1076 = vld [vmem:[#allocation2 + $0x44] sm:$0x1]
        %v1077 = vld [vmem:[#allocation2 + $0x50] sm:$0x1]
        %v1078 = vld [vmem:[#allocation2 + $0x5c] sm:$0x1]
        %v1079 = vld [vmem:[#allocation2 + $0x68] sm:$0x1]
        %v1080 = vld [vmem:[#allocation2 + $0x74] sm:$0x1]
        %v1081 = vld [vmem:[#allocation2 + $0x80] sm:$0x1]
        %v1082 = vld [vmem:[#allocation2 + $0x8c] sm:$0x1]
        %v1083 = vld [vmem:[#allocation2 + $0x98] sm:$0x1]
        %v1084 = vld [vmem:[#allocation2 + $0xa4] sm:$0x1]
        %v1085 = vld [vmem:[#allocation2 + $0xb0] sm:$0x1]
        %v1086 = vld [vmem:[#allocation2 + $0xbc] sm:$0x1]
        %vm1087 = vsmask.f32 3328
        %vm1088 = vsmask.f32 7440
        %vm1089 = vmor %vm1087, %vm1088
        %v1091 = vshrl.u32 %v1023, 16
        %v1093 = vrot.slane %v1091, 4
        %v1094 = vshll.u32 %v1023, 16
        %v1096 = vrot.slane %v1094, 5
        %v1097 = vor.u32 %v1093, %v1096
        %v1098 = vrot.slane %v1097, 4
        %v1100 = vshll.u32 %v1024, 16
        %v1102 = vrot.slane %v1100, 5
        %v1103 = vsel %vm1089, %v1098, %v1102
        %v1104 = vshrl.u32 %v1024, 16
        %v1106 = vrot.slane %v1104, 4
        %v1107 = vor.u32 %v1106, %v1102
        %v1108 = vrot.slane %v1107, 4
        %v1110 = vshll.u32 %v1071, 16
        %v1112 = vrot.slane %v1110, 5
        %v1113 = vsel %vm1089, %v1108, %v1112
        %v1115 = vshrl.u32 %v1025, 16
        %v1117 = vrot.slane %v1115, 4
        %v1118 = vshll.u32 %v1025, 16
        %v1120 = vrot.slane %v1118, 5
        %v1121 = vor.u32 %v1117, %v1120
        %v1122 = vrot.slane %v1121, 4
        %v1124 = vshll.u32 %v1026, 16
        %v1126 = vrot.slane %v1124, 5
        %v1127 = vsel %vm1089, %v1122, %v1126
        %v1128 = vshrl.u32 %v1026, 16
        %v1130 = vrot.slane %v1128, 4
        %v1131 = vor.u32 %v1130, %v1126
        %v1132 = vrot.slane %v1131, 4
        %v1134 = vshll.u32 %v1072, 16
        %v1136 = vrot.slane %v1134, 5
        %v1137 = vsel %vm1089, %v1132, %v1136
        %v1139 = vshrl.u32 %v1027, 16
        %v1141 = vrot.slane %v1139, 4
        %v1142 = vshll.u32 %v1027, 16
        %v1144 = vrot.slane %v1142, 5
        %v1145 = vor.u32 %v1141, %v1144
        %v1146 = vrot.slane %v1145, 4
        %v1148 = vshll.u32 %v1028, 16
        %v1150 = vrot.slane %v1148, 5
        %v1151 = vsel %vm1089, %v1146, %v1150
        %v1152 = vshrl.u32 %v1028, 16
        %v1154 = vrot.slane %v1152, 4
        %v1155 = vor.u32 %v1154, %v1150
        %v1156 = vrot.slane %v1155, 4
        %v1158 = vshll.u32 %v1073, 16
        %v1160 = vrot.slane %v1158, 5
        %v1161 = vsel %vm1089, %v1156, %v1160
        %v1163 = vshrl.u32 %v1029, 16
        %v1165 = vrot.slane %v1163, 4
        %v1166 = vshll.u32 %v1029, 16
        %v1168 = vrot.slane %v1166, 5
        %v1169 = vor.u32 %v1165, %v1168
        %v1170 = vrot.slane %v1169, 4
        %v1172 = vshll.u32 %v1030, 16
        %v1174 = vrot.slane %v1172, 5
        %v1175 = vsel %vm1089, %v1170, %v1174
        %v1176 = vshrl.u32 %v1030, 16
        %v1178 = vrot.slane %v1176, 4
        %v1179 = vor.u32 %v1178, %v1174
        %v1180 = vrot.slane %v1179, 4
        %v1182 = vshll.u32 %v1074, 16
        %v1184 = vrot.slane %v1182, 5
        %v1185 = vsel %vm1089, %v1180, %v1184
        %v1187 = vshrl.u32 %v1031, 16
        %v1189 = vrot.slane %v1187, 4
        %v1190 = vshll.u32 %v1031, 16
        %v1192 = vrot.slane %v1190, 5
        %v1193 = vor.u32 %v1189, %v1192
        %v1194 = vrot.slane %v1193, 4
        %v1196 = vshll.u32 %v1032, 16
        %v1198 = vrot.slane %v1196, 5
        %v1199 = vsel %vm1089, %v1194, %v1198
        %v1200 = vshrl.u32 %v1032, 16
        %v1202 = vrot.slane %v1200, 4
        %v1203 = vor.u32 %v1202, %v1198
        %v1204 = vrot.slane %v1203, 4
        %v1206 = vshll.u32 %v1075, 16
        %v1208 = vrot.slane %v1206, 5
        %v1209 = vsel %vm1089, %v1204, %v1208
        %v1211 = vshrl.u32 %v1033, 16
        %v1213 = vrot.slane %v1211, 4
        %v1214 = vshll.u32 %v1033, 16
        %v1216 = vrot.slane %v1214, 5
        %v1217 = vor.u32 %v1213, %v1216
        %v1218 = vrot.slane %v1217, 4
        %v1220 = vshll.u32 %v1034, 16
        %v1222 = vrot.slane %v1220, 5
        %v1223 = vsel %vm1089, %v1218, %v1222
        %v1224 = vshrl.u32 %v1034, 16
        %v1226 = vrot.slane %v1224, 4
        %v1227 = vor.u32 %v1226, %v1222
        %v1228 = vrot.slane %v1227, 4
        %v1230 = vshll.u32 %v1076, 16
        %v1232 = vrot.slane %v1230, 5
        %v1233 = vsel %vm1089, %v1228, %v1232
        %v1235 = vshrl.u32 %v1035, 16
        %v1237 = vrot.slane %v1235, 4
        %v1238 = vshll.u32 %v1035, 16
        %v1240 = vrot.slane %v1238, 5
        %v1241 = vor.u32 %v1237, %v1240
        %v1242 = vrot.slane %v1241, 4
        %v1244 = vshll.u32 %v1036, 16
        %v1246 = vrot.slane %v1244, 5
        %v1247 = vsel %vm1089, %v1242, %v1246
        %v1248 = vshrl.u32 %v1036, 16
        %v1250 = vrot.slane %v1248, 4
        %v1251 = vor.u32 %v1250, %v1246
        %v1252 = vrot.slane %v1251, 4
        %v1254 = vshll.u32 %v1077, 16
        %v1256 = vrot.slane %v1254, 5
        %v1257 = vsel %vm1089, %v1252, %v1256
        %v1259 = vshrl.u32 %v1037, 16
        %v1261 = vrot.slane %v1259, 4
        %v1262 = vshll.u32 %v1037, 16
        %v1264 = vrot.slane %v1262, 5
        %v1265 = vor.u32 %v1261, %v1264
        %v1266 = vrot.slane %v1265, 4
        %v1268 = vshll.u32 %v1038, 16
        %v1270 = vrot.slane %v1268, 5
        %v1271 = vsel %vm1089, %v1266, %v1270
        %v1272 = vshrl.u32 %v1038, 16
        %v1274 = vrot.slane %v1272, 4
        %v1275 = vor.u32 %v1274, %v1270
        %v1276 = vrot.slane %v1275, 4
        %v1278 = vshll.u32 %v1078, 16
        %v1280 = vrot.slane %v1278, 5
        %v1281 = vsel %vm1089, %v1276, %v1280
        %v1283 = vshrl.u32 %v1039, 16
        %v1285 = vrot.slane %v1283, 4
        %v1286 = vshll.u32 %v1039, 16
        %v1288 = vrot.slane %v1286, 5
        %v1289 = vor.u32 %v1285, %v1288
        %v1290 = vrot.slane %v1289, 4
        %v1292 = vshll.u32 %v1040, 16
        %v1294 = vrot.slane %v1292, 5
        %v1295 = vsel %vm1089, %v1290, %v1294
        %v1296 = vshrl.u32 %v1040, 16
        %v1298 = vrot.slane %v1296, 4
        %v1299 = vor.u32 %v1298, %v1294
        %v1300 = vrot.slane %v1299, 4
        %v1302 = vshll.u32 %v1079, 16
        %v1304 = vrot.slane %v1302, 5
        %v1305 = vsel %vm1089, %v1300, %v1304
        %v1307 = vshrl.u32 %v1041, 16
        %v1309 = vrot.slane %v1307, 4
        %v1310 = vshll.u32 %v1041, 16
        %v1312 = vrot.slane %v1310, 5
        %v1313 = vor.u32 %v1309, %v1312
        %v1314 = vrot.slane %v1313, 4
        %v1316 = vshll.u32 %v1042, 16
        %v1318 = vrot.slane %v1316, 5
        %v1319 = vsel %vm1089, %v1314, %v1318
        %v1320 = vshrl.u32 %v1042, 16
        %v1322 = vrot.slane %v1320, 4
        %v1323 = vor.u32 %v1322, %v1318
        %v1324 = vrot.slane %v1323, 4
        %v1326 = vshll.u32 %v1080, 16
        %v1328 = vrot.slane %v1326, 5
        %v1329 = vsel %vm1089, %v1324, %v1328
        %v1331 = vshrl.u32 %v1043, 16
        %v1333 = vrot.slane %v1331, 4
        %v1334 = vshll.u32 %v1043, 16
        %v1336 = vrot.slane %v1334, 5
        %v1337 = vor.u32 %v1333, %v1336
        %v1338 = vrot.slane %v1337, 4
        %v1340 = vshll.u32 %v1044, 16
        %v1342 = vrot.slane %v1340, 5
        %v1343 = vsel %vm1089, %v1338, %v1342
        %v1344 = vshrl.u32 %v1044, 16
        %v1346 = vrot.slane %v1344, 4
        %v1347 = vor.u32 %v1346, %v1342
        %v1348 = vrot.slane %v1347, 4
        %v1350 = vshll.u32 %v1081, 16
        %v1352 = vrot.slane %v1350, 5
        %v1353 = vsel %vm1089, %v1348, %v1352
        %v1355 = vshrl.u32 %v1045, 16
        %v1357 = vrot.slane %v1355, 4
        %v1358 = vshll.u32 %v1045, 16
        %v1360 = vrot.slane %v1358, 5
        %v1361 = vor.u32 %v1357, %v1360
        %v1362 = vrot.slane %v1361, 4
        %v1364 = vshll.u32 %v1046, 16
        %v1366 = vrot.slane %v1364, 5
        %v1367 = vsel %vm1089, %v1362, %v1366
        %v1368 = vshrl.u32 %v1046, 16
        %v1370 = vrot.slane %v1368, 4
        %v1371 = vor.u32 %v1370, %v1366
        %v1372 = vrot.slane %v1371, 4
        %v1374 = vshll.u32 %v1082, 16
        %v1376 = vrot.slane %v1374, 5
        %v1377 = vsel %vm1089, %v1372, %v1376
        %v1379 = vshrl.u32 %v1047, 16
        %v1381 = vrot.slane %v1379, 4
        %v1382 = vshll.u32 %v1047, 16
        %v1384 = vrot.slane %v1382, 5
        %v1385 = vor.u32 %v1381, %v1384
        %v1386 = vrot.slane %v1385, 4
        %v1388 = vshll.u32 %v1048, 16
        %v1390 = vrot.slane %v1388, 5
        %v1391 = vsel %vm1089, %v1386, %v1390
        %v1392 = vshrl.u32 %v1048, 16
        %v1394 = vrot.slane %v1392, 4
        %v1395 = vor.u32 %v1394, %v1390
        %v1396 = vrot.slane %v1395, 4
        %v1398 = vshll.u32 %v1083, 16
        %v1400 = vrot.slane %v1398, 5
        %v1401 = vsel %vm1089, %v1396, %v1400
        %v1403 = vshrl.u32 %v1049, 16
        %v1405 = vrot.slane %v1403, 4
        %v1406 = vshll.u32 %v1049, 16
        %v1408 = vrot.slane %v1406, 5
        %v1409 = vor.u32 %v1405, %v1408
        %v1410 = vrot.slane %v1409, 4
        %v1412 = vshll.u32 %v1050, 16
        %v1414 = vrot.slane %v1412, 5
        %v1415 = vsel %vm1089, %v1410, %v1414
        %v1416 = vshrl.u32 %v1050, 16
        %v1418 = vrot.slane %v1416, 4
        %v1419 = vor.u32 %v1418, %v1414
        %v1420 = vrot.slane %v1419, 4
        %v1422 = vshll.u32 %v1084, 16
        %v1424 = vrot.slane %v1422, 5
        %v1425 = vsel %vm1089, %v1420, %v1424
        %v1427 = vshrl.u32 %v1051, 16
        %v1429 = vrot.slane %v1427, 4
        %v1430 = vshll.u32 %v1051, 16
        %v1432 = vrot.slane %v1430, 5
        %v1433 = vor.u32 %v1429, %v1432
        %v1434 = vrot.slane %v1433, 4
        %v1436 = vshll.u32 %v1052, 16
        %v1438 = vrot.slane %v1436, 5
        %v1439 = vsel %vm1089, %v1434, %v1438
        %v1440 = vshrl.u32 %v1052, 16
        %v1442 = vrot.slane %v1440, 4
        %v1443 = vor.u32 %v1442, %v1438
        %v1444 = vrot.slane %v1443, 4
        %v1446 = vshll.u32 %v1085, 16
        %v1448 = vrot.slane %v1446, 5
        %v1449 = vsel %vm1089, %v1444, %v1448
        %v1451 = vshrl.u32 %v1053, 16
        %v1453 = vrot.slane %v1451, 4
        %v1454 = vshll.u32 %v1053, 16
        %v1456 = vrot.slane %v1454, 5
        %v1457 = vor.u32 %v1453, %v1456
        %v1458 = vrot.slane %v1457, 4
        %v1460 = vshll.u32 %v1054, 16
        %v1462 = vrot.slane %v1460, 5
        %v1463 = vsel %vm1089, %v1458, %v1462
        %v1464 = vshrl.u32 %v1054, 16
        %v1466 = vrot.slane %v1464, 4
        %v1467 = vor.u32 %v1466, %v1462
        %v1468 = vrot.slane %v1467, 4
        %v1470 = vshll.u32 %v1086, 16
        %v1472 = vrot.slane %v1470, 5
        %v1473 = vsel %vm1089, %v1468, %v1472
        %v1474 = vld [vmem:[#allocation7 + $0x40] sm:$0xf]
        %v1475 = vld [vmem:[#allocation7 + $0x44] sm:$0xf]
        %v1476 = vld [vmem:[#allocation7 + $0x48] sm:$0xf]
        %v1477 = vld [vmem:[#allocation7 + $0x4c] sm:$0xf]
        %v1478 = vld [vmem:[#allocation7 + $0x50] sm:$0xf]
        %v1479 = vld [vmem:[#allocation7 + $0x54] sm:$0xf]
        %v1480 = vld [vmem:[#allocation7 + $0x58] sm:$0xf]
        %v1481 = vld [vmem:[#allocation7 + $0x5c] sm:$0xf]
        %v1482 = vld [vmem:[#allocation7 + $0x60] sm:$0xf]
        %v1483 = vld [vmem:[#allocation7 + $0x64] sm:$0xf]
        %v1484 = vld [vmem:[#allocation7 + $0x68] sm:$0xf]
        %v1485 = vld [vmem:[#allocation7 + $0x6c] sm:$0xf]
        %v1486 = vld [vmem:[#allocation7 + $0x70] sm:$0xf]
        %v1487 = vld [vmem:[#allocation7 + $0x74] sm:$0xf]
        %v1488 = vld [vmem:[#allocation7 + $0x78] sm:$0xf]
        %v1489 = vld [vmem:[#allocation7 + $0x7c] sm:$0xf]
        %v1490 = vunpack.c.l.b16 %v1103
        %v1491 = vunpack.c.l.b16 %v1113
        %v1492 = vunpack.c.l.b16 %v1127
        %v1493 = vunpack.c.l.b16 %v1137
        %v1494 = vunpack.c.l.b16 %v1151
        %v1495 = vunpack.c.l.b16 %v1161
        %v1496 = vunpack.c.l.b16 %v1175
        %v1497 = vunpack.c.l.b16 %v1185
        %v1498 = vunpack.c.l.b16 %v1199
        %v1499 = vunpack.c.l.b16 %v1209
        %v1500 = vunpack.c.l.b16 %v1223
        %v1501 = vunpack.c.l.b16 %v1233
        %v1502 = vunpack.c.l.b16 %v1247
        %v1503 = vunpack.c.l.b16 %v1257
        %v1504 = vunpack.c.l.b16 %v1271
        %v1505 = vunpack.c.l.b16 %v1281
        %v1506 = vunpack.c.l.b16 %v1295
        %v1507 = vunpack.c.l.b16 %v1305
        %v1508 = vunpack.c.l.b16 %v1319
        %v1509 = vunpack.c.l.b16 %v1329
        %v1510 = vunpack.c.l.b16 %v1343
        %v1511 = vunpack.c.l.b16 %v1353
        %v1512 = vunpack.c.l.b16 %v1367
        %v1513 = vunpack.c.l.b16 %v1377
        %v1514 = vunpack.c.l.b16 %v1391
        %v1515 = vunpack.c.l.b16 %v1401
        %v1516 = vunpack.c.l.b16 %v1415
        %v1517 = vunpack.c.l.b16 %v1425
        %v1518 = vunpack.c.l.b16 %v1439
        %v1519 = vunpack.c.l.b16 %v1449
        %v1520 = vunpack.c.l.b16 %v1463
        %v1521 = vunpack.c.l.b16 %v1473
        %v1522 = vpack.c.b16 %v1491, %v1490
        %v1523 = vpack.c.b16 %v1493, %v1492
        %v1524 = vpack.c.b16 %v1495, %v1494
        %v1525 = vpack.c.b16 %v1497, %v1496
        %v1526 = vpack.c.b16 %v1499, %v1498
        %v1527 = vpack.c.b16 %v1501, %v1500
        %v1528 = vpack.c.b16 %v1503, %v1502
        %v1529 = vpack.c.b16 %v1505, %v1504
        %v1530 = vpack.c.b16 %v1507, %v1506
        %v1531 = vpack.c.b16 %v1509, %v1508
        %v1532 = vpack.c.b16 %v1511, %v1510
        %v1533 = vpack.c.b16 %v1513, %v1512
        %v1534 = vpack.c.b16 %v1515, %v1514
        %v1535 = vpack.c.b16 %v1517, %v1516
        %v1536 = vpack.c.b16 %v1519, %v1518
        %v1537 = vpack.c.b16 %v1521, %v1520
        %v1570 = vunpack.c.l.b16 %v1474
        %v1571 = vunpack.c.l.b16 %v1475
        %v1572 = vunpack.c.l.b16 %v1476
        %v1573 = vunpack.c.l.b16 %v1477
        %v1574 = vunpack.c.l.b16 %v1478
        %v1575 = vunpack.c.l.b16 %v1479
        %v1576 = vunpack.c.l.b16 %v1480
        %v1577 = vunpack.c.l.b16 %v1481
        %v1578 = vunpack.c.l.b16 %v1482
        %v1579 = vunpack.c.l.b16 %v1483
        %v1580 = vunpack.c.l.b16 %v1484
        %v1581 = vunpack.c.l.b16 %v1485
        %v1582 = vunpack.c.l.b16 %v1486
        %v1583 = vunpack.c.l.b16 %v1487
        %v1584 = vunpack.c.l.b16 %v1488
        %v1585 = vunpack.c.l.b16 %v1489
        %v1586 = vpack.c.b16 %v1571, %v1570
        %v1587 = vpack.c.b16 %v1573, %v1572
        %v1588 = vpack.c.b16 %v1575, %v1574
        %v1589 = vpack.c.b16 %v1577, %v1576
        %v1590 = vpack.c.b16 %v1579, %v1578
        %v1591 = vpack.c.b16 %v1581, %v1580
        %v1592 = vpack.c.b16 %v1583, %v1582
        %v1593 = vpack.c.b16 %v1585, %v1584
        %1602 = vmatprep.subr.bf16.mxu0 0
        %1603 = vmatpush1.bf16.msra.mxu0 %v1593
        %1604 = vmatprep.subr.bf16.mxu0 0
        %1605 = vmatpush1.bf16.msra.mxu0 %v1592
        %1606 = vmatprep.subr.bf16.mxu0 0
        %1607 = vmatpush1.bf16.msra.mxu0 %v1591
        %1608 = vmatprep.subr.bf16.mxu0 0
        %1609 = vmatpush1.bf16.msra.mxu0 %v1590
        %1610 = vmatprep.subr.bf16.mxu0 0
        %1611 = vmatpush1.bf16.msra.mxu0 %v1589
        %1612 = vmatprep.subr.bf16.mxu0 0
        %1613 = vmatpush1.bf16.msra.mxu0 %v1588
        %1614 = vmatprep.subr.bf16.mxu0 0
        %1615 = vmatpush1.bf16.msra.mxu0 %v1587
        %1616 = vmatprep.subr.bf16.mxu0 0
        %1617 = vmatpush1.bf16.msra.mxu0 %v1586
        %1618 = vmatprep.subr.bf16.mxu0 0
        %1619 = vmatpush2.bf16.msra.mxu0 0
        %1620 = vmatprep.subr.bf16.mxu0 0
        %1621 = vmatpush2.bf16.msra.mxu0 0
        %1622 = vmatprep.subr.bf16.mxu0 0
        %1623 = vmatpush2.bf16.msra.mxu0 0
        %1624 = vmatprep.subr.bf16.mxu0 0
        %1625 = vmatpush2.bf16.msra.mxu0 0
        %1626 = vmatprep.subr.bf16.mxu0 0
        %1627 = vmatpush2.bf16.msra.mxu0 0
        %1628 = vmatprep.subr.bf16.mxu0 0
        %1629 = vmatpush2.bf16.msra.mxu0 0
        %1630 = vmatprep.subr.bf16.mxu0 0
        %1631 = vmatpush2.bf16.msra.mxu0 0
        %1632 = vmatprep.subr.bf16.mxu0 0
        %1633 = vmatpush2.bf16.msra.mxu0 0
        %1634 = vmatprep.mubr.bf16.mxu0 0
        %1635 = vmatmul.mubr.bf16.gmra.mxu0 %v1522
        %v1636 = vpop.f32.mrf.mxu0
        %v1637 = vadd.f32 0.0, %v1636
        %v1638 = vpop.f32.mrf.mxu0
        %v1639 = vpop.f32.mrf.mxu0
        %v1640 = vadd.f32 0.0, %v1639
        %v1641 = vpop.f32.mrf.mxu0
        %1642 = vmatprep.mubr.bf16.mxu0 0
        %1643 = vmatmul.mubr.bf16.gmra.mxu0 %v1523
        %v1644 = vpop.f32.mrf.mxu0
        %v1645 = vadd.f32 0.0, %v1644
        %v1646 = vpop.f32.mrf.mxu0
        %v1647 = vpop.f32.mrf.mxu0
        %v1648 = vadd.f32 0.0, %v1647
        %v1649 = vpop.f32.mrf.mxu0
        %1650 = vmatprep.mubr.bf16.mxu0 0
        %1651 = vmatmul.mubr.bf16.gmra.mxu0 %v1524
        %v1652 = vpop.f32.mrf.mxu0
        %v1653 = vadd.f32 0.0, %v1652
        %v1654 = vpop.f32.mrf.mxu0
        %v1655 = vpop.f32.mrf.mxu0
        %v1656 = vadd.f32 0.0, %v1655
        %v1657 = vpop.f32.mrf.mxu0
        %1658 = vmatprep.mubr.bf16.mxu0 0
        %1659 = vmatmul.mubr.bf16.gmra.mxu0 %v1525
        %v1660 = vpop.f32.mrf.mxu0
        %v1661 = vadd.f32 0.0, %v1660
        %v1662 = vpop.f32.mrf.mxu0
        %v1663 = vpop.f32.mrf.mxu0
        %v1664 = vadd.f32 0.0, %v1663
        %v1665 = vpop.f32.mrf.mxu0
        %1666 = vmatprep.mubr.bf16.mxu0 0
        %1667 = vmatmul.mubr.bf16.gmra.mxu0 %v1526
        %v1668 = vpop.f32.mrf.mxu0
        %v1669 = vadd.f32 0.0, %v1668
        %v1670 = vpop.f32.mrf.mxu0
        %v1671 = vpop.f32.mrf.mxu0
        %v1672 = vadd.f32 0.0, %v1671
        %v1673 = vpop.f32.mrf.mxu0
        %1674 = vmatprep.mubr.bf16.mxu0 0
        %1675 = vmatmul.mubr.bf16.gmra.mxu0 %v1527
        %v1676 = vpop.f32.mrf.mxu0
        %v1677 = vadd.f32 0.0, %v1676
        %v1678 = vpop.f32.mrf.mxu0
        %v1679 = vpop.f32.mrf.mxu0
        %v1680 = vadd.f32 0.0, %v1679
        %v1681 = vpop.f32.mrf.mxu0
        %1682 = vmatprep.mubr.bf16.mxu0 0
        %1683 = vmatmul.mubr.bf16.gmra.mxu0 %v1528
        %v1684 = vpop.f32.mrf.mxu0
        %v1685 = vadd.f32 0.0, %v1684
        %v1686 = vpop.f32.mrf.mxu0
        %v1687 = vpop.f32.mrf.mxu0
        %v1688 = vadd.f32 0.0, %v1687
        %v1689 = vpop.f32.mrf.mxu0
        %1690 = vmatprep.mubr.bf16.mxu0 0
        %1691 = vmatmul.mubr.bf16.gmra.mxu0 %v1529
        %v1692 = vpop.f32.mrf.mxu0
        %v1693 = vadd.f32 0.0, %v1692
        %v1694 = vpop.f32.mrf.mxu0
        %v1695 = vpop.f32.mrf.mxu0
        %v1696 = vadd.f32 0.0, %v1695
        %v1697 = vpop.f32.mrf.mxu0
        %1698 = vmatprep.mubr.bf16.mxu0 0
        %1699 = vmatmul.mubr.bf16.gmra.mxu0 %v1530
        %v1700 = vpop.f32.mrf.mxu0
        %v1701 = vadd.f32 0.0, %v1700
        %v1702 = vpop.f32.mrf.mxu0
        %v1703 = vpop.f32.mrf.mxu0
        %v1704 = vadd.f32 0.0, %v1703
        %v1705 = vpop.f32.mrf.mxu0
        %1706 = vmatprep.mubr.bf16.mxu0 0
        %1707 = vmatmul.mubr.bf16.gmra.mxu0 %v1531
        %v1708 = vpop.f32.mrf.mxu0
        %v1709 = vadd.f32 0.0, %v1708
        %v1710 = vpop.f32.mrf.mxu0
        %v1711 = vpop.f32.mrf.mxu0
        %v1712 = vadd.f32 0.0, %v1711
        %v1713 = vpop.f32.mrf.mxu0
        %1714 = vmatprep.mubr.bf16.mxu0 0
        %1715 = vmatmul.mubr.bf16.gmra.mxu0 %v1532
        %v1716 = vpop.f32.mrf.mxu0
        %v1717 = vadd.f32 0.0, %v1716
        %v1718 = vpop.f32.mrf.mxu0
        %v1719 = vpop.f32.mrf.mxu0
        %v1720 = vadd.f32 0.0, %v1719
        %v1721 = vpop.f32.mrf.mxu0
        %1722 = vmatprep.mubr.bf16.mxu0 0
        %1723 = vmatmul.mubr.bf16.gmra.mxu0 %v1533
        %v1724 = vpop.f32.mrf.mxu0
        %v1725 = vadd.f32 0.0, %v1724
        %v1726 = vpop.f32.mrf.mxu0
        %v1727 = vpop.f32.mrf.mxu0
        %v1728 = vadd.f32 0.0, %v1727
        %v1729 = vpop.f32.mrf.mxu0
        %1730 = vmatprep.mubr.bf16.mxu0 0
        %1731 = vmatmul.mubr.bf16.gmra.mxu0 %v1534
        %v1732 = vpop.f32.mrf.mxu0
        %v1733 = vadd.f32 0.0, %v1732
        %v1734 = vpop.f32.mrf.mxu0
        %v1735 = vpop.f32.mrf.mxu0
        %v1736 = vadd.f32 0.0, %v1735
        %v1737 = vpop.f32.mrf.mxu0
        %1738 = vmatprep.mubr.bf16.mxu0 0
        %1739 = vmatmul.mubr.bf16.gmra.mxu0 %v1535
        %v1740 = vpop.f32.mrf.mxu0
        %v1741 = vadd.f32 0.0, %v1740
        %v1742 = vpop.f32.mrf.mxu0
        %v1743 = vpop.f32.mrf.mxu0
        %v1744 = vadd.f32 0.0, %v1743
        %v1745 = vpop.f32.mrf.mxu0
        %1746 = vmatprep.mubr.bf16.mxu0 0
        %1747 = vmatmul.mubr.bf16.gmra.mxu0 %v1536
        %v1748 = vpop.f32.mrf.mxu0
        %v1749 = vadd.f32 0.0, %v1748
        %v1750 = vpop.f32.mrf.mxu0
        %v1751 = vpop.f32.mrf.mxu0
        %v1752 = vadd.f32 0.0, %v1751
        %v1753 = vpop.f32.mrf.mxu0
        %1754 = vmatprep.mubr.bf16.mxu0 0
        %1755 = vmatmul.mubr.bf16.gmra.mxu0 %v1537
        %v1756 = vpop.f32.mrf.mxu0
        %v1757 = vadd.f32 0.0, %v1756
        %v1758 = vpop.f32.mrf.mxu0
        %v1759 = vpop.f32.mrf.mxu0
        %v1760 = vadd.f32 0.0, %v1759
        %v1761 = vpop.f32.mrf.mxu0
        %1762 = vdwg.mxu0
        %v1795 = vunpack.c.l.b16 %v1023
        %v1796 = vunpack.c.l.b16 %v1024
        %v1797 = vunpack.c.l.b16 %v1025
        %v1798 = vunpack.c.l.b16 %v1026
        %v1799 = vunpack.c.l.b16 %v1027
        %v1800 = vunpack.c.l.b16 %v1028
        %v1801 = vunpack.c.l.b16 %v1029
        %v1802 = vunpack.c.l.b16 %v1030
        %v1803 = vunpack.c.l.b16 %v1031
        %v1804 = vunpack.c.l.b16 %v1032
        %v1805 = vunpack.c.l.b16 %v1033
        %v1806 = vunpack.c.l.b16 %v1034
        %v1807 = vunpack.c.l.b16 %v1035
        %v1808 = vunpack.c.l.b16 %v1036
        %v1809 = vunpack.c.l.b16 %v1037
        %v1810 = vunpack.c.l.b16 %v1038
        %v1811 = vunpack.c.l.b16 %v1039
        %v1812 = vunpack.c.l.b16 %v1040
        %v1813 = vunpack.c.l.b16 %v1041
        %v1814 = vunpack.c.l.b16 %v1042
        %v1815 = vunpack.c.l.b16 %v1043
        %v1816 = vunpack.c.l.b16 %v1044
        %v1817 = vunpack.c.l.b16 %v1045
        %v1818 = vunpack.c.l.b16 %v1046
        %v1819 = vunpack.c.l.b16 %v1047
        %v1820 = vunpack.c.l.b16 %v1048
        %v1821 = vunpack.c.l.b16 %v1049
        %v1822 = vunpack.c.l.b16 %v1050
        %v1823 = vunpack.c.l.b16 %v1051
        %v1824 = vunpack.c.l.b16 %v1052
        %v1825 = vunpack.c.l.b16 %v1053
        %v1826 = vunpack.c.l.b16 %v1054
        %v1827 = vpack.c.b16 %v1796, %v1795
        %v1828 = vpack.c.b16 %v1798, %v1797
        %v1829 = vpack.c.b16 %v1800, %v1799
        %v1830 = vpack.c.b16 %v1802, %v1801
        %v1831 = vpack.c.b16 %v1804, %v1803
        %v1832 = vpack.c.b16 %v1806, %v1805
        %v1833 = vpack.c.b16 %v1808, %v1807
        %v1834 = vpack.c.b16 %v1810, %v1809
        %v1835 = vpack.c.b16 %v1812, %v1811
        %v1836 = vpack.c.b16 %v1814, %v1813
        %v1837 = vpack.c.b16 %v1816, %v1815
        %v1838 = vpack.c.b16 %v1818, %v1817
        %v1839 = vpack.c.b16 %v1820, %v1819
        %v1840 = vpack.c.b16 %v1822, %v1821
        %v1841 = vpack.c.b16 %v1824, %v1823
        %v1842 = vpack.c.b16 %v1826, %v1825
        %v1875 = vunpack.c.l.b16 %v1055
        %v1876 = vunpack.c.l.b16 %v1056
        %v1877 = vunpack.c.l.b16 %v1057
        %v1878 = vunpack.c.l.b16 %v1058
        %v1879 = vunpack.c.l.b16 %v1059
        %v1880 = vunpack.c.l.b16 %v1060
        %v1881 = vunpack.c.l.b16 %v1061
        %v1882 = vunpack.c.l.b16 %v1062
        %v1883 = vunpack.c.l.b16 %v1063
        %v1884 = vunpack.c.l.b16 %v1064
        %v1885 = vunpack.c.l.b16 %v1065
        %v1886 = vunpack.c.l.b16 %v1066
        %v1887 = vunpack.c.l.b16 %v1067
        %v1888 = vunpack.c.l.b16 %v1068
        %v1889 = vunpack.c.l.b16 %v1069
        %v1890 = vunpack.c.l.b16 %v1070
        %v1891 = vpack.c.b16 %v1876, %v1875
        %v1892 = vpack.c.b16 %v1878, %v1877
        %v1893 = vpack.c.b16 %v1880, %v1879
        %v1894 = vpack.c.b16 %v1882, %v1881
        %v1895 = vpack.c.b16 %v1884, %v1883
        %v1896 = vpack.c.b16 %v1886, %v1885
        %v1897 = vpack.c.b16 %v1888, %v1887
        %v1898 = vpack.c.b16 %v1890, %v1889
        %1907 = vmatprep.subr.bf16.mxu0 0
        %1908 = vmatpush1.bf16.msra.mxu0 %v1898
        %1909 = vmatprep.subr.bf16.mxu0 0
        %1910 = vmatpush1.bf16.msra.mxu0 %v1897
        %1911 = vmatprep.subr.bf16.mxu0 0
        %1912 = vmatpush1.bf16.msra.mxu0 %v1896
        %1913 = vmatprep.subr.bf16.mxu0 0
        %1914 = vmatpush1.bf16.msra.mxu0 %v1895
        %1915 = vmatprep.subr.bf16.mxu0 0
        %1916 = vmatpush1.bf16.msra.mxu0 %v1894
        %1917 = vmatprep.subr.bf16.mxu0 0
        %1918 = vmatpush1.bf16.msra.mxu0 %v1893
        %1919 = vmatprep.subr.bf16.mxu0 0
        %1920 = vmatpush1.bf16.msra.mxu0 %v1892
        %1921 = vmatprep.subr.bf16.mxu0 0
        %1922 = vmatpush1.bf16.msra.mxu0 %v1891
        %1923 = vmatprep.subr.bf16.mxu0 0
        %1924 = vmatpush2.bf16.msra.mxu0 0
        %1925 = vmatprep.subr.bf16.mxu0 0
        %1926 = vmatpush2.bf16.msra.mxu0 0
        %1927 = vmatprep.subr.bf16.mxu0 0
        %1928 = vmatpush2.bf16.msra.mxu0 0
        %1929 = vmatprep.subr.bf16.mxu0 0
        %1930 = vmatpush2.bf16.msra.mxu0 0
        %1931 = vmatprep.subr.bf16.mxu0 0
        %1932 = vmatpush2.bf16.msra.mxu0 0
        %1933 = vmatprep.subr.bf16.mxu0 0
        %1934 = vmatpush2.bf16.msra.mxu0 0
        %1935 = vmatprep.subr.bf16.mxu0 0
        %1936 = vmatpush2.bf16.msra.mxu0 0
        %1937 = vmatprep.subr.bf16.mxu0 0
        %1938 = vmatpush2.bf16.msra.mxu0 0
        %1939 = vmatprep.mubr.bf16.mxu0 0
        %1940 = vmatmul.mubr.bf16.gmra.mxu0 %v1827
        %v1941 = vpop.f32.mrf.mxu0
        %v1942 = vadd.f32 %v1637, %v1941
        %v1943 = vpop.f32.mrf.mxu0
        %v1944 = vpop.f32.mrf.mxu0
        %v1945 = vadd.f32 %v1640, %v1944
        %v1946 = vpop.f32.mrf.mxu0
        %1947 = vmatprep.mubr.bf16.mxu0 0
        %1948 = vmatmul.mubr.bf16.gmra.mxu0 %v1828
        %v1949 = vpop.f32.mrf.mxu0
        %v1950 = vadd.f32 %v1645, %v1949
        %v1951 = vpop.f32.mrf.mxu0
        %v1952 = vpop.f32.mrf.mxu0
        %v1953 = vadd.f32 %v1648, %v1952
        %v1954 = vpop.f32.mrf.mxu0
        %1955 = vmatprep.mubr.bf16.mxu0 0
        %1956 = vmatmul.mubr.bf16.gmra.mxu0 %v1829
        %v1957 = vpop.f32.mrf.mxu0
        %v1958 = vadd.f32 %v1653, %v1957
        %v1959 = vpop.f32.mrf.mxu0
        %v1960 = vpop.f32.mrf.mxu0
        %v1961 = vadd.f32 %v1656, %v1960
        %v1962 = vpop.f32.mrf.mxu0
        %1963 = vmatprep.mubr.bf16.mxu0 0
        %1964 = vmatmul.mubr.bf16.gmra.mxu0 %v1830
        %v1965 = vpop.f32.mrf.mxu0
        %v1966 = vadd.f32 %v1661, %v1965
        %v1967 = vpop.f32.mrf.mxu0
        %v1968 = vpop.f32.mrf.mxu0
        %v1969 = vadd.f32 %v1664, %v1968
        %v1970 = vpop.f32.mrf.mxu0
        %1971 = vmatprep.mubr.bf16.mxu0 0
        %1972 = vmatmul.mubr.bf16.gmra.mxu0 %v1831
        %v1973 = vpop.f32.mrf.mxu0
        %v1974 = vadd.f32 %v1669, %v1973
        %v1975 = vpop.f32.mrf.mxu0
        %v1976 = vpop.f32.mrf.mxu0
        %v1977 = vadd.f32 %v1672, %v1976
        %v1978 = vpop.f32.mrf.mxu0
        %1979 = vmatprep.mubr.bf16.mxu0 0
        %1980 = vmatmul.mubr.bf16.gmra.mxu0 %v1832
        %v1981 = vpop.f32.mrf.mxu0
        %v1982 = vadd.f32 %v1677, %v1981
        %v1983 = vpop.f32.mrf.mxu0
        %v1984 = vpop.f32.mrf.mxu0
        %v1985 = vadd.f32 %v1680, %v1984
        %v1986 = vpop.f32.mrf.mxu0
        %1987 = vmatprep.mubr.bf16.mxu0 0
        %1988 = vmatmul.mubr.bf16.gmra.mxu0 %v1833
        %v1989 = vpop.f32.mrf.mxu0
        %v1990 = vadd.f32 %v1685, %v1989
        %v1991 = vpop.f32.mrf.mxu0
        %v1992 = vpop.f32.mrf.mxu0
        %v1993 = vadd.f32 %v1688, %v1992
        %v1994 = vpop.f32.mrf.mxu0
        %1995 = vmatprep.mubr.bf16.mxu0 0
        %1996 = vmatmul.mubr.bf16.gmra.mxu0 %v1834
        %v1997 = vpop.f32.mrf.mxu0
        %v1998 = vadd.f32 %v1693, %v1997
        %v1999 = vpop.f32.mrf.mxu0
        %v2000 = vpop.f32.mrf.mxu0
        %v2001 = vadd.f32 %v1696, %v2000
        %v2002 = vpop.f32.mrf.mxu0
        %2003 = vmatprep.mubr.bf16.mxu0 0
        %2004 = vmatmul.mubr.bf16.gmra.mxu0 %v1835
        %v2005 = vpop.f32.mrf.mxu0
        %v2006 = vadd.f32 %v1701, %v2005
        %v2007 = vpop.f32.mrf.mxu0
        %v2008 = vpop.f32.mrf.mxu0
        %v2009 = vadd.f32 %v1704, %v2008
        %v2010 = vpop.f32.mrf.mxu0
        %2011 = vmatprep.mubr.bf16.mxu0 0
        %2012 = vmatmul.mubr.bf16.gmra.mxu0 %v1836
        %v2013 = vpop.f32.mrf.mxu0
        %v2014 = vadd.f32 %v1709, %v2013
        %v2015 = vpop.f32.mrf.mxu0
        %v2016 = vpop.f32.mrf.mxu0
        %v2017 = vadd.f32 %v1712, %v2016
        %v2018 = vpop.f32.mrf.mxu0
        %2019 = vmatprep.mubr.bf16.mxu0 0
        %2020 = vmatmul.mubr.bf16.gmra.mxu0 %v1837
        %v2021 = vpop.f32.mrf.mxu0
        %v2022 = vadd.f32 %v1717, %v2021
        %v2023 = vpop.f32.mrf.mxu0
        %v2024 = vpop.f32.mrf.mxu0
        %v2025 = vadd.f32 %v1720, %v2024
        %v2026 = vpop.f32.mrf.mxu0
        %2027 = vmatprep.mubr.bf16.mxu0 0
        %2028 = vmatmul.mubr.bf16.gmra.mxu0 %v1838
        %v2029 = vpop.f32.mrf.mxu0
        %v2030 = vadd.f32 %v1725, %v2029
        %v2031 = vpop.f32.mrf.mxu0
        %v2032 = vpop.f32.mrf.mxu0
        %v2033 = vadd.f32 %v1728, %v2032
        %v2034 = vpop.f32.mrf.mxu0
        %2035 = vmatprep.mubr.bf16.mxu0 0
        %2036 = vmatmul.mubr.bf16.gmra.mxu0 %v1839
        %v2037 = vpop.f32.mrf.mxu0
        %v2038 = vadd.f32 %v1733, %v2037
        %v2039 = vpop.f32.mrf.mxu0
        %v2040 = vpop.f32.mrf.mxu0
        %v2041 = vadd.f32 %v1736, %v2040
        %v2042 = vpop.f32.mrf.mxu0
        %2043 = vmatprep.mubr.bf16.mxu0 0
        %2044 = vmatmul.mubr.bf16.gmra.mxu0 %v1840
        %v2045 = vpop.f32.mrf.mxu0
        %v2046 = vadd.f32 %v1741, %v2045
        %v2047 = vpop.f32.mrf.mxu0
        %v2048 = vpop.f32.mrf.mxu0
        %v2049 = vadd.f32 %v1744, %v2048
        %v2050 = vpop.f32.mrf.mxu0
        %2051 = vmatprep.mubr.bf16.mxu0 0
        %2052 = vmatmul.mubr.bf16.gmra.mxu0 %v1841
        %v2053 = vpop.f32.mrf.mxu0
        %v2054 = vadd.f32 %v1749, %v2053
        %v2055 = vpop.f32.mrf.mxu0
        %v2056 = vpop.f32.mrf.mxu0
        %v2057 = vadd.f32 %v1752, %v2056
        %v2058 = vpop.f32.mrf.mxu0
        %2059 = vmatprep.mubr.bf16.mxu0 0
        %2060 = vmatmul.mubr.bf16.gmra.mxu0 %v1842
        %v2061 = vpop.f32.mrf.mxu0
        %v2062 = vadd.f32 %v1757, %v2061
        %v2063 = vpop.f32.mrf.mxu0
        %v2064 = vpop.f32.mrf.mxu0
        %v2065 = vadd.f32 %v1760, %v2064
        %v2066 = vpop.f32.mrf.mxu0
        %2067 = vdwg.mxu0
        %v2068 = vld [vmem:[#allocation2] sm:$0xe]
        %v2069 = vld [vmem:[#allocation2 + $0xc] sm:$0xe]
        %v2070 = vld [vmem:[#allocation2 + $0x18] sm:$0xe]
        %v2071 = vld [vmem:[#allocation2 + $0x24] sm:$0xe]
        %v2072 = vld [vmem:[#allocation2 + $0x30] sm:$0xe]
        %v2073 = vld [vmem:[#allocation2 + $0x3c] sm:$0xe]
        %v2074 = vld [vmem:[#allocation2 + $0x48] sm:$0xe]
        %v2075 = vld [vmem:[#allocation2 + $0x54] sm:$0xe]
        %v2076 = vld [vmem:[#allocation2 + $0x60] sm:$0xe]
        %v2077 = vld [vmem:[#allocation2 + $0x6c] sm:$0xe]
        %v2078 = vld [vmem:[#allocation2 + $0x78] sm:$0xe]
        %v2079 = vld [vmem:[#allocation2 + $0x84] sm:$0xe]
        %v2080 = vld [vmem:[#allocation2 + $0x90] sm:$0xe]
        %v2081 = vld [vmem:[#allocation2 + $0x9c] sm:$0xe]
        %v2082 = vld [vmem:[#allocation2 + $0xa8] sm:$0xe]
        %v2083 = vld [vmem:[#allocation2 + $0xb4] sm:$0xe]
        %vm2116 = vcmask 1042432
        %vm2117 = vcmask 1046532
        %vm2118 = vmor %vm2116, %vm2117
        %v2119 = vrot.slane %v2068, 5
        %v2120 = vrot.slane %v2119, 4
        %v2121 = vrot.slane %v1024, 5
        %v2122 = vsel %vm2118, %v2120, %v2121
        %v2123 = vrot.slane %v2121, 4
        %v2124 = vrot.slane %v1071, 5
        %v2125 = vsel %vm2118, %v2123, %v2124
        %v2126 = vrot.slane %v2069, 5
        %v2127 = vrot.slane %v2126, 4
        %v2128 = vrot.slane %v1026, 5
        %v2129 = vsel %vm2118, %v2127, %v2128
        %v2130 = vrot.slane %v2128, 4
        %v2131 = vrot.slane %v1072, 5
        %v2132 = vsel %vm2118, %v2130, %v2131
        %v2133 = vrot.slane %v2070, 5
        %v2134 = vrot.slane %v2133, 4
        %v2135 = vrot.slane %v1028, 5
        %v2136 = vsel %vm2118, %v2134, %v2135
        %v2137 = vrot.slane %v2135, 4
        %v2138 = vrot.slane %v1073, 5
        %v2139 = vsel %vm2118, %v2137, %v2138
        %v2140 = vrot.slane %v2071, 5
        %v2141 = vrot.slane %v2140, 4
        %v2142 = vrot.slane %v1030, 5
        %v2143 = vsel %vm2118, %v2141, %v2142
        %v2144 = vrot.slane %v2142, 4
        %v2145 = vrot.slane %v1074, 5
        %v2146 = vsel %vm2118, %v2144, %v2145
        %v2147 = vrot.slane %v2072, 5
        %v2148 = vrot.slane %v2147, 4
        %v2149 = vrot.slane %v1032, 5
        %v2150 = vsel %vm2118, %v2148, %v2149
        %v2151 = vrot.slane %v2149, 4
        %v2152 = vrot.slane %v1075, 5
        %v2153 = vsel %vm2118, %v2151, %v2152
        %v2154 = vrot.slane %v2073, 5
        %v2155 = vrot.slane %v2154, 4
        %v2156 = vrot.slane %v1034, 5
        %v2157 = vsel %vm2118, %v2155, %v2156
        %v2158 = vrot.slane %v2156, 4
        %v2159 = vrot.slane %v1076, 5
        %v2160 = vsel %vm2118, %v2158, %v2159
        %v2161 = vrot.slane %v2074, 5
        %v2162 = vrot.slane %v2161, 4
        %v2163 = vrot.slane %v1036, 5
        %v2164 = vsel %vm2118, %v2162, %v2163
        %v2165 = vrot.slane %v2163, 4
        %v2166 = vrot.slane %v1077, 5
        %v2167 = vsel %vm2118, %v2165, %v2166
        %v2168 = vrot.slane %v2075, 5
        %v2169 = vrot.slane %v2168, 4
        %v2170 = vrot.slane %v1038, 5
        %v2171 = vsel %vm2118, %v2169, %v2170
        %v2172 = vrot.slane %v2170, 4
        %v2173 = vrot.slane %v1078, 5
        %v2174 = vsel %vm2118, %v2172, %v2173
        %v2175 = vrot.slane %v2076, 5
        %v2176 = vrot.slane %v2175, 4
        %v2177 = vrot.slane %v1040, 5
        %v2178 = vsel %vm2118, %v2176, %v2177
        %v2179 = vrot.slane %v2177, 4
        %v2180 = vrot.slane %v1079, 5
        %v2181 = vsel %vm2118, %v2179, %v2180
        %v2182 = vrot.slane %v2077, 5
        %v2183 = vrot.slane %v2182, 4
        %v2184 = vrot.slane %v1042, 5
        %v2185 = vsel %vm2118, %v2183, %v2184
        %v2186 = vrot.slane %v2184, 4
        %v2187 = vrot.slane %v1080, 5
        %v2188 = vsel %vm2118, %v2186, %v2187
        %v2189 = vrot.slane %v2078, 5
        %v2190 = vrot.slane %v2189, 4
        %v2191 = vrot.slane %v1044, 5
        %v2192 = vsel %vm2118, %v2190, %v2191
        %v2193 = vrot.slane %v2191, 4
        %v2194 = vrot.slane %v1081, 5
        %v2195 = vsel %vm2118, %v2193, %v2194
        %v2196 = vrot.slane %v2079, 5
        %v2197 = vrot.slane %v2196, 4
        %v2198 = vrot.slane %v1046, 5
        %v2199 = vsel %vm2118, %v2197, %v2198
        %v2200 = vrot.slane %v2198, 4
        %v2201 = vrot.slane %v1082, 5
        %v2202 = vsel %vm2118, %v2200, %v2201
        %v2203 = vrot.slane %v2080, 5
        %v2204 = vrot.slane %v2203, 4
        %v2205 = vrot.slane %v1048, 5
        %v2206 = vsel %vm2118, %v2204, %v2205
        %v2207 = vrot.slane %v2205, 4
        %v2208 = vrot.slane %v1083, 5
        %v2209 = vsel %vm2118, %v2207, %v2208
        %v2210 = vrot.slane %v2081, 5
        %v2211 = vrot.slane %v2210, 4
        %v2212 = vrot.slane %v1050, 5
        %v2213 = vsel %vm2118, %v2211, %v2212
        %v2214 = vrot.slane %v2212, 4
        %v2215 = vrot.slane %v1084, 5
        %v2216 = vsel %vm2118, %v2214, %v2215
        %v2217 = vrot.slane %v2082, 5
        %v2218 = vrot.slane %v2217, 4
        %v2219 = vrot.slane %v1052, 5
        %v2220 = vsel %vm2118, %v2218, %v2219
        %v2221 = vrot.slane %v2219, 4
        %v2222 = vrot.slane %v1085, 5
        %v2223 = vsel %vm2118, %v2221, %v2222
        %v2224 = vrot.slane %v2083, 5
        %v2225 = vrot.slane %v2224, 4
        %v2226 = vrot.slane %v1054, 5
        %v2227 = vsel %vm2118, %v2225, %v2226
        %v2228 = vrot.slane %v2226, 4
        %v2229 = vrot.slane %v1086, 5
        %v2230 = vsel %vm2118, %v2228, %v2229
        %v2231 = vld [vmem:[#allocation7 + $0x80] sm:$0xf]
        %v2232 = vld [vmem:[#allocation7 + $0x84] sm:$0xf]
        %v2233 = vld [vmem:[#allocation7 + $0x88] sm:$0xf]
        %v2234 = vld [vmem:[#allocation7 + $0x8c] sm:$0xf]
        %v2235 = vld [vmem:[#allocation7 + $0x90] sm:$0xf]
        %v2236 = vld [vmem:[#allocation7 + $0x94] sm:$0xf]
        %v2237 = vld [vmem:[#allocation7 + $0x98] sm:$0xf]
        %v2238 = vld [vmem:[#allocation7 + $0x9c] sm:$0xf]
        %v2239 = vld [vmem:[#allocation7 + $0xa0] sm:$0xf]
        %v2240 = vld [vmem:[#allocation7 + $0xa4] sm:$0xf]
        %v2241 = vld [vmem:[#allocation7 + $0xa8] sm:$0xf]
        %v2242 = vld [vmem:[#allocation7 + $0xac] sm:$0xf]
        %v2243 = vld [vmem:[#allocation7 + $0xb0] sm:$0xf]
        %v2244 = vld [vmem:[#allocation7 + $0xb4] sm:$0xf]
        %v2245 = vld [vmem:[#allocation7 + $0xb8] sm:$0xf]
        %v2246 = vld [vmem:[#allocation7 + $0xbc] sm:$0xf]
        %v2247 = vunpack.c.l.b16 %v2122
        %v2248 = vunpack.c.l.b16 %v2125
        %v2249 = vunpack.c.l.b16 %v2129
        %v2250 = vunpack.c.l.b16 %v2132
        %v2251 = vunpack.c.l.b16 %v2136
        %v2252 = vunpack.c.l.b16 %v2139
        %v2253 = vunpack.c.l.b16 %v2143
        %v2254 = vunpack.c.l.b16 %v2146
        %v2255 = vunpack.c.l.b16 %v2150
        %v2256 = vunpack.c.l.b16 %v2153
        %v2257 = vunpack.c.l.b16 %v2157
        %v2258 = vunpack.c.l.b16 %v2160
        %v2259 = vunpack.c.l.b16 %v2164
        %v2260 = vunpack.c.l.b16 %v2167
        %v2261 = vunpack.c.l.b16 %v2171
        %v2262 = vunpack.c.l.b16 %v2174
        %v2263 = vunpack.c.l.b16 %v2178
        %v2264 = vunpack.c.l.b16 %v2181
        %v2265 = vunpack.c.l.b16 %v2185
        %v2266 = vunpack.c.l.b16 %v2188
        %v2267 = vunpack.c.l.b16 %v2192
        %v2268 = vunpack.c.l.b16 %v2195
        %v2269 = vunpack.c.l.b16 %v2199
        %v2270 = vunpack.c.l.b16 %v2202
        %v2271 = vunpack.c.l.b16 %v2206
        %v2272 = vunpack.c.l.b16 %v2209
        %v2273 = vunpack.c.l.b16 %v2213
        %v2274 = vunpack.c.l.b16 %v2216
        %v2275 = vunpack.c.l.b16 %v2220
        %v2276 = vunpack.c.l.b16 %v2223
        %v2277 = vunpack.c.l.b16 %v2227
        %v2278 = vunpack.c.l.b16 %v2230
        %v2279 = vpack.c.b16 %v2248, %v2247
        %v2280 = vpack.c.b16 %v2250, %v2249
        %v2281 = vpack.c.b16 %v2252, %v2251
        %v2282 = vpack.c.b16 %v2254, %v2253
        %v2283 = vpack.c.b16 %v2256, %v2255
        %v2284 = vpack.c.b16 %v2258, %v2257
        %v2285 = vpack.c.b16 %v2260, %v2259
        %v2286 = vpack.c.b16 %v2262, %v2261
        %v2287 = vpack.c.b16 %v2264, %v2263
        %v2288 = vpack.c.b16 %v2266, %v2265
        %v2289 = vpack.c.b16 %v2268, %v2267
        %v2290 = vpack.c.b16 %v2270, %v2269
        %v2291 = vpack.c.b16 %v2272, %v2271
        %v2292 = vpack.c.b16 %v2274, %v2273
        %v2293 = vpack.c.b16 %v2276, %v2275
        %v2294 = vpack.c.b16 %v2278, %v2277
        %v2327 = vunpack.c.l.b16 %v2231
        %v2328 = vunpack.c.l.b16 %v2232
        %v2329 = vunpack.c.l.b16 %v2233
        %v2330 = vunpack.c.l.b16 %v2234
        %v2331 = vunpack.c.l.b16 %v2235
        %v2332 = vunpack.c.l.b16 %v2236
        %v2333 = vunpack.c.l.b16 %v2237
        %v2334 = vunpack.c.l.b16 %v2238
        %v2335 = vunpack.c.l.b16 %v2239
        %v2336 = vunpack.c.l.b16 %v2240
        %v2337 = vunpack.c.l.b16 %v2241
        %v2338 = vunpack.c.l.b16 %v2242
        %v2339 = vunpack.c.l.b16 %v2243
        %v2340 = vunpack.c.l.b16 %v2244
        %v2341 = vunpack.c.l.b16 %v2245
        %v2342 = vunpack.c.l.b16 %v2246
        %v2343 = vpack.c.b16 %v2328, %v2327
        %v2344 = vpack.c.b16 %v2330, %v2329
        %v2345 = vpack.c.b16 %v2332, %v2331
        %v2346 = vpack.c.b16 %v2334, %v2333
        %v2347 = vpack.c.b16 %v2336, %v2335
        %v2348 = vpack.c.b16 %v2338, %v2337
        %v2349 = vpack.c.b16 %v2340, %v2339
        %v2350 = vpack.c.b16 %v2342, %v2341
        %2359 = vmatprep.subr.bf16.mxu0 0
        %2360 = vmatpush1.bf16.msra.mxu0 %v2350
        %2361 = vmatprep.subr.bf16.mxu0 0
        %2362 = vmatpush1.bf16.msra.mxu0 %v2349
        %2363 = vmatprep.subr.bf16.mxu0 0
        %2364 = vmatpush1.bf16.msra.mxu0 %v2348
        %2365 = vmatprep.subr.bf16.mxu0 0
        %2366 = vmatpush1.bf16.msra.mxu0 %v2347
        %2367 = vmatprep.subr.bf16.mxu0 0
        %2368 = vmatpush1.bf16.msra.mxu0 %v2346
        %2369 = vmatprep.subr.bf16.mxu0 0
        %2370 = vmatpush1.bf16.msra.mxu0 %v2345
        %2371 = vmatprep.subr.bf16.mxu0 0
        %2372 = vmatpush1.bf16.msra.mxu0 %v2344
        %2373 = vmatprep.subr.bf16.mxu0 0
        %2374 = vmatpush1.bf16.msra.mxu0 %v2343
        %2375 = vmatprep.subr.bf16.mxu0 0
        %2376 = vmatpush2.bf16.msra.mxu0 0
        %2377 = vmatprep.subr.bf16.mxu0 0
        %2378 = vmatpush2.bf16.msra.mxu0 0
        %2379 = vmatprep.subr.bf16.mxu0 0
        %2380 = vmatpush2.bf16.msra.mxu0 0
        %2381 = vmatprep.subr.bf16.mxu0 0
        %2382 = vmatpush2.bf16.msra.mxu0 0
        %2383 = vmatprep.subr.bf16.mxu0 0
        %2384 = vmatpush2.bf16.msra.mxu0 0
        %2385 = vmatprep.subr.bf16.mxu0 0
        %2386 = vmatpush2.bf16.msra.mxu0 0
        %2387 = vmatprep.subr.bf16.mxu0 0
        %2388 = vmatpush2.bf16.msra.mxu0 0
        %2389 = vmatprep.subr.bf16.mxu0 0
        %2390 = vmatpush2.bf16.msra.mxu0 0
        %2391 = vmatprep.mubr.bf16.mxu0 0
        %2392 = vmatmul.mubr.bf16.gmra.mxu0 %v2279
        %v2393 = vpop.f32.mrf.mxu0
        %v2394 = vadd.f32 0.0, %v2393
        %v2395 = vpop.f32.mrf.mxu0
        %v2396 = vpop.f32.mrf.mxu0
        %v2397 = vadd.f32 0.0, %v2396
        %v2398 = vpop.f32.mrf.mxu0
        %2399 = vmatprep.mubr.bf16.mxu0 0
        %2400 = vmatmul.mubr.bf16.gmra.mxu0 %v2280
        %v2401 = vpop.f32.mrf.mxu0
        %v2402 = vadd.f32 0.0, %v2401
        %v2403 = vpop.f32.mrf.mxu0
        %v2404 = vpop.f32.mrf.mxu0
        %v2405 = vadd.f32 0.0, %v2404
        %v2406 = vpop.f32.mrf.mxu0
        %2407 = vmatprep.mubr.bf16.mxu0 0
        %2408 = vmatmul.mubr.bf16.gmra.mxu0 %v2281
        %v2409 = vpop.f32.mrf.mxu0
        %v2410 = vadd.f32 0.0, %v2409
        %v2411 = vpop.f32.mrf.mxu0
        %v2412 = vpop.f32.mrf.mxu0
        %v2413 = vadd.f32 0.0, %v2412
        %v2414 = vpop.f32.mrf.mxu0
        %2415 = vmatprep.mubr.bf16.mxu0 0
        %2416 = vmatmul.mubr.bf16.gmra.mxu0 %v2282
        %v2417 = vpop.f32.mrf.mxu0
        %v2418 = vadd.f32 0.0, %v2417
        %v2419 = vpop.f32.mrf.mxu0
        %v2420 = vpop.f32.mrf.mxu0
        %v2421 = vadd.f32 0.0, %v2420
        %v2422 = vpop.f32.mrf.mxu0
        %2423 = vmatprep.mubr.bf16.mxu0 0
        %2424 = vmatmul.mubr.bf16.gmra.mxu0 %v2283
        %v2425 = vpop.f32.mrf.mxu0
        %v2426 = vadd.f32 0.0, %v2425
        %v2427 = vpop.f32.mrf.mxu0
        %v2428 = vpop.f32.mrf.mxu0
        %v2429 = vadd.f32 0.0, %v2428
        %v2430 = vpop.f32.mrf.mxu0
        %2431 = vmatprep.mubr.bf16.mxu0 0
        %2432 = vmatmul.mubr.bf16.gmra.mxu0 %v2284
        %v2433 = vpop.f32.mrf.mxu0
        %v2434 = vadd.f32 0.0, %v2433
        %v2435 = vpop.f32.mrf.mxu0
        %v2436 = vpop.f32.mrf.mxu0
        %v2437 = vadd.f32 0.0, %v2436
        %v2438 = vpop.f32.mrf.mxu0
        %2439 = vmatprep.mubr.bf16.mxu0 0
        %2440 = vmatmul.mubr.bf16.gmra.mxu0 %v2285
        %v2441 = vpop.f32.mrf.mxu0
        %v2442 = vadd.f32 0.0, %v2441
        %v2443 = vpop.f32.mrf.mxu0
        %v2444 = vpop.f32.mrf.mxu0
        %v2445 = vadd.f32 0.0, %v2444
        %v2446 = vpop.f32.mrf.mxu0
        %2447 = vmatprep.mubr.bf16.mxu0 0
        %2448 = vmatmul.mubr.bf16.gmra.mxu0 %v2286
        %v2449 = vpop.f32.mrf.mxu0
        %v2450 = vadd.f32 0.0, %v2449
        %v2451 = vpop.f32.mrf.mxu0
        %v2452 = vpop.f32.mrf.mxu0
        %v2453 = vadd.f32 0.0, %v2452
        %v2454 = vpop.f32.mrf.mxu0
        %2455 = vmatprep.mubr.bf16.mxu0 0
        %2456 = vmatmul.mubr.bf16.gmra.mxu0 %v2287
        %v2457 = vpop.f32.mrf.mxu0
        %v2458 = vadd.f32 0.0, %v2457
        %v2459 = vpop.f32.mrf.mxu0
        %v2460 = vpop.f32.mrf.mxu0
        %v2461 = vadd.f32 0.0, %v2460
        %v2462 = vpop.f32.mrf.mxu0
        %2463 = vmatprep.mubr.bf16.mxu0 0
        %2464 = vmatmul.mubr.bf16.gmra.mxu0 %v2288
        %v2465 = vpop.f32.mrf.mxu0
        %v2466 = vadd.f32 0.0, %v2465
        %v2467 = vpop.f32.mrf.mxu0
        %v2468 = vpop.f32.mrf.mxu0
        %v2469 = vadd.f32 0.0, %v2468
        %v2470 = vpop.f32.mrf.mxu0
        %2471 = vmatprep.mubr.bf16.mxu0 0
        %2472 = vmatmul.mubr.bf16.gmra.mxu0 %v2289
        %v2473 = vpop.f32.mrf.mxu0
        %v2474 = vadd.f32 0.0, %v2473
        %v2475 = vpop.f32.mrf.mxu0
        %v2476 = vpop.f32.mrf.mxu0
        %v2477 = vadd.f32 0.0, %v2476
        %v2478 = vpop.f32.mrf.mxu0
        %2479 = vmatprep.mubr.bf16.mxu0 0
        %2480 = vmatmul.mubr.bf16.gmra.mxu0 %v2290
        %v2481 = vpop.f32.mrf.mxu0
        %v2482 = vadd.f32 0.0, %v2481
        %v2483 = vpop.f32.mrf.mxu0
        %v2484 = vpop.f32.mrf.mxu0
        %v2485 = vadd.f32 0.0, %v2484
        %v2486 = vpop.f32.mrf.mxu0
        %2487 = vmatprep.mubr.bf16.mxu0 0
        %2488 = vmatmul.mubr.bf16.gmra.mxu0 %v2291
        %v2489 = vpop.f32.mrf.mxu0
        %v2490 = vadd.f32 0.0, %v2489
        %v2491 = vpop.f32.mrf.mxu0
        %v2492 = vpop.f32.mrf.mxu0
        %v2493 = vadd.f32 0.0, %v2492
        %v2494 = vpop.f32.mrf.mxu0
        %2495 = vmatprep.mubr.bf16.mxu0 0
        %2496 = vmatmul.mubr.bf16.gmra.mxu0 %v2292
        %v2497 = vpop.f32.mrf.mxu0
        %v2498 = vadd.f32 0.0, %v2497
        %v2499 = vpop.f32.mrf.mxu0
        %v2500 = vpop.f32.mrf.mxu0
        %v2501 = vadd.f32 0.0, %v2500
        %v2502 = vpop.f32.mrf.mxu0
        %2503 = vmatprep.mubr.bf16.mxu0 0
        %2504 = vmatmul.mubr.bf16.gmra.mxu0 %v2293
        %v2505 = vpop.f32.mrf.mxu0
        %v2506 = vadd.f32 0.0, %v2505
        %v2507 = vpop.f32.mrf.mxu0
        %v2508 = vpop.f32.mrf.mxu0
        %v2509 = vadd.f32 0.0, %v2508
        %v2510 = vpop.f32.mrf.mxu0
        %2511 = vmatprep.mubr.bf16.mxu0 0
        %2512 = vmatmul.mubr.bf16.gmra.mxu0 %v2294
        %v2513 = vpop.f32.mrf.mxu0
        %v2514 = vadd.f32 0.0, %v2513
        %v2515 = vpop.f32.mrf.mxu0
        %v2516 = vpop.f32.mrf.mxu0
        %v2517 = vadd.f32 0.0, %v2516
        %v2518 = vpop.f32.mrf.mxu0
        %2519 = vdwg.mxu0
        %v2520 = vadd.f32 %v1942, %v2394
        %v2521 = vadd.f32 %v1945, %v2397
        %v2522 = vadd.f32 %v1950, %v2402
        %v2523 = vadd.f32 %v1953, %v2405
        %v2524 = vadd.f32 %v1958, %v2410
        %v2525 = vadd.f32 %v1961, %v2413
        %v2526 = vadd.f32 %v1966, %v2418
        %v2527 = vadd.f32 %v1969, %v2421
        %v2528 = vadd.f32 %v1974, %v2426
        %v2529 = vadd.f32 %v1977, %v2429
        %v2530 = vadd.f32 %v1982, %v2434
        %v2531 = vadd.f32 %v1985, %v2437
        %v2532 = vadd.f32 %v1990, %v2442
        %v2533 = vadd.f32 %v1993, %v2445
        %v2534 = vadd.f32 %v1998, %v2450
        %v2535 = vadd.f32 %v2001, %v2453
        %v2536 = vadd.f32 %v2006, %v2458
        %v2537 = vadd.f32 %v2009, %v2461
        %v2538 = vadd.f32 %v2014, %v2466
        %v2539 = vadd.f32 %v2017, %v2469
        %v2540 = vadd.f32 %v2022, %v2474
        %v2541 = vadd.f32 %v2025, %v2477
        %v2542 = vadd.f32 %v2030, %v2482
        %v2543 = vadd.f32 %v2033, %v2485
        %v2544 = vadd.f32 %v2038, %v2490
        %v2545 = vadd.f32 %v2041, %v2493
        %v2546 = vadd.f32 %v2046, %v2498
        %v2547 = vadd.f32 %v2049, %v2501
        %v2548 = vadd.f32 %v2054, %v2506
        %v2549 = vadd.f32 %v2057, %v2509
        %v2550 = vadd.f32 %v2062, %v2514
        %v2551 = vadd.f32 %v2065, %v2517
        %v2552 = vld [vmem:[%s349] sm:$0xf]
        %v2553 = vld [vmem:[%s349 + $0x4] sm:$0xf]
        %v2554 = vld [vmem:[%s349 + $0xc] sm:$0xf]
        %v2555 = vld [vmem:[%s349 + $0x10] sm:$0xf]
        %v2556 = vld [vmem:[%s349 + $0x18] sm:$0xf]
        %v2557 = vld [vmem:[%s349 + $0x1c] sm:$0xf]
        %v2558 = vld [vmem:[%s349 + $0x24] sm:$0xf]
        %v2559 = vld [vmem:[%s349 + $0x28] sm:$0xf]
        %v2560 = vld [vmem:[%s349 + $0x30] sm:$0xf]
        %v2561 = vld [vmem:[%s349 + $0x34] sm:$0xf]
        %v2562 = vld [vmem:[%s349 + $0x3c] sm:$0xf]
        %v2563 = vld [vmem:[%s349 + $0x40] sm:$0xf]
        %v2564 = vld [vmem:[%s349 + $0x48] sm:$0xf]
        %v2565 = vld [vmem:[%s349 + $0x4c] sm:$0xf]
        %v2566 = vld [vmem:[%s349 + $0x54] sm:$0xf]
        %v2567 = vld [vmem:[%s349 + $0x58] sm:$0xf]
        %v2568 = vld [vmem:[%s349 + $0x60] sm:$0xf]
        %v2569 = vld [vmem:[%s349 + $0x64] sm:$0xf]
        %v2570 = vld [vmem:[%s349 + $0x6c] sm:$0xf]
        %v2571 = vld [vmem:[%s349 + $0x70] sm:$0xf]
        %v2572 = vld [vmem:[%s349 + $0x78] sm:$0xf]
        %v2573 = vld [vmem:[%s349 + $0x7c] sm:$0xf]
        %v2574 = vld [vmem:[%s349 + $0x84] sm:$0xf]
        %v2575 = vld [vmem:[%s349 + $0x88] sm:$0xf]
        %v2576 = vld [vmem:[%s349 + $0x90] sm:$0xf]
        %v2577 = vld [vmem:[%s349 + $0x94] sm:$0xf]
        %v2578 = vld [vmem:[%s349 + $0x9c] sm:$0xf]
        %v2579 = vld [vmem:[%s349 + $0xa0] sm:$0xf]
        %v2580 = vld [vmem:[%s349 + $0xa8] sm:$0xf]
        %v2581 = vld [vmem:[%s349 + $0xac] sm:$0xf]
        %v2582 = vld [vmem:[%s349 + $0xb4] sm:$0xf]
        %v2583 = vld [vmem:[%s349 + $0xb8] sm:$0xf]
        %v2584 = vld [vmem:[#allocation7 + $0xc0] sm:$0xf]
        %v2585 = vld [vmem:[#allocation7 + $0xc4] sm:$0xf]
        %v2586 = vld [vmem:[#allocation7 + $0xc8] sm:$0xf]
        %v2587 = vld [vmem:[#allocation7 + $0xcc] sm:$0xf]
        %v2588 = vld [vmem:[#allocation7 + $0xd0] sm:$0xf]
        %v2589 = vld [vmem:[#allocation7 + $0xd4] sm:$0xf]
        %v2590 = vld [vmem:[#allocation7 + $0xd8] sm:$0xf]
        %v2591 = vld [vmem:[#allocation7 + $0xdc] sm:$0xf]
        %v2592 = vld [vmem:[#allocation7 + $0xe0] sm:$0xf]
        %v2593 = vld [vmem:[#allocation7 + $0xe4] sm:$0xf]
        %v2594 = vld [vmem:[#allocation7 + $0xe8] sm:$0xf]
        %v2595 = vld [vmem:[#allocation7 + $0xec] sm:$0xf]
        %v2596 = vld [vmem:[#allocation7 + $0xf0] sm:$0xf]
        %v2597 = vld [vmem:[#allocation7 + $0xf4] sm:$0xf]
        %v2598 = vld [vmem:[#allocation7 + $0xf8] sm:$0xf]
        %v2599 = vld [vmem:[#allocation7 + $0xfc] sm:$0xf]
        %v2632 = vunpack.c.l.b16 %v2552
        %v2633 = vunpack.c.l.b16 %v2553
        %v2634 = vunpack.c.l.b16 %v2554
        %v2635 = vunpack.c.l.b16 %v2555
        %v2636 = vunpack.c.l.b16 %v2556
        %v2637 = vunpack.c.l.b16 %v2557
        %v2638 = vunpack.c.l.b16 %v2558
        %v2639 = vunpack.c.l.b16 %v2559
        %v2640 = vunpack.c.l.b16 %v2560
        %v2641 = vunpack.c.l.b16 %v2561
        %v2642 = vunpack.c.l.b16 %v2562
        %v2643 = vunpack.c.l.b16 %v2563
        %v2644 = vunpack.c.l.b16 %v2564
        %v2645 = vunpack.c.l.b16 %v2565
        %v2646 = vunpack.c.l.b16 %v2566
        %v2647 = vunpack.c.l.b16 %v2567
        %v2648 = vunpack.c.l.b16 %v2568
        %v2649 = vunpack.c.l.b16 %v2569
        %v2650 = vunpack.c.l.b16 %v2570
        %v2651 = vunpack.c.l.b16 %v2571
        %v2652 = vunpack.c.l.b16 %v2572
        %v2653 = vunpack.c.l.b16 %v2573
        %v2654 = vunpack.c.l.b16 %v2574
        %v2655 = vunpack.c.l.b16 %v2575
        %v2656 = vunpack.c.l.b16 %v2576
        %v2657 = vunpack.c.l.b16 %v2577
        %v2658 = vunpack.c.l.b16 %v2578
        %v2659 = vunpack.c.l.b16 %v2579
        %v2660 = vunpack.c.l.b16 %v2580
        %v2661 = vunpack.c.l.b16 %v2581
        %v2662 = vunpack.c.l.b16 %v2582
        %v2663 = vunpack.c.l.b16 %v2583
        %v2664 = vpack.c.b16 %v2633, %v2632
        %v2665 = vpack.c.b16 %v2635, %v2634
        %v2666 = vpack.c.b16 %v2637, %v2636
        %v2667 = vpack.c.b16 %v2639, %v2638
        %v2668 = vpack.c.b16 %v2641, %v2640
        %v2669 = vpack.c.b16 %v2643, %v2642
        %v2670 = vpack.c.b16 %v2645, %v2644
        %v2671 = vpack.c.b16 %v2647, %v2646
        %v2672 = vpack.c.b16 %v2649, %v2648
        %v2673 = vpack.c.b16 %v2651, %v2650
        %v2674 = vpack.c.b16 %v2653, %v2652
        %v2675 = vpack.c.b16 %v2655, %v2654
        %v2676 = vpack.c.b16 %v2657, %v2656
        %v2677 = vpack.c.b16 %v2659, %v2658
        %v2678 = vpack.c.b16 %v2661, %v2660
        %v2679 = vpack.c.b16 %v2663, %v2662
        %v2712 = vunpack.c.l.b16 %v2584
        %v2713 = vunpack.c.l.b16 %v2585
        %v2714 = vunpack.c.l.b16 %v2586
        %v2715 = vunpack.c.l.b16 %v2587
        %v2716 = vunpack.c.l.b16 %v2588
        %v2717 = vunpack.c.l.b16 %v2589
        %v2718 = vunpack.c.l.b16 %v2590
        %v2719 = vunpack.c.l.b16 %v2591
        %v2720 = vunpack.c.l.b16 %v2592
        %v2721 = vunpack.c.l.b16 %v2593
        %v2722 = vunpack.c.l.b16 %v2594
        %v2723 = vunpack.c.l.b16 %v2595
        %v2724 = vunpack.c.l.b16 %v2596
        %v2725 = vunpack.c.l.b16 %v2597
        %v2726 = vunpack.c.l.b16 %v2598
        %v2727 = vunpack.c.l.b16 %v2599
        %v2728 = vpack.c.b16 %v2713, %v2712
        %v2729 = vpack.c.b16 %v2715, %v2714
        %v2730 = vpack.c.b16 %v2717, %v2716
        %v2731 = vpack.c.b16 %v2719, %v2718
        %v2732 = vpack.c.b16 %v2721, %v2720
        %v2733 = vpack.c.b16 %v2723, %v2722
        %v2734 = vpack.c.b16 %v2725, %v2724
        %v2735 = vpack.c.b16 %v2727, %v2726
        %2744 = vmatprep.subr.bf16.mxu0 0
        %2745 = vmatpush1.bf16.msra.mxu0 %v2735
        %2746 = vmatprep.subr.bf16.mxu0 0
        %2747 = vmatpush1.bf16.msra.mxu0 %v2734
        %2748 = vmatprep.subr.bf16.mxu0 0
        %2749 = vmatpush1.bf16.msra.mxu0 %v2733
        %2750 = vmatprep.subr.bf16.mxu0 0
        %2751 = vmatpush1.bf16.msra.mxu0 %v2732
        %2752 = vmatprep.subr.bf16.mxu0 0
        %2753 = vmatpush1.bf16.msra.mxu0 %v2731
        %2754 = vmatprep.subr.bf16.mxu0 0
        %2755 = vmatpush1.bf16.msra.mxu0 %v2730
        %2756 = vmatprep.subr.bf16.mxu0 0
        %2757 = vmatpush1.bf16.msra.mxu0 %v2729
        %2758 = vmatprep.subr.bf16.mxu0 0
        %2759 = vmatpush1.bf16.msra.mxu0 %v2728
        %2760 = vmatprep.subr.bf16.mxu0 0
        %2761 = vmatpush2.bf16.msra.mxu0 0
        %2762 = vmatprep.subr.bf16.mxu0 0
        %2763 = vmatpush2.bf16.msra.mxu0 0
        %2764 = vmatprep.subr.bf16.mxu0 0
        %2765 = vmatpush2.bf16.msra.mxu0 0
        %2766 = vmatprep.subr.bf16.mxu0 0
        %2767 = vmatpush2.bf16.msra.mxu0 0
        %2768 = vmatprep.subr.bf16.mxu0 0
        %2769 = vmatpush2.bf16.msra.mxu0 0
        %2770 = vmatprep.subr.bf16.mxu0 0
        %2771 = vmatpush2.bf16.msra.mxu0 0
        %2772 = vmatprep.subr.bf16.mxu0 0
        %2773 = vmatpush2.bf16.msra.mxu0 0
        %2774 = vmatprep.subr.bf16.mxu0 0
        %2775 = vmatpush2.bf16.msra.mxu0 0
        %2776 = vmatprep.mubr.bf16.mxu0 0
        %2777 = vmatmul.mubr.bf16.gmra.mxu0 %v2664
        %v2778 = vpop.f32.mrf.mxu0
        %v2779 = vadd.f32 0.0, %v2778
        %v2780 = vpop.f32.mrf.mxu0
        %v2781 = vpop.f32.mrf.mxu0
        %v2782 = vadd.f32 0.0, %v2781
        %v2783 = vpop.f32.mrf.mxu0
        %2784 = vmatprep.mubr.bf16.mxu0 0
        %2785 = vmatmul.mubr.bf16.gmra.mxu0 %v2665
        %v2786 = vpop.f32.mrf.mxu0
        %v2787 = vadd.f32 0.0, %v2786
        %v2788 = vpop.f32.mrf.mxu0
        %v2789 = vpop.f32.mrf.mxu0
        %v2790 = vadd.f32 0.0, %v2789
        %v2791 = vpop.f32.mrf.mxu0
        %2792 = vmatprep.mubr.bf16.mxu0 0
        %2793 = vmatmul.mubr.bf16.gmra.mxu0 %v2666
        %v2794 = vpop.f32.mrf.mxu0
        %v2795 = vadd.f32 0.0, %v2794
        %v2796 = vpop.f32.mrf.mxu0
        %v2797 = vpop.f32.mrf.mxu0
        %v2798 = vadd.f32 0.0, %v2797
        %v2799 = vpop.f32.mrf.mxu0
        %2800 = vmatprep.mubr.bf16.mxu0 0
        %2801 = vmatmul.mubr.bf16.gmra.mxu0 %v2667
        %v2802 = vpop.f32.mrf.mxu0
        %v2803 = vadd.f32 0.0, %v2802
        %v2804 = vpop.f32.mrf.mxu0
        %v2805 = vpop.f32.mrf.mxu0
        %v2806 = vadd.f32 0.0, %v2805
        %v2807 = vpop.f32.mrf.mxu0
        %2808 = vmatprep.mubr.bf16.mxu0 0
        %2809 = vmatmul.mubr.bf16.gmra.mxu0 %v2668
        %v2810 = vpop.f32.mrf.mxu0
        %v2811 = vadd.f32 0.0, %v2810
        %v2812 = vpop.f32.mrf.mxu0
        %v2813 = vpop.f32.mrf.mxu0
        %v2814 = vadd.f32 0.0, %v2813
        %v2815 = vpop.f32.mrf.mxu0
        %2816 = vmatprep.mubr.bf16.mxu0 0
        %2817 = vmatmul.mubr.bf16.gmra.mxu0 %v2669
        %v2818 = vpop.f32.mrf.mxu0
        %v2819 = vadd.f32 0.0, %v2818
        %v2820 = vpop.f32.mrf.mxu0
        %v2821 = vpop.f32.mrf.mxu0
        %v2822 = vadd.f32 0.0, %v2821
        %v2823 = vpop.f32.mrf.mxu0
        %2824 = vmatprep.mubr.bf16.mxu0 0
        %2825 = vmatmul.mubr.bf16.gmra.mxu0 %v2670
        %v2826 = vpop.f32.mrf.mxu0
        %v2827 = vadd.f32 0.0, %v2826
        %v2828 = vpop.f32.mrf.mxu0
        %v2829 = vpop.f32.mrf.mxu0
        %v2830 = vadd.f32 0.0, %v2829
        %v2831 = vpop.f32.mrf.mxu0
        %2832 = vmatprep.mubr.bf16.mxu0 0
        %2833 = vmatmul.mubr.bf16.gmra.mxu0 %v2671
        %v2834 = vpop.f32.mrf.mxu0
        %v2835 = vadd.f32 0.0, %v2834
        %v2836 = vpop.f32.mrf.mxu0
        %v2837 = vpop.f32.mrf.mxu0
        %v2838 = vadd.f32 0.0, %v2837
        %v2839 = vpop.f32.mrf.mxu0
        %2840 = vmatprep.mubr.bf16.mxu0 0
        %2841 = vmatmul.mubr.bf16.gmra.mxu0 %v2672
        %v2842 = vpop.f32.mrf.mxu0
        %v2843 = vadd.f32 0.0, %v2842
        %v2844 = vpop.f32.mrf.mxu0
        %v2845 = vpop.f32.mrf.mxu0
        %v2846 = vadd.f32 0.0, %v2845
        %v2847 = vpop.f32.mrf.mxu0
        %2848 = vmatprep.mubr.bf16.mxu0 0
        %2849 = vmatmul.mubr.bf16.gmra.mxu0 %v2673
        %v2850 = vpop.f32.mrf.mxu0
        %v2851 = vadd.f32 0.0, %v2850
        %v2852 = vpop.f32.mrf.mxu0
        %v2853 = vpop.f32.mrf.mxu0
        %v2854 = vadd.f32 0.0, %v2853
        %v2855 = vpop.f32.mrf.mxu0
        %2856 = vmatprep.mubr.bf16.mxu0 0
        %2857 = vmatmul.mubr.bf16.gmra.mxu0 %v2674
        %v2858 = vpop.f32.mrf.mxu0
        %v2859 = vadd.f32 0.0, %v2858
        %v2860 = vpop.f32.mrf.mxu0
        %v2861 = vpop.f32.mrf.mxu0
        %v2862 = vadd.f32 0.0, %v2861
        %v2863 = vpop.f32.mrf.mxu0
        %2864 = vmatprep.mubr.bf16.mxu0 0
        %2865 = vmatmul.mubr.bf16.gmra.mxu0 %v2675
        %v2866 = vpop.f32.mrf.mxu0
        %v2867 = vadd.f32 0.0, %v2866
        %v2868 = vpop.f32.mrf.mxu0
        %v2869 = vpop.f32.mrf.mxu0
        %v2870 = vadd.f32 0.0, %v2869
        %v2871 = vpop.f32.mrf.mxu0
        %2872 = vmatprep.mubr.bf16.mxu0 0
        %2873 = vmatmul.mubr.bf16.gmra.mxu0 %v2676
        %v2874 = vpop.f32.mrf.mxu0
        %v2875 = vadd.f32 0.0, %v2874
        %v2876 = vpop.f32.mrf.mxu0
        %v2877 = vpop.f32.mrf.mxu0
        %v2878 = vadd.f32 0.0, %v2877
        %v2879 = vpop.f32.mrf.mxu0
        %2880 = vmatprep.mubr.bf16.mxu0 0
        %2881 = vmatmul.mubr.bf16.gmra.mxu0 %v2677
        %v2882 = vpop.f32.mrf.mxu0
        %v2883 = vadd.f32 0.0, %v2882
        %v2884 = vpop.f32.mrf.mxu0
        %v2885 = vpop.f32.mrf.mxu0
        %v2886 = vadd.f32 0.0, %v2885
        %v2887 = vpop.f32.mrf.mxu0
        %2888 = vmatprep.mubr.bf16.mxu0 0
        %2889 = vmatmul.mubr.bf16.gmra.mxu0 %v2678
        %v2890 = vpop.f32.mrf.mxu0
        %v2891 = vadd.f32 0.0, %v2890
        %v2892 = vpop.f32.mrf.mxu0
        %v2893 = vpop.f32.mrf.mxu0
        %v2894 = vadd.f32 0.0, %v2893
        %v2895 = vpop.f32.mrf.mxu0
        %2896 = vmatprep.mubr.bf16.mxu0 0
        %2897 = vmatmul.mubr.bf16.gmra.mxu0 %v2679
        %v2898 = vpop.f32.mrf.mxu0
        %v2899 = vadd.f32 0.0, %v2898
        %v2900 = vpop.f32.mrf.mxu0
        %v2901 = vpop.f32.mrf.mxu0
        %v2902 = vadd.f32 0.0, %v2901
        %v2903 = vpop.f32.mrf.mxu0
        %2904 = vdwg.mxu0
        %v2905 = vadd.f32 %v2520, %v2779
        %v2906 = vadd.f32 %v2521, %v2782
        %v2907 = vadd.f32 %v2522, %v2787
        %v2908 = vadd.f32 %v2523, %v2790
        %v2909 = vadd.f32 %v2524, %v2795
        %v2910 = vadd.f32 %v2525, %v2798
        %v2911 = vadd.f32 %v2526, %v2803
        %v2912 = vadd.f32 %v2527, %v2806
        %v2913 = vadd.f32 %v2528, %v2811
        %v2914 = vadd.f32 %v2529, %v2814
        %v2915 = vadd.f32 %v2530, %v2819
        %v2916 = vadd.f32 %v2531, %v2822
        %v2917 = vadd.f32 %v2532, %v2827
        %v2918 = vadd.f32 %v2533, %v2830
        %v2919 = vadd.f32 %v2534, %v2835
        %v2920 = vadd.f32 %v2535, %v2838
        %v2921 = vadd.f32 %v2536, %v2843
        %v2922 = vadd.f32 %v2537, %v2846
        %v2923 = vadd.f32 %v2538, %v2851
        %v2924 = vadd.f32 %v2539, %v2854
        %v2925 = vadd.f32 %v2540, %v2859
        %v2926 = vadd.f32 %v2541, %v2862
        %v2927 = vadd.f32 %v2542, %v2867
        %v2928 = vadd.f32 %v2543, %v2870
        %v2929 = vadd.f32 %v2544, %v2875
        %v2930 = vadd.f32 %v2545, %v2878
        %v2931 = vadd.f32 %v2546, %v2883
        %v2932 = vadd.f32 %v2547, %v2886
        %v2933 = vadd.f32 %v2548, %v2891
        %v2934 = vadd.f32 %v2549, %v2894
        %v2935 = vadd.f32 %v2550, %v2899
        %v2936 = vadd.f32 %v2551, %v2902
        %v2937 = vld [vmem:[%s349] sm:$0xf]
        %v2938 = vld [vmem:[%s349 + $0x4] sm:$0xf]
        %v2939 = vld [vmem:[%s349 + $0x8] sm:$0x1]
        %v2940 = vld [vmem:[%s349 + $0xc] sm:$0xf]
        %v2941 = vld [vmem:[%s349 + $0x10] sm:$0xf]
        %v2942 = vld [vmem:[%s349 + $0x14] sm:$0x1]
        %v2943 = vld [vmem:[%s349 + $0x18] sm:$0xf]
        %v2944 = vld [vmem:[%s349 + $0x1c] sm:$0xf]
        %v2945 = vld [vmem:[%s349 + $0x20] sm:$0x1]
        %v2946 = vld [vmem:[%s349 + $0x24] sm:$0xf]
        %v2947 = vld [vmem:[%s349 + $0x28] sm:$0xf]
        %v2948 = vld [vmem:[%s349 + $0x2c] sm:$0x1]
        %v2949 = vld [vmem:[%s349 + $0x30] sm:$0xf]
        %v2950 = vld [vmem:[%s349 + $0x34] sm:$0xf]
        %v2951 = vld [vmem:[%s349 + $0x38] sm:$0x1]
        %v2952 = vld [vmem:[%s349 + $0x3c] sm:$0xf]
        %v2953 = vld [vmem:[%s349 + $0x40] sm:$0xf]
        %v2954 = vld [vmem:[%s349 + $0x44] sm:$0x1]
        %v2955 = vld [vmem:[%s349 + $0x48] sm:$0xf]
        %v2956 = vld [vmem:[%s349 + $0x4c] sm:$0xf]
        %v2957 = vld [vmem:[%s349 + $0x50] sm:$0x1]
        %v2958 = vld [vmem:[%s349 + $0x54] sm:$0xf]
        %v2959 = vld [vmem:[%s349 + $0x58] sm:$0xf]
        %v2960 = vld [vmem:[%s349 + $0x5c] sm:$0x1]
        %v2961 = vld [vmem:[%s349 + $0x60] sm:$0xf]
        %v2962 = vld [vmem:[%s349 + $0x64] sm:$0xf]
        %v2963 = vld [vmem:[%s349 + $0x68] sm:$0x1]
        %v2964 = vld [vmem:[%s349 + $0x6c] sm:$0xf]
        %v2965 = vld [vmem:[%s349 + $0x70] sm:$0xf]
        %v2966 = vld [vmem:[%s349 + $0x74] sm:$0x1]
        %v2967 = vld [vmem:[%s349 + $0x78] sm:$0xf]
        %v2968 = vld [vmem:[%s349 + $0x7c] sm:$0xf]
        %v2969 = vld [vmem:[%s349 + $0x80] sm:$0x1]
        %v2970 = vld [vmem:[%s349 + $0x84] sm:$0xf]
        %v2971 = vld [vmem:[%s349 + $0x88] sm:$0xf]
        %v2972 = vld [vmem:[%s349 + $0x8c] sm:$0x1]
        %v2973 = vld [vmem:[%s349 + $0x90] sm:$0xf]
        %v2974 = vld [vmem:[%s349 + $0x94] sm:$0xf]
        %v2975 = vld [vmem:[%s349 + $0x98] sm:$0x1]
        %v2976 = vld [vmem:[%s349 + $0x9c] sm:$0xf]
        %v2977 = vld [vmem:[%s349 + $0xa0] sm:$0xf]
        %v2978 = vld [vmem:[%s349 + $0xa4] sm:$0x1]
        %v2979 = vld [vmem:[%s349 + $0xa8] sm:$0xf]
        %v2980 = vld [vmem:[%s349 + $0xac] sm:$0xf]
        %v2981 = vld [vmem:[%s349 + $0xb0] sm:$0x1]
        %v2982 = vld [vmem:[%s349 + $0xb4] sm:$0xf]
        %v2983 = vld [vmem:[%s349 + $0xb8] sm:$0xf]
        %v2984 = vld [vmem:[%s349 + $0xbc] sm:$0x1]
        %v2986 = vshrl.u32 %v2937, 16
        %v2988 = vrot.slane %v2986, 4
        %v2989 = vshll.u32 %v2937, 16
        %v2991 = vrot.slane %v2989, 5
        %v2992 = vor.u32 %v2988, %v2991
        %v2993 = vrot.slane %v2992, 4
        %v2995 = vshll.u32 %v2938, 16
        %v2997 = vrot.slane %v2995, 5
        %v2998 = vsel %vm1089, %v2993, %v2997
        %v2999 = vshrl.u32 %v2938, 16
        %v3001 = vrot.slane %v2999, 4
        %v3002 = vor.u32 %v3001, %v2997
        %v3003 = vrot.slane %v3002, 4
        %v3005 = vshll.u32 %v2939, 16
        %v3007 = vrot.slane %v3005, 5
        %v3008 = vsel %vm1089, %v3003, %v3007
        %v3010 = vshrl.u32 %v2940, 16
        %v3012 = vrot.slane %v3010, 4
        %v3013 = vshll.u32 %v2940, 16
        %v3015 = vrot.slane %v3013, 5
        %v3016 = vor.u32 %v3012, %v3015
        %v3017 = vrot.slane %v3016, 4
        %v3019 = vshll.u32 %v2941, 16
        %v3021 = vrot.slane %v3019, 5
        %v3022 = vsel %vm1089, %v3017, %v3021
        %v3023 = vshrl.u32 %v2941, 16
        %v3025 = vrot.slane %v3023, 4
        %v3026 = vor.u32 %v3025, %v3021
        %v3027 = vrot.slane %v3026, 4
        %v3029 = vshll.u32 %v2942, 16
        %v3031 = vrot.slane %v3029, 5
        %v3032 = vsel %vm1089, %v3027, %v3031
        %v3034 = vshrl.u32 %v2943, 16
        %v3036 = vrot.slane %v3034, 4
        %v3037 = vshll.u32 %v2943, 16
        %v3039 = vrot.slane %v3037, 5
        %v3040 = vor.u32 %v3036, %v3039
        %v3041 = vrot.slane %v3040, 4
        %v3043 = vshll.u32 %v2944, 16
        %v3045 = vrot.slane %v3043, 5
        %v3046 = vsel %vm1089, %v3041, %v3045
        %v3047 = vshrl.u32 %v2944, 16
        %v3049 = vrot.slane %v3047, 4
        %v3050 = vor.u32 %v3049, %v3045
        %v3051 = vrot.slane %v3050, 4
        %v3053 = vshll.u32 %v2945, 16
        %v3055 = vrot.slane %v3053, 5
        %v3056 = vsel %vm1089, %v3051, %v3055
        %v3058 = vshrl.u32 %v2946, 16
        %v3060 = vrot.slane %v3058, 4
        %v3061 = vshll.u32 %v2946, 16
        %v3063 = vrot.slane %v3061, 5
        %v3064 = vor.u32 %v3060, %v3063
        %v3065 = vrot.slane %v3064, 4
        %v3067 = vshll.u32 %v2947, 16
        %v3069 = vrot.slane %v3067, 5
        %v3070 = vsel %vm1089, %v3065, %v3069
        %v3071 = vshrl.u32 %v2947, 16
        %v3073 = vrot.slane %v3071, 4
        %v3074 = vor.u32 %v3073, %v3069
        %v3075 = vrot.slane %v3074, 4
        %v3077 = vshll.u32 %v2948, 16
        %v3079 = vrot.slane %v3077, 5
        %v3080 = vsel %vm1089, %v3075, %v3079
        %v3082 = vshrl.u32 %v2949, 16
        %v3084 = vrot.slane %v3082, 4
        %v3085 = vshll.u32 %v2949, 16
        %v3087 = vrot.slane %v3085, 5
        %v3088 = vor.u32 %v3084, %v3087
        %v3089 = vrot.slane %v3088, 4
        %v3091 = vshll.u32 %v2950, 16
        %v3093 = vrot.slane %v3091, 5
        %v3094 = vsel %vm1089, %v3089, %v3093
        %v3095 = vshrl.u32 %v2950, 16
        %v3097 = vrot.slane %v3095, 4
        %v3098 = vor.u32 %v3097, %v3093
        %v3099 = vrot.slane %v3098, 4
        %v3101 = vshll.u32 %v2951, 16
        %v3103 = vrot.slane %v3101, 5
        %v3104 = vsel %vm1089, %v3099, %v3103
        %v3106 = vshrl.u32 %v2952, 16
        %v3108 = vrot.slane %v3106, 4
        %v3109 = vshll.u32 %v2952, 16
        %v3111 = vrot.slane %v3109, 5
        %v3112 = vor.u32 %v3108, %v3111
        %v3113 = vrot.slane %v3112, 4
        %v3115 = vshll.u32 %v2953, 16
        %v3117 = vrot.slane %v3115, 5
        %v3118 = vsel %vm1089, %v3113, %v3117
        %v3119 = vshrl.u32 %v2953, 16
        %v3121 = vrot.slane %v3119, 4
        %v3122 = vor.u32 %v3121, %v3117
        %v3123 = vrot.slane %v3122, 4
        %v3125 = vshll.u32 %v2954, 16
        %v3127 = vrot.slane %v3125, 5
        %v3128 = vsel %vm1089, %v3123, %v3127
        %v3130 = vshrl.u32 %v2955, 16
        %v3132 = vrot.slane %v3130, 4
        %v3133 = vshll.u32 %v2955, 16
        %v3135 = vrot.slane %v3133, 5
        %v3136 = vor.u32 %v3132, %v3135
        %v3137 = vrot.slane %v3136, 4
        %v3139 = vshll.u32 %v2956, 16
        %v3141 = vrot.slane %v3139, 5
        %v3142 = vsel %vm1089, %v3137, %v3141
        %v3143 = vshrl.u32 %v2956, 16
        %v3145 = vrot.slane %v3143, 4
        %v3146 = vor.u32 %v3145, %v3141
        %v3147 = vrot.slane %v3146, 4
        %v3149 = vshll.u32 %v2957, 16
        %v3151 = vrot.slane %v3149, 5
        %v3152 = vsel %vm1089, %v3147, %v3151
        %v3154 = vshrl.u32 %v2958, 16
        %v3156 = vrot.slane %v3154, 4
        %v3157 = vshll.u32 %v2958, 16
        %v3159 = vrot.slane %v3157, 5
        %v3160 = vor.u32 %v3156, %v3159
        %v3161 = vrot.slane %v3160, 4
        %v3163 = vshll.u32 %v2959, 16
        %v3165 = vrot.slane %v3163, 5
        %v3166 = vsel %vm1089, %v3161, %v3165
        %v3167 = vshrl.u32 %v2959, 16
        %v3169 = vrot.slane %v3167, 4
        %v3170 = vor.u32 %v3169, %v3165
        %v3171 = vrot.slane %v3170, 4
        %v3173 = vshll.u32 %v2960, 16
        %v3175 = vrot.slane %v3173, 5
        %v3176 = vsel %vm1089, %v3171, %v3175
        %v3178 = vshrl.u32 %v2961, 16
        %v3180 = vrot.slane %v3178, 4
        %v3181 = vshll.u32 %v2961, 16
        %v3183 = vrot.slane %v3181, 5
        %v3184 = vor.u32 %v3180, %v3183
        %v3185 = vrot.slane %v3184, 4
        %v3187 = vshll.u32 %v2962, 16
        %v3189 = vrot.slane %v3187, 5
        %v3190 = vsel %vm1089, %v3185, %v3189
        %v3191 = vshrl.u32 %v2962, 16
        %v3193 = vrot.slane %v3191, 4
        %v3194 = vor.u32 %v3193, %v3189
        %v3195 = vrot.slane %v3194, 4
        %v3197 = vshll.u32 %v2963, 16
        %v3199 = vrot.slane %v3197, 5
        %v3200 = vsel %vm1089, %v3195, %v3199
        %v3202 = vshrl.u32 %v2964, 16
        %v3204 = vrot.slane %v3202, 4
        %v3205 = vshll.u32 %v2964, 16
        %v3207 = vrot.slane %v3205, 5
        %v3208 = vor.u32 %v3204, %v3207
        %v3209 = vrot.slane %v3208, 4
        %v3211 = vshll.u32 %v2965, 16
        %v3213 = vrot.slane %v3211, 5
        %v3214 = vsel %vm1089, %v3209, %v3213
        %v3215 = vshrl.u32 %v2965, 16
        %v3217 = vrot.slane %v3215, 4
        %v3218 = vor.u32 %v3217, %v3213
        %v3219 = vrot.slane %v3218, 4
        %v3221 = vshll.u32 %v2966, 16
        %v3223 = vrot.slane %v3221, 5
        %v3224 = vsel %vm1089, %v3219, %v3223
        %v3226 = vshrl.u32 %v2967, 16
        %v3228 = vrot.slane %v3226, 4
        %v3229 = vshll.u32 %v2967, 16
        %v3231 = vrot.slane %v3229, 5
        %v3232 = vor.u32 %v3228, %v3231
        %v3233 = vrot.slane %v3232, 4
        %v3235 = vshll.u32 %v2968, 16
        %v3237 = vrot.slane %v3235, 5
        %v3238 = vsel %vm1089, %v3233, %v3237
        %v3239 = vshrl.u32 %v2968, 16
        %v3241 = vrot.slane %v3239, 4
        %v3242 = vor.u32 %v3241, %v3237
        %v3243 = vrot.slane %v3242, 4
        %v3245 = vshll.u32 %v2969, 16
        %v3247 = vrot.slane %v3245, 5
        %v3248 = vsel %vm1089, %v3243, %v3247
        %v3250 = vshrl.u32 %v2970, 16
        %v3252 = vrot.slane %v3250, 4
        %v3253 = vshll.u32 %v2970, 16
        %v3255 = vrot.slane %v3253, 5
        %v3256 = vor.u32 %v3252, %v3255
        %v3257 = vrot.slane %v3256, 4
        %v3259 = vshll.u32 %v2971, 16
        %v3261 = vrot.slane %v3259, 5
        %v3262 = vsel %vm1089, %v3257, %v3261
        %v3263 = vshrl.u32 %v2971, 16
        %v3265 = vrot.slane %v3263, 4
        %v3266 = vor.u32 %v3265, %v3261
        %v3267 = vrot.slane %v3266, 4
        %v3269 = vshll.u32 %v2972, 16
        %v3271 = vrot.slane %v3269, 5
        %v3272 = vsel %vm1089, %v3267, %v3271
        %v3274 = vshrl.u32 %v2973, 16
        %v3276 = vrot.slane %v3274, 4
        %v3277 = vshll.u32 %v2973, 16
        %v3279 = vrot.slane %v3277, 5
        %v3280 = vor.u32 %v3276, %v3279
        %v3281 = vrot.slane %v3280, 4
        %v3283 = vshll.u32 %v2974, 16
        %v3285 = vrot.slane %v3283, 5
        %v3286 = vsel %vm1089, %v3281, %v3285
        %v3287 = vshrl.u32 %v2974, 16
        %v3289 = vrot.slane %v3287, 4
        %v3290 = vor.u32 %v3289, %v3285
        %v3291 = vrot.slane %v3290, 4
        %v3293 = vshll.u32 %v2975, 16
        %v3295 = vrot.slane %v3293, 5
        %v3296 = vsel %vm1089, %v3291, %v3295
        %v3298 = vshrl.u32 %v2976, 16
        %v3300 = vrot.slane %v3298, 4
        %v3301 = vshll.u32 %v2976, 16
        %v3303 = vrot.slane %v3301, 5
        %v3304 = vor.u32 %v3300, %v3303
        %v3305 = vrot.slane %v3304, 4
        %v3307 = vshll.u32 %v2977, 16
        %v3309 = vrot.slane %v3307, 5
        %v3310 = vsel %vm1089, %v3305, %v3309
        %v3311 = vshrl.u32 %v2977, 16
        %v3313 = vrot.slane %v3311, 4
        %v3314 = vor.u32 %v3313, %v3309
        %v3315 = vrot.slane %v3314, 4
        %v3317 = vshll.u32 %v2978, 16
        %v3319 = vrot.slane %v3317, 5
        %v3320 = vsel %vm1089, %v3315, %v3319
        %v3322 = vshrl.u32 %v2979, 16
        %v3324 = vrot.slane %v3322, 4
        %v3325 = vshll.u32 %v2979, 16
        %v3327 = vrot.slane %v3325, 5
        %v3328 = vor.u32 %v3324, %v3327
        %v3329 = vrot.slane %v3328, 4
        %v3331 = vshll.u32 %v2980, 16
        %v3333 = vrot.slane %v3331, 5
        %v3334 = vsel %vm1089, %v3329, %v3333
        %v3335 = vshrl.u32 %v2980, 16
        %v3337 = vrot.slane %v3335, 4
        %v3338 = vor.u32 %v3337, %v3333
        %v3339 = vrot.slane %v3338, 4
        %v3341 = vshll.u32 %v2981, 16
        %v3343 = vrot.slane %v3341, 5
        %v3344 = vsel %vm1089, %v3339, %v3343
        %v3346 = vshrl.u32 %v2982, 16
        %v3348 = vrot.slane %v3346, 4
        %v3349 = vshll.u32 %v2982, 16
        %v3351 = vrot.slane %v3349, 5
        %v3352 = vor.u32 %v3348, %v3351
        %v3353 = vrot.slane %v3352, 4
        %v3355 = vshll.u32 %v2983, 16
        %v3357 = vrot.slane %v3355, 5
        %v3358 = vsel %vm1089, %v3353, %v3357
        %v3359 = vshrl.u32 %v2983, 16
        %v3361 = vrot.slane %v3359, 4
        %v3362 = vor.u32 %v3361, %v3357
        %v3363 = vrot.slane %v3362, 4
        %v3365 = vshll.u32 %v2984, 16
        %v3367 = vrot.slane %v3365, 5
        %v3368 = vsel %vm1089, %v3363, %v3367
        %v3369 = vld [vmem:[#allocation7 + $0x100] sm:$0xf]
        %v3370 = vld [vmem:[#allocation7 + $0x104] sm:$0xf]
        %v3371 = vld [vmem:[#allocation7 + $0x108] sm:$0xf]
        %v3372 = vld [vmem:[#allocation7 + $0x10c] sm:$0xf]
        %v3373 = vld [vmem:[#allocation7 + $0x110] sm:$0xf]
        %v3374 = vld [vmem:[#allocation7 + $0x114] sm:$0xf]
        %v3375 = vld [vmem:[#allocation7 + $0x118] sm:$0xf]
        %v3376 = vld [vmem:[#allocation7 + $0x11c] sm:$0xf]
        %v3377 = vld [vmem:[#allocation7 + $0x120] sm:$0xf]
        %v3378 = vld [vmem:[#allocation7 + $0x124] sm:$0xf]
        %v3379 = vld [vmem:[#allocation7 + $0x128] sm:$0xf]
        %v3380 = vld [vmem:[#allocation7 + $0x12c] sm:$0xf]
        %v3381 = vld [vmem:[#allocation7 + $0x130] sm:$0xf]
        %v3382 = vld [vmem:[#allocation7 + $0x134] sm:$0xf]
        %v3383 = vld [vmem:[#allocation7 + $0x138] sm:$0xf]
        %v3384 = vld [vmem:[#allocation7 + $0x13c] sm:$0xf]
        %v3385 = vunpack.c.l.b16 %v2998
        %v3386 = vunpack.c.l.b16 %v3008
        %v3387 = vunpack.c.l.b16 %v3022
        %v3388 = vunpack.c.l.b16 %v3032
        %v3389 = vunpack.c.l.b16 %v3046
        %v3390 = vunpack.c.l.b16 %v3056
        %v3391 = vunpack.c.l.b16 %v3070
        %v3392 = vunpack.c.l.b16 %v3080
        %v3393 = vunpack.c.l.b16 %v3094
        %v3394 = vunpack.c.l.b16 %v3104
        %v3395 = vunpack.c.l.b16 %v3118
        %v3396 = vunpack.c.l.b16 %v3128
        %v3397 = vunpack.c.l.b16 %v3142
        %v3398 = vunpack.c.l.b16 %v3152
        %v3399 = vunpack.c.l.b16 %v3166
        %v3400 = vunpack.c.l.b16 %v3176
        %v3401 = vunpack.c.l.b16 %v3190
        %v3402 = vunpack.c.l.b16 %v3200
        %v3403 = vunpack.c.l.b16 %v3214
        %v3404 = vunpack.c.l.b16 %v3224
        %v3405 = vunpack.c.l.b16 %v3238
        %v3406 = vunpack.c.l.b16 %v3248
        %v3407 = vunpack.c.l.b16 %v3262
        %v3408 = vunpack.c.l.b16 %v3272
        %v3409 = vunpack.c.l.b16 %v3286
        %v3410 = vunpack.c.l.b16 %v3296
        %v3411 = vunpack.c.l.b16 %v3310
        %v3412 = vunpack.c.l.b16 %v3320
        %v3413 = vunpack.c.l.b16 %v3334
        %v3414 = vunpack.c.l.b16 %v3344
        %v3415 = vunpack.c.l.b16 %v3358
        %v3416 = vunpack.c.l.b16 %v3368
        %v3417 = vpack.c.b16 %v3386, %v3385
        %v3418 = vpack.c.b16 %v3388, %v3387
        %v3419 = vpack.c.b16 %v3390, %v3389
        %v3420 = vpack.c.b16 %v3392, %v3391
        %v3421 = vpack.c.b16 %v3394, %v3393
        %v3422 = vpack.c.b16 %v3396, %v3395
        %v3423 = vpack.c.b16 %v3398, %v3397
        %v3424 = vpack.c.b16 %v3400, %v3399
        %v3425 = vpack.c.b16 %v3402, %v3401
        %v3426 = vpack.c.b16 %v3404, %v3403
        %v3427 = vpack.c.b16 %v3406, %v3405
        %v3428 = vpack.c.b16 %v3408, %v3407
        %v3429 = vpack.c.b16 %v3410, %v3409
        %v3430 = vpack.c.b16 %v3412, %v3411
        %v3431 = vpack.c.b16 %v3414, %v3413
        %v3432 = vpack.c.b16 %v3416, %v3415
        %v3465 = vunpack.c.l.b16 %v3369
        %v3466 = vunpack.c.l.b16 %v3370
        %v3467 = vunpack.c.l.b16 %v3371
        %v3468 = vunpack.c.l.b16 %v3372
        %v3469 = vunpack.c.l.b16 %v3373
        %v3470 = vunpack.c.l.b16 %v3374
        %v3471 = vunpack.c.l.b16 %v3375
        %v3472 = vunpack.c.l.b16 %v3376
        %v3473 = vunpack.c.l.b16 %v3377
        %v3474 = vunpack.c.l.b16 %v3378
        %v3475 = vunpack.c.l.b16 %v3379
        %v3476 = vunpack.c.l.b16 %v3380
        %v3477 = vunpack.c.l.b16 %v3381
        %v3478 = vunpack.c.l.b16 %v3382
        %v3479 = vunpack.c.l.b16 %v3383
        %v3480 = vunpack.c.l.b16 %v3384
        %v3481 = vpack.c.b16 %v3466, %v3465
        %v3482 = vpack.c.b16 %v3468, %v3467
        %v3483 = vpack.c.b16 %v3470, %v3469
        %v3484 = vpack.c.b16 %v3472, %v3471
        %v3485 = vpack.c.b16 %v3474, %v3473
        %v3486 = vpack.c.b16 %v3476, %v3475
        %v3487 = vpack.c.b16 %v3478, %v3477
        %v3488 = vpack.c.b16 %v3480, %v3479
        %3497 = vmatprep.subr.bf16.mxu0 0
        %3498 = vmatpush1.bf16.msra.mxu0 %v3488
        %3499 = vmatprep.subr.bf16.mxu0 0
        %3500 = vmatpush1.bf16.msra.mxu0 %v3487
        %3501 = vmatprep.subr.bf16.mxu0 0
        %3502 = vmatpush1.bf16.msra.mxu0 %v3486
        %3503 = vmatprep.subr.bf16.mxu0 0
        %3504 = vmatpush1.bf16.msra.mxu0 %v3485
        %3505 = vmatprep.subr.bf16.mxu0 0
        %3506 = vmatpush1.bf16.msra.mxu0 %v3484
        %3507 = vmatprep.subr.bf16.mxu0 0
        %3508 = vmatpush1.bf16.msra.mxu0 %v3483
        %3509 = vmatprep.subr.bf16.mxu0 0
        %3510 = vmatpush1.bf16.msra.mxu0 %v3482
        %3511 = vmatprep.subr.bf16.mxu0 0
        %3512 = vmatpush1.bf16.msra.mxu0 %v3481
        %3513 = vmatprep.subr.bf16.mxu0 0
        %3514 = vmatpush2.bf16.msra.mxu0 0
        %3515 = vmatprep.subr.bf16.mxu0 0
        %3516 = vmatpush2.bf16.msra.mxu0 0
        %3517 = vmatprep.subr.bf16.mxu0 0
        %3518 = vmatpush2.bf16.msra.mxu0 0
        %3519 = vmatprep.subr.bf16.mxu0 0
        %3520 = vmatpush2.bf16.msra.mxu0 0
        %3521 = vmatprep.subr.bf16.mxu0 0
        %3522 = vmatpush2.bf16.msra.mxu0 0
        %3523 = vmatprep.subr.bf16.mxu0 0
        %3524 = vmatpush2.bf16.msra.mxu0 0
        %3525 = vmatprep.subr.bf16.mxu0 0
        %3526 = vmatpush2.bf16.msra.mxu0 0
        %3527 = vmatprep.subr.bf16.mxu0 0
        %3528 = vmatpush2.bf16.msra.mxu0 0
        %3529 = vmatprep.mubr.bf16.mxu0 0
        %3530 = vmatmul.mubr.bf16.gmra.mxu0 %v3417
        %v3531 = vpop.f32.mrf.mxu0
        %v3532 = vadd.f32 0.0, %v3531
        %v3533 = vpop.f32.mrf.mxu0
        %v3534 = vpop.f32.mrf.mxu0
        %v3535 = vadd.f32 0.0, %v3534
        %v3536 = vpop.f32.mrf.mxu0
        %3537 = vmatprep.mubr.bf16.mxu0 0
        %3538 = vmatmul.mubr.bf16.gmra.mxu0 %v3418
        %v3539 = vpop.f32.mrf.mxu0
        %v3540 = vadd.f32 0.0, %v3539
        %v3541 = vpop.f32.mrf.mxu0
        %v3542 = vpop.f32.mrf.mxu0
        %v3543 = vadd.f32 0.0, %v3542
        %v3544 = vpop.f32.mrf.mxu0
        %3545 = vmatprep.mubr.bf16.mxu0 0
        %3546 = vmatmul.mubr.bf16.gmra.mxu0 %v3419
        %v3547 = vpop.f32.mrf.mxu0
        %v3548 = vadd.f32 0.0, %v3547
        %v3549 = vpop.f32.mrf.mxu0
        %v3550 = vpop.f32.mrf.mxu0
        %v3551 = vadd.f32 0.0, %v3550
        %v3552 = vpop.f32.mrf.mxu0
        %3553 = vmatprep.mubr.bf16.mxu0 0
        %3554 = vmatmul.mubr.bf16.gmra.mxu0 %v3420
        %v3555 = vpop.f32.mrf.mxu0
        %v3556 = vadd.f32 0.0, %v3555
        %v3557 = vpop.f32.mrf.mxu0
        %v3558 = vpop.f32.mrf.mxu0
        %v3559 = vadd.f32 0.0, %v3558
        %v3560 = vpop.f32.mrf.mxu0
        %3561 = vmatprep.mubr.bf16.mxu0 0
        %3562 = vmatmul.mubr.bf16.gmra.mxu0 %v3421
        %v3563 = vpop.f32.mrf.mxu0
        %v3564 = vadd.f32 0.0, %v3563
        %v3565 = vpop.f32.mrf.mxu0
        %v3566 = vpop.f32.mrf.mxu0
        %v3567 = vadd.f32 0.0, %v3566
        %v3568 = vpop.f32.mrf.mxu0
        %3569 = vmatprep.mubr.bf16.mxu0 0
        %3570 = vmatmul.mubr.bf16.gmra.mxu0 %v3422
        %v3571 = vpop.f32.mrf.mxu0
        %v3572 = vadd.f32 0.0, %v3571
        %v3573 = vpop.f32.mrf.mxu0
        %v3574 = vpop.f32.mrf.mxu0
        %v3575 = vadd.f32 0.0, %v3574
        %v3576 = vpop.f32.mrf.mxu0
        %3577 = vmatprep.mubr.bf16.mxu0 0
        %3578 = vmatmul.mubr.bf16.gmra.mxu0 %v3423
        %v3579 = vpop.f32.mrf.mxu0
        %v3580 = vadd.f32 0.0, %v3579
        %v3581 = vpop.f32.mrf.mxu0
        %v3582 = vpop.f32.mrf.mxu0
        %v3583 = vadd.f32 0.0, %v3582
        %v3584 = vpop.f32.mrf.mxu0
        %3585 = vmatprep.mubr.bf16.mxu0 0
        %3586 = vmatmul.mubr.bf16.gmra.mxu0 %v3424
        %v3587 = vpop.f32.mrf.mxu0
        %v3588 = vadd.f32 0.0, %v3587
        %v3589 = vpop.f32.mrf.mxu0
        %v3590 = vpop.f32.mrf.mxu0
        %v3591 = vadd.f32 0.0, %v3590
        %v3592 = vpop.f32.mrf.mxu0
        %3593 = vmatprep.mubr.bf16.mxu0 0
        %3594 = vmatmul.mubr.bf16.gmra.mxu0 %v3425
        %v3595 = vpop.f32.mrf.mxu0
        %v3596 = vadd.f32 0.0, %v3595
        %v3597 = vpop.f32.mrf.mxu0
        %v3598 = vpop.f32.mrf.mxu0
        %v3599 = vadd.f32 0.0, %v3598
        %v3600 = vpop.f32.mrf.mxu0
        %3601 = vmatprep.mubr.bf16.mxu0 0
        %3602 = vmatmul.mubr.bf16.gmra.mxu0 %v3426
        %v3603 = vpop.f32.mrf.mxu0
        %v3604 = vadd.f32 0.0, %v3603
        %v3605 = vpop.f32.mrf.mxu0
        %v3606 = vpop.f32.mrf.mxu0
        %v3607 = vadd.f32 0.0, %v3606
        %v3608 = vpop.f32.mrf.mxu0
        %3609 = vmatprep.mubr.bf16.mxu0 0
        %3610 = vmatmul.mubr.bf16.gmra.mxu0 %v3427
        %v3611 = vpop.f32.mrf.mxu0
        %v3612 = vadd.f32 0.0, %v3611
        %v3613 = vpop.f32.mrf.mxu0
        %v3614 = vpop.f32.mrf.mxu0
        %v3615 = vadd.f32 0.0, %v3614
        %v3616 = vpop.f32.mrf.mxu0
        %3617 = vmatprep.mubr.bf16.mxu0 0
        %3618 = vmatmul.mubr.bf16.gmra.mxu0 %v3428
        %v3619 = vpop.f32.mrf.mxu0
        %v3620 = vadd.f32 0.0, %v3619
        %v3621 = vpop.f32.mrf.mxu0
        %v3622 = vpop.f32.mrf.mxu0
        %v3623 = vadd.f32 0.0, %v3622
        %v3624 = vpop.f32.mrf.mxu0
        %3625 = vmatprep.mubr.bf16.mxu0 0
        %3626 = vmatmul.mubr.bf16.gmra.mxu0 %v3429
        %v3627 = vpop.f32.mrf.mxu0
        %v3628 = vadd.f32 0.0, %v3627
        %v3629 = vpop.f32.mrf.mxu0
        %v3630 = vpop.f32.mrf.mxu0
        %v3631 = vadd.f32 0.0, %v3630
        %v3632 = vpop.f32.mrf.mxu0
        %3633 = vmatprep.mubr.bf16.mxu0 0
        %3634 = vmatmul.mubr.bf16.gmra.mxu0 %v3430
        %v3635 = vpop.f32.mrf.mxu0
        %v3636 = vadd.f32 0.0, %v3635
        %v3637 = vpop.f32.mrf.mxu0
        %v3638 = vpop.f32.mrf.mxu0
        %v3639 = vadd.f32 0.0, %v3638
        %v3640 = vpop.f32.mrf.mxu0
        %3641 = vmatprep.mubr.bf16.mxu0 0
        %3642 = vmatmul.mubr.bf16.gmra.mxu0 %v3431
        %v3643 = vpop.f32.mrf.mxu0
        %v3644 = vadd.f32 0.0, %v3643
        %v3645 = vpop.f32.mrf.mxu0
        %v3646 = vpop.f32.mrf.mxu0
        %v3647 = vadd.f32 0.0, %v3646
        %v3648 = vpop.f32.mrf.mxu0
        %3649 = vmatprep.mubr.bf16.mxu0 0
        %3650 = vmatmul.mubr.bf16.gmra.mxu0 %v3432
        %v3651 = vpop.f32.mrf.mxu0
        %v3652 = vadd.f32 0.0, %v3651
        %v3653 = vpop.f32.mrf.mxu0
        %v3654 = vpop.f32.mrf.mxu0
        %v3655 = vadd.f32 0.0, %v3654
        %v3656 = vpop.f32.mrf.mxu0
        %3657 = vdwg.mxu0
        %v3658 = vadd.f32 %v2905, %v3532
        %v3659 = vadd.f32 %v2906, %v3535
        %v3660 = vadd.f32 %v2907, %v3540
        %v3661 = vadd.f32 %v2908, %v3543
        %v3662 = vadd.f32 %v2909, %v3548
        %v3663 = vadd.f32 %v2910, %v3551
        %v3664 = vadd.f32 %v2911, %v3556
        %v3665 = vadd.f32 %v2912, %v3559
        %v3666 = vadd.f32 %v2913, %v3564
        %v3667 = vadd.f32 %v2914, %v3567
        %v3668 = vadd.f32 %v2915, %v3572
        %v3669 = vadd.f32 %v2916, %v3575
        %v3670 = vadd.f32 %v2917, %v3580
        %v3671 = vadd.f32 %v2918, %v3583
        %v3672 = vadd.f32 %v2919, %v3588
        %v3673 = vadd.f32 %v2920, %v3591
        %v3674 = vadd.f32 %v2921, %v3596
        %v3675 = vadd.f32 %v2922, %v3599
        %v3676 = vadd.f32 %v2923, %v3604
        %v3677 = vadd.f32 %v2924, %v3607
        %v3678 = vadd.f32 %v2925, %v3612
        %v3679 = vadd.f32 %v2926, %v3615
        %v3680 = vadd.f32 %v2927, %v3620
        %v3681 = vadd.f32 %v2928, %v3623
        %v3682 = vadd.f32 %v2929, %v3628
        %v3683 = vadd.f32 %v2930, %v3631
        %v3684 = vadd.f32 %v2931, %v3636
        %v3685 = vadd.f32 %v2932, %v3639
        %v3686 = vadd.f32 %v2933, %v3644
        %v3687 = vadd.f32 %v2934, %v3647
        %v3688 = vadd.f32 %v2935, %v3652
        %v3689 = vadd.f32 %v2936, %v3655
        %v3690 = vld [vmem:[%s349] sm:$0xe]
        %v3691 = vld [vmem:[%s349 + $0xc] sm:$0xe]
        %v3692 = vld [vmem:[%s349 + $0x18] sm:$0xe]
        %v3693 = vld [vmem:[%s349 + $0x24] sm:$0xe]
        %v3694 = vld [vmem:[%s349 + $0x30] sm:$0xe]
        %v3695 = vld [vmem:[%s349 + $0x3c] sm:$0xe]
        %v3696 = vld [vmem:[%s349 + $0x48] sm:$0xe]
        %v3697 = vld [vmem:[%s349 + $0x54] sm:$0xe]
        %v3698 = vld [vmem:[%s349 + $0x60] sm:$0xe]
        %v3699 = vld [vmem:[%s349 + $0x6c] sm:$0xe]
        %v3700 = vld [vmem:[%s349 + $0x78] sm:$0xe]
        %v3701 = vld [vmem:[%s349 + $0x84] sm:$0xe]
        %v3702 = vld [vmem:[%s349 + $0x90] sm:$0xe]
        %v3703 = vld [vmem:[%s349 + $0x9c] sm:$0xe]
        %v3704 = vld [vmem:[%s349 + $0xa8] sm:$0xe]
        %v3705 = vld [vmem:[%s349 + $0xb4] sm:$0xe]
        %v3754 = vrot.slane %v3690, 5
        %v3755 = vrot.slane %v3754, 4
        %v3756 = vrot.slane %v2938, 5
        %v3757 = vsel %vm2118, %v3755, %v3756
        %v3758 = vrot.slane %v3756, 4
        %v3759 = vrot.slane %v2939, 5
        %v3760 = vsel %vm2118, %v3758, %v3759
        %v3761 = vrot.slane %v3691, 5
        %v3762 = vrot.slane %v3761, 4
        %v3763 = vrot.slane %v2941, 5
        %v3764 = vsel %vm2118, %v3762, %v3763
        %v3765 = vrot.slane %v3763, 4
        %v3766 = vrot.slane %v2942, 5
        %v3767 = vsel %vm2118, %v3765, %v3766
        %v3768 = vrot.slane %v3692, 5
        %v3769 = vrot.slane %v3768, 4
        %v3770 = vrot.slane %v2944, 5
        %v3771 = vsel %vm2118, %v3769, %v3770
        %v3772 = vrot.slane %v3770, 4
        %v3773 = vrot.slane %v2945, 5
        %v3774 = vsel %vm2118, %v3772, %v3773
        %v3775 = vrot.slane %v3693, 5
        %v3776 = vrot.slane %v3775, 4
        %v3777 = vrot.slane %v2947, 5
        %v3778 = vsel %vm2118, %v3776, %v3777
        %v3779 = vrot.slane %v3777, 4
        %v3780 = vrot.slane %v2948, 5
        %v3781 = vsel %vm2118, %v3779, %v3780
        %v3782 = vrot.slane %v3694, 5
        %v3783 = vrot.slane %v3782, 4
        %v3784 = vrot.slane %v2950, 5
        %v3785 = vsel %vm2118, %v3783, %v3784
        %v3786 = vrot.slane %v3784, 4
        %v3787 = vrot.slane %v2951, 5
        %v3788 = vsel %vm2118, %v3786, %v3787
        %v3789 = vrot.slane %v3695, 5
        %v3790 = vrot.slane %v3789, 4
        %v3791 = vrot.slane %v2953, 5
        %v3792 = vsel %vm2118, %v3790, %v3791
        %v3793 = vrot.slane %v3791, 4
        %v3794 = vrot.slane %v2954, 5
        %v3795 = vsel %vm2118, %v3793, %v3794
        %v3796 = vrot.slane %v3696, 5
        %v3797 = vrot.slane %v3796, 4
        %v3798 = vrot.slane %v2956, 5
        %v3799 = vsel %vm2118, %v3797, %v3798
        %v3800 = vrot.slane %v3798, 4
        %v3801 = vrot.slane %v2957, 5
        %v3802 = vsel %vm2118, %v3800, %v3801
        %v3803 = vrot.slane %v3697, 5
        %v3804 = vrot.slane %v3803, 4
        %v3805 = vrot.slane %v2959, 5
        %v3806 = vsel %vm2118, %v3804, %v3805
        %v3807 = vrot.slane %v3805, 4
        %v3808 = vrot.slane %v2960, 5
        %v3809 = vsel %vm2118, %v3807, %v3808
        %v3810 = vrot.slane %v3698, 5
        %v3811 = vrot.slane %v3810, 4
        %v3812 = vrot.slane %v2962, 5
        %v3813 = vsel %vm2118, %v3811, %v3812
        %v3814 = vrot.slane %v3812, 4
        %v3815 = vrot.slane %v2963, 5
        %v3816 = vsel %vm2118, %v3814, %v3815
        %v3817 = vrot.slane %v3699, 5
        %v3818 = vrot.slane %v3817, 4
        %v3819 = vrot.slane %v2965, 5
        %v3820 = vsel %vm2118, %v3818, %v3819
        %v3821 = vrot.slane %v3819, 4
        %v3822 = vrot.slane %v2966, 5
        %v3823 = vsel %vm2118, %v3821, %v3822
        %v3824 = vrot.slane %v3700, 5
        %v3825 = vrot.slane %v3824, 4
        %v3826 = vrot.slane %v2968, 5
        %v3827 = vsel %vm2118, %v3825, %v3826
        %v3828 = vrot.slane %v3826, 4
        %v3829 = vrot.slane %v2969, 5
        %v3830 = vsel %vm2118, %v3828, %v3829
        %v3831 = vrot.slane %v3701, 5
        %v3832 = vrot.slane %v3831, 4
        %v3833 = vrot.slane %v2971, 5
        %v3834 = vsel %vm2118, %v3832, %v3833
        %v3835 = vrot.slane %v3833, 4
        %v3836 = vrot.slane %v2972, 5
        %v3837 = vsel %vm2118, %v3835, %v3836
        %v3838 = vrot.slane %v3702, 5
        %v3839 = vrot.slane %v3838, 4
        %v3840 = vrot.slane %v2974, 5
        %v3841 = vsel %vm2118, %v3839, %v3840
        %v3842 = vrot.slane %v3840, 4
        %v3843 = vrot.slane %v2975, 5
        %v3844 = vsel %vm2118, %v3842, %v3843
        %v3845 = vrot.slane %v3703, 5
        %v3846 = vrot.slane %v3845, 4
        %v3847 = vrot.slane %v2977, 5
        %v3848 = vsel %vm2118, %v3846, %v3847
        %v3849 = vrot.slane %v3847, 4
        %v3850 = vrot.slane %v2978, 5
        %v3851 = vsel %vm2118, %v3849, %v3850
        %v3852 = vrot.slane %v3704, 5
        %v3853 = vrot.slane %v3852, 4
        %v3854 = vrot.slane %v2980, 5
        %v3855 = vsel %vm2118, %v3853, %v3854
        %v3856 = vrot.slane %v3854, 4
        %v3857 = vrot.slane %v2981, 5
        %v3858 = vsel %vm2118, %v3856, %v3857
        %v3859 = vrot.slane %v3705, 5
        %v3860 = vrot.slane %v3859, 4
        %v3861 = vrot.slane %v2983, 5
        %v3862 = vsel %vm2118, %v3860, %v3861
        %v3863 = vrot.slane %v3861, 4
        %v3864 = vrot.slane %v2984, 5
        %v3865 = vsel %vm2118, %v3863, %v3864
        %v3866 = vld [vmem:[#allocation7 + $0x140] sm:$0xf]
        %v3867 = vld [vmem:[#allocation7 + $0x144] sm:$0xf]
        %v3868 = vld [vmem:[#allocation7 + $0x148] sm:$0xf]
        %v3869 = vld [vmem:[#allocation7 + $0x14c] sm:$0xf]
        %v3870 = vld [vmem:[#allocation7 + $0x150] sm:$0xf]
        %v3871 = vld [vmem:[#allocation7 + $0x154] sm:$0xf]
        %v3872 = vld [vmem:[#allocation7 + $0x158] sm:$0xf]
        %v3873 = vld [vmem:[#allocation7 + $0x15c] sm:$0xf]
        %v3874 = vld [vmem:[#allocation7 + $0x160] sm:$0xf]
        %v3875 = vld [vmem:[#allocation7 + $0x164] sm:$0xf]
        %v3876 = vld [vmem:[#allocation7 + $0x168] sm:$0xf]
        %v3877 = vld [vmem:[#allocation7 + $0x16c] sm:$0xf]
        %v3878 = vld [vmem:[#allocation7 + $0x170] sm:$0xf]
        %v3879 = vld [vmem:[#allocation7 + $0x174] sm:$0xf]
        %v3880 = vld [vmem:[#allocation7 + $0x178] sm:$0xf]
        %v3881 = vld [vmem:[#allocation7 + $0x17c] sm:$0xf]
        %v3882 = vunpack.c.l.b16 %v3757
        %v3883 = vunpack.c.l.b16 %v3760
        %v3884 = vunpack.c.l.b16 %v3764
        %v3885 = vunpack.c.l.b16 %v3767
        %v3886 = vunpack.c.l.b16 %v3771
        %v3887 = vunpack.c.l.b16 %v3774
        %v3888 = vunpack.c.l.b16 %v3778
        %v3889 = vunpack.c.l.b16 %v3781
        %v3890 = vunpack.c.l.b16 %v3785
        %v3891 = vunpack.c.l.b16 %v3788
        %v3892 = vunpack.c.l.b16 %v3792
        %v3893 = vunpack.c.l.b16 %v3795
        %v3894 = vunpack.c.l.b16 %v3799
        %v3895 = vunpack.c.l.b16 %v3802
        %v3896 = vunpack.c.l.b16 %v3806
        %v3897 = vunpack.c.l.b16 %v3809
        %v3898 = vunpack.c.l.b16 %v3813
        %v3899 = vunpack.c.l.b16 %v3816
        %v3900 = vunpack.c.l.b16 %v3820
        %v3901 = vunpack.c.l.b16 %v3823
        %v3902 = vunpack.c.l.b16 %v3827
        %v3903 = vunpack.c.l.b16 %v3830
        %v3904 = vunpack.c.l.b16 %v3834
        %v3905 = vunpack.c.l.b16 %v3837
        %v3906 = vunpack.c.l.b16 %v3841
        %v3907 = vunpack.c.l.b16 %v3844
        %v3908 = vunpack.c.l.b16 %v3848
        %v3909 = vunpack.c.l.b16 %v3851
        %v3910 = vunpack.c.l.b16 %v3855
        %v3911 = vunpack.c.l.b16 %v3858
        %v3912 = vunpack.c.l.b16 %v3862
        %v3913 = vunpack.c.l.b16 %v3865
        %v3914 = vpack.c.b16 %v3883, %v3882
        %v3915 = vpack.c.b16 %v3885, %v3884
        %v3916 = vpack.c.b16 %v3887, %v3886
        %v3917 = vpack.c.b16 %v3889, %v3888
        %v3918 = vpack.c.b16 %v3891, %v3890
        %v3919 = vpack.c.b16 %v3893, %v3892
        %v3920 = vpack.c.b16 %v3895, %v3894
        %v3921 = vpack.c.b16 %v3897, %v3896
        %v3922 = vpack.c.b16 %v3899, %v3898
        %v3923 = vpack.c.b16 %v3901, %v3900
        %v3924 = vpack.c.b16 %v3903, %v3902
        %v3925 = vpack.c.b16 %v3905, %v3904
        %v3926 = vpack.c.b16 %v3907, %v3906
        %v3927 = vpack.c.b16 %v3909, %v3908
        %v3928 = vpack.c.b16 %v3911, %v3910
        %v3929 = vpack.c.b16 %v3913, %v3912
        %v3962 = vunpack.c.l.b16 %v3866
        %v3963 = vunpack.c.l.b16 %v3867
        %v3964 = vunpack.c.l.b16 %v3868
        %v3965 = vunpack.c.l.b16 %v3869
        %v3966 = vunpack.c.l.b16 %v3870
        %v3967 = vunpack.c.l.b16 %v3871
        %v3968 = vunpack.c.l.b16 %v3872
        %v3969 = vunpack.c.l.b16 %v3873
        %v3970 = vunpack.c.l.b16 %v3874
        %v3971 = vunpack.c.l.b16 %v3875
        %v3972 = vunpack.c.l.b16 %v3876
        %v3973 = vunpack.c.l.b16 %v3877
        %v3974 = vunpack.c.l.b16 %v3878
        %v3975 = vunpack.c.l.b16 %v3879
        %v3976 = vunpack.c.l.b16 %v3880
        %v3977 = vunpack.c.l.b16 %v3881
        %v3978 = vpack.c.b16 %v3963, %v3962
        %v3979 = vpack.c.b16 %v3965, %v3964
        %v3980 = vpack.c.b16 %v3967, %v3966
        %v3981 = vpack.c.b16 %v3969, %v3968
        %v3982 = vpack.c.b16 %v3971, %v3970
        %v3983 = vpack.c.b16 %v3973, %v3972
        %v3984 = vpack.c.b16 %v3975, %v3974
        %v3985 = vpack.c.b16 %v3977, %v3976
        %3994 = vmatprep.subr.bf16.mxu0 0
        %3995 = vmatpush1.bf16.msra.mxu0 %v3985
        %3996 = vmatprep.subr.bf16.mxu0 0
        %3997 = vmatpush1.bf16.msra.mxu0 %v3984
        %3998 = vmatprep.subr.bf16.mxu0 0
        %3999 = vmatpush1.bf16.msra.mxu0 %v3983
        %4000 = vmatprep.subr.bf16.mxu0 0
        %4001 = vmatpush1.bf16.msra.mxu0 %v3982
        %4002 = vmatprep.subr.bf16.mxu0 0
        %4003 = vmatpush1.bf16.msra.mxu0 %v3981
        %4004 = vmatprep.subr.bf16.mxu0 0
        %4005 = vmatpush1.bf16.msra.mxu0 %v3980
        %4006 = vmatprep.subr.bf16.mxu0 0
        %4007 = vmatpush1.bf16.msra.mxu0 %v3979
        %4008 = vmatprep.subr.bf16.mxu0 0
        %4009 = vmatpush1.bf16.msra.mxu0 %v3978
        %4010 = vmatprep.subr.bf16.mxu0 0
        %4011 = vmatpush2.bf16.msra.mxu0 0
        %4012 = vmatprep.subr.bf16.mxu0 0
        %4013 = vmatpush2.bf16.msra.mxu0 0
        %4014 = vmatprep.subr.bf16.mxu0 0
        %4015 = vmatpush2.bf16.msra.mxu0 0
        %4016 = vmatprep.subr.bf16.mxu0 0
        %4017 = vmatpush2.bf16.msra.mxu0 0
        %4018 = vmatprep.subr.bf16.mxu0 0
        %4019 = vmatpush2.bf16.msra.mxu0 0
        %4020 = vmatprep.subr.bf16.mxu0 0
        %4021 = vmatpush2.bf16.msra.mxu0 0
        %4022 = vmatprep.subr.bf16.mxu0 0
        %4023 = vmatpush2.bf16.msra.mxu0 0
        %4024 = vmatprep.subr.bf16.mxu0 0
        %4025 = vmatpush2.bf16.msra.mxu0 0
        %4026 = vmatprep.mubr.bf16.mxu0 0
        %4027 = vmatmul.mubr.bf16.gmra.mxu0 %v3914
        %v4028 = vpop.f32.mrf.mxu0
        %v4029 = vadd.f32 0.0, %v4028
        %v4030 = vpop.f32.mrf.mxu0
        %v4031 = vpop.f32.mrf.mxu0
        %v4032 = vadd.f32 0.0, %v4031
        %v4033 = vpop.f32.mrf.mxu0
        %4034 = vmatprep.mubr.bf16.mxu0 0
        %4035 = vmatmul.mubr.bf16.gmra.mxu0 %v3915
        %v4036 = vpop.f32.mrf.mxu0
        %v4037 = vadd.f32 0.0, %v4036
        %v4038 = vpop.f32.mrf.mxu0
        %v4039 = vpop.f32.mrf.mxu0
        %v4040 = vadd.f32 0.0, %v4039
        %v4041 = vpop.f32.mrf.mxu0
        %4042 = vmatprep.mubr.bf16.mxu0 0
        %4043 = vmatmul.mubr.bf16.gmra.mxu0 %v3916
        %v4044 = vpop.f32.mrf.mxu0
        %v4045 = vadd.f32 0.0, %v4044
        %v4046 = vpop.f32.mrf.mxu0
        %v4047 = vpop.f32.mrf.mxu0
        %v4048 = vadd.f32 0.0, %v4047
        %v4049 = vpop.f32.mrf.mxu0
        %4050 = vmatprep.mubr.bf16.mxu0 0
        %4051 = vmatmul.mubr.bf16.gmra.mxu0 %v3917
        %v4052 = vpop.f32.mrf.mxu0
        %v4053 = vadd.f32 0.0, %v4052
        %v4054 = vpop.f32.mrf.mxu0
        %v4055 = vpop.f32.mrf.mxu0
        %v4056 = vadd.f32 0.0, %v4055
        %v4057 = vpop.f32.mrf.mxu0
        %4058 = vmatprep.mubr.bf16.mxu0 0
        %4059 = vmatmul.mubr.bf16.gmra.mxu0 %v3918
        %v4060 = vpop.f32.mrf.mxu0
        %v4061 = vadd.f32 0.0, %v4060
        %v4062 = vpop.f32.mrf.mxu0
        %v4063 = vpop.f32.mrf.mxu0
        %v4064 = vadd.f32 0.0, %v4063
        %v4065 = vpop.f32.mrf.mxu0
        %4066 = vmatprep.mubr.bf16.mxu0 0
        %4067 = vmatmul.mubr.bf16.gmra.mxu0 %v3919
        %v4068 = vpop.f32.mrf.mxu0
        %v4069 = vadd.f32 0.0, %v4068
        %v4070 = vpop.f32.mrf.mxu0
        %v4071 = vpop.f32.mrf.mxu0
        %v4072 = vadd.f32 0.0, %v4071
        %v4073 = vpop.f32.mrf.mxu0
        %4074 = vmatprep.mubr.bf16.mxu0 0
        %4075 = vmatmul.mubr.bf16.gmra.mxu0 %v3920
        %v4076 = vpop.f32.mrf.mxu0
        %v4077 = vadd.f32 0.0, %v4076
        %v4078 = vpop.f32.mrf.mxu0
        %v4079 = vpop.f32.mrf.mxu0
        %v4080 = vadd.f32 0.0, %v4079
        %v4081 = vpop.f32.mrf.mxu0
        %4082 = vmatprep.mubr.bf16.mxu0 0
        %4083 = vmatmul.mubr.bf16.gmra.mxu0 %v3921
        %v4084 = vpop.f32.mrf.mxu0
        %v4085 = vadd.f32 0.0, %v4084
        %v4086 = vpop.f32.mrf.mxu0
        %v4087 = vpop.f32.mrf.mxu0
        %v4088 = vadd.f32 0.0, %v4087
        %v4089 = vpop.f32.mrf.mxu0
        %4090 = vmatprep.mubr.bf16.mxu0 0
        %4091 = vmatmul.mubr.bf16.gmra.mxu0 %v3922
        %v4092 = vpop.f32.mrf.mxu0
        %v4093 = vadd.f32 0.0, %v4092
        %v4094 = vpop.f32.mrf.mxu0
        %v4095 = vpop.f32.mrf.mxu0
        %v4096 = vadd.f32 0.0, %v4095
        %v4097 = vpop.f32.mrf.mxu0
        %4098 = vmatprep.mubr.bf16.mxu0 0
        %4099 = vmatmul.mubr.bf16.gmra.mxu0 %v3923
        %v4100 = vpop.f32.mrf.mxu0
        %v4101 = vadd.f32 0.0, %v4100
        %v4102 = vpop.f32.mrf.mxu0
        %v4103 = vpop.f32.mrf.mxu0
        %v4104 = vadd.f32 0.0, %v4103
        %v4105 = vpop.f32.mrf.mxu0
        %4106 = vmatprep.mubr.bf16.mxu0 0
        %4107 = vmatmul.mubr.bf16.gmra.mxu0 %v3924
        %v4108 = vpop.f32.mrf.mxu0
        %v4109 = vadd.f32 0.0, %v4108
        %v4110 = vpop.f32.mrf.mxu0
        %v4111 = vpop.f32.mrf.mxu0
        %v4112 = vadd.f32 0.0, %v4111
        %v4113 = vpop.f32.mrf.mxu0
        %4114 = vmatprep.mubr.bf16.mxu0 0
        %4115 = vmatmul.mubr.bf16.gmra.mxu0 %v3925
        %v4116 = vpop.f32.mrf.mxu0
        %v4117 = vadd.f32 0.0, %v4116
        %v4118 = vpop.f32.mrf.mxu0
        %v4119 = vpop.f32.mrf.mxu0
        %v4120 = vadd.f32 0.0, %v4119
        %v4121 = vpop.f32.mrf.mxu0
        %4122 = vmatprep.mubr.bf16.mxu0 0
        %4123 = vmatmul.mubr.bf16.gmra.mxu0 %v3926
        %v4124 = vpop.f32.mrf.mxu0
        %v4125 = vadd.f32 0.0, %v4124
        %v4126 = vpop.f32.mrf.mxu0
        %v4127 = vpop.f32.mrf.mxu0
        %v4128 = vadd.f32 0.0, %v4127
        %v4129 = vpop.f32.mrf.mxu0
        %4130 = vmatprep.mubr.bf16.mxu0 0
        %4131 = vmatmul.mubr.bf16.gmra.mxu0 %v3927
        %v4132 = vpop.f32.mrf.mxu0
        %v4133 = vadd.f32 0.0, %v4132
        %v4134 = vpop.f32.mrf.mxu0
        %v4135 = vpop.f32.mrf.mxu0
        %v4136 = vadd.f32 0.0, %v4135
        %v4137 = vpop.f32.mrf.mxu0
        %4138 = vmatprep.mubr.bf16.mxu0 0
        %4139 = vmatmul.mubr.bf16.gmra.mxu0 %v3928
        %v4140 = vpop.f32.mrf.mxu0
        %v4141 = vadd.f32 0.0, %v4140
        %v4142 = vpop.f32.mrf.mxu0
        %v4143 = vpop.f32.mrf.mxu0
        %v4144 = vadd.f32 0.0, %v4143
        %v4145 = vpop.f32.mrf.mxu0
        %4146 = vmatprep.mubr.bf16.mxu0 0
        %4147 = vmatmul.mubr.bf16.gmra.mxu0 %v3929
        %v4148 = vpop.f32.mrf.mxu0
        %v4149 = vadd.f32 0.0, %v4148
        %v4150 = vpop.f32.mrf.mxu0
        %v4151 = vpop.f32.mrf.mxu0
        %v4152 = vadd.f32 0.0, %v4151
        %v4153 = vpop.f32.mrf.mxu0
        %4154 = vdwg.mxu0
        %v4155 = vadd.f32 %v3658, %v4029
        %v4156 = vadd.f32 %v3659, %v4032
        %v4157 = vadd.f32 %v3660, %v4037
        %v4158 = vadd.f32 %v3661, %v4040
        %v4159 = vadd.f32 %v3662, %v4045
        %v4160 = vadd.f32 %v3663, %v4048
        %v4161 = vadd.f32 %v3664, %v4053
        %v4162 = vadd.f32 %v3665, %v4056
        %v4163 = vadd.f32 %v3666, %v4061
        %v4164 = vadd.f32 %v3667, %v4064
        %v4165 = vadd.f32 %v3668, %v4069
        %v4166 = vadd.f32 %v3669, %v4072
        %v4167 = vadd.f32 %v3670, %v4077
        %v4168 = vadd.f32 %v3671, %v4080
        %v4169 = vadd.f32 %v3672, %v4085
        %v4170 = vadd.f32 %v3673, %v4088
        %v4171 = vadd.f32 %v3674, %v4093
        %v4172 = vadd.f32 %v3675, %v4096
        %v4173 = vadd.f32 %v3676, %v4101
        %v4174 = vadd.f32 %v3677, %v4104
        %v4175 = vadd.f32 %v3678, %v4109
        %v4176 = vadd.f32 %v3679, %v4112
        %v4177 = vadd.f32 %v3680, %v4117
        %v4178 = vadd.f32 %v3681, %v4120
        %v4179 = vadd.f32 %v3682, %v4125
        %v4180 = vadd.f32 %v3683, %v4128
        %v4181 = vadd.f32 %v3684, %v4133
        %v4182 = vadd.f32 %v3685, %v4136
        %v4183 = vadd.f32 %v3686, %v4141
        %v4184 = vadd.f32 %v3687, %v4144
        %v4185 = vadd.f32 %v3688, %v4149
        %v4186 = vadd.f32 %v3689, %v4152
        %s4187 = scalar_lea.vmem [#allocation2], 24
        %v4188 = vld [vmem:[%s4187] sm:$0xf]
        %v4189 = vld [vmem:[%s4187 + $0x4] sm:$0xf]
        %v4190 = vld [vmem:[%s4187 + $0xc] sm:$0xf]
        %v4191 = vld [vmem:[%s4187 + $0x10] sm:$0xf]
        %v4192 = vld [vmem:[%s4187 + $0x18] sm:$0xf]
        %v4193 = vld [vmem:[%s4187 + $0x1c] sm:$0xf]
        %v4194 = vld [vmem:[%s4187 + $0x24] sm:$0xf]
        %v4195 = vld [vmem:[%s4187 + $0x28] sm:$0xf]
        %v4196 = vld [vmem:[%s4187 + $0x30] sm:$0xf]
        %v4197 = vld [vmem:[%s4187 + $0x34] sm:$0xf]
        %v4198 = vld [vmem:[%s4187 + $0x3c] sm:$0xf]
        %v4199 = vld [vmem:[%s4187 + $0x40] sm:$0xf]
        %v4200 = vld [vmem:[%s4187 + $0x48] sm:$0xf]
        %v4201 = vld [vmem:[%s4187 + $0x4c] sm:$0xf]
        %v4202 = vld [vmem:[%s4187 + $0x54] sm:$0xf]
        %v4203 = vld [vmem:[%s4187 + $0x58] sm:$0xf]
        %v4204 = vld [vmem:[%s4187 + $0x60] sm:$0xf]
        %v4205 = vld [vmem:[%s4187 + $0x64] sm:$0xf]
        %v4206 = vld [vmem:[%s4187 + $0x6c] sm:$0xf]
        %v4207 = vld [vmem:[%s4187 + $0x70] sm:$0xf]
        %v4208 = vld [vmem:[%s4187 + $0x78] sm:$0xf]
        %v4209 = vld [vmem:[%s4187 + $0x7c] sm:$0xf]
        %v4210 = vld [vmem:[%s4187 + $0x84] sm:$0xf]
        %v4211 = vld [vmem:[%s4187 + $0x88] sm:$0xf]
        %v4212 = vld [vmem:[%s4187 + $0x90] sm:$0xf]
        %v4213 = vld [vmem:[%s4187 + $0x94] sm:$0xf]
        %v4214 = vld [vmem:[%s4187 + $0x9c] sm:$0xf]
        %v4215 = vld [vmem:[%s4187 + $0xa0] sm:$0xf]
        %v4216 = vld [vmem:[%s4187 + $0xa8] sm:$0xf]
        %v4217 = vld [vmem:[%s4187 + $0xac] sm:$0xf]
        %v4218 = vld [vmem:[%s4187 + $0xb4] sm:$0xf]
        %v4219 = vld [vmem:[%s4187 + $0xb8] sm:$0xf]
        %v4220 = vld [vmem:[#allocation7 + $0x180] sm:$0xf]
        %v4221 = vld [vmem:[#allocation7 + $0x184] sm:$0xf]
        %v4222 = vld [vmem:[#allocation7 + $0x188] sm:$0xf]
        %v4223 = vld [vmem:[#allocation7 + $0x18c] sm:$0xf]
        %v4224 = vld [vmem:[#allocation7 + $0x190] sm:$0xf]
        %v4225 = vld [vmem:[#allocation7 + $0x194] sm:$0xf]
        %v4226 = vld [vmem:[#allocation7 + $0x198] sm:$0xf]
        %v4227 = vld [vmem:[#allocation7 + $0x19c] sm:$0xf]
        %v4228 = vld [vmem:[#allocation7 + $0x1a0] sm:$0xf]
        %v4229 = vld [vmem:[#allocation7 + $0x1a4] sm:$0xf]
        %v4230 = vld [vmem:[#allocation7 + $0x1a8] sm:$0xf]
        %v4231 = vld [vmem:[#allocation7 + $0x1ac] sm:$0xf]
        %v4232 = vld [vmem:[#allocation7 + $0x1b0] sm:$0xf]
        %v4233 = vld [vmem:[#allocation7 + $0x1b4] sm:$0xf]
        %v4234 = vld [vmem:[#allocation7 + $0x1b8] sm:$0xf]
        %v4235 = vld [vmem:[#allocation7 + $0x1bc] sm:$0xf]
        %v4268 = vunpack.c.l.b16 %v4188
        %v4269 = vunpack.c.l.b16 %v4189
        %v4270 = vunpack.c.l.b16 %v4190
        %v4271 = vunpack.c.l.b16 %v4191
        %v4272 = vunpack.c.l.b16 %v4192
        %v4273 = vunpack.c.l.b16 %v4193
        %v4274 = vunpack.c.l.b16 %v4194
        %v4275 = vunpack.c.l.b16 %v4195
        %v4276 = vunpack.c.l.b16 %v4196
        %v4277 = vunpack.c.l.b16 %v4197
        %v4278 = vunpack.c.l.b16 %v4198
        %v4279 = vunpack.c.l.b16 %v4199
        %v4280 = vunpack.c.l.b16 %v4200
        %v4281 = vunpack.c.l.b16 %v4201
        %v4282 = vunpack.c.l.b16 %v4202
        %v4283 = vunpack.c.l.b16 %v4203
        %v4284 = vunpack.c.l.b16 %v4204
        %v4285 = vunpack.c.l.b16 %v4205
        %v4286 = vunpack.c.l.b16 %v4206
        %v4287 = vunpack.c.l.b16 %v4207
        %v4288 = vunpack.c.l.b16 %v4208
        %v4289 = vunpack.c.l.b16 %v4209
        %v4290 = vunpack.c.l.b16 %v4210
        %v4291 = vunpack.c.l.b16 %v4211
        %v4292 = vunpack.c.l.b16 %v4212
        %v4293 = vunpack.c.l.b16 %v4213
        %v4294 = vunpack.c.l.b16 %v4214
        %v4295 = vunpack.c.l.b16 %v4215
        %v4296 = vunpack.c.l.b16 %v4216
        %v4297 = vunpack.c.l.b16 %v4217
        %v4298 = vunpack.c.l.b16 %v4218
        %v4299 = vunpack.c.l.b16 %v4219
        %v4300 = vpack.c.b16 %v4269, %v4268
        %v4301 = vpack.c.b16 %v4271, %v4270
        %v4302 = vpack.c.b16 %v4273, %v4272
        %v4303 = vpack.c.b16 %v4275, %v4274
        %v4304 = vpack.c.b16 %v4277, %v4276
        %v4305 = vpack.c.b16 %v4279, %v4278
        %v4306 = vpack.c.b16 %v4281, %v4280
        %v4307 = vpack.c.b16 %v4283, %v4282
        %v4308 = vpack.c.b16 %v4285, %v4284
        %v4309 = vpack.c.b16 %v4287, %v4286
        %v4310 = vpack.c.b16 %v4289, %v4288
        %v4311 = vpack.c.b16 %v4291, %v4290
        %v4312 = vpack.c.b16 %v4293, %v4292
        %v4313 = vpack.c.b16 %v4295, %v4294
        %v4314 = vpack.c.b16 %v4297, %v4296
        %v4315 = vpack.c.b16 %v4299, %v4298
        %v4348 = vunpack.c.l.b16 %v4220
        %v4349 = vunpack.c.l.b16 %v4221
        %v4350 = vunpack.c.l.b16 %v4222
        %v4351 = vunpack.c.l.b16 %v4223
        %v4352 = vunpack.c.l.b16 %v4224
        %v4353 = vunpack.c.l.b16 %v4225
        %v4354 = vunpack.c.l.b16 %v4226
        %v4355 = vunpack.c.l.b16 %v4227
        %v4356 = vunpack.c.l.b16 %v4228
        %v4357 = vunpack.c.l.b16 %v4229
        %v4358 = vunpack.c.l.b16 %v4230
        %v4359 = vunpack.c.l.b16 %v4231
        %v4360 = vunpack.c.l.b16 %v4232
        %v4361 = vunpack.c.l.b16 %v4233
        %v4362 = vunpack.c.l.b16 %v4234
        %v4363 = vunpack.c.l.b16 %v4235
        %v4364 = vpack.c.b16 %v4349, %v4348
        %v4365 = vpack.c.b16 %v4351, %v4350
        %v4366 = vpack.c.b16 %v4353, %v4352
        %v4367 = vpack.c.b16 %v4355, %v4354
        %v4368 = vpack.c.b16 %v4357, %v4356
        %v4369 = vpack.c.b16 %v4359, %v4358
        %v4370 = vpack.c.b16 %v4361, %v4360
        %v4371 = vpack.c.b16 %v4363, %v4362
        %4380 = vmatprep.subr.bf16.mxu0 0
        %4381 = vmatpush1.bf16.msra.mxu0 %v4371
        %4382 = vmatprep.subr.bf16.mxu0 0
        %4383 = vmatpush1.bf16.msra.mxu0 %v4370
        %4384 = vmatprep.subr.bf16.mxu0 0
        %4385 = vmatpush1.bf16.msra.mxu0 %v4369
        %4386 = vmatprep.subr.bf16.mxu0 0
        %4387 = vmatpush1.bf16.msra.mxu0 %v4368
        %4388 = vmatprep.subr.bf16.mxu0 0
        %4389 = vmatpush1.bf16.msra.mxu0 %v4367
        %4390 = vmatprep.subr.bf16.mxu0 0
        %4391 = vmatpush1.bf16.msra.mxu0 %v4366
        %4392 = vmatprep.subr.bf16.mxu0 0
        %4393 = vmatpush1.bf16.msra.mxu0 %v4365
        %4394 = vmatprep.subr.bf16.mxu0 0
        %4395 = vmatpush1.bf16.msra.mxu0 %v4364
        %4396 = vmatprep.subr.bf16.mxu0 0
        %4397 = vmatpush2.bf16.msra.mxu0 0
        %4398 = vmatprep.subr.bf16.mxu0 0
        %4399 = vmatpush2.bf16.msra.mxu0 0
        %4400 = vmatprep.subr.bf16.mxu0 0
        %4401 = vmatpush2.bf16.msra.mxu0 0
        %4402 = vmatprep.subr.bf16.mxu0 0
        %4403 = vmatpush2.bf16.msra.mxu0 0
        %4404 = vmatprep.subr.bf16.mxu0 0
        %4405 = vmatpush2.bf16.msra.mxu0 0
        %4406 = vmatprep.subr.bf16.mxu0 0
        %4407 = vmatpush2.bf16.msra.mxu0 0
        %4408 = vmatprep.subr.bf16.mxu0 0
        %4409 = vmatpush2.bf16.msra.mxu0 0
        %4410 = vmatprep.subr.bf16.mxu0 0
        %4411 = vmatpush2.bf16.msra.mxu0 0
        %4412 = vmatprep.mubr.bf16.mxu0 0
        %4413 = vmatmul.mubr.bf16.gmra.mxu0 %v4300
        %v4414 = vpop.f32.mrf.mxu0
        %v4415 = vadd.f32 0.0, %v4414
        %v4416 = vpop.f32.mrf.mxu0
        %v4417 = vpop.f32.mrf.mxu0
        %v4418 = vadd.f32 0.0, %v4417
        %v4419 = vpop.f32.mrf.mxu0
        %4420 = vmatprep.mubr.bf16.mxu0 0
        %4421 = vmatmul.mubr.bf16.gmra.mxu0 %v4301
        %v4422 = vpop.f32.mrf.mxu0
        %v4423 = vadd.f32 0.0, %v4422
        %v4424 = vpop.f32.mrf.mxu0
        %v4425 = vpop.f32.mrf.mxu0
        %v4426 = vadd.f32 0.0, %v4425
        %v4427 = vpop.f32.mrf.mxu0
        %4428 = vmatprep.mubr.bf16.mxu0 0
        %4429 = vmatmul.mubr.bf16.gmra.mxu0 %v4302
        %v4430 = vpop.f32.mrf.mxu0
        %v4431 = vadd.f32 0.0, %v4430
        %v4432 = vpop.f32.mrf.mxu0
        %v4433 = vpop.f32.mrf.mxu0
        %v4434 = vadd.f32 0.0, %v4433
        %v4435 = vpop.f32.mrf.mxu0
        %4436 = vmatprep.mubr.bf16.mxu0 0
        %4437 = vmatmul.mubr.bf16.gmra.mxu0 %v4303
        %v4438 = vpop.f32.mrf.mxu0
        %v4439 = vadd.f32 0.0, %v4438
        %v4440 = vpop.f32.mrf.mxu0
        %v4441 = vpop.f32.mrf.mxu0
        %v4442 = vadd.f32 0.0, %v4441
        %v4443 = vpop.f32.mrf.mxu0
        %4444 = vmatprep.mubr.bf16.mxu0 0
        %4445 = vmatmul.mubr.bf16.gmra.mxu0 %v4304
        %v4446 = vpop.f32.mrf.mxu0
        %v4447 = vadd.f32 0.0, %v4446
        %v4448 = vpop.f32.mrf.mxu0
        %v4449 = vpop.f32.mrf.mxu0
        %v4450 = vadd.f32 0.0, %v4449
        %v4451 = vpop.f32.mrf.mxu0
        %4452 = vmatprep.mubr.bf16.mxu0 0
        %4453 = vmatmul.mubr.bf16.gmra.mxu0 %v4305
        %v4454 = vpop.f32.mrf.mxu0
        %v4455 = vadd.f32 0.0, %v4454
        %v4456 = vpop.f32.mrf.mxu0
        %v4457 = vpop.f32.mrf.mxu0
        %v4458 = vadd.f32 0.0, %v4457
        %v4459 = vpop.f32.mrf.mxu0
        %4460 = vmatprep.mubr.bf16.mxu0 0
        %4461 = vmatmul.mubr.bf16.gmra.mxu0 %v4306
        %v4462 = vpop.f32.mrf.mxu0
        %v4463 = vadd.f32 0.0, %v4462
        %v4464 = vpop.f32.mrf.mxu0
        %v4465 = vpop.f32.mrf.mxu0
        %v4466 = vadd.f32 0.0, %v4465
        %v4467 = vpop.f32.mrf.mxu0
        %4468 = vmatprep.mubr.bf16.mxu0 0
        %4469 = vmatmul.mubr.bf16.gmra.mxu0 %v4307
        %v4470 = vpop.f32.mrf.mxu0
        %v4471 = vadd.f32 0.0, %v4470
        %v4472 = vpop.f32.mrf.mxu0
        %v4473 = vpop.f32.mrf.mxu0
        %v4474 = vadd.f32 0.0, %v4473
        %v4475 = vpop.f32.mrf.mxu0
        %4476 = vmatprep.mubr.bf16.mxu0 0
        %4477 = vmatmul.mubr.bf16.gmra.mxu0 %v4308
        %v4478 = vpop.f32.mrf.mxu0
        %v4479 = vadd.f32 0.0, %v4478
        %v4480 = vpop.f32.mrf.mxu0
        %v4481 = vpop.f32.mrf.mxu0
        %v4482 = vadd.f32 0.0, %v4481
        %v4483 = vpop.f32.mrf.mxu0
        %4484 = vmatprep.mubr.bf16.mxu0 0
        %4485 = vmatmul.mubr.bf16.gmra.mxu0 %v4309
        %v4486 = vpop.f32.mrf.mxu0
        %v4487 = vadd.f32 0.0, %v4486
        %v4488 = vpop.f32.mrf.mxu0
        %v4489 = vpop.f32.mrf.mxu0
        %v4490 = vadd.f32 0.0, %v4489
        %v4491 = vpop.f32.mrf.mxu0
        %4492 = vmatprep.mubr.bf16.mxu0 0
        %4493 = vmatmul.mubr.bf16.gmra.mxu0 %v4310
        %v4494 = vpop.f32.mrf.mxu0
        %v4495 = vadd.f32 0.0, %v4494
        %v4496 = vpop.f32.mrf.mxu0
        %v4497 = vpop.f32.mrf.mxu0
        %v4498 = vadd.f32 0.0, %v4497
        %v4499 = vpop.f32.mrf.mxu0
        %4500 = vmatprep.mubr.bf16.mxu0 0
        %4501 = vmatmul.mubr.bf16.gmra.mxu0 %v4311
        %v4502 = vpop.f32.mrf.mxu0
        %v4503 = vadd.f32 0.0, %v4502
        %v4504 = vpop.f32.mrf.mxu0
        %v4505 = vpop.f32.mrf.mxu0
        %v4506 = vadd.f32 0.0, %v4505
        %v4507 = vpop.f32.mrf.mxu0
        %4508 = vmatprep.mubr.bf16.mxu0 0
        %4509 = vmatmul.mubr.bf16.gmra.mxu0 %v4312
        %v4510 = vpop.f32.mrf.mxu0
        %v4511 = vadd.f32 0.0, %v4510
        %v4512 = vpop.f32.mrf.mxu0
        %v4513 = vpop.f32.mrf.mxu0
        %v4514 = vadd.f32 0.0, %v4513
        %v4515 = vpop.f32.mrf.mxu0
        %4516 = vmatprep.mubr.bf16.mxu0 0
        %4517 = vmatmul.mubr.bf16.gmra.mxu0 %v4313
        %v4518 = vpop.f32.mrf.mxu0
        %v4519 = vadd.f32 0.0, %v4518
        %v4520 = vpop.f32.mrf.mxu0
        %v4521 = vpop.f32.mrf.mxu0
        %v4522 = vadd.f32 0.0, %v4521
        %v4523 = vpop.f32.mrf.mxu0
        %4524 = vmatprep.mubr.bf16.mxu0 0
        %4525 = vmatmul.mubr.bf16.gmra.mxu0 %v4314
        %v4526 = vpop.f32.mrf.mxu0
        %v4527 = vadd.f32 0.0, %v4526
        %v4528 = vpop.f32.mrf.mxu0
        %v4529 = vpop.f32.mrf.mxu0
        %v4530 = vadd.f32 0.0, %v4529
        %v4531 = vpop.f32.mrf.mxu0
        %4532 = vmatprep.mubr.bf16.mxu0 0
        %4533 = vmatmul.mubr.bf16.gmra.mxu0 %v4315
        %v4534 = vpop.f32.mrf.mxu0
        %v4535 = vadd.f32 0.0, %v4534
        %v4536 = vpop.f32.mrf.mxu0
        %v4537 = vpop.f32.mrf.mxu0
        %v4538 = vadd.f32 0.0, %v4537
        %v4539 = vpop.f32.mrf.mxu0
        %4540 = vdwg.mxu0
        %v4541 = vadd.f32 %v4155, %v4415
        %v4542 = vadd.f32 %v4156, %v4418
        %v4543 = vadd.f32 %v4157, %v4423
        %v4544 = vadd.f32 %v4158, %v4426
        %v4545 = vadd.f32 %v4159, %v4431
        %v4546 = vadd.f32 %v4160, %v4434
        %v4547 = vadd.f32 %v4161, %v4439
        %v4548 = vadd.f32 %v4162, %v4442
        %v4549 = vadd.f32 %v4163, %v4447
        %v4550 = vadd.f32 %v4164, %v4450
        %v4551 = vadd.f32 %v4165, %v4455
        %v4552 = vadd.f32 %v4166, %v4458
        %v4553 = vadd.f32 %v4167, %v4463
        %v4554 = vadd.f32 %v4168, %v4466
        %v4555 = vadd.f32 %v4169, %v4471
        %v4556 = vadd.f32 %v4170, %v4474
        %v4557 = vadd.f32 %v4171, %v4479
        %v4558 = vadd.f32 %v4172, %v4482
        %v4559 = vadd.f32 %v4173, %v4487
        %v4560 = vadd.f32 %v4174, %v4490
        %v4561 = vadd.f32 %v4175, %v4495
        %v4562 = vadd.f32 %v4176, %v4498
        %v4563 = vadd.f32 %v4177, %v4503
        %v4564 = vadd.f32 %v4178, %v4506
        %v4565 = vadd.f32 %v4179, %v4511
        %v4566 = vadd.f32 %v4180, %v4514
        %v4567 = vadd.f32 %v4181, %v4519
        %v4568 = vadd.f32 %v4182, %v4522
        %v4569 = vadd.f32 %v4183, %v4527
        %v4570 = vadd.f32 %v4184, %v4530
        %v4571 = vadd.f32 %v4185, %v4535
        %v4572 = vadd.f32 %v4186, %v4538
        %v4573 = vld [vmem:[%s4187] sm:$0xf]
        %v4574 = vld [vmem:[%s4187 + $0x4] sm:$0xf]
        %v4575 = vld [vmem:[%s4187 + $0x8] sm:$0x1]
        %v4576 = vld [vmem:[%s4187 + $0xc] sm:$0xf]
        %v4577 = vld [vmem:[%s4187 + $0x10] sm:$0xf]
        %v4578 = vld [vmem:[%s4187 + $0x14] sm:$0x1]
        %v4579 = vld [vmem:[%s4187 + $0x18] sm:$0xf]
        %v4580 = vld [vmem:[%s4187 + $0x1c] sm:$0xf]
        %v4581 = vld [vmem:[%s4187 + $0x20] sm:$0x1]
        %v4582 = vld [vmem:[%s4187 + $0x24] sm:$0xf]
        %v4583 = vld [vmem:[%s4187 + $0x28] sm:$0xf]
        %v4584 = vld [vmem:[%s4187 + $0x2c] sm:$0x1]
        %v4585 = vld [vmem:[%s4187 + $0x30] sm:$0xf]
        %v4586 = vld [vmem:[%s4187 + $0x34] sm:$0xf]
        %v4587 = vld [vmem:[%s4187 + $0x38] sm:$0x1]
        %v4588 = vld [vmem:[%s4187 + $0x3c] sm:$0xf]
        %v4589 = vld [vmem:[%s4187 + $0x40] sm:$0xf]
        %v4590 = vld [vmem:[%s4187 + $0x44] sm:$0x1]
        %v4591 = vld [vmem:[%s4187 + $0x48] sm:$0xf]
        %v4592 = vld [vmem:[%s4187 + $0x4c] sm:$0xf]
        %v4593 = vld [vmem:[%s4187 + $0x50] sm:$0x1]
        %v4594 = vld [vmem:[%s4187 + $0x54] sm:$0xf]
        %v4595 = vld [vmem:[%s4187 + $0x58] sm:$0xf]
        %v4596 = vld [vmem:[%s4187 + $0x5c] sm:$0x1]
        %v4597 = vld [vmem:[%s4187 + $0x60] sm:$0xf]
        %v4598 = vld [vmem:[%s4187 + $0x64] sm:$0xf]
        %v4599 = vld [vmem:[%s4187 + $0x68] sm:$0x1]
        %v4600 = vld [vmem:[%s4187 + $0x6c] sm:$0xf]
        %v4601 = vld [vmem:[%s4187 + $0x70] sm:$0xf]
        %v4602 = vld [vmem:[%s4187 + $0x74] sm:$0x1]
        %v4603 = vld [vmem:[%s4187 + $0x78] sm:$0xf]
        %v4604 = vld [vmem:[%s4187 + $0x7c] sm:$0xf]
        %v4605 = vld [vmem:[%s4187 + $0x80] sm:$0x1]
        %v4606 = vld [vmem:[%s4187 + $0x84] sm:$0xf]
        %v4607 = vld [vmem:[%s4187 + $0x88] sm:$0xf]
        %v4608 = vld [vmem:[%s4187 + $0x8c] sm:$0x1]
        %v4609 = vld [vmem:[%s4187 + $0x90] sm:$0xf]
        %v4610 = vld [vmem:[%s4187 + $0x94] sm:$0xf]
        %v4611 = vld [vmem:[%s4187 + $0x98] sm:$0x1]
        %v4612 = vld [vmem:[%s4187 + $0x9c] sm:$0xf]
        %v4613 = vld [vmem:[%s4187 + $0xa0] sm:$0xf]
        %v4614 = vld [vmem:[%s4187 + $0xa4] sm:$0x1]
        %v4615 = vld [vmem:[%s4187 + $0xa8] sm:$0xf]
        %v4616 = vld [vmem:[%s4187 + $0xac] sm:$0xf]
        %v4617 = vld [vmem:[%s4187 + $0xb0] sm:$0x1]
        %v4618 = vld [vmem:[%s4187 + $0xb4] sm:$0xf]
        %v4619 = vld [vmem:[%s4187 + $0xb8] sm:$0xf]
        %v4620 = vld [vmem:[%s4187 + $0xbc] sm:$0x1]
        %v4622 = vshrl.u32 %v4573, 16
        %v4624 = vrot.slane %v4622, 4
        %v4625 = vshll.u32 %v4573, 16
        %v4627 = vrot.slane %v4625, 5
        %v4628 = vor.u32 %v4624, %v4627
        %v4629 = vrot.slane %v4628, 4
        %v4631 = vshll.u32 %v4574, 16
        %v4633 = vrot.slane %v4631, 5
        %v4634 = vsel %vm1089, %v4629, %v4633
        %v4635 = vshrl.u32 %v4574, 16
        %v4637 = vrot.slane %v4635, 4
        %v4638 = vor.u32 %v4637, %v4633
        %v4639 = vrot.slane %v4638, 4
        %v4641 = vshll.u32 %v4575, 16
        %v4643 = vrot.slane %v4641, 5
        %v4644 = vsel %vm1089, %v4639, %v4643
        %v4646 = vshrl.u32 %v4576, 16
        %v4648 = vrot.slane %v4646, 4
        %v4649 = vshll.u32 %v4576, 16
        %v4651 = vrot.slane %v4649, 5
        %v4652 = vor.u32 %v4648, %v4651
        %v4653 = vrot.slane %v4652, 4
        %v4655 = vshll.u32 %v4577, 16
        %v4657 = vrot.slane %v4655, 5
        %v4658 = vsel %vm1089, %v4653, %v4657
        %v4659 = vshrl.u32 %v4577, 16
        %v4661 = vrot.slane %v4659, 4
        %v4662 = vor.u32 %v4661, %v4657
        %v4663 = vrot.slane %v4662, 4
        %v4665 = vshll.u32 %v4578, 16
        %v4667 = vrot.slane %v4665, 5
        %v4668 = vsel %vm1089, %v4663, %v4667
        %v4670 = vshrl.u32 %v4579, 16
        %v4672 = vrot.slane %v4670, 4
        %v4673 = vshll.u32 %v4579, 16
        %v4675 = vrot.slane %v4673, 5
        %v4676 = vor.u32 %v4672, %v4675
        %v4677 = vrot.slane %v4676, 4
        %v4679 = vshll.u32 %v4580, 16
        %v4681 = vrot.slane %v4679, 5
        %v4682 = vsel %vm1089, %v4677, %v4681
        %v4683 = vshrl.u32 %v4580, 16
        %v4685 = vrot.slane %v4683, 4
        %v4686 = vor.u32 %v4685, %v4681
        %v4687 = vrot.slane %v4686, 4
        %v4689 = vshll.u32 %v4581, 16
        %v4691 = vrot.slane %v4689, 5
        %v4692 = vsel %vm1089, %v4687, %v4691
        %v4694 = vshrl.u32 %v4582, 16
        %v4696 = vrot.slane %v4694, 4
        %v4697 = vshll.u32 %v4582, 16
        %v4699 = vrot.slane %v4697, 5
        %v4700 = vor.u32 %v4696, %v4699
        %v4701 = vrot.slane %v4700, 4
        %v4703 = vshll.u32 %v4583, 16
        %v4705 = vrot.slane %v4703, 5
        %v4706 = vsel %vm1089, %v4701, %v4705
        %v4707 = vshrl.u32 %v4583, 16
        %v4709 = vrot.slane %v4707, 4
        %v4710 = vor.u32 %v4709, %v4705
        %v4711 = vrot.slane %v4710, 4
        %v4713 = vshll.u32 %v4584, 16
        %v4715 = vrot.slane %v4713, 5
        %v4716 = vsel %vm1089, %v4711, %v4715
        %v4718 = vshrl.u32 %v4585, 16
        %v4720 = vrot.slane %v4718, 4
        %v4721 = vshll.u32 %v4585, 16
        %v4723 = vrot.slane %v4721, 5
        %v4724 = vor.u32 %v4720, %v4723
        %v4725 = vrot.slane %v4724, 4
        %v4727 = vshll.u32 %v4586, 16
        %v4729 = vrot.slane %v4727, 5
        %v4730 = vsel %vm1089, %v4725, %v4729
        %v4731 = vshrl.u32 %v4586, 16
        %v4733 = vrot.slane %v4731, 4
        %v4734 = vor.u32 %v4733, %v4729
        %v4735 = vrot.slane %v4734, 4
        %v4737 = vshll.u32 %v4587, 16
        %v4739 = vrot.slane %v4737, 5
        %v4740 = vsel %vm1089, %v4735, %v4739
        %v4742 = vshrl.u32 %v4588, 16
        %v4744 = vrot.slane %v4742, 4
        %v4745 = vshll.u32 %v4588, 16
        %v4747 = vrot.slane %v4745, 5
        %v4748 = vor.u32 %v4744, %v4747
        %v4749 = vrot.slane %v4748, 4
        %v4751 = vshll.u32 %v4589, 16
        %v4753 = vrot.slane %v4751, 5
        %v4754 = vsel %vm1089, %v4749, %v4753
        %v4755 = vshrl.u32 %v4589, 16
        %v4757 = vrot.slane %v4755, 4
        %v4758 = vor.u32 %v4757, %v4753
        %v4759 = vrot.slane %v4758, 4
        %v4761 = vshll.u32 %v4590, 16
        %v4763 = vrot.slane %v4761, 5
        %v4764 = vsel %vm1089, %v4759, %v4763
        %v4766 = vshrl.u32 %v4591, 16
        %v4768 = vrot.slane %v4766, 4
        %v4769 = vshll.u32 %v4591, 16
        %v4771 = vrot.slane %v4769, 5
        %v4772 = vor.u32 %v4768, %v4771
        %v4773 = vrot.slane %v4772, 4
        %v4775 = vshll.u32 %v4592, 16
        %v4777 = vrot.slane %v4775, 5
        %v4778 = vsel %vm1089, %v4773, %v4777
        %v4779 = vshrl.u32 %v4592, 16
        %v4781 = vrot.slane %v4779, 4
        %v4782 = vor.u32 %v4781, %v4777
        %v4783 = vrot.slane %v4782, 4
        %v4785 = vshll.u32 %v4593, 16
        %v4787 = vrot.slane %v4785, 5
        %v4788 = vsel %vm1089, %v4783, %v4787
        %v4790 = vshrl.u32 %v4594, 16
        %v4792 = vrot.slane %v4790, 4
        %v4793 = vshll.u32 %v4594, 16
        %v4795 = vrot.slane %v4793, 5
        %v4796 = vor.u32 %v4792, %v4795
        %v4797 = vrot.slane %v4796, 4
        %v4799 = vshll.u32 %v4595, 16
        %v4801 = vrot.slane %v4799, 5
        %v4802 = vsel %vm1089, %v4797, %v4801
        %v4803 = vshrl.u32 %v4595, 16
        %v4805 = vrot.slane %v4803, 4
        %v4806 = vor.u32 %v4805, %v4801
        %v4807 = vrot.slane %v4806, 4
        %v4809 = vshll.u32 %v4596, 16
        %v4811 = vrot.slane %v4809, 5
        %v4812 = vsel %vm1089, %v4807, %v4811
        %v4814 = vshrl.u32 %v4597, 16
        %v4816 = vrot.slane %v4814, 4
        %v4817 = vshll.u32 %v4597, 16
        %v4819 = vrot.slane %v4817, 5
        %v4820 = vor.u32 %v4816, %v4819
        %v4821 = vrot.slane %v4820, 4
        %v4823 = vshll.u32 %v4598, 16
        %v4825 = vrot.slane %v4823, 5
        %v4826 = vsel %vm1089, %v4821, %v4825
        %v4827 = vshrl.u32 %v4598, 16
        %v4829 = vrot.slane %v4827, 4
        %v4830 = vor.u32 %v4829, %v4825
        %v4831 = vrot.slane %v4830, 4
        %v4833 = vshll.u32 %v4599, 16
        %v4835 = vrot.slane %v4833, 5
        %v4836 = vsel %vm1089, %v4831, %v4835
        %v4838 = vshrl.u32 %v4600, 16
        %v4840 = vrot.slane %v4838, 4
        %v4841 = vshll.u32 %v4600, 16
        %v4843 = vrot.slane %v4841, 5
        %v4844 = vor.u32 %v4840, %v4843
        %v4845 = vrot.slane %v4844, 4
        %v4847 = vshll.u32 %v4601, 16
        %v4849 = vrot.slane %v4847, 5
        %v4850 = vsel %vm1089, %v4845, %v4849
        %v4851 = vshrl.u32 %v4601, 16
        %v4853 = vrot.slane %v4851, 4
        %v4854 = vor.u32 %v4853, %v4849
        %v4855 = vrot.slane %v4854, 4
        %v4857 = vshll.u32 %v4602, 16
        %v4859 = vrot.slane %v4857, 5
        %v4860 = vsel %vm1089, %v4855, %v4859
        %v4862 = vshrl.u32 %v4603, 16
        %v4864 = vrot.slane %v4862, 4
        %v4865 = vshll.u32 %v4603, 16
        %v4867 = vrot.slane %v4865, 5
        %v4868 = vor.u32 %v4864, %v4867
        %v4869 = vrot.slane %v4868, 4
        %v4871 = vshll.u32 %v4604, 16
        %v4873 = vrot.slane %v4871, 5
        %v4874 = vsel %vm1089, %v4869, %v4873
        %v4875 = vshrl.u32 %v4604, 16
        %v4877 = vrot.slane %v4875, 4
        %v4878 = vor.u32 %v4877, %v4873
        %v4879 = vrot.slane %v4878, 4
        %v4881 = vshll.u32 %v4605, 16
        %v4883 = vrot.slane %v4881, 5
        %v4884 = vsel %vm1089, %v4879, %v4883
        %v4886 = vshrl.u32 %v4606, 16
        %v4888 = vrot.slane %v4886, 4
        %v4889 = vshll.u32 %v4606, 16
        %v4891 = vrot.slane %v4889, 5
        %v4892 = vor.u32 %v4888, %v4891
        %v4893 = vrot.slane %v4892, 4
        %v4895 = vshll.u32 %v4607, 16
        %v4897 = vrot.slane %v4895, 5
        %v4898 = vsel %vm1089, %v4893, %v4897
        %v4899 = vshrl.u32 %v4607, 16
        %v4901 = vrot.slane %v4899, 4
        %v4902 = vor.u32 %v4901, %v4897
        %v4903 = vrot.slane %v4902, 4
        %v4905 = vshll.u32 %v4608, 16
        %v4907 = vrot.slane %v4905, 5
        %v4908 = vsel %vm1089, %v4903, %v4907
        %v4910 = vshrl.u32 %v4609, 16
        %v4912 = vrot.slane %v4910, 4
        %v4913 = vshll.u32 %v4609, 16
        %v4915 = vrot.slane %v4913, 5
        %v4916 = vor.u32 %v4912, %v4915
        %v4917 = vrot.slane %v4916, 4
        %v4919 = vshll.u32 %v4610, 16
        %v4921 = vrot.slane %v4919, 5
        %v4922 = vsel %vm1089, %v4917, %v4921
        %v4923 = vshrl.u32 %v4610, 16
        %v4925 = vrot.slane %v4923, 4
        %v4926 = vor.u32 %v4925, %v4921
        %v4927 = vrot.slane %v4926, 4
        %v4929 = vshll.u32 %v4611, 16
        %v4931 = vrot.slane %v4929, 5
        %v4932 = vsel %vm1089, %v4927, %v4931
        %v4934 = vshrl.u32 %v4612, 16
        %v4936 = vrot.slane %v4934, 4
        %v4937 = vshll.u32 %v4612, 16
        %v4939 = vrot.slane %v4937, 5
        %v4940 = vor.u32 %v4936, %v4939
        %v4941 = vrot.slane %v4940, 4
        %v4943 = vshll.u32 %v4613, 16
        %v4945 = vrot.slane %v4943, 5
        %v4946 = vsel %vm1089, %v4941, %v4945
        %v4947 = vshrl.u32 %v4613, 16
        %v4949 = vrot.slane %v4947, 4
        %v4950 = vor.u32 %v4949, %v4945
        %v4951 = vrot.slane %v4950, 4
        %v4953 = vshll.u32 %v4614, 16
        %v4955 = vrot.slane %v4953, 5
        %v4956 = vsel %vm1089, %v4951, %v4955
        %v4958 = vshrl.u32 %v4615, 16
        %v4960 = vrot.slane %v4958, 4
        %v4961 = vshll.u32 %v4615, 16
        %v4963 = vrot.slane %v4961, 5
        %v4964 = vor.u32 %v4960, %v4963
        %v4965 = vrot.slane %v4964, 4
        %v4967 = vshll.u32 %v4616, 16
        %v4969 = vrot.slane %v4967, 5
        %v4970 = vsel %vm1089, %v4965, %v4969
        %v4971 = vshrl.u32 %v4616, 16
        %v4973 = vrot.slane %v4971, 4
        %v4974 = vor.u32 %v4973, %v4969
        %v4975 = vrot.slane %v4974, 4
        %v4977 = vshll.u32 %v4617, 16
        %v4979 = vrot.slane %v4977, 5
        %v4980 = vsel %vm1089, %v4975, %v4979
        %v4982 = vshrl.u32 %v4618, 16
        %v4984 = vrot.slane %v4982, 4
        %v4985 = vshll.u32 %v4618, 16
        %v4987 = vrot.slane %v4985, 5
        %v4988 = vor.u32 %v4984, %v4987
        %v4989 = vrot.slane %v4988, 4
        %v4991 = vshll.u32 %v4619, 16
        %v4993 = vrot.slane %v4991, 5
        %v4994 = vsel %vm1089, %v4989, %v4993
        %v4995 = vshrl.u32 %v4619, 16
        %v4997 = vrot.slane %v4995, 4
        %v4998 = vor.u32 %v4997, %v4993
        %v4999 = vrot.slane %v4998, 4
        %v5001 = vshll.u32 %v4620, 16
        %v5003 = vrot.slane %v5001, 5
        %v5004 = vsel %vm1089, %v4999, %v5003
        %v5005 = vld [vmem:[#allocation7 + $0x1c0] sm:$0xf]
        %v5006 = vld [vmem:[#allocation7 + $0x1c4] sm:$0xf]
        %v5007 = vld [vmem:[#allocation7 + $0x1c8] sm:$0xf]
        %v5008 = vld [vmem:[#allocation7 + $0x1cc] sm:$0xf]
        %v5009 = vld [vmem:[#allocation7 + $0x1d0] sm:$0xf]
        %v5010 = vld [vmem:[#allocation7 + $0x1d4] sm:$0xf]
        %v5011 = vld [vmem:[#allocation7 + $0x1d8] sm:$0xf]
        %v5012 = vld [vmem:[#allocation7 + $0x1dc] sm:$0xf]
        %v5013 = vld [vmem:[#allocation7 + $0x1e0] sm:$0xf]
        %v5014 = vld [vmem:[#allocation7 + $0x1e4] sm:$0xf]
        %v5015 = vld [vmem:[#allocation7 + $0x1e8] sm:$0xf]
        %v5016 = vld [vmem:[#allocation7 + $0x1ec] sm:$0xf]
        %v5017 = vld [vmem:[#allocation7 + $0x1f0] sm:$0xf]
        %v5018 = vld [vmem:[#allocation7 + $0x1f4] sm:$0xf]
        %v5019 = vld [vmem:[#allocation7 + $0x1f8] sm:$0xf]
        %v5020 = vld [vmem:[#allocation7 + $0x1fc] sm:$0xf]
        %v5021 = vunpack.c.l.b16 %v4634
        %v5022 = vunpack.c.l.b16 %v4644
        %v5023 = vunpack.c.l.b16 %v4658
        %v5024 = vunpack.c.l.b16 %v4668
        %v5025 = vunpack.c.l.b16 %v4682
        %v5026 = vunpack.c.l.b16 %v4692
        %v5027 = vunpack.c.l.b16 %v4706
        %v5028 = vunpack.c.l.b16 %v4716
        %v5029 = vunpack.c.l.b16 %v4730
        %v5030 = vunpack.c.l.b16 %v4740
        %v5031 = vunpack.c.l.b16 %v4754
        %v5032 = vunpack.c.l.b16 %v4764
        %v5033 = vunpack.c.l.b16 %v4778
        %v5034 = vunpack.c.l.b16 %v4788
        %v5035 = vunpack.c.l.b16 %v4802
        %v5036 = vunpack.c.l.b16 %v4812
        %v5037 = vunpack.c.l.b16 %v4826
        %v5038 = vunpack.c.l.b16 %v4836
        %v5039 = vunpack.c.l.b16 %v4850
        %v5040 = vunpack.c.l.b16 %v4860
        %v5041 = vunpack.c.l.b16 %v4874
        %v5042 = vunpack.c.l.b16 %v4884
        %v5043 = vunpack.c.l.b16 %v4898
        %v5044 = vunpack.c.l.b16 %v4908
        %v5045 = vunpack.c.l.b16 %v4922
        %v5046 = vunpack.c.l.b16 %v4932
        %v5047 = vunpack.c.l.b16 %v4946
        %v5048 = vunpack.c.l.b16 %v4956
        %v5049 = vunpack.c.l.b16 %v4970
        %v5050 = vunpack.c.l.b16 %v4980
        %v5051 = vunpack.c.l.b16 %v4994
        %v5052 = vunpack.c.l.b16 %v5004
        %v5053 = vpack.c.b16 %v5022, %v5021
        %v5054 = vpack.c.b16 %v5024, %v5023
        %v5055 = vpack.c.b16 %v5026, %v5025
        %v5056 = vpack.c.b16 %v5028, %v5027
        %v5057 = vpack.c.b16 %v5030, %v5029
        %v5058 = vpack.c.b16 %v5032, %v5031
        %v5059 = vpack.c.b16 %v5034, %v5033
        %v5060 = vpack.c.b16 %v5036, %v5035
        %v5061 = vpack.c.b16 %v5038, %v5037
        %v5062 = vpack.c.b16 %v5040, %v5039
        %v5063 = vpack.c.b16 %v5042, %v5041
        %v5064 = vpack.c.b16 %v5044, %v5043
        %v5065 = vpack.c.b16 %v5046, %v5045
        %v5066 = vpack.c.b16 %v5048, %v5047
        %v5067 = vpack.c.b16 %v5050, %v5049
        %v5068 = vpack.c.b16 %v5052, %v5051
        %v5101 = vunpack.c.l.b16 %v5005
        %v5102 = vunpack.c.l.b16 %v5006
        %v5103 = vunpack.c.l.b16 %v5007
        %v5104 = vunpack.c.l.b16 %v5008
        %v5105 = vunpack.c.l.b16 %v5009
        %v5106 = vunpack.c.l.b16 %v5010
        %v5107 = vunpack.c.l.b16 %v5011
        %v5108 = vunpack.c.l.b16 %v5012
        %v5109 = vunpack.c.l.b16 %v5013
        %v5110 = vunpack.c.l.b16 %v5014
        %v5111 = vunpack.c.l.b16 %v5015
        %v5112 = vunpack.c.l.b16 %v5016
        %v5113 = vunpack.c.l.b16 %v5017
        %v5114 = vunpack.c.l.b16 %v5018
        %v5115 = vunpack.c.l.b16 %v5019
        %v5116 = vunpack.c.l.b16 %v5020
        %v5117 = vpack.c.b16 %v5102, %v5101
        %v5118 = vpack.c.b16 %v5104, %v5103
        %v5119 = vpack.c.b16 %v5106, %v5105
        %v5120 = vpack.c.b16 %v5108, %v5107
        %v5121 = vpack.c.b16 %v5110, %v5109
        %v5122 = vpack.c.b16 %v5112, %v5111
        %v5123 = vpack.c.b16 %v5114, %v5113
        %v5124 = vpack.c.b16 %v5116, %v5115
        %5133 = vmatprep.subr.bf16.mxu0 0
        %5134 = vmatpush1.bf16.msra.mxu0 %v5124
        %5135 = vmatprep.subr.bf16.mxu0 0
        %5136 = vmatpush1.bf16.msra.mxu0 %v5123
        %5137 = vmatprep.subr.bf16.mxu0 0
        %5138 = vmatpush1.bf16.msra.mxu0 %v5122
        %5139 = vmatprep.subr.bf16.mxu0 0
        %5140 = vmatpush1.bf16.msra.mxu0 %v5121
        %5141 = vmatprep.subr.bf16.mxu0 0
        %5142 = vmatpush1.bf16.msra.mxu0 %v5120
        %5143 = vmatprep.subr.bf16.mxu0 0
        %5144 = vmatpush1.bf16.msra.mxu0 %v5119
        %5145 = vmatprep.subr.bf16.mxu0 0
        %5146 = vmatpush1.bf16.msra.mxu0 %v5118
        %5147 = vmatprep.subr.bf16.mxu0 0
        %5148 = vmatpush1.bf16.msra.mxu0 %v5117
        %5149 = vmatprep.subr.bf16.mxu0 0
        %5150 = vmatpush2.bf16.msra.mxu0 0
        %5151 = vmatprep.subr.bf16.mxu0 0
        %5152 = vmatpush2.bf16.msra.mxu0 0
        %5153 = vmatprep.subr.bf16.mxu0 0
        %5154 = vmatpush2.bf16.msra.mxu0 0
        %5155 = vmatprep.subr.bf16.mxu0 0
        %5156 = vmatpush2.bf16.msra.mxu0 0
        %5157 = vmatprep.subr.bf16.mxu0 0
        %5158 = vmatpush2.bf16.msra.mxu0 0
        %5159 = vmatprep.subr.bf16.mxu0 0
        %5160 = vmatpush2.bf16.msra.mxu0 0
        %5161 = vmatprep.subr.bf16.mxu0 0
        %5162 = vmatpush2.bf16.msra.mxu0 0
        %5163 = vmatprep.subr.bf16.mxu0 0
        %5164 = vmatpush2.bf16.msra.mxu0 0
        %5165 = vmatprep.mubr.bf16.mxu0 0
        %5166 = vmatmul.mubr.bf16.gmra.mxu0 %v5053
        %v5167 = vpop.f32.mrf.mxu0
        %v5168 = vadd.f32 0.0, %v5167
        %v5169 = vpop.f32.mrf.mxu0
        %v5170 = vpop.f32.mrf.mxu0
        %v5171 = vadd.f32 0.0, %v5170
        %v5172 = vpop.f32.mrf.mxu0
        %5173 = vmatprep.mubr.bf16.mxu0 0
        %5174 = vmatmul.mubr.bf16.gmra.mxu0 %v5054
        %v5175 = vpop.f32.mrf.mxu0
        %v5176 = vadd.f32 0.0, %v5175
        %v5177 = vpop.f32.mrf.mxu0
        %v5178 = vpop.f32.mrf.mxu0
        %v5179 = vadd.f32 0.0, %v5178
        %v5180 = vpop.f32.mrf.mxu0
        %5181 = vmatprep.mubr.bf16.mxu0 0
        %5182 = vmatmul.mubr.bf16.gmra.mxu0 %v5055
        %v5183 = vpop.f32.mrf.mxu0
        %v5184 = vadd.f32 0.0, %v5183
        %v5185 = vpop.f32.mrf.mxu0
        %v5186 = vpop.f32.mrf.mxu0
        %v5187 = vadd.f32 0.0, %v5186
        %v5188 = vpop.f32.mrf.mxu0
        %5189 = vmatprep.mubr.bf16.mxu0 0
        %5190 = vmatmul.mubr.bf16.gmra.mxu0 %v5056
        %v5191 = vpop.f32.mrf.mxu0
        %v5192 = vadd.f32 0.0, %v5191
        %v5193 = vpop.f32.mrf.mxu0
        %v5194 = vpop.f32.mrf.mxu0
        %v5195 = vadd.f32 0.0, %v5194
        %v5196 = vpop.f32.mrf.mxu0
        %5197 = vmatprep.mubr.bf16.mxu0 0
        %5198 = vmatmul.mubr.bf16.gmra.mxu0 %v5057
        %v5199 = vpop.f32.mrf.mxu0
        %v5200 = vadd.f32 0.0, %v5199
        %v5201 = vpop.f32.mrf.mxu0
        %v5202 = vpop.f32.mrf.mxu0
        %v5203 = vadd.f32 0.0, %v5202
        %v5204 = vpop.f32.mrf.mxu0
        %5205 = vmatprep.mubr.bf16.mxu0 0
        %5206 = vmatmul.mubr.bf16.gmra.mxu0 %v5058
        %v5207 = vpop.f32.mrf.mxu0
        %v5208 = vadd.f32 0.0, %v5207
        %v5209 = vpop.f32.mrf.mxu0
        %v5210 = vpop.f32.mrf.mxu0
        %v5211 = vadd.f32 0.0, %v5210
        %v5212 = vpop.f32.mrf.mxu0
        %5213 = vmatprep.mubr.bf16.mxu0 0
        %5214 = vmatmul.mubr.bf16.gmra.mxu0 %v5059
        %v5215 = vpop.f32.mrf.mxu0
        %v5216 = vadd.f32 0.0, %v5215
        %v5217 = vpop.f32.mrf.mxu0
        %v5218 = vpop.f32.mrf.mxu0
        %v5219 = vadd.f32 0.0, %v5218
        %v5220 = vpop.f32.mrf.mxu0
        %5221 = vmatprep.mubr.bf16.mxu0 0
        %5222 = vmatmul.mubr.bf16.gmra.mxu0 %v5060
        %v5223 = vpop.f32.mrf.mxu0
        %v5224 = vadd.f32 0.0, %v5223
        %v5225 = vpop.f32.mrf.mxu0
        %v5226 = vpop.f32.mrf.mxu0
        %v5227 = vadd.f32 0.0, %v5226
        %v5228 = vpop.f32.mrf.mxu0
        %5229 = vmatprep.mubr.bf16.mxu0 0
        %5230 = vmatmul.mubr.bf16.gmra.mxu0 %v5061
        %v5231 = vpop.f32.mrf.mxu0
        %v5232 = vadd.f32 0.0, %v5231
        %v5233 = vpop.f32.mrf.mxu0
        %v5234 = vpop.f32.mrf.mxu0
        %v5235 = vadd.f32 0.0, %v5234
        %v5236 = vpop.f32.mrf.mxu0
        %5237 = vmatprep.mubr.bf16.mxu0 0
        %5238 = vmatmul.mubr.bf16.gmra.mxu0 %v5062
        %v5239 = vpop.f32.mrf.mxu0
        %v5240 = vadd.f32 0.0, %v5239
        %v5241 = vpop.f32.mrf.mxu0
        %v5242 = vpop.f32.mrf.mxu0
        %v5243 = vadd.f32 0.0, %v5242
        %v5244 = vpop.f32.mrf.mxu0
        %5245 = vmatprep.mubr.bf16.mxu0 0
        %5246 = vmatmul.mubr.bf16.gmra.mxu0 %v5063
        %v5247 = vpop.f32.mrf.mxu0
        %v5248 = vadd.f32 0.0, %v5247
        %v5249 = vpop.f32.mrf.mxu0
        %v5250 = vpop.f32.mrf.mxu0
        %v5251 = vadd.f32 0.0, %v5250
        %v5252 = vpop.f32.mrf.mxu0
        %5253 = vmatprep.mubr.bf16.mxu0 0
        %5254 = vmatmul.mubr.bf16.gmra.mxu0 %v5064
        %v5255 = vpop.f32.mrf.mxu0
        %v5256 = vadd.f32 0.0, %v5255
        %v5257 = vpop.f32.mrf.mxu0
        %v5258 = vpop.f32.mrf.mxu0
        %v5259 = vadd.f32 0.0, %v5258
        %v5260 = vpop.f32.mrf.mxu0
        %5261 = vmatprep.mubr.bf16.mxu0 0
        %5262 = vmatmul.mubr.bf16.gmra.mxu0 %v5065
        %v5263 = vpop.f32.mrf.mxu0
        %v5264 = vadd.f32 0.0, %v5263
        %v5265 = vpop.f32.mrf.mxu0
        %v5266 = vpop.f32.mrf.mxu0
        %v5267 = vadd.f32 0.0, %v5266
        %v5268 = vpop.f32.mrf.mxu0
        %5269 = vmatprep.mubr.bf16.mxu0 0
        %5270 = vmatmul.mubr.bf16.gmra.mxu0 %v5066
        %v5271 = vpop.f32.mrf.mxu0
        %v5272 = vadd.f32 0.0, %v5271
        %v5273 = vpop.f32.mrf.mxu0
        %v5274 = vpop.f32.mrf.mxu0
        %v5275 = vadd.f32 0.0, %v5274
        %v5276 = vpop.f32.mrf.mxu0
        %5277 = vmatprep.mubr.bf16.mxu0 0
        %5278 = vmatmul.mubr.bf16.gmra.mxu0 %v5067
        %v5279 = vpop.f32.mrf.mxu0
        %v5280 = vadd.f32 0.0, %v5279
        %v5281 = vpop.f32.mrf.mxu0
        %v5282 = vpop.f32.mrf.mxu0
        %v5283 = vadd.f32 0.0, %v5282
        %v5284 = vpop.f32.mrf.mxu0
        %5285 = vmatprep.mubr.bf16.mxu0 0
        %5286 = vmatmul.mubr.bf16.gmra.mxu0 %v5068
        %v5287 = vpop.f32.mrf.mxu0
        %v5288 = vadd.f32 0.0, %v5287
        %v5289 = vpop.f32.mrf.mxu0
        %v5290 = vpop.f32.mrf.mxu0
        %v5291 = vadd.f32 0.0, %v5290
        %v5292 = vpop.f32.mrf.mxu0
        %5293 = vdwg.mxu0
        %v5294 = vadd.f32 %v4541, %v5168
        %v5295 = vadd.f32 %v4542, %v5171
        %v5296 = vadd.f32 %v4543, %v5176
        %v5297 = vadd.f32 %v4544, %v5179
        %v5298 = vadd.f32 %v4545, %v5184
        %v5299 = vadd.f32 %v4546, %v5187
        %v5300 = vadd.f32 %v4547, %v5192
        %v5301 = vadd.f32 %v4548, %v5195
        %v5302 = vadd.f32 %v4549, %v5200
        %v5303 = vadd.f32 %v4550, %v5203
        %v5304 = vadd.f32 %v4551, %v5208
        %v5305 = vadd.f32 %v4552, %v5211
        %v5306 = vadd.f32 %v4553, %v5216
        %v5307 = vadd.f32 %v4554, %v5219
        %v5308 = vadd.f32 %v4555, %v5224
        %v5309 = vadd.f32 %v4556, %v5227
        %v5310 = vadd.f32 %v4557, %v5232
        %v5311 = vadd.f32 %v4558, %v5235
        %v5312 = vadd.f32 %v4559, %v5240
        %v5313 = vadd.f32 %v4560, %v5243
        %v5314 = vadd.f32 %v4561, %v5248
        %v5315 = vadd.f32 %v4562, %v5251
        %v5316 = vadd.f32 %v4563, %v5256
        %v5317 = vadd.f32 %v4564, %v5259
        %v5318 = vadd.f32 %v4565, %v5264
        %v5319 = vadd.f32 %v4566, %v5267
        %v5320 = vadd.f32 %v4567, %v5272
        %v5321 = vadd.f32 %v4568, %v5275
        %v5322 = vadd.f32 %v4569, %v5280
        %v5323 = vadd.f32 %v4570, %v5283
        %v5324 = vadd.f32 %v4571, %v5288
        %v5325 = vadd.f32 %v4572, %v5291
        %v5326 = vld [vmem:[%s4187] sm:$0xe]
        %v5327 = vld [vmem:[%s4187 + $0xc] sm:$0xe]
        %v5328 = vld [vmem:[%s4187 + $0x18] sm:$0xe]
        %v5329 = vld [vmem:[%s4187 + $0x24] sm:$0xe]
        %v5330 = vld [vmem:[%s4187 + $0x30] sm:$0xe]
        %v5331 = vld [vmem:[%s4187 + $0x3c] sm:$0xe]
        %v5332 = vld [vmem:[%s4187 + $0x48] sm:$0xe]
        %v5333 = vld [vmem:[%s4187 + $0x54] sm:$0xe]
        %v5334 = vld [vmem:[%s4187 + $0x60] sm:$0xe]
        %v5335 = vld [vmem:[%s4187 + $0x6c] sm:$0xe]
        %v5336 = vld [vmem:[%s4187 + $0x78] sm:$0xe]
        %v5337 = vld [vmem:[%s4187 + $0x84] sm:$0xe]
        %v5338 = vld [vmem:[%s4187 + $0x90] sm:$0xe]
        %v5339 = vld [vmem:[%s4187 + $0x9c] sm:$0xe]
        %v5340 = vld [vmem:[%s4187 + $0xa8] sm:$0xe]
        %v5341 = vld [vmem:[%s4187 + $0xb4] sm:$0xe]
        %v5390 = vrot.slane %v5326, 5
        %v5391 = vrot.slane %v5390, 4
        %v5392 = vrot.slane %v4574, 5
        %v5393 = vsel %vm2118, %v5391, %v5392
        %v5394 = vrot.slane %v5392, 4
        %v5395 = vrot.slane %v4575, 5
        %v5396 = vsel %vm2118, %v5394, %v5395
        %v5397 = vrot.slane %v5327, 5
        %v5398 = vrot.slane %v5397, 4
        %v5399 = vrot.slane %v4577, 5
        %v5400 = vsel %vm2118, %v5398, %v5399
        %v5401 = vrot.slane %v5399, 4
        %v5402 = vrot.slane %v4578, 5
        %v5403 = vsel %vm2118, %v5401, %v5402
        %v5404 = vrot.slane %v5328, 5
        %v5405 = vrot.slane %v5404, 4
        %v5406 = vrot.slane %v4580, 5
        %v5407 = vsel %vm2118, %v5405, %v5406
        %v5408 = vrot.slane %v5406, 4
        %v5409 = vrot.slane %v4581, 5
        %v5410 = vsel %vm2118, %v5408, %v5409
        %v5411 = vrot.slane %v5329, 5
        %v5412 = vrot.slane %v5411, 4
        %v5413 = vrot.slane %v4583, 5
        %v5414 = vsel %vm2118, %v5412, %v5413
        %v5415 = vrot.slane %v5413, 4
        %v5416 = vrot.slane %v4584, 5
        %v5417 = vsel %vm2118, %v5415, %v5416
        %v5418 = vrot.slane %v5330, 5
        %v5419 = vrot.slane %v5418, 4
        %v5420 = vrot.slane %v4586, 5
        %v5421 = vsel %vm2118, %v5419, %v5420
        %v5422 = vrot.slane %v5420, 4
        %v5423 = vrot.slane %v4587, 5
        %v5424 = vsel %vm2118, %v5422, %v5423
        %v5425 = vrot.slane %v5331, 5
        %v5426 = vrot.slane %v5425, 4
        %v5427 = vrot.slane %v4589, 5
        %v5428 = vsel %vm2118, %v5426, %v5427
        %v5429 = vrot.slane %v5427, 4
        %v5430 = vrot.slane %v4590, 5
        %v5431 = vsel %vm2118, %v5429, %v5430
        %v5432 = vrot.slane %v5332, 5
        %v5433 = vrot.slane %v5432, 4
        %v5434 = vrot.slane %v4592, 5
        %v5435 = vsel %vm2118, %v5433, %v5434
        %v5436 = vrot.slane %v5434, 4
        %v5437 = vrot.slane %v4593, 5
        %v5438 = vsel %vm2118, %v5436, %v5437
        %v5439 = vrot.slane %v5333, 5
        %v5440 = vrot.slane %v5439, 4
        %v5441 = vrot.slane %v4595, 5
        %v5442 = vsel %vm2118, %v5440, %v5441
        %v5443 = vrot.slane %v5441, 4
        %v5444 = vrot.slane %v4596, 5
        %v5445 = vsel %vm2118, %v5443, %v5444
        %v5446 = vrot.slane %v5334, 5
        %v5447 = vrot.slane %v5446, 4
        %v5448 = vrot.slane %v4598, 5
        %v5449 = vsel %vm2118, %v5447, %v5448
        %v5450 = vrot.slane %v5448, 4
        %v5451 = vrot.slane %v4599, 5
        %v5452 = vsel %vm2118, %v5450, %v5451
        %v5453 = vrot.slane %v5335, 5
        %v5454 = vrot.slane %v5453, 4
        %v5455 = vrot.slane %v4601, 5
        %v5456 = vsel %vm2118, %v5454, %v5455
        %v5457 = vrot.slane %v5455, 4
        %v5458 = vrot.slane %v4602, 5
        %v5459 = vsel %vm2118, %v5457, %v5458
        %v5460 = vrot.slane %v5336, 5
        %v5461 = vrot.slane %v5460, 4
        %v5462 = vrot.slane %v4604, 5
        %v5463 = vsel %vm2118, %v5461, %v5462
        %v5464 = vrot.slane %v5462, 4
        %v5465 = vrot.slane %v4605, 5
        %v5466 = vsel %vm2118, %v5464, %v5465
        %v5467 = vrot.slane %v5337, 5
        %v5468 = vrot.slane %v5467, 4
        %v5469 = vrot.slane %v4607, 5
        %v5470 = vsel %vm2118, %v5468, %v5469
        %v5471 = vrot.slane %v5469, 4
        %v5472 = vrot.slane %v4608, 5
        %v5473 = vsel %vm2118, %v5471, %v5472
        %v5474 = vrot.slane %v5338, 5
        %v5475 = vrot.slane %v5474, 4
        %v5476 = vrot.slane %v4610, 5
        %v5477 = vsel %vm2118, %v5475, %v5476
        %v5478 = vrot.slane %v5476, 4
        %v5479 = vrot.slane %v4611, 5
        %v5480 = vsel %vm2118, %v5478, %v5479
        %v5481 = vrot.slane %v5339, 5
        %v5482 = vrot.slane %v5481, 4
        %v5483 = vrot.slane %v4613, 5
        %v5484 = vsel %vm2118, %v5482, %v5483
        %v5485 = vrot.slane %v5483, 4
        %v5486 = vrot.slane %v4614, 5
        %v5487 = vsel %vm2118, %v5485, %v5486
        %v5488 = vrot.slane %v5340, 5
        %v5489 = vrot.slane %v5488, 4
        %v5490 = vrot.slane %v4616, 5
        %v5491 = vsel %vm2118, %v5489, %v5490
        %v5492 = vrot.slane %v5490, 4
        %v5493 = vrot.slane %v4617, 5
        %v5494 = vsel %vm2118, %v5492, %v5493
        %v5495 = vrot.slane %v5341, 5
        %v5496 = vrot.slane %v5495, 4
        %v5497 = vrot.slane %v4619, 5
        %v5498 = vsel %vm2118, %v5496, %v5497
        %v5499 = vrot.slane %v5497, 4
        %v5500 = vrot.slane %v4620, 5
        %v5501 = vsel %vm2118, %v5499, %v5500
        %v5502 = vld [vmem:[#allocation7 + $0x200] sm:$0xf]
        %v5503 = vld [vmem:[#allocation7 + $0x204] sm:$0xf]
        %v5504 = vld [vmem:[#allocation7 + $0x208] sm:$0xf]
        %v5505 = vld [vmem:[#allocation7 + $0x20c] sm:$0xf]
        %v5506 = vld [vmem:[#allocation7 + $0x210] sm:$0xf]
        %v5507 = vld [vmem:[#allocation7 + $0x214] sm:$0xf]
        %v5508 = vld [vmem:[#allocation7 + $0x218] sm:$0xf]
        %v5509 = vld [vmem:[#allocation7 + $0x21c] sm:$0xf]
        %v5510 = vld [vmem:[#allocation7 + $0x220] sm:$0xf]
        %v5511 = vld [vmem:[#allocation7 + $0x224] sm:$0xf]
        %v5512 = vld [vmem:[#allocation7 + $0x228] sm:$0xf]
        %v5513 = vld [vmem:[#allocation7 + $0x22c] sm:$0xf]
        %v5514 = vld [vmem:[#allocation7 + $0x230] sm:$0xf]
        %v5515 = vld [vmem:[#allocation7 + $0x234] sm:$0xf]
        %v5516 = vld [vmem:[#allocation7 + $0x238] sm:$0xf]
        %v5517 = vld [vmem:[#allocation7 + $0x23c] sm:$0xf]
        %v5518 = vunpack.c.l.b16 %v5393
        %v5519 = vunpack.c.l.b16 %v5396
        %v5520 = vunpack.c.l.b16 %v5400
        %v5521 = vunpack.c.l.b16 %v5403
        %v5522 = vunpack.c.l.b16 %v5407
        %v5523 = vunpack.c.l.b16 %v5410
        %v5524 = vunpack.c.l.b16 %v5414
        %v5525 = vunpack.c.l.b16 %v5417
        %v5526 = vunpack.c.l.b16 %v5421
        %v5527 = vunpack.c.l.b16 %v5424
        %v5528 = vunpack.c.l.b16 %v5428
        %v5529 = vunpack.c.l.b16 %v5431
        %v5530 = vunpack.c.l.b16 %v5435
        %v5531 = vunpack.c.l.b16 %v5438
        %v5532 = vunpack.c.l.b16 %v5442
        %v5533 = vunpack.c.l.b16 %v5445
        %v5534 = vunpack.c.l.b16 %v5449
        %v5535 = vunpack.c.l.b16 %v5452
        %v5536 = vunpack.c.l.b16 %v5456
        %v5537 = vunpack.c.l.b16 %v5459
        %v5538 = vunpack.c.l.b16 %v5463
        %v5539 = vunpack.c.l.b16 %v5466
        %v5540 = vunpack.c.l.b16 %v5470
        %v5541 = vunpack.c.l.b16 %v5473
        %v5542 = vunpack.c.l.b16 %v5477
        %v5543 = vunpack.c.l.b16 %v5480
        %v5544 = vunpack.c.l.b16 %v5484
        %v5545 = vunpack.c.l.b16 %v5487
        %v5546 = vunpack.c.l.b16 %v5491
        %v5547 = vunpack.c.l.b16 %v5494
        %v5548 = vunpack.c.l.b16 %v5498
        %v5549 = vunpack.c.l.b16 %v5501
        %v5550 = vpack.c.b16 %v5519, %v5518
        %v5551 = vpack.c.b16 %v5521, %v5520
        %v5552 = vpack.c.b16 %v5523, %v5522
        %v5553 = vpack.c.b16 %v5525, %v5524
        %v5554 = vpack.c.b16 %v5527, %v5526
        %v5555 = vpack.c.b16 %v5529, %v5528
        %v5556 = vpack.c.b16 %v5531, %v5530
        %v5557 = vpack.c.b16 %v5533, %v5532
        %v5558 = vpack.c.b16 %v5535, %v5534
        %v5559 = vpack.c.b16 %v5537, %v5536
        %v5560 = vpack.c.b16 %v5539, %v5538
        %v5561 = vpack.c.b16 %v5541, %v5540
        %v5562 = vpack.c.b16 %v5543, %v5542
        %v5563 = vpack.c.b16 %v5545, %v5544
        %v5564 = vpack.c.b16 %v5547, %v5546
        %v5565 = vpack.c.b16 %v5549, %v5548
        %v5598 = vunpack.c.l.b16 %v5502
        %v5599 = vunpack.c.l.b16 %v5503
        %v5600 = vunpack.c.l.b16 %v5504
        %v5601 = vunpack.c.l.b16 %v5505
        %v5602 = vunpack.c.l.b16 %v5506
        %v5603 = vunpack.c.l.b16 %v5507
        %v5604 = vunpack.c.l.b16 %v5508
        %v5605 = vunpack.c.l.b16 %v5509
        %v5606 = vunpack.c.l.b16 %v5510
        %v5607 = vunpack.c.l.b16 %v5511
        %v5608 = vunpack.c.l.b16 %v5512
        %v5609 = vunpack.c.l.b16 %v5513
        %v5610 = vunpack.c.l.b16 %v5514
        %v5611 = vunpack.c.l.b16 %v5515
        %v5612 = vunpack.c.l.b16 %v5516
        %v5613 = vunpack.c.l.b16 %v5517
        %v5614 = vpack.c.b16 %v5599, %v5598
        %v5615 = vpack.c.b16 %v5601, %v5600
        %v5616 = vpack.c.b16 %v5603, %v5602
        %v5617 = vpack.c.b16 %v5605, %v5604
        %v5618 = vpack.c.b16 %v5607, %v5606
        %v5619 = vpack.c.b16 %v5609, %v5608
        %v5620 = vpack.c.b16 %v5611, %v5610
        %v5621 = vpack.c.b16 %v5613, %v5612
        %5630 = vmatprep.subr.bf16.mxu0 0
        %5631 = vmatpush1.bf16.msra.mxu0 %v5621
        %5632 = vmatprep.subr.bf16.mxu0 0
        %5633 = vmatpush1.bf16.msra.mxu0 %v5620
        %5634 = vmatprep.subr.bf16.mxu0 0
        %5635 = vmatpush1.bf16.msra.mxu0 %v5619
        %5636 = vmatprep.subr.bf16.mxu0 0
        %5637 = vmatpush1.bf16.msra.mxu0 %v5618
        %5638 = vmatprep.subr.bf16.mxu0 0
        %5639 = vmatpush1.bf16.msra.mxu0 %v5617
        %5640 = vmatprep.subr.bf16.mxu0 0
        %5641 = vmatpush1.bf16.msra.mxu0 %v5616
        %5642 = vmatprep.subr.bf16.mxu0 0
        %5643 = vmatpush1.bf16.msra.mxu0 %v5615
        %5644 = vmatprep.subr.bf16.mxu0 0
        %5645 = vmatpush1.bf16.msra.mxu0 %v5614
        %5646 = vmatprep.subr.bf16.mxu0 0
        %5647 = vmatpush2.bf16.msra.mxu0 0
        %5648 = vmatprep.subr.bf16.mxu0 0
        %5649 = vmatpush2.bf16.msra.mxu0 0
        %5650 = vmatprep.subr.bf16.mxu0 0
        %5651 = vmatpush2.bf16.msra.mxu0 0
        %5652 = vmatprep.subr.bf16.mxu0 0
        %5653 = vmatpush2.bf16.msra.mxu0 0
        %5654 = vmatprep.subr.bf16.mxu0 0
        %5655 = vmatpush2.bf16.msra.mxu0 0
        %5656 = vmatprep.subr.bf16.mxu0 0
        %5657 = vmatpush2.bf16.msra.mxu0 0
        %5658 = vmatprep.subr.bf16.mxu0 0
        %5659 = vmatpush2.bf16.msra.mxu0 0
        %5660 = vmatprep.subr.bf16.mxu0 0
        %5661 = vmatpush2.bf16.msra.mxu0 0
        %5662 = vmatprep.mubr.bf16.mxu0 0
        %5663 = vmatmul.mubr.bf16.gmra.mxu0 %v5550
        %v5664 = vpop.f32.mrf.mxu0
        %v5665 = vadd.f32 0.0, %v5664
        %v5666 = vpop.f32.mrf.mxu0
        %v5667 = vpop.f32.mrf.mxu0
        %v5668 = vadd.f32 0.0, %v5667
        %v5669 = vpop.f32.mrf.mxu0
        %5670 = vmatprep.mubr.bf16.mxu0 0
        %5671 = vmatmul.mubr.bf16.gmra.mxu0 %v5551
        %v5672 = vpop.f32.mrf.mxu0
        %v5673 = vadd.f32 0.0, %v5672
        %v5674 = vpop.f32.mrf.mxu0
        %v5675 = vpop.f32.mrf.mxu0
        %v5676 = vadd.f32 0.0, %v5675
        %v5677 = vpop.f32.mrf.mxu0
        %5678 = vmatprep.mubr.bf16.mxu0 0
        %5679 = vmatmul.mubr.bf16.gmra.mxu0 %v5552
        %v5680 = vpop.f32.mrf.mxu0
        %v5681 = vadd.f32 0.0, %v5680
        %v5682 = vpop.f32.mrf.mxu0
        %v5683 = vpop.f32.mrf.mxu0
        %v5684 = vadd.f32 0.0, %v5683
        %v5685 = vpop.f32.mrf.mxu0
        %5686 = vmatprep.mubr.bf16.mxu0 0
        %5687 = vmatmul.mubr.bf16.gmra.mxu0 %v5553
        %v5688 = vpop.f32.mrf.mxu0
        %v5689 = vadd.f32 0.0, %v5688
        %v5690 = vpop.f32.mrf.mxu0
        %v5691 = vpop.f32.mrf.mxu0
        %v5692 = vadd.f32 0.0, %v5691
        %v5693 = vpop.f32.mrf.mxu0
        %5694 = vmatprep.mubr.bf16.mxu0 0
        %5695 = vmatmul.mubr.bf16.gmra.mxu0 %v5554
        %v5696 = vpop.f32.mrf.mxu0
        %v5697 = vadd.f32 0.0, %v5696
        %v5698 = vpop.f32.mrf.mxu0
        %v5699 = vpop.f32.mrf.mxu0
        %v5700 = vadd.f32 0.0, %v5699
        %v5701 = vpop.f32.mrf.mxu0
        %5702 = vmatprep.mubr.bf16.mxu0 0
        %5703 = vmatmul.mubr.bf16.gmra.mxu0 %v5555
        %v5704 = vpop.f32.mrf.mxu0
        %v5705 = vadd.f32 0.0, %v5704
        %v5706 = vpop.f32.mrf.mxu0
        %v5707 = vpop.f32.mrf.mxu0
        %v5708 = vadd.f32 0.0, %v5707
        %v5709 = vpop.f32.mrf.mxu0
        %5710 = vmatprep.mubr.bf16.mxu0 0
        %5711 = vmatmul.mubr.bf16.gmra.mxu0 %v5556
        %v5712 = vpop.f32.mrf.mxu0
        %v5713 = vadd.f32 0.0, %v5712
        %v5714 = vpop.f32.mrf.mxu0
        %v5715 = vpop.f32.mrf.mxu0
        %v5716 = vadd.f32 0.0, %v5715
        %v5717 = vpop.f32.mrf.mxu0
        %5718 = vmatprep.mubr.bf16.mxu0 0
        %5719 = vmatmul.mubr.bf16.gmra.mxu0 %v5557
        %v5720 = vpop.f32.mrf.mxu0
        %v5721 = vadd.f32 0.0, %v5720
        %v5722 = vpop.f32.mrf.mxu0
        %v5723 = vpop.f32.mrf.mxu0
        %v5724 = vadd.f32 0.0, %v5723
        %v5725 = vpop.f32.mrf.mxu0
        %5726 = vmatprep.mubr.bf16.mxu0 0
        %5727 = vmatmul.mubr.bf16.gmra.mxu0 %v5558
        %v5728 = vpop.f32.mrf.mxu0
        %v5729 = vadd.f32 0.0, %v5728
        %v5730 = vpop.f32.mrf.mxu0
        %v5731 = vpop.f32.mrf.mxu0
        %v5732 = vadd.f32 0.0, %v5731
        %v5733 = vpop.f32.mrf.mxu0
        %5734 = vmatprep.mubr.bf16.mxu0 0
        %5735 = vmatmul.mubr.bf16.gmra.mxu0 %v5559
        %v5736 = vpop.f32.mrf.mxu0
        %v5737 = vadd.f32 0.0, %v5736
        %v5738 = vpop.f32.mrf.mxu0
        %v5739 = vpop.f32.mrf.mxu0
        %v5740 = vadd.f32 0.0, %v5739
        %v5741 = vpop.f32.mrf.mxu0
        %5742 = vmatprep.mubr.bf16.mxu0 0
        %5743 = vmatmul.mubr.bf16.gmra.mxu0 %v5560
        %v5744 = vpop.f32.mrf.mxu0
        %v5745 = vadd.f32 0.0, %v5744
        %v5746 = vpop.f32.mrf.mxu0
        %v5747 = vpop.f32.mrf.mxu0
        %v5748 = vadd.f32 0.0, %v5747
        %v5749 = vpop.f32.mrf.mxu0
        %5750 = vmatprep.mubr.bf16.mxu0 0
        %5751 = vmatmul.mubr.bf16.gmra.mxu0 %v5561
        %v5752 = vpop.f32.mrf.mxu0
        %v5753 = vadd.f32 0.0, %v5752
        %v5754 = vpop.f32.mrf.mxu0
        %v5755 = vpop.f32.mrf.mxu0
        %v5756 = vadd.f32 0.0, %v5755
        %v5757 = vpop.f32.mrf.mxu0
        %5758 = vmatprep.mubr.bf16.mxu0 0
        %5759 = vmatmul.mubr.bf16.gmra.mxu0 %v5562
        %v5760 = vpop.f32.mrf.mxu0
        %v5761 = vadd.f32 0.0, %v5760
        %v5762 = vpop.f32.mrf.mxu0
        %v5763 = vpop.f32.mrf.mxu0
        %v5764 = vadd.f32 0.0, %v5763
        %v5765 = vpop.f32.mrf.mxu0
        %5766 = vmatprep.mubr.bf16.mxu0 0
        %5767 = vmatmul.mubr.bf16.gmra.mxu0 %v5563
        %v5768 = vpop.f32.mrf.mxu0
        %v5769 = vadd.f32 0.0, %v5768
        %v5770 = vpop.f32.mrf.mxu0
        %v5771 = vpop.f32.mrf.mxu0
        %v5772 = vadd.f32 0.0, %v5771
        %v5773 = vpop.f32.mrf.mxu0
        %5774 = vmatprep.mubr.bf16.mxu0 0
        %5775 = vmatmul.mubr.bf16.gmra.mxu0 %v5564
        %v5776 = vpop.f32.mrf.mxu0
        %v5777 = vadd.f32 0.0, %v5776
        %v5778 = vpop.f32.mrf.mxu0
        %v5779 = vpop.f32.mrf.mxu0
        %v5780 = vadd.f32 0.0, %v5779
        %v5781 = vpop.f32.mrf.mxu0
        %5782 = vmatprep.mubr.bf16.mxu0 0
        %5783 = vmatmul.mubr.bf16.gmra.mxu0 %v5565
        %v5784 = vpop.f32.mrf.mxu0
        %v5785 = vadd.f32 0.0, %v5784
        %v5786 = vpop.f32.mrf.mxu0
        %v5787 = vpop.f32.mrf.mxu0
        %v5788 = vadd.f32 0.0, %v5787
        %v5789 = vpop.f32.mrf.mxu0
        %5790 = vdwg.mxu0
        %v5791 = vadd.f32 %v5294, %v5665
        %v5792 = vadd.f32 %v5295, %v5668
        %v5793 = vadd.f32 %v5296, %v5673
        %v5794 = vadd.f32 %v5297, %v5676
        %v5795 = vadd.f32 %v5298, %v5681
        %v5796 = vadd.f32 %v5299, %v5684
        %v5797 = vadd.f32 %v5300, %v5689
        %v5798 = vadd.f32 %v5301, %v5692
        %v5799 = vadd.f32 %v5302, %v5697
        %v5800 = vadd.f32 %v5303, %v5700
        %v5801 = vadd.f32 %v5304, %v5705
        %v5802 = vadd.f32 %v5305, %v5708
        %v5803 = vadd.f32 %v5306, %v5713
        %v5804 = vadd.f32 %v5307, %v5716
        %v5805 = vadd.f32 %v5308, %v5721
        %v5806 = vadd.f32 %v5309, %v5724
        %v5807 = vadd.f32 %v5310, %v5729
        %v5808 = vadd.f32 %v5311, %v5732
        %v5809 = vadd.f32 %v5312, %v5737
        %v5810 = vadd.f32 %v5313, %v5740
        %v5811 = vadd.f32 %v5314, %v5745
        %v5812 = vadd.f32 %v5315, %v5748
        %v5813 = vadd.f32 %v5316, %v5753
        %v5814 = vadd.f32 %v5317, %v5756
        %v5815 = vadd.f32 %v5318, %v5761
        %v5816 = vadd.f32 %v5319, %v5764
        %v5817 = vadd.f32 %v5320, %v5769
        %v5818 = vadd.f32 %v5321, %v5772
        %v5819 = vadd.f32 %v5322, %v5777
        %v5820 = vadd.f32 %v5323, %v5780
        %v5821 = vadd.f32 %v5324, %v5785
        %v5822 = vadd.f32 %v5325, %v5788
        %v5823 = vld [vmem:[%s2] sm:$0x1]
        %v5825 = vlaneseq
        %v5826 = vshrl.u32 %v5825, 7
        %v5827 = vsub.s32 0, %v5826
        %v5828 = vrot.slane %v5823, %v5827
        %v5830 = vadd.f32 %v5791, %v5828
        %v5831 = vadd.f32 %v5792, %v5828
        %v5832 = vadd.f32 %v5793, %v5828
        %v5833 = vadd.f32 %v5794, %v5828
        %v5834 = vadd.f32 %v5795, %v5828
        %v5835 = vadd.f32 %v5796, %v5828
        %v5836 = vadd.f32 %v5797, %v5828
        %v5837 = vadd.f32 %v5798, %v5828
        %v5838 = vadd.f32 %v5799, %v5828
        %v5839 = vadd.f32 %v5800, %v5828
        %v5840 = vadd.f32 %v5801, %v5828
        %v5841 = vadd.f32 %v5802, %v5828
        %v5842 = vadd.f32 %v5803, %v5828
        %v5843 = vadd.f32 %v5804, %v5828
        %v5844 = vadd.f32 %v5805, %v5828
        %v5845 = vadd.f32 %v5806, %v5828
        %v5846 = vadd.f32 %v5807, %v5828
        %v5847 = vadd.f32 %v5808, %v5828
        %v5848 = vadd.f32 %v5809, %v5828
        %v5849 = vadd.f32 %v5810, %v5828
        %v5850 = vadd.f32 %v5811, %v5828
        %v5851 = vadd.f32 %v5812, %v5828
        %v5852 = vadd.f32 %v5813, %v5828
        %v5853 = vadd.f32 %v5814, %v5828
        %v5854 = vadd.f32 %v5815, %v5828
        %v5855 = vadd.f32 %v5816, %v5828
        %v5856 = vadd.f32 %v5817, %v5828
        %v5857 = vadd.f32 %v5818, %v5828
        %v5858 = vadd.f32 %v5819, %v5828
        %v5859 = vadd.f32 %v5820, %v5828
        %v5860 = vadd.f32 %v5821, %v5828
        %v5861 = vadd.f32 %v5822, %v5828
        %v5862 = vmax.f32 %v5830, 0.0
        %v5863 = vmax.f32 %v5831, 0.0
        %v5864 = vmax.f32 %v5832, 0.0
        %v5865 = vmax.f32 %v5833, 0.0
        %v5866 = vmax.f32 %v5834, 0.0
        %v5867 = vmax.f32 %v5835, 0.0
        %v5868 = vmax.f32 %v5836, 0.0
        %v5869 = vmax.f32 %v5837, 0.0
        %v5870 = vmax.f32 %v5838, 0.0
        %v5871 = vmax.f32 %v5839, 0.0
        %v5872 = vmax.f32 %v5840, 0.0
        %v5873 = vmax.f32 %v5841, 0.0
        %v5874 = vmax.f32 %v5842, 0.0
        %v5875 = vmax.f32 %v5843, 0.0
        %v5876 = vmax.f32 %v5844, 0.0
        %v5877 = vmax.f32 %v5845, 0.0
        %v5878 = vmax.f32 %v5846, 0.0
        %v5879 = vmax.f32 %v5847, 0.0
        %v5880 = vmax.f32 %v5848, 0.0
        %v5881 = vmax.f32 %v5849, 0.0
        %v5882 = vmax.f32 %v5850, 0.0
        %v5883 = vmax.f32 %v5851, 0.0
        %v5884 = vmax.f32 %v5852, 0.0
        %v5885 = vmax.f32 %v5853, 0.0
        %v5886 = vmax.f32 %v5854, 0.0
        %v5887 = vmax.f32 %v5855, 0.0
        %v5888 = vmax.f32 %v5856, 0.0
        %v5889 = vmax.f32 %v5857, 0.0
        %v5890 = vmax.f32 %v5858, 0.0
        %v5891 = vmax.f32 %v5859, 0.0
        %v5892 = vmax.f32 %v5860, 0.0
        %v5893 = vmax.f32 %v5861, 0.0
        %v5894 = vpack.c.bf16 %v5863, %v5862
        %v5895 = vpack.c.bf16 %v5865, %v5864
        %v5896 = vpack.c.bf16 %v5867, %v5866
        %v5897 = vpack.c.bf16 %v5869, %v5868
        %v5898 = vpack.c.bf16 %v5871, %v5870
        %v5899 = vpack.c.bf16 %v5873, %v5872
        %v5900 = vpack.c.bf16 %v5875, %v5874
        %v5901 = vpack.c.bf16 %v5877, %v5876
        %v5902 = vpack.c.bf16 %v5879, %v5878
        %v5903 = vpack.c.bf16 %v5881, %v5880
        %v5904 = vpack.c.bf16 %v5883, %v5882
        %v5905 = vpack.c.bf16 %v5885, %v5884
        %v5906 = vpack.c.bf16 %v5887, %v5886
        %v5907 = vpack.c.bf16 %v5889, %v5888
        %v5908 = vpack.c.bf16 %v5891, %v5890
        %v5909 = vpack.c.bf16 %v5893, %v5892
        %v5926 = vunpack.c.l.b16 %v5894
        %v5927 = vunpack.c.h.b16 %v5894
        %v5928 = vunpack.c.l.b16 %v5895
        %v5929 = vunpack.c.h.b16 %v5895
        %v5930 = vunpack.c.l.b16 %v5896
        %v5931 = vunpack.c.h.b16 %v5896
        %v5932 = vunpack.c.l.b16 %v5897
        %v5933 = vunpack.c.h.b16 %v5897
        %v5934 = vunpack.c.l.b16 %v5898
        %v5935 = vunpack.c.h.b16 %v5898
        %v5936 = vunpack.c.l.b16 %v5899
        %v5937 = vunpack.c.h.b16 %v5899
        %v5938 = vunpack.c.l.b16 %v5900
        %v5939 = vunpack.c.h.b16 %v5900
        %v5940 = vunpack.c.l.b16 %v5901
        %v5941 = vunpack.c.h.b16 %v5901
        %v5942 = vunpack.c.l.b16 %v5902
        %v5943 = vunpack.c.h.b16 %v5902
        %v5944 = vunpack.c.l.b16 %v5903
        %v5945 = vunpack.c.h.b16 %v5903
        %v5946 = vunpack.c.l.b16 %v5904
        %v5947 = vunpack.c.h.b16 %v5904
        %v5948 = vunpack.c.l.b16 %v5905
        %v5949 = vunpack.c.h.b16 %v5905
        %v5950 = vunpack.c.l.b16 %v5906
        %v5951 = vunpack.c.h.b16 %v5906
        %v5952 = vunpack.c.l.b16 %v5907
        %v5953 = vunpack.c.h.b16 %v5907
        %v5954 = vunpack.c.l.b16 %v5908
        %v5955 = vunpack.c.h.b16 %v5908
        %v5956 = vunpack.c.l.b16 %v5909
        %v5957 = vunpack.c.h.b16 %v5909
        %v5958 = vpack.c.b16 %v5926, %v5926
        %v5959 = vpack.c.b16 %v5927, %v5927
        %v5960 = vpack.c.b16 %v5928, %v5928
        %v5961 = vpack.c.b16 %v5929, %v5929
        %v5962 = vpack.c.b16 %v5930, %v5930
        %v5963 = vpack.c.b16 %v5931, %v5931
        %v5964 = vpack.c.b16 %v5932, %v5932
        %v5965 = vpack.c.b16 %v5933, %v5933
        %v5966 = vpack.c.b16 %v5934, %v5934
        %v5967 = vpack.c.b16 %v5935, %v5935
        %v5968 = vpack.c.b16 %v5936, %v5936
        %v5969 = vpack.c.b16 %v5937, %v5937
        %v5970 = vpack.c.b16 %v5938, %v5938
        %v5971 = vpack.c.b16 %v5939, %v5939
        %v5972 = vpack.c.b16 %v5940, %v5940
        %v5973 = vpack.c.b16 %v5941, %v5941
        %v5974 = vpack.c.b16 %v5942, %v5942
        %v5975 = vpack.c.b16 %v5943, %v5943
        %v5976 = vpack.c.b16 %v5944, %v5944
        %v5977 = vpack.c.b16 %v5945, %v5945
        %v5978 = vpack.c.b16 %v5946, %v5946
        %v5979 = vpack.c.b16 %v5947, %v5947
        %v5980 = vpack.c.b16 %v5948, %v5948
        %v5981 = vpack.c.b16 %v5949, %v5949
        %v5982 = vpack.c.b16 %v5950, %v5950
        %v5983 = vpack.c.b16 %v5951, %v5951
        %v5984 = vpack.c.b16 %v5952, %v5952
        %v5985 = vpack.c.b16 %v5953, %v5953
        %v5986 = vpack.c.b16 %v5954, %v5954
        %v5987 = vpack.c.b16 %v5955, %v5955
        %v5988 = vpack.c.b16 %v5956, %v5956
        %v5989 = vpack.c.b16 %v5957, %v5957
        %v5991 = vshrl.u32 %v5958, 16
        %v5993 = vrot.slane %v5991, 7
        %v5994 = vshll.u32 %v5958, 16
        %v5996 = vor.u32 %v5993, %v5994
        %v5997 = vrot.slane %v5993, 4
        %v5999 = vshrl.u32 %v5959, 16
        %v6001 = vrot.slane %v5999, 7
        %v6002 = vshll.u32 %v5959, 16
        %v6004 = vor.u32 %v6001, %v6002
        %v6005 = vsel %vm588, %v5997, %v6004
        %v6006 = vrot.slane %v6001, 4
        %v6008 = vshrl.u32 %v5960, 16
        %v6010 = vrot.slane %v6008, 7
        %v6011 = vshll.u32 %v5960, 16
        %v6013 = vor.u32 %v6010, %v6011
        %v6014 = vrot.slane %v6010, 4
        %v6016 = vshrl.u32 %v5961, 16
        %v6018 = vrot.slane %v6016, 7
        %v6019 = vshll.u32 %v5961, 16
        %v6021 = vor.u32 %v6018, %v6019
        %v6022 = vsel %vm588, %v6014, %v6021
        %v6023 = vrot.slane %v6018, 4
        %v6025 = vshrl.u32 %v5962, 16
        %v6027 = vrot.slane %v6025, 7
        %v6028 = vshll.u32 %v5962, 16
        %v6030 = vor.u32 %v6027, %v6028
        %v6031 = vrot.slane %v6027, 4
        %v6033 = vshrl.u32 %v5963, 16
        %v6035 = vrot.slane %v6033, 7
        %v6036 = vshll.u32 %v5963, 16
        %v6038 = vor.u32 %v6035, %v6036
        %v6039 = vsel %vm588, %v6031, %v6038
        %v6040 = vrot.slane %v6035, 4
        %v6042 = vshrl.u32 %v5964, 16
        %v6044 = vrot.slane %v6042, 7
        %v6045 = vshll.u32 %v5964, 16
        %v6047 = vor.u32 %v6044, %v6045
        %v6048 = vrot.slane %v6044, 4
        %v6050 = vshrl.u32 %v5965, 16
        %v6052 = vrot.slane %v6050, 7
        %v6053 = vshll.u32 %v5965, 16
        %v6055 = vor.u32 %v6052, %v6053
        %v6056 = vsel %vm588, %v6048, %v6055
        %v6057 = vrot.slane %v6052, 4
        %v6059 = vshrl.u32 %v5966, 16
        %v6061 = vrot.slane %v6059, 7
        %v6062 = vshll.u32 %v5966, 16
        %v6064 = vor.u32 %v6061, %v6062
        %v6065 = vrot.slane %v6061, 4
        %v6067 = vshrl.u32 %v5967, 16
        %v6069 = vrot.slane %v6067, 7
        %v6070 = vshll.u32 %v5967, 16
        %v6072 = vor.u32 %v6069, %v6070
        %v6073 = vsel %vm588, %v6065, %v6072
        %v6074 = vrot.slane %v6069, 4
        %v6076 = vshrl.u32 %v5968, 16
        %v6078 = vrot.slane %v6076, 7
        %v6079 = vshll.u32 %v5968, 16
        %v6081 = vor.u32 %v6078, %v6079
        %v6082 = vrot.slane %v6078, 4
        %v6084 = vshrl.u32 %v5969, 16
        %v6086 = vrot.slane %v6084, 7
        %v6087 = vshll.u32 %v5969, 16
        %v6089 = vor.u32 %v6086, %v6087
        %v6090 = vsel %vm588, %v6082, %v6089
        %v6091 = vrot.slane %v6086, 4
        %v6093 = vshrl.u32 %v5970, 16
        %v6095 = vrot.slane %v6093, 7
        %v6096 = vshll.u32 %v5970, 16
        %v6098 = vor.u32 %v6095, %v6096
        %v6099 = vrot.slane %v6095, 4
        %v6101 = vshrl.u32 %v5971, 16
        %v6103 = vrot.slane %v6101, 7
        %v6104 = vshll.u32 %v5971, 16
        %v6106 = vor.u32 %v6103, %v6104
        %v6107 = vsel %vm588, %v6099, %v6106
        %v6108 = vrot.slane %v6103, 4
        %v6110 = vshrl.u32 %v5972, 16
        %v6112 = vrot.slane %v6110, 7
        %v6113 = vshll.u32 %v5972, 16
        %v6115 = vor.u32 %v6112, %v6113
        %v6116 = vrot.slane %v6112, 4
        %v6118 = vshrl.u32 %v5973, 16
        %v6120 = vrot.slane %v6118, 7
        %v6121 = vshll.u32 %v5973, 16
        %v6123 = vor.u32 %v6120, %v6121
        %v6124 = vsel %vm588, %v6116, %v6123
        %v6125 = vrot.slane %v6120, 4
        %v6127 = vshrl.u32 %v5974, 16
        %v6129 = vrot.slane %v6127, 7
        %v6130 = vshll.u32 %v5974, 16
        %v6132 = vor.u32 %v6129, %v6130
        %v6133 = vrot.slane %v6129, 4
        %v6135 = vshrl.u32 %v5975, 16
        %v6137 = vrot.slane %v6135, 7
        %v6138 = vshll.u32 %v5975, 16
        %v6140 = vor.u32 %v6137, %v6138
        %v6141 = vsel %vm588, %v6133, %v6140
        %v6142 = vrot.slane %v6137, 4
        %v6144 = vshrl.u32 %v5976, 16
        %v6146 = vrot.slane %v6144, 7
        %v6147 = vshll.u32 %v5976, 16
        %v6149 = vor.u32 %v6146, %v6147
        %v6150 = vrot.slane %v6146, 4
        %v6152 = vshrl.u32 %v5977, 16
        %v6154 = vrot.slane %v6152, 7
        %v6155 = vshll.u32 %v5977, 16
        %v6157 = vor.u32 %v6154, %v6155
        %v6158 = vsel %vm588, %v6150, %v6157
        %v6159 = vrot.slane %v6154, 4
        %v6161 = vshrl.u32 %v5978, 16
        %v6163 = vrot.slane %v6161, 7
        %v6164 = vshll.u32 %v5978, 16
        %v6166 = vor.u32 %v6163, %v6164
        %v6167 = vrot.slane %v6163, 4
        %v6169 = vshrl.u32 %v5979, 16
        %v6171 = vrot.slane %v6169, 7
        %v6172 = vshll.u32 %v5979, 16
        %v6174 = vor.u32 %v6171, %v6172
        %v6175 = vsel %vm588, %v6167, %v6174
        %v6176 = vrot.slane %v6171, 4
        %v6178 = vshrl.u32 %v5980, 16
        %v6180 = vrot.slane %v6178, 7
        %v6181 = vshll.u32 %v5980, 16
        %v6183 = vor.u32 %v6180, %v6181
        %v6184 = vrot.slane %v6180, 4
        %v6186 = vshrl.u32 %v5981, 16
        %v6188 = vrot.slane %v6186, 7
        %v6189 = vshll.u32 %v5981, 16
        %v6191 = vor.u32 %v6188, %v6189
        %v6192 = vsel %vm588, %v6184, %v6191
        %v6193 = vrot.slane %v6188, 4
        %v6195 = vshrl.u32 %v5982, 16
        %v6197 = vrot.slane %v6195, 7
        %v6198 = vshll.u32 %v5982, 16
        %v6200 = vor.u32 %v6197, %v6198
        %v6201 = vrot.slane %v6197, 4
        %v6203 = vshrl.u32 %v5983, 16
        %v6205 = vrot.slane %v6203, 7
        %v6206 = vshll.u32 %v5983, 16
        %v6208 = vor.u32 %v6205, %v6206
        %v6209 = vsel %vm588, %v6201, %v6208
        %v6210 = vrot.slane %v6205, 4
        %v6212 = vshrl.u32 %v5984, 16
        %v6214 = vrot.slane %v6212, 7
        %v6215 = vshll.u32 %v5984, 16
        %v6217 = vor.u32 %v6214, %v6215
        %v6218 = vrot.slane %v6214, 4
        %v6220 = vshrl.u32 %v5985, 16
        %v6222 = vrot.slane %v6220, 7
        %v6223 = vshll.u32 %v5985, 16
        %v6225 = vor.u32 %v6222, %v6223
        %v6226 = vsel %vm588, %v6218, %v6225
        %v6227 = vrot.slane %v6222, 4
        %v6229 = vshrl.u32 %v5986, 16
        %v6231 = vrot.slane %v6229, 7
        %v6232 = vshll.u32 %v5986, 16
        %v6234 = vor.u32 %v6231, %v6232
        %v6235 = vrot.slane %v6231, 4
        %v6237 = vshrl.u32 %v5987, 16
        %v6239 = vrot.slane %v6237, 7
        %v6240 = vshll.u32 %v5987, 16
        %v6242 = vor.u32 %v6239, %v6240
        %v6243 = vsel %vm588, %v6235, %v6242
        %v6244 = vrot.slane %v6239, 4
        %v6246 = vshrl.u32 %v5988, 16
        %v6248 = vrot.slane %v6246, 7
        %v6249 = vshll.u32 %v5988, 16
        %v6251 = vor.u32 %v6248, %v6249
        %v6252 = vrot.slane %v6248, 4
        %v6254 = vshrl.u32 %v5989, 16
        %v6256 = vrot.slane %v6254, 7
        %v6257 = vshll.u32 %v5989, 16
        %v6259 = vor.u32 %v6256, %v6257
        %v6260 = vsel %vm588, %v6252, %v6259
        %v6261 = vrot.slane %v6256, 4
        %v6310 = vld [vmem:[%s458] sm:$0xf]
        %v6311 = vsel %vm910, %v5996, %v6310
        %6312 = vst [vmem:[%s458] sm:$0xf] %v6311
        %6313 = vst [vmem:[%s458 + $0x4] sm:$0xf] %v6005
        %v6314 = vld [vmem:[%s458 + $0x8] sm:$0x1]
        %v6315 = vsel %vm352, %v6006, %v6314
        %6316 = vst [vmem:[%s458 + $0x8] sm:$0x1] %v6315
        %v6317 = vld [vmem:[%s458 + $0xc] sm:$0xf]
        %v6318 = vsel %vm910, %v6013, %v6317
        %6319 = vst [vmem:[%s458 + $0xc] sm:$0xf] %v6318
        %6320 = vst [vmem:[%s458 + $0x10] sm:$0xf] %v6022
        %v6321 = vld [vmem:[%s458 + $0x14] sm:$0x1]
        %v6322 = vsel %vm352, %v6023, %v6321
        %6323 = vst [vmem:[%s458 + $0x14] sm:$0x1] %v6322
        %v6324 = vld [vmem:[%s458 + $0x18] sm:$0xf]
        %v6325 = vsel %vm910, %v6030, %v6324
        %6326 = vst [vmem:[%s458 + $0x18] sm:$0xf] %v6325
        %6327 = vst [vmem:[%s458 + $0x1c] sm:$0xf] %v6039
        %v6328 = vld [vmem:[%s458 + $0x20] sm:$0x1]
        %v6329 = vsel %vm352, %v6040, %v6328
        %6330 = vst [vmem:[%s458 + $0x20] sm:$0x1] %v6329
        %v6331 = vld [vmem:[%s458 + $0x24] sm:$0xf]
        %v6332 = vsel %vm910, %v6047, %v6331
        %6333 = vst [vmem:[%s458 + $0x24] sm:$0xf] %v6332
        %6334 = vst [vmem:[%s458 + $0x28] sm:$0xf] %v6056
        %v6335 = vld [vmem:[%s458 + $0x2c] sm:$0x1]
        %v6336 = vsel %vm352, %v6057, %v6335
        %6337 = vst [vmem:[%s458 + $0x2c] sm:$0x1] %v6336
        %v6338 = vld [vmem:[%s458 + $0x30] sm:$0xf]
        %v6339 = vsel %vm910, %v6064, %v6338
        %6340 = vst [vmem:[%s458 + $0x30] sm:$0xf] %v6339
        %6341 = vst [vmem:[%s458 + $0x34] sm:$0xf] %v6073
        %v6342 = vld [vmem:[%s458 + $0x38] sm:$0x1]
        %v6343 = vsel %vm352, %v6074, %v6342
        %6344 = vst [vmem:[%s458 + $0x38] sm:$0x1] %v6343
        %v6345 = vld [vmem:[%s458 + $0x3c] sm:$0xf]
        %v6346 = vsel %vm910, %v6081, %v6345
        %6347 = vst [vmem:[%s458 + $0x3c] sm:$0xf] %v6346
        %6348 = vst [vmem:[%s458 + $0x40] sm:$0xf] %v6090
        %v6349 = vld [vmem:[%s458 + $0x44] sm:$0x1]
        %v6350 = vsel %vm352, %v6091, %v6349
        %6351 = vst [vmem:[%s458 + $0x44] sm:$0x1] %v6350
        %v6352 = vld [vmem:[%s458 + $0x48] sm:$0xf]
        %v6353 = vsel %vm910, %v6098, %v6352
        %6354 = vst [vmem:[%s458 + $0x48] sm:$0xf] %v6353
        %6355 = vst [vmem:[%s458 + $0x4c] sm:$0xf] %v6107
        %v6356 = vld [vmem:[%s458 + $0x50] sm:$0x1]
        %v6357 = vsel %vm352, %v6108, %v6356
        %6358 = vst [vmem:[%s458 + $0x50] sm:$0x1] %v6357
        %v6359 = vld [vmem:[%s458 + $0x54] sm:$0xf]
        %v6360 = vsel %vm910, %v6115, %v6359
        %6361 = vst [vmem:[%s458 + $0x54] sm:$0xf] %v6360
        %6362 = vst [vmem:[%s458 + $0x58] sm:$0xf] %v6124
        %v6363 = vld [vmem:[%s458 + $0x5c] sm:$0x1]
        %v6364 = vsel %vm352, %v6125, %v6363
        %6365 = vst [vmem:[%s458 + $0x5c] sm:$0x1] %v6364
        %v6366 = vld [vmem:[%s458 + $0x60] sm:$0xf]
        %v6367 = vsel %vm910, %v6132, %v6366
        %6368 = vst [vmem:[%s458 + $0x60] sm:$0xf] %v6367
        %6369 = vst [vmem:[%s458 + $0x64] sm:$0xf] %v6141
        %v6370 = vld [vmem:[%s458 + $0x68] sm:$0x1]
        %v6371 = vsel %vm352, %v6142, %v6370
        %6372 = vst [vmem:[%s458 + $0x68] sm:$0x1] %v6371
        %v6373 = vld [vmem:[%s458 + $0x6c] sm:$0xf]
        %v6374 = vsel %vm910, %v6149, %v6373
        %6375 = vst [vmem:[%s458 + $0x6c] sm:$0xf] %v6374
        %6376 = vst [vmem:[%s458 + $0x70] sm:$0xf] %v6158
        %v6377 = vld [vmem:[%s458 + $0x74] sm:$0x1]
        %v6378 = vsel %vm352, %v6159, %v6377
        %6379 = vst [vmem:[%s458 + $0x74] sm:$0x1] %v6378
        %v6380 = vld [vmem:[%s458 + $0x78] sm:$0xf]
        %v6381 = vsel %vm910, %v6166, %v6380
        %6382 = vst [vmem:[%s458 + $0x78] sm:$0xf] %v6381
        %6383 = vst [vmem:[%s458 + $0x7c] sm:$0xf] %v6175
        %v6384 = vld [vmem:[%s458 + $0x80] sm:$0x1]
        %v6385 = vsel %vm352, %v6176, %v6384
        %6386 = vst [vmem:[%s458 + $0x80] sm:$0x1] %v6385
        %v6387 = vld [vmem:[%s458 + $0x84] sm:$0xf]
        %v6388 = vsel %vm910, %v6183, %v6387
        %6389 = vst [vmem:[%s458 + $0x84] sm:$0xf] %v6388
        %6390 = vst [vmem:[%s458 + $0x88] sm:$0xf] %v6192
        %v6391 = vld [vmem:[%s458 + $0x8c] sm:$0x1]
        %v6392 = vsel %vm352, %v6193, %v6391
        %6393 = vst [vmem:[%s458 + $0x8c] sm:$0x1] %v6392
        %v6394 = vld [vmem:[%s458 + $0x90] sm:$0xf]
        %v6395 = vsel %vm910, %v6200, %v6394
        %6396 = vst [vmem:[%s458 + $0x90] sm:$0xf] %v6395
        %6397 = vst [vmem:[%s458 + $0x94] sm:$0xf] %v6209
        %v6398 = vld [vmem:[%s458 + $0x98] sm:$0x1]
        %v6399 = vsel %vm352, %v6210, %v6398
        %6400 = vst [vmem:[%s458 + $0x98] sm:$0x1] %v6399
        %v6401 = vld [vmem:[%s458 + $0x9c] sm:$0xf]
        %v6402 = vsel %vm910, %v6217, %v6401
        %6403 = vst [vmem:[%s458 + $0x9c] sm:$0xf] %v6402
        %6404 = vst [vmem:[%s458 + $0xa0] sm:$0xf] %v6226
        %v6405 = vld [vmem:[%s458 + $0xa4] sm:$0x1]
        %v6406 = vsel %vm352, %v6227, %v6405
        %6407 = vst [vmem:[%s458 + $0xa4] sm:$0x1] %v6406
        %v6408 = vld [vmem:[%s458 + $0xa8] sm:$0xf]
        %v6409 = vsel %vm910, %v6234, %v6408
        %6410 = vst [vmem:[%s458 + $0xa8] sm:$0xf] %v6409
        %6411 = vst [vmem:[%s458 + $0xac] sm:$0xf] %v6243
        %v6412 = vld [vmem:[%s458 + $0xb0] sm:$0x1]
        %v6413 = vsel %vm352, %v6244, %v6412
        %6414 = vst [vmem:[%s458 + $0xb0] sm:$0x1] %v6413
        %v6415 = vld [vmem:[%s458 + $0xb4] sm:$0xf]
        %v6416 = vsel %vm910, %v6251, %v6415
        %6417 = vst [vmem:[%s458 + $0xb4] sm:$0xf] %v6416
        %6418 = vst [vmem:[%s458 + $0xb8] sm:$0xf] %v6260
        %v6419 = vld [vmem:[%s458 + $0xbc] sm:$0x1]
        %v6420 = vsel %vm352, %v6261, %v6419
        %6421 = vst [vmem:[%s458 + $0xbc] sm:$0x1] %v6420
        %v6422 = vld [vmem:[#allocation3] sm:$0xf]
        %v6423 = vld [vmem:[#allocation3 + $0x4] sm:$0xf]
        %v6424 = vld [vmem:[#allocation3 + $0xc] sm:$0xf]
        %v6425 = vld [vmem:[#allocation3 + $0x10] sm:$0xf]
        %v6426 = vld [vmem:[#allocation3 + $0x18] sm:$0xf]
        %v6427 = vld [vmem:[#allocation3 + $0x1c] sm:$0xf]
        %v6428 = vld [vmem:[#allocation3 + $0x24] sm:$0xf]
        %v6429 = vld [vmem:[#allocation3 + $0x28] sm:$0xf]
        %v6430 = vld [vmem:[#allocation3 + $0x30] sm:$0xf]
        %v6431 = vld [vmem:[#allocation3 + $0x34] sm:$0xf]
        %v6432 = vld [vmem:[#allocation3 + $0x3c] sm:$0xf]
        %v6433 = vld [vmem:[#allocation3 + $0x40] sm:$0xf]
        %v6434 = vld [vmem:[#allocation3 + $0x48] sm:$0xf]
        %v6435 = vld [vmem:[#allocation3 + $0x4c] sm:$0xf]
        %v6436 = vld [vmem:[#allocation3 + $0x54] sm:$0xf]
        %v6437 = vld [vmem:[#allocation3 + $0x58] sm:$0xf]
        %v6438 = vld [vmem:[#allocation3 + $0x60] sm:$0xf]
        %v6439 = vld [vmem:[#allocation3 + $0x64] sm:$0xf]
        %v6440 = vld [vmem:[#allocation3 + $0x6c] sm:$0xf]
        %v6441 = vld [vmem:[#allocation3 + $0x70] sm:$0xf]
        %v6442 = vld [vmem:[#allocation3 + $0x78] sm:$0xf]
        %v6443 = vld [vmem:[#allocation3 + $0x7c] sm:$0xf]
        %v6444 = vld [vmem:[#allocation3 + $0x84] sm:$0xf]
        %v6445 = vld [vmem:[#allocation3 + $0x88] sm:$0xf]
        %v6446 = vld [vmem:[#allocation3 + $0x90] sm:$0xf]
        %v6447 = vld [vmem:[#allocation3 + $0x94] sm:$0xf]
        %v6448 = vld [vmem:[#allocation3 + $0x9c] sm:$0xf]
        %v6449 = vld [vmem:[#allocation3 + $0xa0] sm:$0xf]
        %v6450 = vld [vmem:[#allocation3 + $0xa8] sm:$0xf]
        %v6451 = vld [vmem:[#allocation3 + $0xac] sm:$0xf]
        %v6452 = vld [vmem:[#allocation3 + $0xb4] sm:$0xf]
        %v6453 = vld [vmem:[#allocation3 + $0xb8] sm:$0xf]
        %v6454 = vld [vmem:[#allocation9] sm:$0xf]
        %v6455 = vld [vmem:[#allocation9 + $0x4] sm:$0xf]
        %v6456 = vld [vmem:[#allocation9 + $0x8] sm:$0xf]
        %v6457 = vld [vmem:[#allocation9 + $0xc] sm:$0xf]
        %v6458 = vld [vmem:[#allocation9 + $0x10] sm:$0xf]
        %v6459 = vld [vmem:[#allocation9 + $0x14] sm:$0xf]
        %v6460 = vld [vmem:[#allocation9 + $0x18] sm:$0xf]
        %v6461 = vld [vmem:[#allocation9 + $0x1c] sm:$0xf]
        %v6462 = vld [vmem:[#allocation9 + $0x20] sm:$0xf]
        %v6463 = vld [vmem:[#allocation9 + $0x24] sm:$0xf]
        %v6464 = vld [vmem:[#allocation9 + $0x28] sm:$0xf]
        %v6465 = vld [vmem:[#allocation9 + $0x2c] sm:$0xf]
        %v6466 = vld [vmem:[#allocation9 + $0x30] sm:$0xf]
        %v6467 = vld [vmem:[#allocation9 + $0x34] sm:$0xf]
        %v6468 = vld [vmem:[#allocation9 + $0x38] sm:$0xf]
        %v6469 = vld [vmem:[#allocation9 + $0x3c] sm:$0xf]
        %v6470 = vld [vmem:[#allocation3 + $0x8] sm:$0x1]
        %v6471 = vld [vmem:[#allocation3 + $0x14] sm:$0x1]
        %v6472 = vld [vmem:[#allocation3 + $0x20] sm:$0x1]
        %v6473 = vld [vmem:[#allocation3 + $0x2c] sm:$0x1]
        %v6474 = vld [vmem:[#allocation3 + $0x38] sm:$0x1]
        %v6475 = vld [vmem:[#allocation3 + $0x44] sm:$0x1]
        %v6476 = vld [vmem:[#allocation3 + $0x50] sm:$0x1]
        %v6477 = vld [vmem:[#allocation3 + $0x5c] sm:$0x1]
        %v6478 = vld [vmem:[#allocation3 + $0x68] sm:$0x1]
        %v6479 = vld [vmem:[#allocation3 + $0x74] sm:$0x1]
        %v6480 = vld [vmem:[#allocation3 + $0x80] sm:$0x1]
        %v6481 = vld [vmem:[#allocation3 + $0x8c] sm:$0x1]
        %v6482 = vld [vmem:[#allocation3 + $0x98] sm:$0x1]
        %v6483 = vld [vmem:[#allocation3 + $0xa4] sm:$0x1]
        %v6484 = vld [vmem:[#allocation3 + $0xb0] sm:$0x1]
        %v6485 = vld [vmem:[#allocation3 + $0xbc] sm:$0x1]
        %v6487 = vshrl.u32 %v6422, 16
        %v6489 = vrot.slane %v6487, 4
        %v6490 = vshll.u32 %v6422, 16
        %v6492 = vrot.slane %v6490, 5
        %v6493 = vor.u32 %v6489, %v6492
        %v6494 = vrot.slane %v6493, 4
        %v6496 = vshll.u32 %v6423, 16
        %v6498 = vrot.slane %v6496, 5
        %v6499 = vsel %vm1089, %v6494, %v6498
        %v6500 = vshrl.u32 %v6423, 16
        %v6502 = vrot.slane %v6500, 4
        %v6503 = vor.u32 %v6502, %v6498
        %v6504 = vrot.slane %v6503, 4
        %v6506 = vshll.u32 %v6470, 16
        %v6508 = vrot.slane %v6506, 5
        %v6509 = vsel %vm1089, %v6504, %v6508
        %v6511 = vshrl.u32 %v6424, 16
        %v6513 = vrot.slane %v6511, 4
        %v6514 = vshll.u32 %v6424, 16
        %v6516 = vrot.slane %v6514, 5
        %v6517 = vor.u32 %v6513, %v6516
        %v6518 = vrot.slane %v6517, 4
        %v6520 = vshll.u32 %v6425, 16
        %v6522 = vrot.slane %v6520, 5
        %v6523 = vsel %vm1089, %v6518, %v6522
        %v6524 = vshrl.u32 %v6425, 16
        %v6526 = vrot.slane %v6524, 4
        %v6527 = vor.u32 %v6526, %v6522
        %v6528 = vrot.slane %v6527, 4
        %v6530 = vshll.u32 %v6471, 16
        %v6532 = vrot.slane %v6530, 5
        %v6533 = vsel %vm1089, %v6528, %v6532
        %v6535 = vshrl.u32 %v6426, 16
        %v6537 = vrot.slane %v6535, 4
        %v6538 = vshll.u32 %v6426, 16
        %v6540 = vrot.slane %v6538, 5
        %v6541 = vor.u32 %v6537, %v6540
        %v6542 = vrot.slane %v6541, 4
        %v6544 = vshll.u32 %v6427, 16
        %v6546 = vrot.slane %v6544, 5
        %v6547 = vsel %vm1089, %v6542, %v6546
        %v6548 = vshrl.u32 %v6427, 16
        %v6550 = vrot.slane %v6548, 4
        %v6551 = vor.u32 %v6550, %v6546
        %v6552 = vrot.slane %v6551, 4
        %v6554 = vshll.u32 %v6472, 16
        %v6556 = vrot.slane %v6554, 5
        %v6557 = vsel %vm1089, %v6552, %v6556
        %v6559 = vshrl.u32 %v6428, 16
        %v6561 = vrot.slane %v6559, 4
        %v6562 = vshll.u32 %v6428, 16
        %v6564 = vrot.slane %v6562, 5
        %v6565 = vor.u32 %v6561, %v6564
        %v6566 = vrot.slane %v6565, 4
        %v6568 = vshll.u32 %v6429, 16
        %v6570 = vrot.slane %v6568, 5
        %v6571 = vsel %vm1089, %v6566, %v6570
        %v6572 = vshrl.u32 %v6429, 16
        %v6574 = vrot.slane %v6572, 4
        %v6575 = vor.u32 %v6574, %v6570
        %v6576 = vrot.slane %v6575, 4
        %v6578 = vshll.u32 %v6473, 16
        %v6580 = vrot.slane %v6578, 5
        %v6581 = vsel %vm1089, %v6576, %v6580
        %v6583 = vshrl.u32 %v6430, 16
        %v6585 = vrot.slane %v6583, 4
        %v6586 = vshll.u32 %v6430, 16
        %v6588 = vrot.slane %v6586, 5
        %v6589 = vor.u32 %v6585, %v6588
        %v6590 = vrot.slane %v6589, 4
        %v6592 = vshll.u32 %v6431, 16
        %v6594 = vrot.slane %v6592, 5
        %v6595 = vsel %vm1089, %v6590, %v6594
        %v6596 = vshrl.u32 %v6431, 16
        %v6598 = vrot.slane %v6596, 4
        %v6599 = vor.u32 %v6598, %v6594
        %v6600 = vrot.slane %v6599, 4
        %v6602 = vshll.u32 %v6474, 16
        %v6604 = vrot.slane %v6602, 5
        %v6605 = vsel %vm1089, %v6600, %v6604
        %v6607 = vshrl.u32 %v6432, 16
        %v6609 = vrot.slane %v6607, 4
        %v6610 = vshll.u32 %v6432, 16
        %v6612 = vrot.slane %v6610, 5
        %v6613 = vor.u32 %v6609, %v6612
        %v6614 = vrot.slane %v6613, 4
        %v6616 = vshll.u32 %v6433, 16
        %v6618 = vrot.slane %v6616, 5
        %v6619 = vsel %vm1089, %v6614, %v6618
        %v6620 = vshrl.u32 %v6433, 16
        %v6622 = vrot.slane %v6620, 4
        %v6623 = vor.u32 %v6622, %v6618
        %v6624 = vrot.slane %v6623, 4
        %v6626 = vshll.u32 %v6475, 16
        %v6628 = vrot.slane %v6626, 5
        %v6629 = vsel %vm1089, %v6624, %v6628
        %v6631 = vshrl.u32 %v6434, 16
        %v6633 = vrot.slane %v6631, 4
        %v6634 = vshll.u32 %v6434, 16
        %v6636 = vrot.slane %v6634, 5
        %v6637 = vor.u32 %v6633, %v6636
        %v6638 = vrot.slane %v6637, 4
        %v6640 = vshll.u32 %v6435, 16
        %v6642 = vrot.slane %v6640, 5
        %v6643 = vsel %vm1089, %v6638, %v6642
        %v6644 = vshrl.u32 %v6435, 16
        %v6646 = vrot.slane %v6644, 4
        %v6647 = vor.u32 %v6646, %v6642
        %v6648 = vrot.slane %v6647, 4
        %v6650 = vshll.u32 %v6476, 16
        %v6652 = vrot.slane %v6650, 5
        %v6653 = vsel %vm1089, %v6648, %v6652
        %v6655 = vshrl.u32 %v6436, 16
        %v6657 = vrot.slane %v6655, 4
        %v6658 = vshll.u32 %v6436, 16
        %v6660 = vrot.slane %v6658, 5
        %v6661 = vor.u32 %v6657, %v6660
        %v6662 = vrot.slane %v6661, 4
        %v6664 = vshll.u32 %v6437, 16
        %v6666 = vrot.slane %v6664, 5
        %v6667 = vsel %vm1089, %v6662, %v6666
        %v6668 = vshrl.u32 %v6437, 16
        %v6670 = vrot.slane %v6668, 4
        %v6671 = vor.u32 %v6670, %v6666
        %v6672 = vrot.slane %v6671, 4
        %v6674 = vshll.u32 %v6477, 16
        %v6676 = vrot.slane %v6674, 5
        %v6677 = vsel %vm1089, %v6672, %v6676
        %v6679 = vshrl.u32 %v6438, 16
        %v6681 = vrot.slane %v6679, 4
        %v6682 = vshll.u32 %v6438, 16
        %v6684 = vrot.slane %v6682, 5
        %v6685 = vor.u32 %v6681, %v6684
        %v6686 = vrot.slane %v6685, 4
        %v6688 = vshll.u32 %v6439, 16
        %v6690 = vrot.slane %v6688, 5
        %v6691 = vsel %vm1089, %v6686, %v6690
        %v6692 = vshrl.u32 %v6439, 16
        %v6694 = vrot.slane %v6692, 4
        %v6695 = vor.u32 %v6694, %v6690
        %v6696 = vrot.slane %v6695, 4
        %v6698 = vshll.u32 %v6478, 16
        %v6700 = vrot.slane %v6698, 5
        %v6701 = vsel %vm1089, %v6696, %v6700
        %v6703 = vshrl.u32 %v6440, 16
        %v6705 = vrot.slane %v6703, 4
        %v6706 = vshll.u32 %v6440, 16
        %v6708 = vrot.slane %v6706, 5
        %v6709 = vor.u32 %v6705, %v6708
        %v6710 = vrot.slane %v6709, 4
        %v6712 = vshll.u32 %v6441, 16
        %v6714 = vrot.slane %v6712, 5
        %v6715 = vsel %vm1089, %v6710, %v6714
        %v6716 = vshrl.u32 %v6441, 16
        %v6718 = vrot.slane %v6716, 4
        %v6719 = vor.u32 %v6718, %v6714
        %v6720 = vrot.slane %v6719, 4
        %v6722 = vshll.u32 %v6479, 16
        %v6724 = vrot.slane %v6722, 5
        %v6725 = vsel %vm1089, %v6720, %v6724
        %v6727 = vshrl.u32 %v6442, 16
        %v6729 = vrot.slane %v6727, 4
        %v6730 = vshll.u32 %v6442, 16
        %v6732 = vrot.slane %v6730, 5
        %v6733 = vor.u32 %v6729, %v6732
        %v6734 = vrot.slane %v6733, 4
        %v6736 = vshll.u32 %v6443, 16
        %v6738 = vrot.slane %v6736, 5
        %v6739 = vsel %vm1089, %v6734, %v6738
        %v6740 = vshrl.u32 %v6443, 16
        %v6742 = vrot.slane %v6740, 4
        %v6743 = vor.u32 %v6742, %v6738
        %v6744 = vrot.slane %v6743, 4
        %v6746 = vshll.u32 %v6480, 16
        %v6748 = vrot.slane %v6746, 5
        %v6749 = vsel %vm1089, %v6744, %v6748
        %v6751 = vshrl.u32 %v6444, 16
        %v6753 = vrot.slane %v6751, 4
        %v6754 = vshll.u32 %v6444, 16
        %v6756 = vrot.slane %v6754, 5
        %v6757 = vor.u32 %v6753, %v6756
        %v6758 = vrot.slane %v6757, 4
        %v6760 = vshll.u32 %v6445, 16
        %v6762 = vrot.slane %v6760, 5
        %v6763 = vsel %vm1089, %v6758, %v6762
        %v6764 = vshrl.u32 %v6445, 16
        %v6766 = vrot.slane %v6764, 4
        %v6767 = vor.u32 %v6766, %v6762
        %v6768 = vrot.slane %v6767, 4
        %v6770 = vshll.u32 %v6481, 16
        %v6772 = vrot.slane %v6770, 5
        %v6773 = vsel %vm1089, %v6768, %v6772
        %v6775 = vshrl.u32 %v6446, 16
        %v6777 = vrot.slane %v6775, 4
        %v6778 = vshll.u32 %v6446, 16
        %v6780 = vrot.slane %v6778, 5
        %v6781 = vor.u32 %v6777, %v6780
        %v6782 = vrot.slane %v6781, 4
        %v6784 = vshll.u32 %v6447, 16
        %v6786 = vrot.slane %v6784, 5
        %v6787 = vsel %vm1089, %v6782, %v6786
        %v6788 = vshrl.u32 %v6447, 16
        %v6790 = vrot.slane %v6788, 4
        %v6791 = vor.u32 %v6790, %v6786
        %v6792 = vrot.slane %v6791, 4
        %v6794 = vshll.u32 %v6482, 16
        %v6796 = vrot.slane %v6794, 5
        %v6797 = vsel %vm1089, %v6792, %v6796
        %v6799 = vshrl.u32 %v6448, 16
        %v6801 = vrot.slane %v6799, 4
        %v6802 = vshll.u32 %v6448, 16
        %v6804 = vrot.slane %v6802, 5
        %v6805 = vor.u32 %v6801, %v6804
        %v6806 = vrot.slane %v6805, 4
        %v6808 = vshll.u32 %v6449, 16
        %v6810 = vrot.slane %v6808, 5
        %v6811 = vsel %vm1089, %v6806, %v6810
        %v6812 = vshrl.u32 %v6449, 16
        %v6814 = vrot.slane %v6812, 4
        %v6815 = vor.u32 %v6814, %v6810
        %v6816 = vrot.slane %v6815, 4
        %v6818 = vshll.u32 %v6483, 16
        %v6820 = vrot.slane %v6818, 5
        %v6821 = vsel %vm1089, %v6816, %v6820
        %v6823 = vshrl.u32 %v6450, 16
        %v6825 = vrot.slane %v6823, 4
        %v6826 = vshll.u32 %v6450, 16
        %v6828 = vrot.slane %v6826, 5
        %v6829 = vor.u32 %v6825, %v6828
        %v6830 = vrot.slane %v6829, 4
        %v6832 = vshll.u32 %v6451, 16
        %v6834 = vrot.slane %v6832, 5
        %v6835 = vsel %vm1089, %v6830, %v6834
        %v6836 = vshrl.u32 %v6451, 16
        %v6838 = vrot.slane %v6836, 4
        %v6839 = vor.u32 %v6838, %v6834
        %v6840 = vrot.slane %v6839, 4
        %v6842 = vshll.u32 %v6484, 16
        %v6844 = vrot.slane %v6842, 5
        %v6845 = vsel %vm1089, %v6840, %v6844
        %v6847 = vshrl.u32 %v6452, 16
        %v6849 = vrot.slane %v6847, 4
        %v6850 = vshll.u32 %v6452, 16
        %v6852 = vrot.slane %v6850, 5
        %v6853 = vor.u32 %v6849, %v6852
        %v6854 = vrot.slane %v6853, 4
        %v6856 = vshll.u32 %v6453, 16
        %v6858 = vrot.slane %v6856, 5
        %v6859 = vsel %vm1089, %v6854, %v6858
        %v6860 = vshrl.u32 %v6453, 16
        %v6862 = vrot.slane %v6860, 4
        %v6863 = vor.u32 %v6862, %v6858
        %v6864 = vrot.slane %v6863, 4
        %v6866 = vshll.u32 %v6485, 16
        %v6868 = vrot.slane %v6866, 5
        %v6869 = vsel %vm1089, %v6864, %v6868
        %v6870 = vld [vmem:[#allocation9 + $0x40] sm:$0xf]
        %v6871 = vld [vmem:[#allocation9 + $0x44] sm:$0xf]
        %v6872 = vld [vmem:[#allocation9 + $0x48] sm:$0xf]
        %v6873 = vld [vmem:[#allocation9 + $0x4c] sm:$0xf]
        %v6874 = vld [vmem:[#allocation9 + $0x50] sm:$0xf]
        %v6875 = vld [vmem:[#allocation9 + $0x54] sm:$0xf]
        %v6876 = vld [vmem:[#allocation9 + $0x58] sm:$0xf]
        %v6877 = vld [vmem:[#allocation9 + $0x5c] sm:$0xf]
        %v6878 = vld [vmem:[#allocation9 + $0x60] sm:$0xf]
        %v6879 = vld [vmem:[#allocation9 + $0x64] sm:$0xf]
        %v6880 = vld [vmem:[#allocation9 + $0x68] sm:$0xf]
        %v6881 = vld [vmem:[#allocation9 + $0x6c] sm:$0xf]
        %v6882 = vld [vmem:[#allocation9 + $0x70] sm:$0xf]
        %v6883 = vld [vmem:[#allocation9 + $0x74] sm:$0xf]
        %v6884 = vld [vmem:[#allocation9 + $0x78] sm:$0xf]
        %v6885 = vld [vmem:[#allocation9 + $0x7c] sm:$0xf]
        %v6886 = vunpack.c.l.b16 %v6499
        %v6887 = vunpack.c.l.b16 %v6509
        %v6888 = vunpack.c.l.b16 %v6523
        %v6889 = vunpack.c.l.b16 %v6533
        %v6890 = vunpack.c.l.b16 %v6547
        %v6891 = vunpack.c.l.b16 %v6557
        %v6892 = vunpack.c.l.b16 %v6571
        %v6893 = vunpack.c.l.b16 %v6581
        %v6894 = vunpack.c.l.b16 %v6595
        %v6895 = vunpack.c.l.b16 %v6605
        %v6896 = vunpack.c.l.b16 %v6619
        %v6897 = vunpack.c.l.b16 %v6629
        %v6898 = vunpack.c.l.b16 %v6643
        %v6899 = vunpack.c.l.b16 %v6653
        %v6900 = vunpack.c.l.b16 %v6667
        %v6901 = vunpack.c.l.b16 %v6677
        %v6902 = vunpack.c.l.b16 %v6691
        %v6903 = vunpack.c.l.b16 %v6701
        %v6904 = vunpack.c.l.b16 %v6715
        %v6905 = vunpack.c.l.b16 %v6725
        %v6906 = vunpack.c.l.b16 %v6739
        %v6907 = vunpack.c.l.b16 %v6749
        %v6908 = vunpack.c.l.b16 %v6763
        %v6909 = vunpack.c.l.b16 %v6773
        %v6910 = vunpack.c.l.b16 %v6787
        %v6911 = vunpack.c.l.b16 %v6797
        %v6912 = vunpack.c.l.b16 %v6811
        %v6913 = vunpack.c.l.b16 %v6821
        %v6914 = vunpack.c.l.b16 %v6835
        %v6915 = vunpack.c.l.b16 %v6845
        %v6916 = vunpack.c.l.b16 %v6859
        %v6917 = vunpack.c.l.b16 %v6869
        %v6918 = vpack.c.b16 %v6887, %v6886
        %v6919 = vpack.c.b16 %v6889, %v6888
        %v6920 = vpack.c.b16 %v6891, %v6890
        %v6921 = vpack.c.b16 %v6893, %v6892
        %v6922 = vpack.c.b16 %v6895, %v6894
        %v6923 = vpack.c.b16 %v6897, %v6896
        %v6924 = vpack.c.b16 %v6899, %v6898
        %v6925 = vpack.c.b16 %v6901, %v6900
        %v6926 = vpack.c.b16 %v6903, %v6902
        %v6927 = vpack.c.b16 %v6905, %v6904
        %v6928 = vpack.c.b16 %v6907, %v6906
        %v6929 = vpack.c.b16 %v6909, %v6908
        %v6930 = vpack.c.b16 %v6911, %v6910
        %v6931 = vpack.c.b16 %v6913, %v6912
        %v6932 = vpack.c.b16 %v6915, %v6914
        %v6933 = vpack.c.b16 %v6917, %v6916
        %v6966 = vunpack.c.l.b16 %v6870
        %v6967 = vunpack.c.l.b16 %v6871
        %v6968 = vunpack.c.l.b16 %v6872
        %v6969 = vunpack.c.l.b16 %v6873
        %v6970 = vunpack.c.l.b16 %v6874
        %v6971 = vunpack.c.l.b16 %v6875
        %v6972 = vunpack.c.l.b16 %v6876
        %v6973 = vunpack.c.l.b16 %v6877
        %v6974 = vunpack.c.l.b16 %v6878
        %v6975 = vunpack.c.l.b16 %v6879
        %v6976 = vunpack.c.l.b16 %v6880
        %v6977 = vunpack.c.l.b16 %v6881
        %v6978 = vunpack.c.l.b16 %v6882
        %v6979 = vunpack.c.l.b16 %v6883
        %v6980 = vunpack.c.l.b16 %v6884
        %v6981 = vunpack.c.l.b16 %v6885
        %v6982 = vpack.c.b16 %v6967, %v6966
        %v6983 = vpack.c.b16 %v6969, %v6968
        %v6984 = vpack.c.b16 %v6971, %v6970
        %v6985 = vpack.c.b16 %v6973, %v6972
        %v6986 = vpack.c.b16 %v6975, %v6974
        %v6987 = vpack.c.b16 %v6977, %v6976
        %v6988 = vpack.c.b16 %v6979, %v6978
        %v6989 = vpack.c.b16 %v6981, %v6980
        %6998 = vmatprep.subr.bf16.mxu0 0
        %6999 = vmatpush1.bf16.msra.mxu0 %v6989
        %7000 = vmatprep.subr.bf16.mxu0 0
        %7001 = vmatpush1.bf16.msra.mxu0 %v6988
        %7002 = vmatprep.subr.bf16.mxu0 0
        %7003 = vmatpush1.bf16.msra.mxu0 %v6987
        %7004 = vmatprep.subr.bf16.mxu0 0
        %7005 = vmatpush1.bf16.msra.mxu0 %v6986
        %7006 = vmatprep.subr.bf16.mxu0 0
        %7007 = vmatpush1.bf16.msra.mxu0 %v6985
        %7008 = vmatprep.subr.bf16.mxu0 0
        %7009 = vmatpush1.bf16.msra.mxu0 %v6984
        %7010 = vmatprep.subr.bf16.mxu0 0
        %7011 = vmatpush1.bf16.msra.mxu0 %v6983
        %7012 = vmatprep.subr.bf16.mxu0 0
        %7013 = vmatpush1.bf16.msra.mxu0 %v6982
        %7014 = vmatprep.subr.bf16.mxu0 0
        %7015 = vmatpush2.bf16.msra.mxu0 0
        %7016 = vmatprep.subr.bf16.mxu0 0
        %7017 = vmatpush2.bf16.msra.mxu0 0
        %7018 = vmatprep.subr.bf16.mxu0 0
        %7019 = vmatpush2.bf16.msra.mxu0 0
        %7020 = vmatprep.subr.bf16.mxu0 0
        %7021 = vmatpush2.bf16.msra.mxu0 0
        %7022 = vmatprep.subr.bf16.mxu0 0
        %7023 = vmatpush2.bf16.msra.mxu0 0
        %7024 = vmatprep.subr.bf16.mxu0 0
        %7025 = vmatpush2.bf16.msra.mxu0 0
        %7026 = vmatprep.subr.bf16.mxu0 0
        %7027 = vmatpush2.bf16.msra.mxu0 0
        %7028 = vmatprep.subr.bf16.mxu0 0
        %7029 = vmatpush2.bf16.msra.mxu0 0
        %7030 = vmatprep.mubr.bf16.mxu0 0
        %7031 = vmatmul.mubr.bf16.gmra.mxu0 %v6918
        %v7032 = vpop.f32.mrf.mxu0
        %v7033 = vadd.f32 0.0, %v7032
        %v7034 = vpop.f32.mrf.mxu0
        %v7035 = vpop.f32.mrf.mxu0
        %v7036 = vadd.f32 0.0, %v7035
        %v7037 = vpop.f32.mrf.mxu0
        %7038 = vmatprep.mubr.bf16.mxu0 0
        %7039 = vmatmul.mubr.bf16.gmra.mxu0 %v6919
        %v7040 = vpop.f32.mrf.mxu0
        %v7041 = vadd.f32 0.0, %v7040
        %v7042 = vpop.f32.mrf.mxu0
        %v7043 = vpop.f32.mrf.mxu0
        %v7044 = vadd.f32 0.0, %v7043
        %v7045 = vpop.f32.mrf.mxu0
        %7046 = vmatprep.mubr.bf16.mxu0 0
        %7047 = vmatmul.mubr.bf16.gmra.mxu0 %v6920
        %v7048 = vpop.f32.mrf.mxu0
        %v7049 = vadd.f32 0.0, %v7048
        %v7050 = vpop.f32.mrf.mxu0
        %v7051 = vpop.f32.mrf.mxu0
        %v7052 = vadd.f32 0.0, %v7051
        %v7053 = vpop.f32.mrf.mxu0
        %7054 = vmatprep.mubr.bf16.mxu0 0
        %7055 = vmatmul.mubr.bf16.gmra.mxu0 %v6921
        %v7056 = vpop.f32.mrf.mxu0
        %v7057 = vadd.f32 0.0, %v7056
        %v7058 = vpop.f32.mrf.mxu0
        %v7059 = vpop.f32.mrf.mxu0
        %v7060 = vadd.f32 0.0, %v7059
        %v7061 = vpop.f32.mrf.mxu0
        %7062 = vmatprep.mubr.bf16.mxu0 0
        %7063 = vmatmul.mubr.bf16.gmra.mxu0 %v6922
        %v7064 = vpop.f32.mrf.mxu0
        %v7065 = vadd.f32 0.0, %v7064
        %v7066 = vpop.f32.mrf.mxu0
        %v7067 = vpop.f32.mrf.mxu0
        %v7068 = vadd.f32 0.0, %v7067
        %v7069 = vpop.f32.mrf.mxu0
        %7070 = vmatprep.mubr.bf16.mxu0 0
        %7071 = vmatmul.mubr.bf16.gmra.mxu0 %v6923
        %v7072 = vpop.f32.mrf.mxu0
        %v7073 = vadd.f32 0.0, %v7072
        %v7074 = vpop.f32.mrf.mxu0
        %v7075 = vpop.f32.mrf.mxu0
        %v7076 = vadd.f32 0.0, %v7075
        %v7077 = vpop.f32.mrf.mxu0
        %7078 = vmatprep.mubr.bf16.mxu0 0
        %7079 = vmatmul.mubr.bf16.gmra.mxu0 %v6924
        %v7080 = vpop.f32.mrf.mxu0
        %v7081 = vadd.f32 0.0, %v7080
        %v7082 = vpop.f32.mrf.mxu0
        %v7083 = vpop.f32.mrf.mxu0
        %v7084 = vadd.f32 0.0, %v7083
        %v7085 = vpop.f32.mrf.mxu0
        %7086 = vmatprep.mubr.bf16.mxu0 0
        %7087 = vmatmul.mubr.bf16.gmra.mxu0 %v6925
        %v7088 = vpop.f32.mrf.mxu0
        %v7089 = vadd.f32 0.0, %v7088
        %v7090 = vpop.f32.mrf.mxu0
        %v7091 = vpop.f32.mrf.mxu0
        %v7092 = vadd.f32 0.0, %v7091
        %v7093 = vpop.f32.mrf.mxu0
        %7094 = vmatprep.mubr.bf16.mxu0 0
        %7095 = vmatmul.mubr.bf16.gmra.mxu0 %v6926
        %v7096 = vpop.f32.mrf.mxu0
        %v7097 = vadd.f32 0.0, %v7096
        %v7098 = vpop.f32.mrf.mxu0
        %v7099 = vpop.f32.mrf.mxu0
        %v7100 = vadd.f32 0.0, %v7099
        %v7101 = vpop.f32.mrf.mxu0
        %7102 = vmatprep.mubr.bf16.mxu0 0
        %7103 = vmatmul.mubr.bf16.gmra.mxu0 %v6927
        %v7104 = vpop.f32.mrf.mxu0
        %v7105 = vadd.f32 0.0, %v7104
        %v7106 = vpop.f32.mrf.mxu0
        %v7107 = vpop.f32.mrf.mxu0
        %v7108 = vadd.f32 0.0, %v7107
        %v7109 = vpop.f32.mrf.mxu0
        %7110 = vmatprep.mubr.bf16.mxu0 0
        %7111 = vmatmul.mubr.bf16.gmra.mxu0 %v6928
        %v7112 = vpop.f32.mrf.mxu0
        %v7113 = vadd.f32 0.0, %v7112
        %v7114 = vpop.f32.mrf.mxu0
        %v7115 = vpop.f32.mrf.mxu0
        %v7116 = vadd.f32 0.0, %v7115
        %v7117 = vpop.f32.mrf.mxu0
        %7118 = vmatprep.mubr.bf16.mxu0 0
        %7119 = vmatmul.mubr.bf16.gmra.mxu0 %v6929
        %v7120 = vpop.f32.mrf.mxu0
        %v7121 = vadd.f32 0.0, %v7120
        %v7122 = vpop.f32.mrf.mxu0
        %v7123 = vpop.f32.mrf.mxu0
        %v7124 = vadd.f32 0.0, %v7123
        %v7125 = vpop.f32.mrf.mxu0
        %7126 = vmatprep.mubr.bf16.mxu0 0
        %7127 = vmatmul.mubr.bf16.gmra.mxu0 %v6930
        %v7128 = vpop.f32.mrf.mxu0
        %v7129 = vadd.f32 0.0, %v7128
        %v7130 = vpop.f32.mrf.mxu0
        %v7131 = vpop.f32.mrf.mxu0
        %v7132 = vadd.f32 0.0, %v7131
        %v7133 = vpop.f32.mrf.mxu0
        %7134 = vmatprep.mubr.bf16.mxu0 0
        %7135 = vmatmul.mubr.bf16.gmra.mxu0 %v6931
        %v7136 = vpop.f32.mrf.mxu0
        %v7137 = vadd.f32 0.0, %v7136
        %v7138 = vpop.f32.mrf.mxu0
        %v7139 = vpop.f32.mrf.mxu0
        %v7140 = vadd.f32 0.0, %v7139
        %v7141 = vpop.f32.mrf.mxu0
        %7142 = vmatprep.mubr.bf16.mxu0 0
        %7143 = vmatmul.mubr.bf16.gmra.mxu0 %v6932
        %v7144 = vpop.f32.mrf.mxu0
        %v7145 = vadd.f32 0.0, %v7144
        %v7146 = vpop.f32.mrf.mxu0
        %v7147 = vpop.f32.mrf.mxu0
        %v7148 = vadd.f32 0.0, %v7147
        %v7149 = vpop.f32.mrf.mxu0
        %7150 = vmatprep.mubr.bf16.mxu0 0
        %7151 = vmatmul.mubr.bf16.gmra.mxu0 %v6933
        %v7152 = vpop.f32.mrf.mxu0
        %v7153 = vadd.f32 0.0, %v7152
        %v7154 = vpop.f32.mrf.mxu0
        %v7155 = vpop.f32.mrf.mxu0
        %v7156 = vadd.f32 0.0, %v7155
        %v7157 = vpop.f32.mrf.mxu0
        %7158 = vdwg.mxu0
        %v7191 = vunpack.c.l.b16 %v6422
        %v7192 = vunpack.c.l.b16 %v6423
        %v7193 = vunpack.c.l.b16 %v6424
        %v7194 = vunpack.c.l.b16 %v6425
        %v7195 = vunpack.c.l.b16 %v6426
        %v7196 = vunpack.c.l.b16 %v6427
        %v7197 = vunpack.c.l.b16 %v6428
        %v7198 = vunpack.c.l.b16 %v6429
        %v7199 = vunpack.c.l.b16 %v6430
        %v7200 = vunpack.c.l.b16 %v6431
        %v7201 = vunpack.c.l.b16 %v6432
        %v7202 = vunpack.c.l.b16 %v6433
        %v7203 = vunpack.c.l.b16 %v6434
        %v7204 = vunpack.c.l.b16 %v6435
        %v7205 = vunpack.c.l.b16 %v6436
        %v7206 = vunpack.c.l.b16 %v6437
        %v7207 = vunpack.c.l.b16 %v6438
        %v7208 = vunpack.c.l.b16 %v6439
        %v7209 = vunpack.c.l.b16 %v6440
        %v7210 = vunpack.c.l.b16 %v6441
        %v7211 = vunpack.c.l.b16 %v6442
        %v7212 = vunpack.c.l.b16 %v6443
        %v7213 = vunpack.c.l.b16 %v6444
        %v7214 = vunpack.c.l.b16 %v6445
        %v7215 = vunpack.c.l.b16 %v6446
        %v7216 = vunpack.c.l.b16 %v6447
        %v7217 = vunpack.c.l.b16 %v6448
        %v7218 = vunpack.c.l.b16 %v6449
        %v7219 = vunpack.c.l.b16 %v6450
        %v7220 = vunpack.c.l.b16 %v6451
        %v7221 = vunpack.c.l.b16 %v6452
        %v7222 = vunpack.c.l.b16 %v6453
        %v7223 = vpack.c.b16 %v7192, %v7191
        %v7224 = vpack.c.b16 %v7194, %v7193
        %v7225 = vpack.c.b16 %v7196, %v7195
        %v7226 = vpack.c.b16 %v7198, %v7197
        %v7227 = vpack.c.b16 %v7200, %v7199
        %v7228 = vpack.c.b16 %v7202, %v7201
        %v7229 = vpack.c.b16 %v7204, %v7203
        %v7230 = vpack.c.b16 %v7206, %v7205
        %v7231 = vpack.c.b16 %v7208, %v7207
        %v7232 = vpack.c.b16 %v7210, %v7209
        %v7233 = vpack.c.b16 %v7212, %v7211
        %v7234 = vpack.c.b16 %v7214, %v7213
        %v7235 = vpack.c.b16 %v7216, %v7215
        %v7236 = vpack.c.b16 %v7218, %v7217
        %v7237 = vpack.c.b16 %v7220, %v7219
        %v7238 = vpack.c.b16 %v7222, %v7221
        %v7271 = vunpack.c.l.b16 %v6454
        %v7272 = vunpack.c.l.b16 %v6455
        %v7273 = vunpack.c.l.b16 %v6456
        %v7274 = vunpack.c.l.b16 %v6457
        %v7275 = vunpack.c.l.b16 %v6458
        %v7276 = vunpack.c.l.b16 %v6459
        %v7277 = vunpack.c.l.b16 %v6460
        %v7278 = vunpack.c.l.b16 %v6461
        %v7279 = vunpack.c.l.b16 %v6462
        %v7280 = vunpack.c.l.b16 %v6463
        %v7281 = vunpack.c.l.b16 %v6464
        %v7282 = vunpack.c.l.b16 %v6465
        %v7283 = vunpack.c.l.b16 %v6466
        %v7284 = vunpack.c.l.b16 %v6467
        %v7285 = vunpack.c.l.b16 %v6468
        %v7286 = vunpack.c.l.b16 %v6469
        %v7287 = vpack.c.b16 %v7272, %v7271
        %v7288 = vpack.c.b16 %v7274, %v7273
        %v7289 = vpack.c.b16 %v7276, %v7275
        %v7290 = vpack.c.b16 %v7278, %v7277
        %v7291 = vpack.c.b16 %v7280, %v7279
        %v7292 = vpack.c.b16 %v7282, %v7281
        %v7293 = vpack.c.b16 %v7284, %v7283
        %v7294 = vpack.c.b16 %v7286, %v7285
        %7303 = vmatprep.subr.bf16.mxu0 0
        %7304 = vmatpush1.bf16.msra.mxu0 %v7294
        %7305 = vmatprep.subr.bf16.mxu0 0
        %7306 = vmatpush1.bf16.msra.mxu0 %v7293
        %7307 = vmatprep.subr.bf16.mxu0 0
        %7308 = vmatpush1.bf16.msra.mxu0 %v7292
        %7309 = vmatprep.subr.bf16.mxu0 0
        %7310 = vmatpush1.bf16.msra.mxu0 %v7291
        %7311 = vmatprep.subr.bf16.mxu0 0
        %7312 = vmatpush1.bf16.msra.mxu0 %v7290
        %7313 = vmatprep.subr.bf16.mxu0 0
        %7314 = vmatpush1.bf16.msra.mxu0 %v7289
        %7315 = vmatprep.subr.bf16.mxu0 0
        %7316 = vmatpush1.bf16.msra.mxu0 %v7288
        %7317 = vmatprep.subr.bf16.mxu0 0
        %7318 = vmatpush1.bf16.msra.mxu0 %v7287
        %7319 = vmatprep.subr.bf16.mxu0 0
        %7320 = vmatpush2.bf16.msra.mxu0 0
        %7321 = vmatprep.subr.bf16.mxu0 0
        %7322 = vmatpush2.bf16.msra.mxu0 0
        %7323 = vmatprep.subr.bf16.mxu0 0
        %7324 = vmatpush2.bf16.msra.mxu0 0
        %7325 = vmatprep.subr.bf16.mxu0 0
        %7326 = vmatpush2.bf16.msra.mxu0 0
        %7327 = vmatprep.subr.bf16.mxu0 0
        %7328 = vmatpush2.bf16.msra.mxu0 0
        %7329 = vmatprep.subr.bf16.mxu0 0
        %7330 = vmatpush2.bf16.msra.mxu0 0
        %7331 = vmatprep.subr.bf16.mxu0 0
        %7332 = vmatpush2.bf16.msra.mxu0 0
        %7333 = vmatprep.subr.bf16.mxu0 0
        %7334 = vmatpush2.bf16.msra.mxu0 0
        %7335 = vmatprep.mubr.bf16.mxu0 0
        %7336 = vmatmul.mubr.bf16.gmra.mxu0 %v7223
        %v7337 = vpop.f32.mrf.mxu0
        %v7338 = vadd.f32 %v7033, %v7337
        %v7339 = vpop.f32.mrf.mxu0
        %v7340 = vpop.f32.mrf.mxu0
        %v7341 = vadd.f32 %v7036, %v7340
        %v7342 = vpop.f32.mrf.mxu0
        %7343 = vmatprep.mubr.bf16.mxu0 0
        %7344 = vmatmul.mubr.bf16.gmra.mxu0 %v7224
        %v7345 = vpop.f32.mrf.mxu0
        %v7346 = vadd.f32 %v7041, %v7345
        %v7347 = vpop.f32.mrf.mxu0
        %v7348 = vpop.f32.mrf.mxu0
        %v7349 = vadd.f32 %v7044, %v7348
        %v7350 = vpop.f32.mrf.mxu0
        %7351 = vmatprep.mubr.bf16.mxu0 0
        %7352 = vmatmul.mubr.bf16.gmra.mxu0 %v7225
        %v7353 = vpop.f32.mrf.mxu0
        %v7354 = vadd.f32 %v7049, %v7353
        %v7355 = vpop.f32.mrf.mxu0
        %v7356 = vpop.f32.mrf.mxu0
        %v7357 = vadd.f32 %v7052, %v7356
        %v7358 = vpop.f32.mrf.mxu0
        %7359 = vmatprep.mubr.bf16.mxu0 0
        %7360 = vmatmul.mubr.bf16.gmra.mxu0 %v7226
        %v7361 = vpop.f32.mrf.mxu0
        %v7362 = vadd.f32 %v7057, %v7361
        %v7363 = vpop.f32.mrf.mxu0
        %v7364 = vpop.f32.mrf.mxu0
        %v7365 = vadd.f32 %v7060, %v7364
        %v7366 = vpop.f32.mrf.mxu0
        %7367 = vmatprep.mubr.bf16.mxu0 0
        %7368 = vmatmul.mubr.bf16.gmra.mxu0 %v7227
        %v7369 = vpop.f32.mrf.mxu0
        %v7370 = vadd.f32 %v7065, %v7369
        %v7371 = vpop.f32.mrf.mxu0
        %v7372 = vpop.f32.mrf.mxu0
        %v7373 = vadd.f32 %v7068, %v7372
        %v7374 = vpop.f32.mrf.mxu0
        %7375 = vmatprep.mubr.bf16.mxu0 0
        %7376 = vmatmul.mubr.bf16.gmra.mxu0 %v7228
        %v7377 = vpop.f32.mrf.mxu0
        %v7378 = vadd.f32 %v7073, %v7377
        %v7379 = vpop.f32.mrf.mxu0
        %v7380 = vpop.f32.mrf.mxu0
        %v7381 = vadd.f32 %v7076, %v7380
        %v7382 = vpop.f32.mrf.mxu0
        %7383 = vmatprep.mubr.bf16.mxu0 0
        %7384 = vmatmul.mubr.bf16.gmra.mxu0 %v7229
        %v7385 = vpop.f32.mrf.mxu0
        %v7386 = vadd.f32 %v7081, %v7385
        %v7387 = vpop.f32.mrf.mxu0
        %v7388 = vpop.f32.mrf.mxu0
        %v7389 = vadd.f32 %v7084, %v7388
        %v7390 = vpop.f32.mrf.mxu0
        %7391 = vmatprep.mubr.bf16.mxu0 0
        %7392 = vmatmul.mubr.bf16.gmra.mxu0 %v7230
        %v7393 = vpop.f32.mrf.mxu0
        %v7394 = vadd.f32 %v7089, %v7393
        %v7395 = vpop.f32.mrf.mxu0
        %v7396 = vpop.f32.mrf.mxu0
        %v7397 = vadd.f32 %v7092, %v7396
        %v7398 = vpop.f32.mrf.mxu0
        %7399 = vmatprep.mubr.bf16.mxu0 0
        %7400 = vmatmul.mubr.bf16.gmra.mxu0 %v7231
        %v7401 = vpop.f32.mrf.mxu0
        %v7402 = vadd.f32 %v7097, %v7401
        %v7403 = vpop.f32.mrf.mxu0
        %v7404 = vpop.f32.mrf.mxu0
        %v7405 = vadd.f32 %v7100, %v7404
        %v7406 = vpop.f32.mrf.mxu0
        %7407 = vmatprep.mubr.bf16.mxu0 0
        %7408 = vmatmul.mubr.bf16.gmra.mxu0 %v7232
        %v7409 = vpop.f32.mrf.mxu0
        %v7410 = vadd.f32 %v7105, %v7409
        %v7411 = vpop.f32.mrf.mxu0
        %v7412 = vpop.f32.mrf.mxu0
        %v7413 = vadd.f32 %v7108, %v7412
        %v7414 = vpop.f32.mrf.mxu0
        %7415 = vmatprep.mubr.bf16.mxu0 0
        %7416 = vmatmul.mubr.bf16.gmra.mxu0 %v7233
        %v7417 = vpop.f32.mrf.mxu0
        %v7418 = vadd.f32 %v7113, %v7417
        %v7419 = vpop.f32.mrf.mxu0
        %v7420 = vpop.f32.mrf.mxu0
        %v7421 = vadd.f32 %v7116, %v7420
        %v7422 = vpop.f32.mrf.mxu0
        %7423 = vmatprep.mubr.bf16.mxu0 0
        %7424 = vmatmul.mubr.bf16.gmra.mxu0 %v7234
        %v7425 = vpop.f32.mrf.mxu0
        %v7426 = vadd.f32 %v7121, %v7425
        %v7427 = vpop.f32.mrf.mxu0
        %v7428 = vpop.f32.mrf.mxu0
        %v7429 = vadd.f32 %v7124, %v7428
        %v7430 = vpop.f32.mrf.mxu0
        %7431 = vmatprep.mubr.bf16.mxu0 0
        %7432 = vmatmul.mubr.bf16.gmra.mxu0 %v7235
        %v7433 = vpop.f32.mrf.mxu0
        %v7434 = vadd.f32 %v7129, %v7433
        %v7435 = vpop.f32.mrf.mxu0
        %v7436 = vpop.f32.mrf.mxu0
        %v7437 = vadd.f32 %v7132, %v7436
        %v7438 = vpop.f32.mrf.mxu0
        %7439 = vmatprep.mubr.bf16.mxu0 0
        %7440 = vmatmul.mubr.bf16.gmra.mxu0 %v7236
        %v7441 = vpop.f32.mrf.mxu0
        %v7442 = vadd.f32 %v7137, %v7441
        %v7443 = vpop.f32.mrf.mxu0
        %v7444 = vpop.f32.mrf.mxu0
        %v7445 = vadd.f32 %v7140, %v7444
        %v7446 = vpop.f32.mrf.mxu0
        %7447 = vmatprep.mubr.bf16.mxu0 0
        %7448 = vmatmul.mubr.bf16.gmra.mxu0 %v7237
        %v7449 = vpop.f32.mrf.mxu0
        %v7450 = vadd.f32 %v7145, %v7449
        %v7451 = vpop.f32.mrf.mxu0
        %v7452 = vpop.f32.mrf.mxu0
        %v7453 = vadd.f32 %v7148, %v7452
        %v7454 = vpop.f32.mrf.mxu0
        %7455 = vmatprep.mubr.bf16.mxu0 0
        %7456 = vmatmul.mubr.bf16.gmra.mxu0 %v7238
        %v7457 = vpop.f32.mrf.mxu0
        %v7458 = vadd.f32 %v7153, %v7457
        %v7459 = vpop.f32.mrf.mxu0
        %v7460 = vpop.f32.mrf.mxu0
        %v7461 = vadd.f32 %v7156, %v7460
        %v7462 = vpop.f32.mrf.mxu0
        %7463 = vdwg.mxu0
        %v7464 = vld [vmem:[#allocation3] sm:$0xe]
        %v7465 = vld [vmem:[#allocation3 + $0xc] sm:$0xe]
        %v7466 = vld [vmem:[#allocation3 + $0x18] sm:$0xe]
        %v7467 = vld [vmem:[#allocation3 + $0x24] sm:$0xe]
        %v7468 = vld [vmem:[#allocation3 + $0x30] sm:$0xe]
        %v7469 = vld [vmem:[#allocation3 + $0x3c] sm:$0xe]
        %v7470 = vld [vmem:[#allocation3 + $0x48] sm:$0xe]
        %v7471 = vld [vmem:[#allocation3 + $0x54] sm:$0xe]
        %v7472 = vld [vmem:[#allocation3 + $0x60] sm:$0xe]
        %v7473 = vld [vmem:[#allocation3 + $0x6c] sm:$0xe]
        %v7474 = vld [vmem:[#allocation3 + $0x78] sm:$0xe]
        %v7475 = vld [vmem:[#allocation3 + $0x84] sm:$0xe]
        %v7476 = vld [vmem:[#allocation3 + $0x90] sm:$0xe]
        %v7477 = vld [vmem:[#allocation3 + $0x9c] sm:$0xe]
        %v7478 = vld [vmem:[#allocation3 + $0xa8] sm:$0xe]
        %v7479 = vld [vmem:[#allocation3 + $0xb4] sm:$0xe]
        %v7512 = vrot.slane %v7464, 5
        %v7513 = vrot.slane %v7512, 4
        %v7514 = vrot.slane %v6423, 5
        %v7515 = vsel %vm2118, %v7513, %v7514
        %v7516 = vrot.slane %v7514, 4
        %v7517 = vrot.slane %v6470, 5
        %v7518 = vsel %vm2118, %v7516, %v7517
        %v7519 = vrot.slane %v7465, 5
        %v7520 = vrot.slane %v7519, 4
        %v7521 = vrot.slane %v6425, 5
        %v7522 = vsel %vm2118, %v7520, %v7521
        %v7523 = vrot.slane %v7521, 4
        %v7524 = vrot.slane %v6471, 5
        %v7525 = vsel %vm2118, %v7523, %v7524
        %v7526 = vrot.slane %v7466, 5
        %v7527 = vrot.slane %v7526, 4
        %v7528 = vrot.slane %v6427, 5
        %v7529 = vsel %vm2118, %v7527, %v7528
        %v7530 = vrot.slane %v7528, 4
        %v7531 = vrot.slane %v6472, 5
        %v7532 = vsel %vm2118, %v7530, %v7531
        %v7533 = vrot.slane %v7467, 5
        %v7534 = vrot.slane %v7533, 4
        %v7535 = vrot.slane %v6429, 5
        %v7536 = vsel %vm2118, %v7534, %v7535
        %v7537 = vrot.slane %v7535, 4
        %v7538 = vrot.slane %v6473, 5
        %v7539 = vsel %vm2118, %v7537, %v7538
        %v7540 = vrot.slane %v7468, 5
        %v7541 = vrot.slane %v7540, 4
        %v7542 = vrot.slane %v6431, 5
        %v7543 = vsel %vm2118, %v7541, %v7542
        %v7544 = vrot.slane %v7542, 4
        %v7545 = vrot.slane %v6474, 5
        %v7546 = vsel %vm2118, %v7544, %v7545
        %v7547 = vrot.slane %v7469, 5
        %v7548 = vrot.slane %v7547, 4
        %v7549 = vrot.slane %v6433, 5
        %v7550 = vsel %vm2118, %v7548, %v7549
        %v7551 = vrot.slane %v7549, 4
        %v7552 = vrot.slane %v6475, 5
        %v7553 = vsel %vm2118, %v7551, %v7552
        %v7554 = vrot.slane %v7470, 5
        %v7555 = vrot.slane %v7554, 4
        %v7556 = vrot.slane %v6435, 5
        %v7557 = vsel %vm2118, %v7555, %v7556
        %v7558 = vrot.slane %v7556, 4
        %v7559 = vrot.slane %v6476, 5
        %v7560 = vsel %vm2118, %v7558, %v7559
        %v7561 = vrot.slane %v7471, 5
        %v7562 = vrot.slane %v7561, 4
        %v7563 = vrot.slane %v6437, 5
        %v7564 = vsel %vm2118, %v7562, %v7563
        %v7565 = vrot.slane %v7563, 4
        %v7566 = vrot.slane %v6477, 5
        %v7567 = vsel %vm2118, %v7565, %v7566
        %v7568 = vrot.slane %v7472, 5
        %v7569 = vrot.slane %v7568, 4
        %v7570 = vrot.slane %v6439, 5
        %v7571 = vsel %vm2118, %v7569, %v7570
        %v7572 = vrot.slane %v7570, 4
        %v7573 = vrot.slane %v6478, 5
        %v7574 = vsel %vm2118, %v7572, %v7573
        %v7575 = vrot.slane %v7473, 5
        %v7576 = vrot.slane %v7575, 4
        %v7577 = vrot.slane %v6441, 5
        %v7578 = vsel %vm2118, %v7576, %v7577
        %v7579 = vrot.slane %v7577, 4
        %v7580 = vrot.slane %v6479, 5
        %v7581 = vsel %vm2118, %v7579, %v7580
        %v7582 = vrot.slane %v7474, 5
        %v7583 = vrot.slane %v7582, 4
        %v7584 = vrot.slane %v6443, 5
        %v7585 = vsel %vm2118, %v7583, %v7584
        %v7586 = vrot.slane %v7584, 4
        %v7587 = vrot.slane %v6480, 5
        %v7588 = vsel %vm2118, %v7586, %v7587
        %v7589 = vrot.slane %v7475, 5
        %v7590 = vrot.slane %v7589, 4
        %v7591 = vrot.slane %v6445, 5
        %v7592 = vsel %vm2118, %v7590, %v7591
        %v7593 = vrot.slane %v7591, 4
        %v7594 = vrot.slane %v6481, 5
        %v7595 = vsel %vm2118, %v7593, %v7594
        %v7596 = vrot.slane %v7476, 5
        %v7597 = vrot.slane %v7596, 4
        %v7598 = vrot.slane %v6447, 5
        %v7599 = vsel %vm2118, %v7597, %v7598
        %v7600 = vrot.slane %v7598, 4
        %v7601 = vrot.slane %v6482, 5
        %v7602 = vsel %vm2118, %v7600, %v7601
        %v7603 = vrot.slane %v7477, 5
        %v7604 = vrot.slane %v7603, 4
        %v7605 = vrot.slane %v6449, 5
        %v7606 = vsel %vm2118, %v7604, %v7605
        %v7607 = vrot.slane %v7605, 4
        %v7608 = vrot.slane %v6483, 5
        %v7609 = vsel %vm2118, %v7607, %v7608
        %v7610 = vrot.slane %v7478, 5
        %v7611 = vrot.slane %v7610, 4
        %v7612 = vrot.slane %v6451, 5
        %v7613 = vsel %vm2118, %v7611, %v7612
        %v7614 = vrot.slane %v7612, 4
        %v7615 = vrot.slane %v6484, 5
        %v7616 = vsel %vm2118, %v7614, %v7615
        %v7617 = vrot.slane %v7479, 5
        %v7618 = vrot.slane %v7617, 4
        %v7619 = vrot.slane %v6453, 5
        %v7620 = vsel %vm2118, %v7618, %v7619
        %v7621 = vrot.slane %v7619, 4
        %v7622 = vrot.slane %v6485, 5
        %v7623 = vsel %vm2118, %v7621, %v7622
        %v7624 = vld [vmem:[#allocation9 + $0x80] sm:$0xf]
        %v7625 = vld [vmem:[#allocation9 + $0x84] sm:$0xf]
        %v7626 = vld [vmem:[#allocation9 + $0x88] sm:$0xf]
        %v7627 = vld [vmem:[#allocation9 + $0x8c] sm:$0xf]
        %v7628 = vld [vmem:[#allocation9 + $0x90] sm:$0xf]
        %v7629 = vld [vmem:[#allocation9 + $0x94] sm:$0xf]
        %v7630 = vld [vmem:[#allocation9 + $0x98] sm:$0xf]
        %v7631 = vld [vmem:[#allocation9 + $0x9c] sm:$0xf]
        %v7632 = vld [vmem:[#allocation9 + $0xa0] sm:$0xf]
        %v7633 = vld [vmem:[#allocation9 + $0xa4] sm:$0xf]
        %v7634 = vld [vmem:[#allocation9 + $0xa8] sm:$0xf]
        %v7635 = vld [vmem:[#allocation9 + $0xac] sm:$0xf]
        %v7636 = vld [vmem:[#allocation9 + $0xb0] sm:$0xf]
        %v7637 = vld [vmem:[#allocation9 + $0xb4] sm:$0xf]
        %v7638 = vld [vmem:[#allocation9 + $0xb8] sm:$0xf]
        %v7639 = vld [vmem:[#allocation9 + $0xbc] sm:$0xf]
        %v7640 = vunpack.c.l.b16 %v7515
        %v7641 = vunpack.c.l.b16 %v7518
        %v7642 = vunpack.c.l.b16 %v7522
        %v7643 = vunpack.c.l.b16 %v7525
        %v7644 = vunpack.c.l.b16 %v7529
        %v7645 = vunpack.c.l.b16 %v7532
        %v7646 = vunpack.c.l.b16 %v7536
        %v7647 = vunpack.c.l.b16 %v7539
        %v7648 = vunpack.c.l.b16 %v7543
        %v7649 = vunpack.c.l.b16 %v7546
        %v7650 = vunpack.c.l.b16 %v7550
        %v7651 = vunpack.c.l.b16 %v7553
        %v7652 = vunpack.c.l.b16 %v7557
        %v7653 = vunpack.c.l.b16 %v7560
        %v7654 = vunpack.c.l.b16 %v7564
        %v7655 = vunpack.c.l.b16 %v7567
        %v7656 = vunpack.c.l.b16 %v7571
        %v7657 = vunpack.c.l.b16 %v7574
        %v7658 = vunpack.c.l.b16 %v7578
        %v7659 = vunpack.c.l.b16 %v7581
        %v7660 = vunpack.c.l.b16 %v7585
        %v7661 = vunpack.c.l.b16 %v7588
        %v7662 = vunpack.c.l.b16 %v7592
        %v7663 = vunpack.c.l.b16 %v7595
        %v7664 = vunpack.c.l.b16 %v7599
        %v7665 = vunpack.c.l.b16 %v7602
        %v7666 = vunpack.c.l.b16 %v7606
        %v7667 = vunpack.c.l.b16 %v7609
        %v7668 = vunpack.c.l.b16 %v7613
        %v7669 = vunpack.c.l.b16 %v7616
        %v7670 = vunpack.c.l.b16 %v7620
        %v7671 = vunpack.c.l.b16 %v7623
        %v7672 = vpack.c.b16 %v7641, %v7640
        %v7673 = vpack.c.b16 %v7643, %v7642
        %v7674 = vpack.c.b16 %v7645, %v7644
        %v7675 = vpack.c.b16 %v7647, %v7646
        %v7676 = vpack.c.b16 %v7649, %v7648
        %v7677 = vpack.c.b16 %v7651, %v7650
        %v7678 = vpack.c.b16 %v7653, %v7652
        %v7679 = vpack.c.b16 %v7655, %v7654
        %v7680 = vpack.c.b16 %v7657, %v7656
        %v7681 = vpack.c.b16 %v7659, %v7658
        %v7682 = vpack.c.b16 %v7661, %v7660
        %v7683 = vpack.c.b16 %v7663, %v7662
        %v7684 = vpack.c.b16 %v7665, %v7664
        %v7685 = vpack.c.b16 %v7667, %v7666
        %v7686 = vpack.c.b16 %v7669, %v7668
        %v7687 = vpack.c.b16 %v7671, %v7670
        %v7720 = vunpack.c.l.b16 %v7624
        %v7721 = vunpack.c.l.b16 %v7625
        %v7722 = vunpack.c.l.b16 %v7626
        %v7723 = vunpack.c.l.b16 %v7627
        %v7724 = vunpack.c.l.b16 %v7628
        %v7725 = vunpack.c.l.b16 %v7629
        %v7726 = vunpack.c.l.b16 %v7630
        %v7727 = vunpack.c.l.b16 %v7631
        %v7728 = vunpack.c.l.b16 %v7632
        %v7729 = vunpack.c.l.b16 %v7633
        %v7730 = vunpack.c.l.b16 %v7634
        %v7731 = vunpack.c.l.b16 %v7635
        %v7732 = vunpack.c.l.b16 %v7636
        %v7733 = vunpack.c.l.b16 %v7637
        %v7734 = vunpack.c.l.b16 %v7638
        %v7735 = vunpack.c.l.b16 %v7639
        %v7736 = vpack.c.b16 %v7721, %v7720
        %v7737 = vpack.c.b16 %v7723, %v7722
        %v7738 = vpack.c.b16 %v7725, %v7724
        %v7739 = vpack.c.b16 %v7727, %v7726
        %v7740 = vpack.c.b16 %v7729, %v7728
        %v7741 = vpack.c.b16 %v7731, %v7730
        %v7742 = vpack.c.b16 %v7733, %v7732
        %v7743 = vpack.c.b16 %v7735, %v7734
        %7752 = vmatprep.subr.bf16.mxu0 0
        %7753 = vmatpush1.bf16.msra.mxu0 %v7743
        %7754 = vmatprep.subr.bf16.mxu0 0
        %7755 = vmatpush1.bf16.msra.mxu0 %v7742
        %7756 = vmatprep.subr.bf16.mxu0 0
        %7757 = vmatpush1.bf16.msra.mxu0 %v7741
        %7758 = vmatprep.subr.bf16.mxu0 0
        %7759 = vmatpush1.bf16.msra.mxu0 %v7740
        %7760 = vmatprep.subr.bf16.mxu0 0
        %7761 = vmatpush1.bf16.msra.mxu0 %v7739
        %7762 = vmatprep.subr.bf16.mxu0 0
        %7763 = vmatpush1.bf16.msra.mxu0 %v7738
        %7764 = vmatprep.subr.bf16.mxu0 0
        %7765 = vmatpush1.bf16.msra.mxu0 %v7737
        %7766 = vmatprep.subr.bf16.mxu0 0
        %7767 = vmatpush1.bf16.msra.mxu0 %v7736
        %7768 = vmatprep.subr.bf16.mxu0 0
        %7769 = vmatpush2.bf16.msra.mxu0 0
        %7770 = vmatprep.subr.bf16.mxu0 0
        %7771 = vmatpush2.bf16.msra.mxu0 0
        %7772 = vmatprep.subr.bf16.mxu0 0
        %7773 = vmatpush2.bf16.msra.mxu0 0
        %7774 = vmatprep.subr.bf16.mxu0 0
        %7775 = vmatpush2.bf16.msra.mxu0 0
        %7776 = vmatprep.subr.bf16.mxu0 0
        %7777 = vmatpush2.bf16.msra.mxu0 0
        %7778 = vmatprep.subr.bf16.mxu0 0
        %7779 = vmatpush2.bf16.msra.mxu0 0
        %7780 = vmatprep.subr.bf16.mxu0 0
        %7781 = vmatpush2.bf16.msra.mxu0 0
        %7782 = vmatprep.subr.bf16.mxu0 0
        %7783 = vmatpush2.bf16.msra.mxu0 0
        %7784 = vmatprep.mubr.bf16.mxu0 0
        %7785 = vmatmul.mubr.bf16.gmra.mxu0 %v7672
        %v7786 = vpop.f32.mrf.mxu0
        %v7787 = vadd.f32 0.0, %v7786
        %v7788 = vpop.f32.mrf.mxu0
        %v7789 = vpop.f32.mrf.mxu0
        %v7790 = vadd.f32 0.0, %v7789
        %v7791 = vpop.f32.mrf.mxu0
        %7792 = vmatprep.mubr.bf16.mxu0 0
        %7793 = vmatmul.mubr.bf16.gmra.mxu0 %v7673
        %v7794 = vpop.f32.mrf.mxu0
        %v7795 = vadd.f32 0.0, %v7794
        %v7796 = vpop.f32.mrf.mxu0
        %v7797 = vpop.f32.mrf.mxu0
        %v7798 = vadd.f32 0.0, %v7797
        %v7799 = vpop.f32.mrf.mxu0
        %7800 = vmatprep.mubr.bf16.mxu0 0
        %7801 = vmatmul.mubr.bf16.gmra.mxu0 %v7674
        %v7802 = vpop.f32.mrf.mxu0
        %v7803 = vadd.f32 0.0, %v7802
        %v7804 = vpop.f32.mrf.mxu0
        %v7805 = vpop.f32.mrf.mxu0
        %v7806 = vadd.f32 0.0, %v7805
        %v7807 = vpop.f32.mrf.mxu0
        %7808 = vmatprep.mubr.bf16.mxu0 0
        %7809 = vmatmul.mubr.bf16.gmra.mxu0 %v7675
        %v7810 = vpop.f32.mrf.mxu0
        %v7811 = vadd.f32 0.0, %v7810
        %v7812 = vpop.f32.mrf.mxu0
        %v7813 = vpop.f32.mrf.mxu0
        %v7814 = vadd.f32 0.0, %v7813
        %v7815 = vpop.f32.mrf.mxu0
        %7816 = vmatprep.mubr.bf16.mxu0 0
        %7817 = vmatmul.mubr.bf16.gmra.mxu0 %v7676
        %v7818 = vpop.f32.mrf.mxu0
        %v7819 = vadd.f32 0.0, %v7818
        %v7820 = vpop.f32.mrf.mxu0
        %v7821 = vpop.f32.mrf.mxu0
        %v7822 = vadd.f32 0.0, %v7821
        %v7823 = vpop.f32.mrf.mxu0
        %7824 = vmatprep.mubr.bf16.mxu0 0
        %7825 = vmatmul.mubr.bf16.gmra.mxu0 %v7677
        %v7826 = vpop.f32.mrf.mxu0
        %v7827 = vadd.f32 0.0, %v7826
        %v7828 = vpop.f32.mrf.mxu0
        %v7829 = vpop.f32.mrf.mxu0
        %v7830 = vadd.f32 0.0, %v7829
        %v7831 = vpop.f32.mrf.mxu0
        %7832 = vmatprep.mubr.bf16.mxu0 0
        %7833 = vmatmul.mubr.bf16.gmra.mxu0 %v7678
        %v7834 = vpop.f32.mrf.mxu0
        %v7835 = vadd.f32 0.0, %v7834
        %v7836 = vpop.f32.mrf.mxu0
        %v7837 = vpop.f32.mrf.mxu0
        %v7838 = vadd.f32 0.0, %v7837
        %v7839 = vpop.f32.mrf.mxu0
        %7840 = vmatprep.mubr.bf16.mxu0 0
        %7841 = vmatmul.mubr.bf16.gmra.mxu0 %v7679
        %v7842 = vpop.f32.mrf.mxu0
        %v7843 = vadd.f32 0.0, %v7842
        %v7844 = vpop.f32.mrf.mxu0
        %v7845 = vpop.f32.mrf.mxu0
        %v7846 = vadd.f32 0.0, %v7845
        %v7847 = vpop.f32.mrf.mxu0
        %7848 = vmatprep.mubr.bf16.mxu0 0
        %7849 = vmatmul.mubr.bf16.gmra.mxu0 %v7680
        %v7850 = vpop.f32.mrf.mxu0
        %v7851 = vadd.f32 0.0, %v7850
        %v7852 = vpop.f32.mrf.mxu0
        %v7853 = vpop.f32.mrf.mxu0
        %v7854 = vadd.f32 0.0, %v7853
        %v7855 = vpop.f32.mrf.mxu0
        %7856 = vmatprep.mubr.bf16.mxu0 0
        %7857 = vmatmul.mubr.bf16.gmra.mxu0 %v7681
        %v7858 = vpop.f32.mrf.mxu0
        %v7859 = vadd.f32 0.0, %v7858
        %v7860 = vpop.f32.mrf.mxu0
        %v7861 = vpop.f32.mrf.mxu0
        %v7862 = vadd.f32 0.0, %v7861
        %v7863 = vpop.f32.mrf.mxu0
        %7864 = vmatprep.mubr.bf16.mxu0 0
        %7865 = vmatmul.mubr.bf16.gmra.mxu0 %v7682
        %v7866 = vpop.f32.mrf.mxu0
        %v7867 = vadd.f32 0.0, %v7866
        %v7868 = vpop.f32.mrf.mxu0
        %v7869 = vpop.f32.mrf.mxu0
        %v7870 = vadd.f32 0.0, %v7869
        %v7871 = vpop.f32.mrf.mxu0
        %7872 = vmatprep.mubr.bf16.mxu0 0
        %7873 = vmatmul.mubr.bf16.gmra.mxu0 %v7683
        %v7874 = vpop.f32.mrf.mxu0
        %v7875 = vadd.f32 0.0, %v7874
        %v7876 = vpop.f32.mrf.mxu0
        %v7877 = vpop.f32.mrf.mxu0
        %v7878 = vadd.f32 0.0, %v7877
        %v7879 = vpop.f32.mrf.mxu0
        %7880 = vmatprep.mubr.bf16.mxu0 0
        %7881 = vmatmul.mubr.bf16.gmra.mxu0 %v7684
        %v7882 = vpop.f32.mrf.mxu0
        %v7883 = vadd.f32 0.0, %v7882
        %v7884 = vpop.f32.mrf.mxu0
        %v7885 = vpop.f32.mrf.mxu0
        %v7886 = vadd.f32 0.0, %v7885
        %v7887 = vpop.f32.mrf.mxu0
        %7888 = vmatprep.mubr.bf16.mxu0 0
        %7889 = vmatmul.mubr.bf16.gmra.mxu0 %v7685
        %v7890 = vpop.f32.mrf.mxu0
        %v7891 = vadd.f32 0.0, %v7890
        %v7892 = vpop.f32.mrf.mxu0
        %v7893 = vpop.f32.mrf.mxu0
        %v7894 = vadd.f32 0.0, %v7893
        %v7895 = vpop.f32.mrf.mxu0
        %7896 = vmatprep.mubr.bf16.mxu0 0
        %7897 = vmatmul.mubr.bf16.gmra.mxu0 %v7686
        %v7898 = vpop.f32.mrf.mxu0
        %v7899 = vadd.f32 0.0, %v7898
        %v7900 = vpop.f32.mrf.mxu0
        %v7901 = vpop.f32.mrf.mxu0
        %v7902 = vadd.f32 0.0, %v7901
        %v7903 = vpop.f32.mrf.mxu0
        %7904 = vmatprep.mubr.bf16.mxu0 0
        %7905 = vmatmul.mubr.bf16.gmra.mxu0 %v7687
        %v7906 = vpop.f32.mrf.mxu0
        %v7907 = vadd.f32 0.0, %v7906
        %v7908 = vpop.f32.mrf.mxu0
        %v7909 = vpop.f32.mrf.mxu0
        %v7910 = vadd.f32 0.0, %v7909
        %v7911 = vpop.f32.mrf.mxu0
        %7912 = vdwg.mxu0
        %v7913 = vadd.f32 %v7338, %v7787
        %v7914 = vadd.f32 %v7341, %v7790
        %v7915 = vadd.f32 %v7346, %v7795
        %v7916 = vadd.f32 %v7349, %v7798
        %v7917 = vadd.f32 %v7354, %v7803
        %v7918 = vadd.f32 %v7357, %v7806
        %v7919 = vadd.f32 %v7362, %v7811
        %v7920 = vadd.f32 %v7365, %v7814
        %v7921 = vadd.f32 %v7370, %v7819
        %v7922 = vadd.f32 %v7373, %v7822
        %v7923 = vadd.f32 %v7378, %v7827
        %v7924 = vadd.f32 %v7381, %v7830
        %v7925 = vadd.f32 %v7386, %v7835
        %v7926 = vadd.f32 %v7389, %v7838
        %v7927 = vadd.f32 %v7394, %v7843
        %v7928 = vadd.f32 %v7397, %v7846
        %v7929 = vadd.f32 %v7402, %v7851
        %v7930 = vadd.f32 %v7405, %v7854
        %v7931 = vadd.f32 %v7410, %v7859
        %v7932 = vadd.f32 %v7413, %v7862
        %v7933 = vadd.f32 %v7418, %v7867
        %v7934 = vadd.f32 %v7421, %v7870
        %v7935 = vadd.f32 %v7426, %v7875
        %v7936 = vadd.f32 %v7429, %v7878
        %v7937 = vadd.f32 %v7434, %v7883
        %v7938 = vadd.f32 %v7437, %v7886
        %v7939 = vadd.f32 %v7442, %v7891
        %v7940 = vadd.f32 %v7445, %v7894
        %v7941 = vadd.f32 %v7450, %v7899
        %v7942 = vadd.f32 %v7453, %v7902
        %v7943 = vadd.f32 %v7458, %v7907
        %v7944 = vadd.f32 %v7461, %v7910
        %v7945 = vld [vmem:[%s458] sm:$0xf]
        %v7946 = vld [vmem:[%s458 + $0x4] sm:$0xf]
        %v7947 = vld [vmem:[%s458 + $0xc] sm:$0xf]
        %v7948 = vld [vmem:[%s458 + $0x10] sm:$0xf]
        %v7949 = vld [vmem:[%s458 + $0x18] sm:$0xf]
        %v7950 = vld [vmem:[%s458 + $0x1c] sm:$0xf]
        %v7951 = vld [vmem:[%s458 + $0x24] sm:$0xf]
        %v7952 = vld [vmem:[%s458 + $0x28] sm:$0xf]
        %v7953 = vld [vmem:[%s458 + $0x30] sm:$0xf]
        %v7954 = vld [vmem:[%s458 + $0x34] sm:$0xf]
        %v7955 = vld [vmem:[%s458 + $0x3c] sm:$0xf]
        %v7956 = vld [vmem:[%s458 + $0x40] sm:$0xf]
        %v7957 = vld [vmem:[%s458 + $0x48] sm:$0xf]
        %v7958 = vld [vmem:[%s458 + $0x4c] sm:$0xf]
        %v7959 = vld [vmem:[%s458 + $0x54] sm:$0xf]
        %v7960 = vld [vmem:[%s458 + $0x58] sm:$0xf]
        %v7961 = vld [vmem:[%s458 + $0x60] sm:$0xf]
        %v7962 = vld [vmem:[%s458 + $0x64] sm:$0xf]
        %v7963 = vld [vmem:[%s458 + $0x6c] sm:$0xf]
        %v7964 = vld [vmem:[%s458 + $0x70] sm:$0xf]
        %v7965 = vld [vmem:[%s458 + $0x78] sm:$0xf]
        %v7966 = vld [vmem:[%s458 + $0x7c] sm:$0xf]
        %v7967 = vld [vmem:[%s458 + $0x84] sm:$0xf]
        %v7968 = vld [vmem:[%s458 + $0x88] sm:$0xf]
        %v7969 = vld [vmem:[%s458 + $0x90] sm:$0xf]
        %v7970 = vld [vmem:[%s458 + $0x94] sm:$0xf]
        %v7971 = vld [vmem:[%s458 + $0x9c] sm:$0xf]
        %v7972 = vld [vmem:[%s458 + $0xa0] sm:$0xf]
        %v7973 = vld [vmem:[%s458 + $0xa8] sm:$0xf]
        %v7974 = vld [vmem:[%s458 + $0xac] sm:$0xf]
        %v7975 = vld [vmem:[%s458 + $0xb4] sm:$0xf]
        %v7976 = vld [vmem:[%s458 + $0xb8] sm:$0xf]
        %v7977 = vld [vmem:[#allocation9 + $0xc0] sm:$0xf]
        %v7978 = vld [vmem:[#allocation9 + $0xc4] sm:$0xf]
        %v7979 = vld [vmem:[#allocation9 + $0xc8] sm:$0xf]
        %v7980 = vld [vmem:[#allocation9 + $0xcc] sm:$0xf]
        %v7981 = vld [vmem:[#allocation9 + $0xd0] sm:$0xf]
        %v7982 = vld [vmem:[#allocation9 + $0xd4] sm:$0xf]
        %v7983 = vld [vmem:[#allocation9 + $0xd8] sm:$0xf]
        %v7984 = vld [vmem:[#allocation9 + $0xdc] sm:$0xf]
        %v7985 = vld [vmem:[#allocation9 + $0xe0] sm:$0xf]
        %v7986 = vld [vmem:[#allocation9 + $0xe4] sm:$0xf]
        %v7987 = vld [vmem:[#allocation9 + $0xe8] sm:$0xf]
        %v7988 = vld [vmem:[#allocation9 + $0xec] sm:$0xf]
        %v7989 = vld [vmem:[#allocation9 + $0xf0] sm:$0xf]
        %v7990 = vld [vmem:[#allocation9 + $0xf4] sm:$0xf]
        %v7991 = vld [vmem:[#allocation9 + $0xf8] sm:$0xf]
        %v7992 = vld [vmem:[#allocation9 + $0xfc] sm:$0xf]
        %v8025 = vunpack.c.l.b16 %v7945
        %v8026 = vunpack.c.l.b16 %v7946
        %v8027 = vunpack.c.l.b16 %v7947
        %v8028 = vunpack.c.l.b16 %v7948
        %v8029 = vunpack.c.l.b16 %v7949
        %v8030 = vunpack.c.l.b16 %v7950
        %v8031 = vunpack.c.l.b16 %v7951
        %v8032 = vunpack.c.l.b16 %v7952
        %v8033 = vunpack.c.l.b16 %v7953
        %v8034 = vunpack.c.l.b16 %v7954
        %v8035 = vunpack.c.l.b16 %v7955
        %v8036 = vunpack.c.l.b16 %v7956
        %v8037 = vunpack.c.l.b16 %v7957
        %v8038 = vunpack.c.l.b16 %v7958
        %v8039 = vunpack.c.l.b16 %v7959
        %v8040 = vunpack.c.l.b16 %v7960
        %v8041 = vunpack.c.l.b16 %v7961
        %v8042 = vunpack.c.l.b16 %v7962
        %v8043 = vunpack.c.l.b16 %v7963
        %v8044 = vunpack.c.l.b16 %v7964
        %v8045 = vunpack.c.l.b16 %v7965
        %v8046 = vunpack.c.l.b16 %v7966
        %v8047 = vunpack.c.l.b16 %v7967
        %v8048 = vunpack.c.l.b16 %v7968
        %v8049 = vunpack.c.l.b16 %v7969
        %v8050 = vunpack.c.l.b16 %v7970
        %v8051 = vunpack.c.l.b16 %v7971
        %v8052 = vunpack.c.l.b16 %v7972
        %v8053 = vunpack.c.l.b16 %v7973
        %v8054 = vunpack.c.l.b16 %v7974
        %v8055 = vunpack.c.l.b16 %v7975
        %v8056 = vunpack.c.l.b16 %v7976
        %v8057 = vpack.c.b16 %v8026, %v8025
        %v8058 = vpack.c.b16 %v8028, %v8027
        %v8059 = vpack.c.b16 %v8030, %v8029
        %v8060 = vpack.c.b16 %v8032, %v8031
        %v8061 = vpack.c.b16 %v8034, %v8033
        %v8062 = vpack.c.b16 %v8036, %v8035
        %v8063 = vpack.c.b16 %v8038, %v8037
        %v8064 = vpack.c.b16 %v8040, %v8039
        %v8065 = vpack.c.b16 %v8042, %v8041
        %v8066 = vpack.c.b16 %v8044, %v8043
        %v8067 = vpack.c.b16 %v8046, %v8045
        %v8068 = vpack.c.b16 %v8048, %v8047
        %v8069 = vpack.c.b16 %v8050, %v8049
        %v8070 = vpack.c.b16 %v8052, %v8051
        %v8071 = vpack.c.b16 %v8054, %v8053
        %v8072 = vpack.c.b16 %v8056, %v8055
        %v8105 = vunpack.c.l.b16 %v7977
        %v8106 = vunpack.c.l.b16 %v7978
        %v8107 = vunpack.c.l.b16 %v7979
        %v8108 = vunpack.c.l.b16 %v7980
        %v8109 = vunpack.c.l.b16 %v7981
        %v8110 = vunpack.c.l.b16 %v7982
        %v8111 = vunpack.c.l.b16 %v7983
        %v8112 = vunpack.c.l.b16 %v7984
        %v8113 = vunpack.c.l.b16 %v7985
        %v8114 = vunpack.c.l.b16 %v7986
        %v8115 = vunpack.c.l.b16 %v7987
        %v8116 = vunpack.c.l.b16 %v7988
        %v8117 = vunpack.c.l.b16 %v7989
        %v8118 = vunpack.c.l.b16 %v7990
        %v8119 = vunpack.c.l.b16 %v7991
        %v8120 = vunpack.c.l.b16 %v7992
        %v8121 = vpack.c.b16 %v8106, %v8105
        %v8122 = vpack.c.b16 %v8108, %v8107
        %v8123 = vpack.c.b16 %v8110, %v8109
        %v8124 = vpack.c.b16 %v8112, %v8111
        %v8125 = vpack.c.b16 %v8114, %v8113
        %v8126 = vpack.c.b16 %v8116, %v8115
        %v8127 = vpack.c.b16 %v8118, %v8117
        %v8128 = vpack.c.b16 %v8120, %v8119
        %8137 = vmatprep.subr.bf16.mxu0 0
        %8138 = vmatpush1.bf16.msra.mxu0 %v8128
        %8139 = vmatprep.subr.bf16.mxu0 0
        %8140 = vmatpush1.bf16.msra.mxu0 %v8127
        %8141 = vmatprep.subr.bf16.mxu0 0
        %8142 = vmatpush1.bf16.msra.mxu0 %v8126
        %8143 = vmatprep.subr.bf16.mxu0 0
        %8144 = vmatpush1.bf16.msra.mxu0 %v8125
        %8145 = vmatprep.subr.bf16.mxu0 0
        %8146 = vmatpush1.bf16.msra.mxu0 %v8124
        %8147 = vmatprep.subr.bf16.mxu0 0
        %8148 = vmatpush1.bf16.msra.mxu0 %v8123
        %8149 = vmatprep.subr.bf16.mxu0 0
        %8150 = vmatpush1.bf16.msra.mxu0 %v8122
        %8151 = vmatprep.subr.bf16.mxu0 0
        %8152 = vmatpush1.bf16.msra.mxu0 %v8121
        %8153 = vmatprep.subr.bf16.mxu0 0
        %8154 = vmatpush2.bf16.msra.mxu0 0
        %8155 = vmatprep.subr.bf16.mxu0 0
        %8156 = vmatpush2.bf16.msra.mxu0 0
        %8157 = vmatprep.subr.bf16.mxu0 0
        %8158 = vmatpush2.bf16.msra.mxu0 0
        %8159 = vmatprep.subr.bf16.mxu0 0
        %8160 = vmatpush2.bf16.msra.mxu0 0
        %8161 = vmatprep.subr.bf16.mxu0 0
        %8162 = vmatpush2.bf16.msra.mxu0 0
        %8163 = vmatprep.subr.bf16.mxu0 0
        %8164 = vmatpush2.bf16.msra.mxu0 0
        %8165 = vmatprep.subr.bf16.mxu0 0
        %8166 = vmatpush2.bf16.msra.mxu0 0
        %8167 = vmatprep.subr.bf16.mxu0 0
        %8168 = vmatpush2.bf16.msra.mxu0 0
        %8169 = vmatprep.mubr.bf16.mxu0 0
        %8170 = vmatmul.mubr.bf16.gmra.mxu0 %v8057
        %v8171 = vpop.f32.mrf.mxu0
        %v8172 = vadd.f32 0.0, %v8171
        %v8173 = vpop.f32.mrf.mxu0
        %v8174 = vpop.f32.mrf.mxu0
        %v8175 = vadd.f32 0.0, %v8174
        %v8176 = vpop.f32.mrf.mxu0
        %8177 = vmatprep.mubr.bf16.mxu0 0
        %8178 = vmatmul.mubr.bf16.gmra.mxu0 %v8058
        %v8179 = vpop.f32.mrf.mxu0
        %v8180 = vadd.f32 0.0, %v8179
        %v8181 = vpop.f32.mrf.mxu0
        %v8182 = vpop.f32.mrf.mxu0
        %v8183 = vadd.f32 0.0, %v8182
        %v8184 = vpop.f32.mrf.mxu0
        %8185 = vmatprep.mubr.bf16.mxu0 0
        %8186 = vmatmul.mubr.bf16.gmra.mxu0 %v8059
        %v8187 = vpop.f32.mrf.mxu0
        %v8188 = vadd.f32 0.0, %v8187
        %v8189 = vpop.f32.mrf.mxu0
        %v8190 = vpop.f32.mrf.mxu0
        %v8191 = vadd.f32 0.0, %v8190
        %v8192 = vpop.f32.mrf.mxu0
        %8193 = vmatprep.mubr.bf16.mxu0 0
        %8194 = vmatmul.mubr.bf16.gmra.mxu0 %v8060
        %v8195 = vpop.f32.mrf.mxu0
        %v8196 = vadd.f32 0.0, %v8195
        %v8197 = vpop.f32.mrf.mxu0
        %v8198 = vpop.f32.mrf.mxu0
        %v8199 = vadd.f32 0.0, %v8198
        %v8200 = vpop.f32.mrf.mxu0
        %8201 = vmatprep.mubr.bf16.mxu0 0
        %8202 = vmatmul.mubr.bf16.gmra.mxu0 %v8061
        %v8203 = vpop.f32.mrf.mxu0
        %v8204 = vadd.f32 0.0, %v8203
        %v8205 = vpop.f32.mrf.mxu0
        %v8206 = vpop.f32.mrf.mxu0
        %v8207 = vadd.f32 0.0, %v8206
        %v8208 = vpop.f32.mrf.mxu0
        %8209 = vmatprep.mubr.bf16.mxu0 0
        %8210 = vmatmul.mubr.bf16.gmra.mxu0 %v8062
        %v8211 = vpop.f32.mrf.mxu0
        %v8212 = vadd.f32 0.0, %v8211
        %v8213 = vpop.f32.mrf.mxu0
        %v8214 = vpop.f32.mrf.mxu0
        %v8215 = vadd.f32 0.0, %v8214
        %v8216 = vpop.f32.mrf.mxu0
        %8217 = vmatprep.mubr.bf16.mxu0 0
        %8218 = vmatmul.mubr.bf16.gmra.mxu0 %v8063
        %v8219 = vpop.f32.mrf.mxu0
        %v8220 = vadd.f32 0.0, %v8219
        %v8221 = vpop.f32.mrf.mxu0
        %v8222 = vpop.f32.mrf.mxu0
        %v8223 = vadd.f32 0.0, %v8222
        %v8224 = vpop.f32.mrf.mxu0
        %8225 = vmatprep.mubr.bf16.mxu0 0
        %8226 = vmatmul.mubr.bf16.gmra.mxu0 %v8064
        %v8227 = vpop.f32.mrf.mxu0
        %v8228 = vadd.f32 0.0, %v8227
        %v8229 = vpop.f32.mrf.mxu0
        %v8230 = vpop.f32.mrf.mxu0
        %v8231 = vadd.f32 0.0, %v8230
        %v8232 = vpop.f32.mrf.mxu0
        %8233 = vmatprep.mubr.bf16.mxu0 0
        %8234 = vmatmul.mubr.bf16.gmra.mxu0 %v8065
        %v8235 = vpop.f32.mrf.mxu0
        %v8236 = vadd.f32 0.0, %v8235
        %v8237 = vpop.f32.mrf.mxu0
        %v8238 = vpop.f32.mrf.mxu0
        %v8239 = vadd.f32 0.0, %v8238
        %v8240 = vpop.f32.mrf.mxu0
        %8241 = vmatprep.mubr.bf16.mxu0 0
        %8242 = vmatmul.mubr.bf16.gmra.mxu0 %v8066
        %v8243 = vpop.f32.mrf.mxu0
        %v8244 = vadd.f32 0.0, %v8243
        %v8245 = vpop.f32.mrf.mxu0
        %v8246 = vpop.f32.mrf.mxu0
        %v8247 = vadd.f32 0.0, %v8246
        %v8248 = vpop.f32.mrf.mxu0
        %8249 = vmatprep.mubr.bf16.mxu0 0
        %8250 = vmatmul.mubr.bf16.gmra.mxu0 %v8067
        %v8251 = vpop.f32.mrf.mxu0
        %v8252 = vadd.f32 0.0, %v8251
        %v8253 = vpop.f32.mrf.mxu0
        %v8254 = vpop.f32.mrf.mxu0
        %v8255 = vadd.f32 0.0, %v8254
        %v8256 = vpop.f32.mrf.mxu0
        %8257 = vmatprep.mubr.bf16.mxu0 0
        %8258 = vmatmul.mubr.bf16.gmra.mxu0 %v8068
        %v8259 = vpop.f32.mrf.mxu0
        %v8260 = vadd.f32 0.0, %v8259
        %v8261 = vpop.f32.mrf.mxu0
        %v8262 = vpop.f32.mrf.mxu0
        %v8263 = vadd.f32 0.0, %v8262
        %v8264 = vpop.f32.mrf.mxu0
        %8265 = vmatprep.mubr.bf16.mxu0 0
        %8266 = vmatmul.mubr.bf16.gmra.mxu0 %v8069
        %v8267 = vpop.f32.mrf.mxu0
        %v8268 = vadd.f32 0.0, %v8267
        %v8269 = vpop.f32.mrf.mxu0
        %v8270 = vpop.f32.mrf.mxu0
        %v8271 = vadd.f32 0.0, %v8270
        %v8272 = vpop.f32.mrf.mxu0
        %8273 = vmatprep.mubr.bf16.mxu0 0
        %8274 = vmatmul.mubr.bf16.gmra.mxu0 %v8070
        %v8275 = vpop.f32.mrf.mxu0
        %v8276 = vadd.f32 0.0, %v8275
        %v8277 = vpop.f32.mrf.mxu0
        %v8278 = vpop.f32.mrf.mxu0
        %v8279 = vadd.f32 0.0, %v8278
        %v8280 = vpop.f32.mrf.mxu0
        %8281 = vmatprep.mubr.bf16.mxu0 0
        %8282 = vmatmul.mubr.bf16.gmra.mxu0 %v8071
        %v8283 = vpop.f32.mrf.mxu0
        %v8284 = vadd.f32 0.0, %v8283
        %v8285 = vpop.f32.mrf.mxu0
        %v8286 = vpop.f32.mrf.mxu0
        %v8287 = vadd.f32 0.0, %v8286
        %v8288 = vpop.f32.mrf.mxu0
        %8289 = vmatprep.mubr.bf16.mxu0 0
        %8290 = vmatmul.mubr.bf16.gmra.mxu0 %v8072
        %v8291 = vpop.f32.mrf.mxu0
        %v8292 = vadd.f32 0.0, %v8291
        %v8293 = vpop.f32.mrf.mxu0
        %v8294 = vpop.f32.mrf.mxu0
        %v8295 = vadd.f32 0.0, %v8294
        %v8296 = vpop.f32.mrf.mxu0
        %8297 = vdwg.mxu0
        %v8298 = vadd.f32 %v7913, %v8172
        %v8299 = vadd.f32 %v7914, %v8175
        %v8300 = vadd.f32 %v7915, %v8180
        %v8301 = vadd.f32 %v7916, %v8183
        %v8302 = vadd.f32 %v7917, %v8188
        %v8303 = vadd.f32 %v7918, %v8191
        %v8304 = vadd.f32 %v7919, %v8196
        %v8305 = vadd.f32 %v7920, %v8199
        %v8306 = vadd.f32 %v7921, %v8204
        %v8307 = vadd.f32 %v7922, %v8207
        %v8308 = vadd.f32 %v7923, %v8212
        %v8309 = vadd.f32 %v7924, %v8215
        %v8310 = vadd.f32 %v7925, %v8220
        %v8311 = vadd.f32 %v7926, %v8223
        %v8312 = vadd.f32 %v7927, %v8228
        %v8313 = vadd.f32 %v7928, %v8231
        %v8314 = vadd.f32 %v7929, %v8236
        %v8315 = vadd.f32 %v7930, %v8239
        %v8316 = vadd.f32 %v7931, %v8244
        %v8317 = vadd.f32 %v7932, %v8247
        %v8318 = vadd.f32 %v7933, %v8252
        %v8319 = vadd.f32 %v7934, %v8255
        %v8320 = vadd.f32 %v7935, %v8260
        %v8321 = vadd.f32 %v7936, %v8263
        %v8322 = vadd.f32 %v7937, %v8268
        %v8323 = vadd.f32 %v7938, %v8271
        %v8324 = vadd.f32 %v7939, %v8276
        %v8325 = vadd.f32 %v7940, %v8279
        %v8326 = vadd.f32 %v7941, %v8284
        %v8327 = vadd.f32 %v7942, %v8287
        %v8328 = vadd.f32 %v7943, %v8292
        %v8329 = vadd.f32 %v7944, %v8295
        %v8330 = vld [vmem:[%s458] sm:$0xf]
        %v8331 = vld [vmem:[%s458 + $0x4] sm:$0xf]
        %v8332 = vld [vmem:[%s458 + $0x8] sm:$0x1]
        %v8333 = vld [vmem:[%s458 + $0xc] sm:$0xf]
        %v8334 = vld [vmem:[%s458 + $0x10] sm:$0xf]
        %v8335 = vld [vmem:[%s458 + $0x14] sm:$0x1]
        %v8336 = vld [vmem:[%s458 + $0x18] sm:$0xf]
        %v8337 = vld [vmem:[%s458 + $0x1c] sm:$0xf]
        %v8338 = vld [vmem:[%s458 + $0x20] sm:$0x1]
        %v8339 = vld [vmem:[%s458 + $0x24] sm:$0xf]
        %v8340 = vld [vmem:[%s458 + $0x28] sm:$0xf]
        %v8341 = vld [vmem:[%s458 + $0x2c] sm:$0x1]
        %v8342 = vld [vmem:[%s458 + $0x30] sm:$0xf]
        %v8343 = vld [vmem:[%s458 + $0x34] sm:$0xf]
        %v8344 = vld [vmem:[%s458 + $0x38] sm:$0x1]
        %v8345 = vld [vmem:[%s458 + $0x3c] sm:$0xf]
        %v8346 = vld [vmem:[%s458 + $0x40] sm:$0xf]
        %v8347 = vld [vmem:[%s458 + $0x44] sm:$0x1]
        %v8348 = vld [vmem:[%s458 + $0x48] sm:$0xf]
        %v8349 = vld [vmem:[%s458 + $0x4c] sm:$0xf]
        %v8350 = vld [vmem:[%s458 + $0x50] sm:$0x1]
        %v8351 = vld [vmem:[%s458 + $0x54] sm:$0xf]
        %v8352 = vld [vmem:[%s458 + $0x58] sm:$0xf]
        %v8353 = vld [vmem:[%s458 + $0x5c] sm:$0x1]
        %v8354 = vld [vmem:[%s458 + $0x60] sm:$0xf]
        %v8355 = vld [vmem:[%s458 + $0x64] sm:$0xf]
        %v8356 = vld [vmem:[%s458 + $0x68] sm:$0x1]
        %v8357 = vld [vmem:[%s458 + $0x6c] sm:$0xf]
        %v8358 = vld [vmem:[%s458 + $0x70] sm:$0xf]
        %v8359 = vld [vmem:[%s458 + $0x74] sm:$0x1]
        %v8360 = vld [vmem:[%s458 + $0x78] sm:$0xf]
        %v8361 = vld [vmem:[%s458 + $0x7c] sm:$0xf]
        %v8362 = vld [vmem:[%s458 + $0x80] sm:$0x1]
        %v8363 = vld [vmem:[%s458 + $0x84] sm:$0xf]
        %v8364 = vld [vmem:[%s458 + $0x88] sm:$0xf]
        %v8365 = vld [vmem:[%s458 + $0x8c] sm:$0x1]
        %v8366 = vld [vmem:[%s458 + $0x90] sm:$0xf]
        %v8367 = vld [vmem:[%s458 + $0x94] sm:$0xf]
        %v8368 = vld [vmem:[%s458 + $0x98] sm:$0x1]
        %v8369 = vld [vmem:[%s458 + $0x9c] sm:$0xf]
        %v8370 = vld [vmem:[%s458 + $0xa0] sm:$0xf]
        %v8371 = vld [vmem:[%s458 + $0xa4] sm:$0x1]
        %v8372 = vld [vmem:[%s458 + $0xa8] sm:$0xf]
        %v8373 = vld [vmem:[%s458 + $0xac] sm:$0xf]
        %v8374 = vld [vmem:[%s458 + $0xb0] sm:$0x1]
        %v8375 = vld [vmem:[%s458 + $0xb4] sm:$0xf]
        %v8376 = vld [vmem:[%s458 + $0xb8] sm:$0xf]
        %v8377 = vld [vmem:[%s458 + $0xbc] sm:$0x1]
        %v8379 = vshrl.u32 %v8330, 16
        %v8381 = vrot.slane %v8379, 4
        %v8382 = vshll.u32 %v8330, 16
        %v8384 = vrot.slane %v8382, 5
        %v8385 = vor.u32 %v8381, %v8384
        %v8386 = vrot.slane %v8385, 4
        %v8388 = vshll.u32 %v8331, 16
        %v8390 = vrot.slane %v8388, 5
        %v8391 = vsel %vm1089, %v8386, %v8390
        %v8392 = vshrl.u32 %v8331, 16
        %v8394 = vrot.slane %v8392, 4
        %v8395 = vor.u32 %v8394, %v8390
        %v8396 = vrot.slane %v8395, 4
        %v8398 = vshll.u32 %v8332, 16
        %v8400 = vrot.slane %v8398, 5
        %v8401 = vsel %vm1089, %v8396, %v8400
        %v8403 = vshrl.u32 %v8333, 16
        %v8405 = vrot.slane %v8403, 4
        %v8406 = vshll.u32 %v8333, 16
        %v8408 = vrot.slane %v8406, 5
        %v8409 = vor.u32 %v8405, %v8408
        %v8410 = vrot.slane %v8409, 4
        %v8412 = vshll.u32 %v8334, 16
        %v8414 = vrot.slane %v8412, 5
        %v8415 = vsel %vm1089, %v8410, %v8414
        %v8416 = vshrl.u32 %v8334, 16
        %v8418 = vrot.slane %v8416, 4
        %v8419 = vor.u32 %v8418, %v8414
        %v8420 = vrot.slane %v8419, 4
        %v8422 = vshll.u32 %v8335, 16
        %v8424 = vrot.slane %v8422, 5
        %v8425 = vsel %vm1089, %v8420, %v8424
        %v8427 = vshrl.u32 %v8336, 16
        %v8429 = vrot.slane %v8427, 4
        %v8430 = vshll.u32 %v8336, 16
        %v8432 = vrot.slane %v8430, 5
        %v8433 = vor.u32 %v8429, %v8432
        %v8434 = vrot.slane %v8433, 4
        %v8436 = vshll.u32 %v8337, 16
        %v8438 = vrot.slane %v8436, 5
        %v8439 = vsel %vm1089, %v8434, %v8438
        %v8440 = vshrl.u32 %v8337, 16
        %v8442 = vrot.slane %v8440, 4
        %v8443 = vor.u32 %v8442, %v8438
        %v8444 = vrot.slane %v8443, 4
        %v8446 = vshll.u32 %v8338, 16
        %v8448 = vrot.slane %v8446, 5
        %v8449 = vsel %vm1089, %v8444, %v8448
        %v8451 = vshrl.u32 %v8339, 16
        %v8453 = vrot.slane %v8451, 4
        %v8454 = vshll.u32 %v8339, 16
        %v8456 = vrot.slane %v8454, 5
        %v8457 = vor.u32 %v8453, %v8456
        %v8458 = vrot.slane %v8457, 4
        %v8460 = vshll.u32 %v8340, 16
        %v8462 = vrot.slane %v8460, 5
        %v8463 = vsel %vm1089, %v8458, %v8462
        %v8464 = vshrl.u32 %v8340, 16
        %v8466 = vrot.slane %v8464, 4
        %v8467 = vor.u32 %v8466, %v8462
        %v8468 = vrot.slane %v8467, 4
        %v8470 = vshll.u32 %v8341, 16
        %v8472 = vrot.slane %v8470, 5
        %v8473 = vsel %vm1089, %v8468, %v8472
        %v8475 = vshrl.u32 %v8342, 16
        %v8477 = vrot.slane %v8475, 4
        %v8478 = vshll.u32 %v8342, 16
        %v8480 = vrot.slane %v8478, 5
        %v8481 = vor.u32 %v8477, %v8480
        %v8482 = vrot.slane %v8481, 4
        %v8484 = vshll.u32 %v8343, 16
        %v8486 = vrot.slane %v8484, 5
        %v8487 = vsel %vm1089, %v8482, %v8486
        %v8488 = vshrl.u32 %v8343, 16
        %v8490 = vrot.slane %v8488, 4
        %v8491 = vor.u32 %v8490, %v8486
        %v8492 = vrot.slane %v8491, 4
        %v8494 = vshll.u32 %v8344, 16
        %v8496 = vrot.slane %v8494, 5
        %v8497 = vsel %vm1089, %v8492, %v8496
        %v8499 = vshrl.u32 %v8345, 16
        %v8501 = vrot.slane %v8499, 4
        %v8502 = vshll.u32 %v8345, 16
        %v8504 = vrot.slane %v8502, 5
        %v8505 = vor.u32 %v8501, %v8504
        %v8506 = vrot.slane %v8505, 4
        %v8508 = vshll.u32 %v8346, 16
        %v8510 = vrot.slane %v8508, 5
        %v8511 = vsel %vm1089, %v8506, %v8510
        %v8512 = vshrl.u32 %v8346, 16
        %v8514 = vrot.slane %v8512, 4
        %v8515 = vor.u32 %v8514, %v8510
        %v8516 = vrot.slane %v8515, 4
        %v8518 = vshll.u32 %v8347, 16
        %v8520 = vrot.slane %v8518, 5
        %v8521 = vsel %vm1089, %v8516, %v8520
        %v8523 = vshrl.u32 %v8348, 16
        %v8525 = vrot.slane %v8523, 4
        %v8526 = vshll.u32 %v8348, 16
        %v8528 = vrot.slane %v8526, 5
        %v8529 = vor.u32 %v8525, %v8528
        %v8530 = vrot.slane %v8529, 4
        %v8532 = vshll.u32 %v8349, 16
        %v8534 = vrot.slane %v8532, 5
        %v8535 = vsel %vm1089, %v8530, %v8534
        %v8536 = vshrl.u32 %v8349, 16
        %v8538 = vrot.slane %v8536, 4
        %v8539 = vor.u32 %v8538, %v8534
        %v8540 = vrot.slane %v8539, 4
        %v8542 = vshll.u32 %v8350, 16
        %v8544 = vrot.slane %v8542, 5
        %v8545 = vsel %vm1089, %v8540, %v8544
        %v8547 = vshrl.u32 %v8351, 16
        %v8549 = vrot.slane %v8547, 4
        %v8550 = vshll.u32 %v8351, 16
        %v8552 = vrot.slane %v8550, 5
        %v8553 = vor.u32 %v8549, %v8552
        %v8554 = vrot.slane %v8553, 4
        %v8556 = vshll.u32 %v8352, 16
        %v8558 = vrot.slane %v8556, 5
        %v8559 = vsel %vm1089, %v8554, %v8558
        %v8560 = vshrl.u32 %v8352, 16
        %v8562 = vrot.slane %v8560, 4
        %v8563 = vor.u32 %v8562, %v8558
        %v8564 = vrot.slane %v8563, 4
        %v8566 = vshll.u32 %v8353, 16
        %v8568 = vrot.slane %v8566, 5
        %v8569 = vsel %vm1089, %v8564, %v8568
        %v8571 = vshrl.u32 %v8354, 16
        %v8573 = vrot.slane %v8571, 4
        %v8574 = vshll.u32 %v8354, 16
        %v8576 = vrot.slane %v8574, 5
        %v8577 = vor.u32 %v8573, %v8576
        %v8578 = vrot.slane %v8577, 4
        %v8580 = vshll.u32 %v8355, 16
        %v8582 = vrot.slane %v8580, 5
        %v8583 = vsel %vm1089, %v8578, %v8582
        %v8584 = vshrl.u32 %v8355, 16
        %v8586 = vrot.slane %v8584, 4
        %v8587 = vor.u32 %v8586, %v8582
        %v8588 = vrot.slane %v8587, 4
        %v8590 = vshll.u32 %v8356, 16
        %v8592 = vrot.slane %v8590, 5
        %v8593 = vsel %vm1089, %v8588, %v8592
        %v8595 = vshrl.u32 %v8357, 16
        %v8597 = vrot.slane %v8595, 4
        %v8598 = vshll.u32 %v8357, 16
        %v8600 = vrot.slane %v8598, 5
        %v8601 = vor.u32 %v8597, %v8600
        %v8602 = vrot.slane %v8601, 4
        %v8604 = vshll.u32 %v8358, 16
        %v8606 = vrot.slane %v8604, 5
        %v8607 = vsel %vm1089, %v8602, %v8606
        %v8608 = vshrl.u32 %v8358, 16
        %v8610 = vrot.slane %v8608, 4
        %v8611 = vor.u32 %v8610, %v8606
        %v8612 = vrot.slane %v8611, 4
        %v8614 = vshll.u32 %v8359, 16
        %v8616 = vrot.slane %v8614, 5
        %v8617 = vsel %vm1089, %v8612, %v8616
        %v8619 = vshrl.u32 %v8360, 16
        %v8621 = vrot.slane %v8619, 4
        %v8622 = vshll.u32 %v8360, 16
        %v8624 = vrot.slane %v8622, 5
        %v8625 = vor.u32 %v8621, %v8624
        %v8626 = vrot.slane %v8625, 4
        %v8628 = vshll.u32 %v8361, 16
        %v8630 = vrot.slane %v8628, 5
        %v8631 = vsel %vm1089, %v8626, %v8630
        %v8632 = vshrl.u32 %v8361, 16
        %v8634 = vrot.slane %v8632, 4
        %v8635 = vor.u32 %v8634, %v8630
        %v8636 = vrot.slane %v8635, 4
        %v8638 = vshll.u32 %v8362, 16
        %v8640 = vrot.slane %v8638, 5
        %v8641 = vsel %vm1089, %v8636, %v8640
        %v8643 = vshrl.u32 %v8363, 16
        %v8645 = vrot.slane %v8643, 4
        %v8646 = vshll.u32 %v8363, 16
        %v8648 = vrot.slane %v8646, 5
        %v8649 = vor.u32 %v8645, %v8648
        %v8650 = vrot.slane %v8649, 4
        %v8652 = vshll.u32 %v8364, 16
        %v8654 = vrot.slane %v8652, 5
        %v8655 = vsel %vm1089, %v8650, %v8654
        %v8656 = vshrl.u32 %v8364, 16
        %v8658 = vrot.slane %v8656, 4
        %v8659 = vor.u32 %v8658, %v8654
        %v8660 = vrot.slane %v8659, 4
        %v8662 = vshll.u32 %v8365, 16
        %v8664 = vrot.slane %v8662, 5
        %v8665 = vsel %vm1089, %v8660, %v8664
        %v8667 = vshrl.u32 %v8366, 16
        %v8669 = vrot.slane %v8667, 4
        %v8670 = vshll.u32 %v8366, 16
        %v8672 = vrot.slane %v8670, 5
        %v8673 = vor.u32 %v8669, %v8672
        %v8674 = vrot.slane %v8673, 4
        %v8676 = vshll.u32 %v8367, 16
        %v8678 = vrot.slane %v8676, 5
        %v8679 = vsel %vm1089, %v8674, %v8678
        %v8680 = vshrl.u32 %v8367, 16
        %v8682 = vrot.slane %v8680, 4
        %v8683 = vor.u32 %v8682, %v8678
        %v8684 = vrot.slane %v8683, 4
        %v8686 = vshll.u32 %v8368, 16
        %v8688 = vrot.slane %v8686, 5
        %v8689 = vsel %vm1089, %v8684, %v8688
        %v8691 = vshrl.u32 %v8369, 16
        %v8693 = vrot.slane %v8691, 4
        %v8694 = vshll.u32 %v8369, 16
        %v8696 = vrot.slane %v8694, 5
        %v8697 = vor.u32 %v8693, %v8696
        %v8698 = vrot.slane %v8697, 4
        %v8700 = vshll.u32 %v8370, 16
        %v8702 = vrot.slane %v8700, 5
        %v8703 = vsel %vm1089, %v8698, %v8702
        %v8704 = vshrl.u32 %v8370, 16
        %v8706 = vrot.slane %v8704, 4
        %v8707 = vor.u32 %v8706, %v8702
        %v8708 = vrot.slane %v8707, 4
        %v8710 = vshll.u32 %v8371, 16
        %v8712 = vrot.slane %v8710, 5
        %v8713 = vsel %vm1089, %v8708, %v8712
        %v8715 = vshrl.u32 %v8372, 16
        %v8717 = vrot.slane %v8715, 4
        %v8718 = vshll.u32 %v8372, 16
        %v8720 = vrot.slane %v8718, 5
        %v8721 = vor.u32 %v8717, %v8720
        %v8722 = vrot.slane %v8721, 4
        %v8724 = vshll.u32 %v8373, 16
        %v8726 = vrot.slane %v8724, 5
        %v8727 = vsel %vm1089, %v8722, %v8726
        %v8728 = vshrl.u32 %v8373, 16
        %v8730 = vrot.slane %v8728, 4
        %v8731 = vor.u32 %v8730, %v8726
        %v8732 = vrot.slane %v8731, 4
        %v8734 = vshll.u32 %v8374, 16
        %v8736 = vrot.slane %v8734, 5
        %v8737 = vsel %vm1089, %v8732, %v8736
        %v8739 = vshrl.u32 %v8375, 16
        %v8741 = vrot.slane %v8739, 4
        %v8742 = vshll.u32 %v8375, 16
        %v8744 = vrot.slane %v8742, 5
        %v8745 = vor.u32 %v8741, %v8744
        %v8746 = vrot.slane %v8745, 4
        %v8748 = vshll.u32 %v8376, 16
        %v8750 = vrot.slane %v8748, 5
        %v8751 = vsel %vm1089, %v8746, %v8750
        %v8752 = vshrl.u32 %v8376, 16
        %v8754 = vrot.slane %v8752, 4
        %v8755 = vor.u32 %v8754, %v8750
        %v8756 = vrot.slane %v8755, 4
        %v8758 = vshll.u32 %v8377, 16
        %v8760 = vrot.slane %v8758, 5
        %v8761 = vsel %vm1089, %v8756, %v8760
        %v8762 = vld [vmem:[#allocation9 + $0x100] sm:$0xf]
        %v8763 = vld [vmem:[#allocation9 + $0x104] sm:$0xf]
        %v8764 = vld [vmem:[#allocation9 + $0x108] sm:$0xf]
        %v8765 = vld [vmem:[#allocation9 + $0x10c] sm:$0xf]
        %v8766 = vld [vmem:[#allocation9 + $0x110] sm:$0xf]
        %v8767 = vld [vmem:[#allocation9 + $0x114] sm:$0xf]
        %v8768 = vld [vmem:[#allocation9 + $0x118] sm:$0xf]
        %v8769 = vld [vmem:[#allocation9 + $0x11c] sm:$0xf]
        %v8770 = vld [vmem:[#allocation9 + $0x120] sm:$0xf]
        %v8771 = vld [vmem:[#allocation9 + $0x124] sm:$0xf]
        %v8772 = vld [vmem:[#allocation9 + $0x128] sm:$0xf]
        %v8773 = vld [vmem:[#allocation9 + $0x12c] sm:$0xf]
        %v8774 = vld [vmem:[#allocation9 + $0x130] sm:$0xf]
        %v8775 = vld [vmem:[#allocation9 + $0x134] sm:$0xf]
        %v8776 = vld [vmem:[#allocation9 + $0x138] sm:$0xf]
        %v8777 = vld [vmem:[#allocation9 + $0x13c] sm:$0xf]
        %v8778 = vunpack.c.l.b16 %v8391
        %v8779 = vunpack.c.l.b16 %v8401
        %v8780 = vunpack.c.l.b16 %v8415
        %v8781 = vunpack.c.l.b16 %v8425
        %v8782 = vunpack.c.l.b16 %v8439
        %v8783 = vunpack.c.l.b16 %v8449
        %v8784 = vunpack.c.l.b16 %v8463
        %v8785 = vunpack.c.l.b16 %v8473
        %v8786 = vunpack.c.l.b16 %v8487
        %v8787 = vunpack.c.l.b16 %v8497
        %v8788 = vunpack.c.l.b16 %v8511
        %v8789 = vunpack.c.l.b16 %v8521
        %v8790 = vunpack.c.l.b16 %v8535
        %v8791 = vunpack.c.l.b16 %v8545
        %v8792 = vunpack.c.l.b16 %v8559
        %v8793 = vunpack.c.l.b16 %v8569
        %v8794 = vunpack.c.l.b16 %v8583
        %v8795 = vunpack.c.l.b16 %v8593
        %v8796 = vunpack.c.l.b16 %v8607
        %v8797 = vunpack.c.l.b16 %v8617
        %v8798 = vunpack.c.l.b16 %v8631
        %v8799 = vunpack.c.l.b16 %v8641
        %v8800 = vunpack.c.l.b16 %v8655
        %v8801 = vunpack.c.l.b16 %v8665
        %v8802 = vunpack.c.l.b16 %v8679
        %v8803 = vunpack.c.l.b16 %v8689
        %v8804 = vunpack.c.l.b16 %v8703
        %v8805 = vunpack.c.l.b16 %v8713
        %v8806 = vunpack.c.l.b16 %v8727
        %v8807 = vunpack.c.l.b16 %v8737
        %v8808 = vunpack.c.l.b16 %v8751
        %v8809 = vunpack.c.l.b16 %v8761
        %v8810 = vpack.c.b16 %v8779, %v8778
        %v8811 = vpack.c.b16 %v8781, %v8780
        %v8812 = vpack.c.b16 %v8783, %v8782
        %v8813 = vpack.c.b16 %v8785, %v8784
        %v8814 = vpack.c.b16 %v8787, %v8786
        %v8815 = vpack.c.b16 %v8789, %v8788
        %v8816 = vpack.c.b16 %v8791, %v8790
        %v8817 = vpack.c.b16 %v8793, %v8792
        %v8818 = vpack.c.b16 %v8795, %v8794
        %v8819 = vpack.c.b16 %v8797, %v8796
        %v8820 = vpack.c.b16 %v8799, %v8798
        %v8821 = vpack.c.b16 %v8801, %v8800
        %v8822 = vpack.c.b16 %v8803, %v8802
        %v8823 = vpack.c.b16 %v8805, %v8804
        %v8824 = vpack.c.b16 %v8807, %v8806
        %v8825 = vpack.c.b16 %v8809, %v8808
        %v8858 = vunpack.c.l.b16 %v8762
        %v8859 = vunpack.c.l.b16 %v8763
        %v8860 = vunpack.c.l.b16 %v8764
        %v8861 = vunpack.c.l.b16 %v8765
        %v8862 = vunpack.c.l.b16 %v8766
        %v8863 = vunpack.c.l.b16 %v8767
        %v8864 = vunpack.c.l.b16 %v8768
        %v8865 = vunpack.c.l.b16 %v8769
        %v8866 = vunpack.c.l.b16 %v8770
        %v8867 = vunpack.c.l.b16 %v8771
        %v8868 = vunpack.c.l.b16 %v8772
        %v8869 = vunpack.c.l.b16 %v8773
        %v8870 = vunpack.c.l.b16 %v8774
        %v8871 = vunpack.c.l.b16 %v8775
        %v8872 = vunpack.c.l.b16 %v8776
        %v8873 = vunpack.c.l.b16 %v8777
        %v8874 = vpack.c.b16 %v8859, %v8858
        %v8875 = vpack.c.b16 %v8861, %v8860
        %v8876 = vpack.c.b16 %v8863, %v8862
        %v8877 = vpack.c.b16 %v8865, %v8864
        %v8878 = vpack.c.b16 %v8867, %v8866
        %v8879 = vpack.c.b16 %v8869, %v8868
        %v8880 = vpack.c.b16 %v8871, %v8870
        %v8881 = vpack.c.b16 %v8873, %v8872
        %8890 = vmatprep.subr.bf16.mxu0 0
        %8891 = vmatpush1.bf16.msra.mxu0 %v8881
        %8892 = vmatprep.subr.bf16.mxu0 0
        %8893 = vmatpush1.bf16.msra.mxu0 %v8880
        %8894 = vmatprep.subr.bf16.mxu0 0
        %8895 = vmatpush1.bf16.msra.mxu0 %v8879
        %8896 = vmatprep.subr.bf16.mxu0 0
        %8897 = vmatpush1.bf16.msra.mxu0 %v8878
        %8898 = vmatprep.subr.bf16.mxu0 0
        %8899 = vmatpush1.bf16.msra.mxu0 %v8877
        %8900 = vmatprep.subr.bf16.mxu0 0
        %8901 = vmatpush1.bf16.msra.mxu0 %v8876
        %8902 = vmatprep.subr.bf16.mxu0 0
        %8903 = vmatpush1.bf16.msra.mxu0 %v8875
        %8904 = vmatprep.subr.bf16.mxu0 0
        %8905 = vmatpush1.bf16.msra.mxu0 %v8874
        %8906 = vmatprep.subr.bf16.mxu0 0
        %8907 = vmatpush2.bf16.msra.mxu0 0
        %8908 = vmatprep.subr.bf16.mxu0 0
        %8909 = vmatpush2.bf16.msra.mxu0 0
        %8910 = vmatprep.subr.bf16.mxu0 0
        %8911 = vmatpush2.bf16.msra.mxu0 0
        %8912 = vmatprep.subr.bf16.mxu0 0
        %8913 = vmatpush2.bf16.msra.mxu0 0
        %8914 = vmatprep.subr.bf16.mxu0 0
        %8915 = vmatpush2.bf16.msra.mxu0 0
        %8916 = vmatprep.subr.bf16.mxu0 0
        %8917 = vmatpush2.bf16.msra.mxu0 0
        %8918 = vmatprep.subr.bf16.mxu0 0
        %8919 = vmatpush2.bf16.msra.mxu0 0
        %8920 = vmatprep.subr.bf16.mxu0 0
        %8921 = vmatpush2.bf16.msra.mxu0 0
        %8922 = vmatprep.mubr.bf16.mxu0 0
        %8923 = vmatmul.mubr.bf16.gmra.mxu0 %v8810
        %v8924 = vpop.f32.mrf.mxu0
        %v8925 = vadd.f32 0.0, %v8924
        %v8926 = vpop.f32.mrf.mxu0
        %v8927 = vpop.f32.mrf.mxu0
        %v8928 = vadd.f32 0.0, %v8927
        %v8929 = vpop.f32.mrf.mxu0
        %8930 = vmatprep.mubr.bf16.mxu0 0
        %8931 = vmatmul.mubr.bf16.gmra.mxu0 %v8811
        %v8932 = vpop.f32.mrf.mxu0
        %v8933 = vadd.f32 0.0, %v8932
        %v8934 = vpop.f32.mrf.mxu0
        %v8935 = vpop.f32.mrf.mxu0
        %v8936 = vadd.f32 0.0, %v8935
        %v8937 = vpop.f32.mrf.mxu0
        %8938 = vmatprep.mubr.bf16.mxu0 0
        %8939 = vmatmul.mubr.bf16.gmra.mxu0 %v8812
        %v8940 = vpop.f32.mrf.mxu0
        %v8941 = vadd.f32 0.0, %v8940
        %v8942 = vpop.f32.mrf.mxu0
        %v8943 = vpop.f32.mrf.mxu0
        %v8944 = vadd.f32 0.0, %v8943
        %v8945 = vpop.f32.mrf.mxu0
        %8946 = vmatprep.mubr.bf16.mxu0 0
        %8947 = vmatmul.mubr.bf16.gmra.mxu0 %v8813
        %v8948 = vpop.f32.mrf.mxu0
        %v8949 = vadd.f32 0.0, %v8948
        %v8950 = vpop.f32.mrf.mxu0
        %v8951 = vpop.f32.mrf.mxu0
        %v8952 = vadd.f32 0.0, %v8951
        %v8953 = vpop.f32.mrf.mxu0
        %8954 = vmatprep.mubr.bf16.mxu0 0
        %8955 = vmatmul.mubr.bf16.gmra.mxu0 %v8814
        %v8956 = vpop.f32.mrf.mxu0
        %v8957 = vadd.f32 0.0, %v8956
        %v8958 = vpop.f32.mrf.mxu0
        %v8959 = vpop.f32.mrf.mxu0
        %v8960 = vadd.f32 0.0, %v8959
        %v8961 = vpop.f32.mrf.mxu0
        %8962 = vmatprep.mubr.bf16.mxu0 0
        %8963 = vmatmul.mubr.bf16.gmra.mxu0 %v8815
        %v8964 = vpop.f32.mrf.mxu0
        %v8965 = vadd.f32 0.0, %v8964
        %v8966 = vpop.f32.mrf.mxu0
        %v8967 = vpop.f32.mrf.mxu0
        %v8968 = vadd.f32 0.0, %v8967
        %v8969 = vpop.f32.mrf.mxu0
        %8970 = vmatprep.mubr.bf16.mxu0 0
        %8971 = vmatmul.mubr.bf16.gmra.mxu0 %v8816
        %v8972 = vpop.f32.mrf.mxu0
        %v8973 = vadd.f32 0.0, %v8972
        %v8974 = vpop.f32.mrf.mxu0
        %v8975 = vpop.f32.mrf.mxu0
        %v8976 = vadd.f32 0.0, %v8975
        %v8977 = vpop.f32.mrf.mxu0
        %8978 = vmatprep.mubr.bf16.mxu0 0
        %8979 = vmatmul.mubr.bf16.gmra.mxu0 %v8817
        %v8980 = vpop.f32.mrf.mxu0
        %v8981 = vadd.f32 0.0, %v8980
        %v8982 = vpop.f32.mrf.mxu0
        %v8983 = vpop.f32.mrf.mxu0
        %v8984 = vadd.f32 0.0, %v8983
        %v8985 = vpop.f32.mrf.mxu0
        %8986 = vmatprep.mubr.bf16.mxu0 0
        %8987 = vmatmul.mubr.bf16.gmra.mxu0 %v8818
        %v8988 = vpop.f32.mrf.mxu0
        %v8989 = vadd.f32 0.0, %v8988
        %v8990 = vpop.f32.mrf.mxu0
        %v8991 = vpop.f32.mrf.mxu0
        %v8992 = vadd.f32 0.0, %v8991
        %v8993 = vpop.f32.mrf.mxu0
        %8994 = vmatprep.mubr.bf16.mxu0 0
        %8995 = vmatmul.mubr.bf16.gmra.mxu0 %v8819
        %v8996 = vpop.f32.mrf.mxu0
        %v8997 = vadd.f32 0.0, %v8996
        %v8998 = vpop.f32.mrf.mxu0
        %v8999 = vpop.f32.mrf.mxu0
        %v9000 = vadd.f32 0.0, %v8999
        %v9001 = vpop.f32.mrf.mxu0
        %9002 = vmatprep.mubr.bf16.mxu0 0
        %9003 = vmatmul.mubr.bf16.gmra.mxu0 %v8820
        %v9004 = vpop.f32.mrf.mxu0
        %v9005 = vadd.f32 0.0, %v9004
        %v9006 = vpop.f32.mrf.mxu0
        %v9007 = vpop.f32.mrf.mxu0
        %v9008 = vadd.f32 0.0, %v9007
        %v9009 = vpop.f32.mrf.mxu0
        %9010 = vmatprep.mubr.bf16.mxu0 0
        %9011 = vmatmul.mubr.bf16.gmra.mxu0 %v8821
        %v9012 = vpop.f32.mrf.mxu0
        %v9013 = vadd.f32 0.0, %v9012
        %v9014 = vpop.f32.mrf.mxu0
        %v9015 = vpop.f32.mrf.mxu0
        %v9016 = vadd.f32 0.0, %v9015
        %v9017 = vpop.f32.mrf.mxu0
        %9018 = vmatprep.mubr.bf16.mxu0 0
        %9019 = vmatmul.mubr.bf16.gmra.mxu0 %v8822
        %v9020 = vpop.f32.mrf.mxu0
        %v9021 = vadd.f32 0.0, %v9020
        %v9022 = vpop.f32.mrf.mxu0
        %v9023 = vpop.f32.mrf.mxu0
        %v9024 = vadd.f32 0.0, %v9023
        %v9025 = vpop.f32.mrf.mxu0
        %9026 = vmatprep.mubr.bf16.mxu0 0
        %9027 = vmatmul.mubr.bf16.gmra.mxu0 %v8823
        %v9028 = vpop.f32.mrf.mxu0
        %v9029 = vadd.f32 0.0, %v9028
        %v9030 = vpop.f32.mrf.mxu0
        %v9031 = vpop.f32.mrf.mxu0
        %v9032 = vadd.f32 0.0, %v9031
        %v9033 = vpop.f32.mrf.mxu0
        %9034 = vmatprep.mubr.bf16.mxu0 0
        %9035 = vmatmul.mubr.bf16.gmra.mxu0 %v8824
        %v9036 = vpop.f32.mrf.mxu0
        %v9037 = vadd.f32 0.0, %v9036
        %v9038 = vpop.f32.mrf.mxu0
        %v9039 = vpop.f32.mrf.mxu0
        %v9040 = vadd.f32 0.0, %v9039
        %v9041 = vpop.f32.mrf.mxu0
        %9042 = vmatprep.mubr.bf16.mxu0 0
        %9043 = vmatmul.mubr.bf16.gmra.mxu0 %v8825
        %v9044 = vpop.f32.mrf.mxu0
        %v9045 = vadd.f32 0.0, %v9044
        %v9046 = vpop.f32.mrf.mxu0
        %v9047 = vpop.f32.mrf.mxu0
        %v9048 = vadd.f32 0.0, %v9047
        %v9049 = vpop.f32.mrf.mxu0
        %9050 = vdwg.mxu0
        %v9051 = vadd.f32 %v8298, %v8925
        %v9052 = vadd.f32 %v8299, %v8928
        %v9053 = vadd.f32 %v8300, %v8933
        %v9054 = vadd.f32 %v8301, %v8936
        %v9055 = vadd.f32 %v8302, %v8941
        %v9056 = vadd.f32 %v8303, %v8944
        %v9057 = vadd.f32 %v8304, %v8949
        %v9058 = vadd.f32 %v8305, %v8952
        %v9059 = vadd.f32 %v8306, %v8957
        %v9060 = vadd.f32 %v8307, %v8960
        %v9061 = vadd.f32 %v8308, %v8965
        %v9062 = vadd.f32 %v8309, %v8968
        %v9063 = vadd.f32 %v8310, %v8973
        %v9064 = vadd.f32 %v8311, %v8976
        %v9065 = vadd.f32 %v8312, %v8981
        %v9066 = vadd.f32 %v8313, %v8984
        %v9067 = vadd.f32 %v8314, %v8989
        %v9068 = vadd.f32 %v8315, %v8992
        %v9069 = vadd.f32 %v8316, %v8997
        %v9070 = vadd.f32 %v8317, %v9000
        %v9071 = vadd.f32 %v8318, %v9005
        %v9072 = vadd.f32 %v8319, %v9008
        %v9073 = vadd.f32 %v8320, %v9013
        %v9074 = vadd.f32 %v8321, %v9016
        %v9075 = vadd.f32 %v8322, %v9021
        %v9076 = vadd.f32 %v8323, %v9024
        %v9077 = vadd.f32 %v8324, %v9029
        %v9078 = vadd.f32 %v8325, %v9032
        %v9079 = vadd.f32 %v8326, %v9037
        %v9080 = vadd.f32 %v8327, %v9040
        %v9081 = vadd.f32 %v8328, %v9045
        %v9082 = vadd.f32 %v8329, %v9048
        %v9083 = vld [vmem:[%s458] sm:$0xe]
        %v9084 = vld [vmem:[%s458 + $0xc] sm:$0xe]
        %v9085 = vld [vmem:[%s458 + $0x18] sm:$0xe]
        %v9086 = vld [vmem:[%s458 + $0x24] sm:$0xe]
        %v9087 = vld [vmem:[%s458 + $0x30] sm:$0xe]
        %v9088 = vld [vmem:[%s458 + $0x3c] sm:$0xe]
        %v9089 = vld [vmem:[%s458 + $0x48] sm:$0xe]
        %v9090 = vld [vmem:[%s458 + $0x54] sm:$0xe]
        %v9091 = vld [vmem:[%s458 + $0x60] sm:$0xe]
        %v9092 = vld [vmem:[%s458 + $0x6c] sm:$0xe]
        %v9093 = vld [vmem:[%s458 + $0x78] sm:$0xe]
        %v9094 = vld [vmem:[%s458 + $0x84] sm:$0xe]
        %v9095 = vld [vmem:[%s458 + $0x90] sm:$0xe]
        %v9096 = vld [vmem:[%s458 + $0x9c] sm:$0xe]
        %v9097 = vld [vmem:[%s458 + $0xa8] sm:$0xe]
        %v9098 = vld [vmem:[%s458 + $0xb4] sm:$0xe]
        %v9147 = vrot.slane %v9083, 5
        %v9148 = vrot.slane %v9147, 4
        %v9149 = vrot.slane %v8331, 5
        %v9150 = vsel %vm2118, %v9148, %v9149
        %v9151 = vrot.slane %v9149, 4
        %v9152 = vrot.slane %v8332, 5
        %v9153 = vsel %vm2118, %v9151, %v9152
        %v9154 = vrot.slane %v9084, 5
        %v9155 = vrot.slane %v9154, 4
        %v9156 = vrot.slane %v8334, 5
        %v9157 = vsel %vm2118, %v9155, %v9156
        %v9158 = vrot.slane %v9156, 4
        %v9159 = vrot.slane %v8335, 5
        %v9160 = vsel %vm2118, %v9158, %v9159
        %v9161 = vrot.slane %v9085, 5
        %v9162 = vrot.slane %v9161, 4
        %v9163 = vrot.slane %v8337, 5
        %v9164 = vsel %vm2118, %v9162, %v9163
        %v9165 = vrot.slane %v9163, 4
        %v9166 = vrot.slane %v8338, 5
        %v9167 = vsel %vm2118, %v9165, %v9166
        %v9168 = vrot.slane %v9086, 5
        %v9169 = vrot.slane %v9168, 4
        %v9170 = vrot.slane %v8340, 5
        %v9171 = vsel %vm2118, %v9169, %v9170
        %v9172 = vrot.slane %v9170, 4
        %v9173 = vrot.slane %v8341, 5
        %v9174 = vsel %vm2118, %v9172, %v9173
        %v9175 = vrot.slane %v9087, 5
        %v9176 = vrot.slane %v9175, 4
        %v9177 = vrot.slane %v8343, 5
        %v9178 = vsel %vm2118, %v9176, %v9177
        %v9179 = vrot.slane %v9177, 4
        %v9180 = vrot.slane %v8344, 5
        %v9181 = vsel %vm2118, %v9179, %v9180
        %v9182 = vrot.slane %v9088, 5
        %v9183 = vrot.slane %v9182, 4
        %v9184 = vrot.slane %v8346, 5
        %v9185 = vsel %vm2118, %v9183, %v9184
        %v9186 = vrot.slane %v9184, 4
        %v9187 = vrot.slane %v8347, 5
        %v9188 = vsel %vm2118, %v9186, %v9187
        %v9189 = vrot.slane %v9089, 5
        %v9190 = vrot.slane %v9189, 4
        %v9191 = vrot.slane %v8349, 5
        %v9192 = vsel %vm2118, %v9190, %v9191
        %v9193 = vrot.slane %v9191, 4
        %v9194 = vrot.slane %v8350, 5
        %v9195 = vsel %vm2118, %v9193, %v9194
        %v9196 = vrot.slane %v9090, 5
        %v9197 = vrot.slane %v9196, 4
        %v9198 = vrot.slane %v8352, 5
        %v9199 = vsel %vm2118, %v9197, %v9198
        %v9200 = vrot.slane %v9198, 4
        %v9201 = vrot.slane %v8353, 5
        %v9202 = vsel %vm2118, %v9200, %v9201
        %v9203 = vrot.slane %v9091, 5
        %v9204 = vrot.slane %v9203, 4
        %v9205 = vrot.slane %v8355, 5
        %v9206 = vsel %vm2118, %v9204, %v9205
        %v9207 = vrot.slane %v9205, 4
        %v9208 = vrot.slane %v8356, 5
        %v9209 = vsel %vm2118, %v9207, %v9208
        %v9210 = vrot.slane %v9092, 5
        %v9211 = vrot.slane %v9210, 4
        %v9212 = vrot.slane %v8358, 5
        %v9213 = vsel %vm2118, %v9211, %v9212
        %v9214 = vrot.slane %v9212, 4
        %v9215 = vrot.slane %v8359, 5
        %v9216 = vsel %vm2118, %v9214, %v9215
        %v9217 = vrot.slane %v9093, 5
        %v9218 = vrot.slane %v9217, 4
        %v9219 = vrot.slane %v8361, 5
        %v9220 = vsel %vm2118, %v9218, %v9219
        %v9221 = vrot.slane %v9219, 4
        %v9222 = vrot.slane %v8362, 5
        %v9223 = vsel %vm2118, %v9221, %v9222
        %v9224 = vrot.slane %v9094, 5
        %v9225 = vrot.slane %v9224, 4
        %v9226 = vrot.slane %v8364, 5
        %v9227 = vsel %vm2118, %v9225, %v9226
        %v9228 = vrot.slane %v9226, 4
        %v9229 = vrot.slane %v8365, 5
        %v9230 = vsel %vm2118, %v9228, %v9229
        %v9231 = vrot.slane %v9095, 5
        %v9232 = vrot.slane %v9231, 4
        %v9233 = vrot.slane %v8367, 5
        %v9234 = vsel %vm2118, %v9232, %v9233
        %v9235 = vrot.slane %v9233, 4
        %v9236 = vrot.slane %v8368, 5
        %v9237 = vsel %vm2118, %v9235, %v9236
        %v9238 = vrot.slane %v9096, 5
        %v9239 = vrot.slane %v9238, 4
        %v9240 = vrot.slane %v8370, 5
        %v9241 = vsel %vm2118, %v9239, %v9240
        %v9242 = vrot.slane %v9240, 4
        %v9243 = vrot.slane %v8371, 5
        %v9244 = vsel %vm2118, %v9242, %v9243
        %v9245 = vrot.slane %v9097, 5
        %v9246 = vrot.slane %v9245, 4
        %v9247 = vrot.slane %v8373, 5
        %v9248 = vsel %vm2118, %v9246, %v9247
        %v9249 = vrot.slane %v9247, 4
        %v9250 = vrot.slane %v8374, 5
        %v9251 = vsel %vm2118, %v9249, %v9250
        %v9252 = vrot.slane %v9098, 5
        %v9253 = vrot.slane %v9252, 4
        %v9254 = vrot.slane %v8376, 5
        %v9255 = vsel %vm2118, %v9253, %v9254
        %v9256 = vrot.slane %v9254, 4
        %v9257 = vrot.slane %v8377, 5
        %v9258 = vsel %vm2118, %v9256, %v9257
        %v9259 = vld [vmem:[#allocation9 + $0x140] sm:$0xf]
        %v9260 = vld [vmem:[#allocation9 + $0x144] sm:$0xf]
        %v9261 = vld [vmem:[#allocation9 + $0x148] sm:$0xf]
        %v9262 = vld [vmem:[#allocation9 + $0x14c] sm:$0xf]
        %v9263 = vld [vmem:[#allocation9 + $0x150] sm:$0xf]
        %v9264 = vld [vmem:[#allocation9 + $0x154] sm:$0xf]
        %v9265 = vld [vmem:[#allocation9 + $0x158] sm:$0xf]
        %v9266 = vld [vmem:[#allocation9 + $0x15c] sm:$0xf]
        %v9267 = vld [vmem:[#allocation9 + $0x160] sm:$0xf]
        %v9268 = vld [vmem:[#allocation9 + $0x164] sm:$0xf]
        %v9269 = vld [vmem:[#allocation9 + $0x168] sm:$0xf]
        %v9270 = vld [vmem:[#allocation9 + $0x16c] sm:$0xf]
        %v9271 = vld [vmem:[#allocation9 + $0x170] sm:$0xf]
        %v9272 = vld [vmem:[#allocation9 + $0x174] sm:$0xf]
        %v9273 = vld [vmem:[#allocation9 + $0x178] sm:$0xf]
        %v9274 = vld [vmem:[#allocation9 + $0x17c] sm:$0xf]
        %v9275 = vunpack.c.l.b16 %v9150
        %v9276 = vunpack.c.l.b16 %v9153
        %v9277 = vunpack.c.l.b16 %v9157
        %v9278 = vunpack.c.l.b16 %v9160
        %v9279 = vunpack.c.l.b16 %v9164
        %v9280 = vunpack.c.l.b16 %v9167
        %v9281 = vunpack.c.l.b16 %v9171
        %v9282 = vunpack.c.l.b16 %v9174
        %v9283 = vunpack.c.l.b16 %v9178
        %v9284 = vunpack.c.l.b16 %v9181
        %v9285 = vunpack.c.l.b16 %v9185
        %v9286 = vunpack.c.l.b16 %v9188
        %v9287 = vunpack.c.l.b16 %v9192
        %v9288 = vunpack.c.l.b16 %v9195
        %v9289 = vunpack.c.l.b16 %v9199
        %v9290 = vunpack.c.l.b16 %v9202
        %v9291 = vunpack.c.l.b16 %v9206
        %v9292 = vunpack.c.l.b16 %v9209
        %v9293 = vunpack.c.l.b16 %v9213
        %v9294 = vunpack.c.l.b16 %v9216
        %v9295 = vunpack.c.l.b16 %v9220
        %v9296 = vunpack.c.l.b16 %v9223
        %v9297 = vunpack.c.l.b16 %v9227
        %v9298 = vunpack.c.l.b16 %v9230
        %v9299 = vunpack.c.l.b16 %v9234
        %v9300 = vunpack.c.l.b16 %v9237
        %v9301 = vunpack.c.l.b16 %v9241
        %v9302 = vunpack.c.l.b16 %v9244
        %v9303 = vunpack.c.l.b16 %v9248
        %v9304 = vunpack.c.l.b16 %v9251
        %v9305 = vunpack.c.l.b16 %v9255
        %v9306 = vunpack.c.l.b16 %v9258
        %v9307 = vpack.c.b16 %v9276, %v9275
        %v9308 = vpack.c.b16 %v9278, %v9277
        %v9309 = vpack.c.b16 %v9280, %v9279
        %v9310 = vpack.c.b16 %v9282, %v9281
        %v9311 = vpack.c.b16 %v9284, %v9283
        %v9312 = vpack.c.b16 %v9286, %v9285
        %v9313 = vpack.c.b16 %v9288, %v9287
        %v9314 = vpack.c.b16 %v9290, %v9289
        %v9315 = vpack.c.b16 %v9292, %v9291
        %v9316 = vpack.c.b16 %v9294, %v9293
        %v9317 = vpack.c.b16 %v9296, %v9295
        %v9318 = vpack.c.b16 %v9298, %v9297
        %v9319 = vpack.c.b16 %v9300, %v9299
        %v9320 = vpack.c.b16 %v9302, %v9301
        %v9321 = vpack.c.b16 %v9304, %v9303
        %v9322 = vpack.c.b16 %v9306, %v9305
        %v9355 = vunpack.c.l.b16 %v9259
        %v9356 = vunpack.c.l.b16 %v9260
        %v9357 = vunpack.c.l.b16 %v9261
        %v9358 = vunpack.c.l.b16 %v9262
        %v9359 = vunpack.c.l.b16 %v9263
        %v9360 = vunpack.c.l.b16 %v9264
        %v9361 = vunpack.c.l.b16 %v9265
        %v9362 = vunpack.c.l.b16 %v9266
        %v9363 = vunpack.c.l.b16 %v9267
        %v9364 = vunpack.c.l.b16 %v9268
        %v9365 = vunpack.c.l.b16 %v9269
        %v9366 = vunpack.c.l.b16 %v9270
        %v9367 = vunpack.c.l.b16 %v9271
        %v9368 = vunpack.c.l.b16 %v9272
        %v9369 = vunpack.c.l.b16 %v9273
        %v9370 = vunpack.c.l.b16 %v9274
        %v9371 = vpack.c.b16 %v9356, %v9355
        %v9372 = vpack.c.b16 %v9358, %v9357
        %v9373 = vpack.c.b16 %v9360, %v9359
        %v9374 = vpack.c.b16 %v9362, %v9361
        %v9375 = vpack.c.b16 %v9364, %v9363
        %v9376 = vpack.c.b16 %v9366, %v9365
        %v9377 = vpack.c.b16 %v9368, %v9367
        %v9378 = vpack.c.b16 %v9370, %v9369
        %9387 = vmatprep.subr.bf16.mxu0 0
        %9388 = vmatpush1.bf16.msra.mxu0 %v9378
        %9389 = vmatprep.subr.bf16.mxu0 0
        %9390 = vmatpush1.bf16.msra.mxu0 %v9377
        %9391 = vmatprep.subr.bf16.mxu0 0
        %9392 = vmatpush1.bf16.msra.mxu0 %v9376
        %9393 = vmatprep.subr.bf16.mxu0 0
        %9394 = vmatpush1.bf16.msra.mxu0 %v9375
        %9395 = vmatprep.subr.bf16.mxu0 0
        %9396 = vmatpush1.bf16.msra.mxu0 %v9374
        %9397 = vmatprep.subr.bf16.mxu0 0
        %9398 = vmatpush1.bf16.msra.mxu0 %v9373
        %9399 = vmatprep.subr.bf16.mxu0 0
        %9400 = vmatpush1.bf16.msra.mxu0 %v9372
        %9401 = vmatprep.subr.bf16.mxu0 0
        %9402 = vmatpush1.bf16.msra.mxu0 %v9371
        %9403 = vmatprep.subr.bf16.mxu0 0
        %9404 = vmatpush2.bf16.msra.mxu0 0
        %9405 = vmatprep.subr.bf16.mxu0 0
        %9406 = vmatpush2.bf16.msra.mxu0 0
        %9407 = vmatprep.subr.bf16.mxu0 0
        %9408 = vmatpush2.bf16.msra.mxu0 0
        %9409 = vmatprep.subr.bf16.mxu0 0
        %9410 = vmatpush2.bf16.msra.mxu0 0
        %9411 = vmatprep.subr.bf16.mxu0 0
        %9412 = vmatpush2.bf16.msra.mxu0 0
        %9413 = vmatprep.subr.bf16.mxu0 0
        %9414 = vmatpush2.bf16.msra.mxu0 0
        %9415 = vmatprep.subr.bf16.mxu0 0
        %9416 = vmatpush2.bf16.msra.mxu0 0
        %9417 = vmatprep.subr.bf16.mxu0 0
        %9418 = vmatpush2.bf16.msra.mxu0 0
        %9419 = vmatprep.mubr.bf16.mxu0 0
        %9420 = vmatmul.mubr.bf16.gmra.mxu0 %v9307
        %v9421 = vpop.f32.mrf.mxu0
        %v9422 = vadd.f32 0.0, %v9421
        %v9423 = vpop.f32.mrf.mxu0
        %v9424 = vpop.f32.mrf.mxu0
        %v9425 = vadd.f32 0.0, %v9424
        %v9426 = vpop.f32.mrf.mxu0
        %9427 = vmatprep.mubr.bf16.mxu0 0
        %9428 = vmatmul.mubr.bf16.gmra.mxu0 %v9308
        %v9429 = vpop.f32.mrf.mxu0
        %v9430 = vadd.f32 0.0, %v9429
        %v9431 = vpop.f32.mrf.mxu0
        %v9432 = vpop.f32.mrf.mxu0
        %v9433 = vadd.f32 0.0, %v9432
        %v9434 = vpop.f32.mrf.mxu0
        %9435 = vmatprep.mubr.bf16.mxu0 0
        %9436 = vmatmul.mubr.bf16.gmra.mxu0 %v9309
        %v9437 = vpop.f32.mrf.mxu0
        %v9438 = vadd.f32 0.0, %v9437
        %v9439 = vpop.f32.mrf.mxu0
        %v9440 = vpop.f32.mrf.mxu0
        %v9441 = vadd.f32 0.0, %v9440
        %v9442 = vpop.f32.mrf.mxu0
        %9443 = vmatprep.mubr.bf16.mxu0 0
        %9444 = vmatmul.mubr.bf16.gmra.mxu0 %v9310
        %v9445 = vpop.f32.mrf.mxu0
        %v9446 = vadd.f32 0.0, %v9445
        %v9447 = vpop.f32.mrf.mxu0
        %v9448 = vpop.f32.mrf.mxu0
        %v9449 = vadd.f32 0.0, %v9448
        %v9450 = vpop.f32.mrf.mxu0
        %9451 = vmatprep.mubr.bf16.mxu0 0
        %9452 = vmatmul.mubr.bf16.gmra.mxu0 %v9311
        %v9453 = vpop.f32.mrf.mxu0
        %v9454 = vadd.f32 0.0, %v9453
        %v9455 = vpop.f32.mrf.mxu0
        %v9456 = vpop.f32.mrf.mxu0
        %v9457 = vadd.f32 0.0, %v9456
        %v9458 = vpop.f32.mrf.mxu0
        %9459 = vmatprep.mubr.bf16.mxu0 0
        %9460 = vmatmul.mubr.bf16.gmra.mxu0 %v9312
        %v9461 = vpop.f32.mrf.mxu0
        %v9462 = vadd.f32 0.0, %v9461
        %v9463 = vpop.f32.mrf.mxu0
        %v9464 = vpop.f32.mrf.mxu0
        %v9465 = vadd.f32 0.0, %v9464
        %v9466 = vpop.f32.mrf.mxu0
        %9467 = vmatprep.mubr.bf16.mxu0 0
        %9468 = vmatmul.mubr.bf16.gmra.mxu0 %v9313
        %v9469 = vpop.f32.mrf.mxu0
        %v9470 = vadd.f32 0.0, %v9469
        %v9471 = vpop.f32.mrf.mxu0
        %v9472 = vpop.f32.mrf.mxu0
        %v9473 = vadd.f32 0.0, %v9472
        %v9474 = vpop.f32.mrf.mxu0
        %9475 = vmatprep.mubr.bf16.mxu0 0
        %9476 = vmatmul.mubr.bf16.gmra.mxu0 %v9314
        %v9477 = vpop.f32.mrf.mxu0
        %v9478 = vadd.f32 0.0, %v9477
        %v9479 = vpop.f32.mrf.mxu0
        %v9480 = vpop.f32.mrf.mxu0
        %v9481 = vadd.f32 0.0, %v9480
        %v9482 = vpop.f32.mrf.mxu0
        %9483 = vmatprep.mubr.bf16.mxu0 0
        %9484 = vmatmul.mubr.bf16.gmra.mxu0 %v9315
        %v9485 = vpop.f32.mrf.mxu0
        %v9486 = vadd.f32 0.0, %v9485
        %v9487 = vpop.f32.mrf.mxu0
        %v9488 = vpop.f32.mrf.mxu0
        %v9489 = vadd.f32 0.0, %v9488
        %v9490 = vpop.f32.mrf.mxu0
        %9491 = vmatprep.mubr.bf16.mxu0 0
        %9492 = vmatmul.mubr.bf16.gmra.mxu0 %v9316
        %v9493 = vpop.f32.mrf.mxu0
        %v9494 = vadd.f32 0.0, %v9493
        %v9495 = vpop.f32.mrf.mxu0
        %v9496 = vpop.f32.mrf.mxu0
        %v9497 = vadd.f32 0.0, %v9496
        %v9498 = vpop.f32.mrf.mxu0
        %9499 = vmatprep.mubr.bf16.mxu0 0
        %9500 = vmatmul.mubr.bf16.gmra.mxu0 %v9317
        %v9501 = vpop.f32.mrf.mxu0
        %v9502 = vadd.f32 0.0, %v9501
        %v9503 = vpop.f32.mrf.mxu0
        %v9504 = vpop.f32.mrf.mxu0
        %v9505 = vadd.f32 0.0, %v9504
        %v9506 = vpop.f32.mrf.mxu0
        %9507 = vmatprep.mubr.bf16.mxu0 0
        %9508 = vmatmul.mubr.bf16.gmra.mxu0 %v9318
        %v9509 = vpop.f32.mrf.mxu0
        %v9510 = vadd.f32 0.0, %v9509
        %v9511 = vpop.f32.mrf.mxu0
        %v9512 = vpop.f32.mrf.mxu0
        %v9513 = vadd.f32 0.0, %v9512
        %v9514 = vpop.f32.mrf.mxu0
        %9515 = vmatprep.mubr.bf16.mxu0 0
        %9516 = vmatmul.mubr.bf16.gmra.mxu0 %v9319
        %v9517 = vpop.f32.mrf.mxu0
        %v9518 = vadd.f32 0.0, %v9517
        %v9519 = vpop.f32.mrf.mxu0
        %v9520 = vpop.f32.mrf.mxu0
        %v9521 = vadd.f32 0.0, %v9520
        %v9522 = vpop.f32.mrf.mxu0
        %9523 = vmatprep.mubr.bf16.mxu0 0
        %9524 = vmatmul.mubr.bf16.gmra.mxu0 %v9320
        %v9525 = vpop.f32.mrf.mxu0
        %v9526 = vadd.f32 0.0, %v9525
        %v9527 = vpop.f32.mrf.mxu0
        %v9528 = vpop.f32.mrf.mxu0
        %v9529 = vadd.f32 0.0, %v9528
        %v9530 = vpop.f32.mrf.mxu0
        %9531 = vmatprep.mubr.bf16.mxu0 0
        %9532 = vmatmul.mubr.bf16.gmra.mxu0 %v9321
        %v9533 = vpop.f32.mrf.mxu0
        %v9534 = vadd.f32 0.0, %v9533
        %v9535 = vpop.f32.mrf.mxu0
        %v9536 = vpop.f32.mrf.mxu0
        %v9537 = vadd.f32 0.0, %v9536
        %v9538 = vpop.f32.mrf.mxu0
        %9539 = vmatprep.mubr.bf16.mxu0 0
        %9540 = vmatmul.mubr.bf16.gmra.mxu0 %v9322
        %v9541 = vpop.f32.mrf.mxu0
        %v9542 = vadd.f32 0.0, %v9541
        %v9543 = vpop.f32.mrf.mxu0
        %v9544 = vpop.f32.mrf.mxu0
        %v9545 = vadd.f32 0.0, %v9544
        %v9546 = vpop.f32.mrf.mxu0
        %9547 = vdwg.mxu0
        %v9548 = vadd.f32 %v9051, %v9422
        %v9549 = vadd.f32 %v9052, %v9425
        %v9550 = vadd.f32 %v9053, %v9430
        %v9551 = vadd.f32 %v9054, %v9433
        %v9552 = vadd.f32 %v9055, %v9438
        %v9553 = vadd.f32 %v9056, %v9441
        %v9554 = vadd.f32 %v9057, %v9446
        %v9555 = vadd.f32 %v9058, %v9449
        %v9556 = vadd.f32 %v9059, %v9454
        %v9557 = vadd.f32 %v9060, %v9457
        %v9558 = vadd.f32 %v9061, %v9462
        %v9559 = vadd.f32 %v9062, %v9465
        %v9560 = vadd.f32 %v9063, %v9470
        %v9561 = vadd.f32 %v9064, %v9473
        %v9562 = vadd.f32 %v9065, %v9478
        %v9563 = vadd.f32 %v9066, %v9481
        %v9564 = vadd.f32 %v9067, %v9486
        %v9565 = vadd.f32 %v9068, %v9489
        %v9566 = vadd.f32 %v9069, %v9494
        %v9567 = vadd.f32 %v9070, %v9497
        %v9568 = vadd.f32 %v9071, %v9502
        %v9569 = vadd.f32 %v9072, %v9505
        %v9570 = vadd.f32 %v9073, %v9510
        %v9571 = vadd.f32 %v9074, %v9513
        %v9572 = vadd.f32 %v9075, %v9518
        %v9573 = vadd.f32 %v9076, %v9521
        %v9574 = vadd.f32 %v9077, %v9526
        %v9575 = vadd.f32 %v9078, %v9529
        %v9576 = vadd.f32 %v9079, %v9534
        %v9577 = vadd.f32 %v9080, %v9537
        %v9578 = vadd.f32 %v9081, %v9542
        %v9579 = vadd.f32 %v9082, %v9545
        %s9580 = scalar_lea.vmem [#allocation3], 24
        %v9581 = vld [vmem:[%s9580] sm:$0xf]
        %v9582 = vld [vmem:[%s9580 + $0x4] sm:$0xf]
        %v9583 = vld [vmem:[%s9580 + $0xc] sm:$0xf]
        %v9584 = vld [vmem:[%s9580 + $0x10] sm:$0xf]
        %v9585 = vld [vmem:[%s9580 + $0x18] sm:$0xf]
        %v9586 = vld [vmem:[%s9580 + $0x1c] sm:$0xf]
        %v9587 = vld [vmem:[%s9580 + $0x24] sm:$0xf]
        %v9588 = vld [vmem:[%s9580 + $0x28] sm:$0xf]
        %v9589 = vld [vmem:[%s9580 + $0x30] sm:$0xf]
        %v9590 = vld [vmem:[%s9580 + $0x34] sm:$0xf]
        %v9591 = vld [vmem:[%s9580 + $0x3c] sm:$0xf]
        %v9592 = vld [vmem:[%s9580 + $0x40] sm:$0xf]
        %v9593 = vld [vmem:[%s9580 + $0x48] sm:$0xf]
        %v9594 = vld [vmem:[%s9580 + $0x4c] sm:$0xf]
        %v9595 = vld [vmem:[%s9580 + $0x54] sm:$0xf]
        %v9596 = vld [vmem:[%s9580 + $0x58] sm:$0xf]
        %v9597 = vld [vmem:[%s9580 + $0x60] sm:$0xf]
        %v9598 = vld [vmem:[%s9580 + $0x64] sm:$0xf]
        %v9599 = vld [vmem:[%s9580 + $0x6c] sm:$0xf]
        %v9600 = vld [vmem:[%s9580 + $0x70] sm:$0xf]
        %v9601 = vld [vmem:[%s9580 + $0x78] sm:$0xf]
        %v9602 = vld [vmem:[%s9580 + $0x7c] sm:$0xf]
        %v9603 = vld [vmem:[%s9580 + $0x84] sm:$0xf]
        %v9604 = vld [vmem:[%s9580 + $0x88] sm:$0xf]
        %v9605 = vld [vmem:[%s9580 + $0x90] sm:$0xf]
        %v9606 = vld [vmem:[%s9580 + $0x94] sm:$0xf]
        %v9607 = vld [vmem:[%s9580 + $0x9c] sm:$0xf]
        %v9608 = vld [vmem:[%s9580 + $0xa0] sm:$0xf]
        %v9609 = vld [vmem:[%s9580 + $0xa8] sm:$0xf]
        %v9610 = vld [vmem:[%s9580 + $0xac] sm:$0xf]
        %v9611 = vld [vmem:[%s9580 + $0xb4] sm:$0xf]
        %v9612 = vld [vmem:[%s9580 + $0xb8] sm:$0xf]
        %v9613 = vld [vmem:[#allocation9 + $0x180] sm:$0xf]
        %v9614 = vld [vmem:[#allocation9 + $0x184] sm:$0xf]
        %v9615 = vld [vmem:[#allocation9 + $0x188] sm:$0xf]
        %v9616 = vld [vmem:[#allocation9 + $0x18c] sm:$0xf]
        %v9617 = vld [vmem:[#allocation9 + $0x190] sm:$0xf]
        %v9618 = vld [vmem:[#allocation9 + $0x194] sm:$0xf]
        %v9619 = vld [vmem:[#allocation9 + $0x198] sm:$0xf]
        %v9620 = vld [vmem:[#allocation9 + $0x19c] sm:$0xf]
        %v9621 = vld [vmem:[#allocation9 + $0x1a0] sm:$0xf]
        %v9622 = vld [vmem:[#allocation9 + $0x1a4] sm:$0xf]
        %v9623 = vld [vmem:[#allocation9 + $0x1a8] sm:$0xf]
        %v9624 = vld [vmem:[#allocation9 + $0x1ac] sm:$0xf]
        %v9625 = vld [vmem:[#allocation9 + $0x1b0] sm:$0xf]
        %v9626 = vld [vmem:[#allocation9 + $0x1b4] sm:$0xf]
        %v9627 = vld [vmem:[#allocation9 + $0x1b8] sm:$0xf]
        %v9628 = vld [vmem:[#allocation9 + $0x1bc] sm:$0xf]
        %v9661 = vunpack.c.l.b16 %v9581
        %v9662 = vunpack.c.l.b16 %v9582
        %v9663 = vunpack.c.l.b16 %v9583
        %v9664 = vunpack.c.l.b16 %v9584
        %v9665 = vunpack.c.l.b16 %v9585
        %v9666 = vunpack.c.l.b16 %v9586
        %v9667 = vunpack.c.l.b16 %v9587
        %v9668 = vunpack.c.l.b16 %v9588
        %v9669 = vunpack.c.l.b16 %v9589
        %v9670 = vunpack.c.l.b16 %v9590
        %v9671 = vunpack.c.l.b16 %v9591
        %v9672 = vunpack.c.l.b16 %v9592
        %v9673 = vunpack.c.l.b16 %v9593
        %v9674 = vunpack.c.l.b16 %v9594
        %v9675 = vunpack.c.l.b16 %v9595
        %v9676 = vunpack.c.l.b16 %v9596
        %v9677 = vunpack.c.l.b16 %v9597
        %v9678 = vunpack.c.l.b16 %v9598
        %v9679 = vunpack.c.l.b16 %v9599
        %v9680 = vunpack.c.l.b16 %v9600
        %v9681 = vunpack.c.l.b16 %v9601
        %v9682 = vunpack.c.l.b16 %v9602
        %v9683 = vunpack.c.l.b16 %v9603
        %v9684 = vunpack.c.l.b16 %v9604
        %v9685 = vunpack.c.l.b16 %v9605
        %v9686 = vunpack.c.l.b16 %v9606
        %v9687 = vunpack.c.l.b16 %v9607
        %v9688 = vunpack.c.l.b16 %v9608
        %v9689 = vunpack.c.l.b16 %v9609
        %v9690 = vunpack.c.l.b16 %v9610
        %v9691 = vunpack.c.l.b16 %v9611
        %v9692 = vunpack.c.l.b16 %v9612
        %v9693 = vpack.c.b16 %v9662, %v9661
        %v9694 = vpack.c.b16 %v9664, %v9663
        %v9695 = vpack.c.b16 %v9666, %v9665
        %v9696 = vpack.c.b16 %v9668, %v9667
        %v9697 = vpack.c.b16 %v9670, %v9669
        %v9698 = vpack.c.b16 %v9672, %v9671
        %v9699 = vpack.c.b16 %v9674, %v9673
        %v9700 = vpack.c.b16 %v9676, %v9675
        %v9701 = vpack.c.b16 %v9678, %v9677
        %v9702 = vpack.c.b16 %v9680, %v9679
        %v9703 = vpack.c.b16 %v9682, %v9681
        %v9704 = vpack.c.b16 %v9684, %v9683
        %v9705 = vpack.c.b16 %v9686, %v9685
        %v9706 = vpack.c.b16 %v9688, %v9687
        %v9707 = vpack.c.b16 %v9690, %v9689
        %v9708 = vpack.c.b16 %v9692, %v9691
        %v9741 = vunpack.c.l.b16 %v9613
        %v9742 = vunpack.c.l.b16 %v9614
        %v9743 = vunpack.c.l.b16 %v9615
        %v9744 = vunpack.c.l.b16 %v9616
        %v9745 = vunpack.c.l.b16 %v9617
        %v9746 = vunpack.c.l.b16 %v9618
        %v9747 = vunpack.c.l.b16 %v9619
        %v9748 = vunpack.c.l.b16 %v9620
        %v9749 = vunpack.c.l.b16 %v9621
        %v9750 = vunpack.c.l.b16 %v9622
        %v9751 = vunpack.c.l.b16 %v9623
        %v9752 = vunpack.c.l.b16 %v9624
        %v9753 = vunpack.c.l.b16 %v9625
        %v9754 = vunpack.c.l.b16 %v9626
        %v9755 = vunpack.c.l.b16 %v9627
        %v9756 = vunpack.c.l.b16 %v9628
        %v9757 = vpack.c.b16 %v9742, %v9741
        %v9758 = vpack.c.b16 %v9744, %v9743
        %v9759 = vpack.c.b16 %v9746, %v9745
        %v9760 = vpack.c.b16 %v9748, %v9747
        %v9761 = vpack.c.b16 %v9750, %v9749
        %v9762 = vpack.c.b16 %v9752, %v9751
        %v9763 = vpack.c.b16 %v9754, %v9753
        %v9764 = vpack.c.b16 %v9756, %v9755
        %9773 = vmatprep.subr.bf16.mxu0 0
        %9774 = vmatpush1.bf16.msra.mxu0 %v9764
        %9775 = vmatprep.subr.bf16.mxu0 0
        %9776 = vmatpush1.bf16.msra.mxu0 %v9763
        %9777 = vmatprep.subr.bf16.mxu0 0
        %9778 = vmatpush1.bf16.msra.mxu0 %v9762
        %9779 = vmatprep.subr.bf16.mxu0 0
        %9780 = vmatpush1.bf16.msra.mxu0 %v9761
        %9781 = vmatprep.subr.bf16.mxu0 0
        %9782 = vmatpush1.bf16.msra.mxu0 %v9760
        %9783 = vmatprep.subr.bf16.mxu0 0
        %9784 = vmatpush1.bf16.msra.mxu0 %v9759
        %9785 = vmatprep.subr.bf16.mxu0 0
        %9786 = vmatpush1.bf16.msra.mxu0 %v9758
        %9787 = vmatprep.subr.bf16.mxu0 0
        %9788 = vmatpush1.bf16.msra.mxu0 %v9757
        %9789 = vmatprep.subr.bf16.mxu0 0
        %9790 = vmatpush2.bf16.msra.mxu0 0
        %9791 = vmatprep.subr.bf16.mxu0 0
        %9792 = vmatpush2.bf16.msra.mxu0 0
        %9793 = vmatprep.subr.bf16.mxu0 0
        %9794 = vmatpush2.bf16.msra.mxu0 0
        %9795 = vmatprep.subr.bf16.mxu0 0
        %9796 = vmatpush2.bf16.msra.mxu0 0
        %9797 = vmatprep.subr.bf16.mxu0 0
        %9798 = vmatpush2.bf16.msra.mxu0 0
        %9799 = vmatprep.subr.bf16.mxu0 0
        %9800 = vmatpush2.bf16.msra.mxu0 0
        %9801 = vmatprep.subr.bf16.mxu0 0
        %9802 = vmatpush2.bf16.msra.mxu0 0
        %9803 = vmatprep.subr.bf16.mxu0 0
        %9804 = vmatpush2.bf16.msra.mxu0 0
        %9805 = vmatprep.mubr.bf16.mxu0 0
        %9806 = vmatmul.mubr.bf16.gmra.mxu0 %v9693
        %v9807 = vpop.f32.mrf.mxu0
        %v9808 = vadd.f32 0.0, %v9807
        %v9809 = vpop.f32.mrf.mxu0
        %v9810 = vpop.f32.mrf.mxu0
        %v9811 = vadd.f32 0.0, %v9810
        %v9812 = vpop.f32.mrf.mxu0
        %9813 = vmatprep.mubr.bf16.mxu0 0
        %9814 = vmatmul.mubr.bf16.gmra.mxu0 %v9694
        %v9815 = vpop.f32.mrf.mxu0
        %v9816 = vadd.f32 0.0, %v9815
        %v9817 = vpop.f32.mrf.mxu0
        %v9818 = vpop.f32.mrf.mxu0
        %v9819 = vadd.f32 0.0, %v9818
        %v9820 = vpop.f32.mrf.mxu0
        %9821 = vmatprep.mubr.bf16.mxu0 0
        %9822 = vmatmul.mubr.bf16.gmra.mxu0 %v9695
        %v9823 = vpop.f32.mrf.mxu0
        %v9824 = vadd.f32 0.0, %v9823
        %v9825 = vpop.f32.mrf.mxu0
        %v9826 = vpop.f32.mrf.mxu0
        %v9827 = vadd.f32 0.0, %v9826
        %v9828 = vpop.f32.mrf.mxu0
        %9829 = vmatprep.mubr.bf16.mxu0 0
        %9830 = vmatmul.mubr.bf16.gmra.mxu0 %v9696
        %v9831 = vpop.f32.mrf.mxu0
        %v9832 = vadd.f32 0.0, %v9831
        %v9833 = vpop.f32.mrf.mxu0
        %v9834 = vpop.f32.mrf.mxu0
        %v9835 = vadd.f32 0.0, %v9834
        %v9836 = vpop.f32.mrf.mxu0
        %9837 = vmatprep.mubr.bf16.mxu0 0
        %9838 = vmatmul.mubr.bf16.gmra.mxu0 %v9697
        %v9839 = vpop.f32.mrf.mxu0
        %v9840 = vadd.f32 0.0, %v9839
        %v9841 = vpop.f32.mrf.mxu0
        %v9842 = vpop.f32.mrf.mxu0
        %v9843 = vadd.f32 0.0, %v9842
        %v9844 = vpop.f32.mrf.mxu0
        %9845 = vmatprep.mubr.bf16.mxu0 0
        %9846 = vmatmul.mubr.bf16.gmra.mxu0 %v9698
        %v9847 = vpop.f32.mrf.mxu0
        %v9848 = vadd.f32 0.0, %v9847
        %v9849 = vpop.f32.mrf.mxu0
        %v9850 = vpop.f32.mrf.mxu0
        %v9851 = vadd.f32 0.0, %v9850
        %v9852 = vpop.f32.mrf.mxu0
        %9853 = vmatprep.mubr.bf16.mxu0 0
        %9854 = vmatmul.mubr.bf16.gmra.mxu0 %v9699
        %v9855 = vpop.f32.mrf.mxu0
        %v9856 = vadd.f32 0.0, %v9855
        %v9857 = vpop.f32.mrf.mxu0
        %v9858 = vpop.f32.mrf.mxu0
        %v9859 = vadd.f32 0.0, %v9858
        %v9860 = vpop.f32.mrf.mxu0
        %9861 = vmatprep.mubr.bf16.mxu0 0
        %9862 = vmatmul.mubr.bf16.gmra.mxu0 %v9700
        %v9863 = vpop.f32.mrf.mxu0
        %v9864 = vadd.f32 0.0, %v9863
        %v9865 = vpop.f32.mrf.mxu0
        %v9866 = vpop.f32.mrf.mxu0
        %v9867 = vadd.f32 0.0, %v9866
        %v9868 = vpop.f32.mrf.mxu0
        %9869 = vmatprep.mubr.bf16.mxu0 0
        %9870 = vmatmul.mubr.bf16.gmra.mxu0 %v9701
        %v9871 = vpop.f32.mrf.mxu0
        %v9872 = vadd.f32 0.0, %v9871
        %v9873 = vpop.f32.mrf.mxu0
        %v9874 = vpop.f32.mrf.mxu0
        %v9875 = vadd.f32 0.0, %v9874
        %v9876 = vpop.f32.mrf.mxu0
        %9877 = vmatprep.mubr.bf16.mxu0 0
        %9878 = vmatmul.mubr.bf16.gmra.mxu0 %v9702
        %v9879 = vpop.f32.mrf.mxu0
        %v9880 = vadd.f32 0.0, %v9879
        %v9881 = vpop.f32.mrf.mxu0
        %v9882 = vpop.f32.mrf.mxu0
        %v9883 = vadd.f32 0.0, %v9882
        %v9884 = vpop.f32.mrf.mxu0
        %9885 = vmatprep.mubr.bf16.mxu0 0
        %9886 = vmatmul.mubr.bf16.gmra.mxu0 %v9703
        %v9887 = vpop.f32.mrf.mxu0
        %v9888 = vadd.f32 0.0, %v9887
        %v9889 = vpop.f32.mrf.mxu0
        %v9890 = vpop.f32.mrf.mxu0
        %v9891 = vadd.f32 0.0, %v9890
        %v9892 = vpop.f32.mrf.mxu0
        %9893 = vmatprep.mubr.bf16.mxu0 0
        %9894 = vmatmul.mubr.bf16.gmra.mxu0 %v9704
        %v9895 = vpop.f32.mrf.mxu0
        %v9896 = vadd.f32 0.0, %v9895
        %v9897 = vpop.f32.mrf.mxu0
        %v9898 = vpop.f32.mrf.mxu0
        %v9899 = vadd.f32 0.0, %v9898
        %v9900 = vpop.f32.mrf.mxu0
        %9901 = vmatprep.mubr.bf16.mxu0 0
        %9902 = vmatmul.mubr.bf16.gmra.mxu0 %v9705
        %v9903 = vpop.f32.mrf.mxu0
        %v9904 = vadd.f32 0.0, %v9903
        %v9905 = vpop.f32.mrf.mxu0
        %v9906 = vpop.f32.mrf.mxu0
        %v9907 = vadd.f32 0.0, %v9906
        %v9908 = vpop.f32.mrf.mxu0
        %9909 = vmatprep.mubr.bf16.mxu0 0
        %9910 = vmatmul.mubr.bf16.gmra.mxu0 %v9706
        %v9911 = vpop.f32.mrf.mxu0
        %v9912 = vadd.f32 0.0, %v9911
        %v9913 = vpop.f32.mrf.mxu0
        %v9914 = vpop.f32.mrf.mxu0
        %v9915 = vadd.f32 0.0, %v9914
        %v9916 = vpop.f32.mrf.mxu0
        %9917 = vmatprep.mubr.bf16.mxu0 0
        %9918 = vmatmul.mubr.bf16.gmra.mxu0 %v9707
        %v9919 = vpop.f32.mrf.mxu0
        %v9920 = vadd.f32 0.0, %v9919
        %v9921 = vpop.f32.mrf.mxu0
        %v9922 = vpop.f32.mrf.mxu0
        %v9923 = vadd.f32 0.0, %v9922
        %v9924 = vpop.f32.mrf.mxu0
        %9925 = vmatprep.mubr.bf16.mxu0 0
        %9926 = vmatmul.mubr.bf16.gmra.mxu0 %v9708
        %v9927 = vpop.f32.mrf.mxu0
        %v9928 = vadd.f32 0.0, %v9927
        %v9929 = vpop.f32.mrf.mxu0
        %v9930 = vpop.f32.mrf.mxu0
        %v9931 = vadd.f32 0.0, %v9930
        %v9932 = vpop.f32.mrf.mxu0
        %9933 = vdwg.mxu0
        %v9934 = vadd.f32 %v9548, %v9808
        %v9935 = vadd.f32 %v9549, %v9811
        %v9936 = vadd.f32 %v9550, %v9816
        %v9937 = vadd.f32 %v9551, %v9819
        %v9938 = vadd.f32 %v9552, %v9824
        %v9939 = vadd.f32 %v9553, %v9827
        %v9940 = vadd.f32 %v9554, %v9832
        %v9941 = vadd.f32 %v9555, %v9835
        %v9942 = vadd.f32 %v9556, %v9840
        %v9943 = vadd.f32 %v9557, %v9843
        %v9944 = vadd.f32 %v9558, %v9848
        %v9945 = vadd.f32 %v9559, %v9851
        %v9946 = vadd.f32 %v9560, %v9856
        %v9947 = vadd.f32 %v9561, %v9859
        %v9948 = vadd.f32 %v9562, %v9864
        %v9949 = vadd.f32 %v9563, %v9867
        %v9950 = vadd.f32 %v9564, %v9872
        %v9951 = vadd.f32 %v9565, %v9875
        %v9952 = vadd.f32 %v9566, %v9880
        %v9953 = vadd.f32 %v9567, %v9883
        %v9954 = vadd.f32 %v9568, %v9888
        %v9955 = vadd.f32 %v9569, %v9891
        %v9956 = vadd.f32 %v9570, %v9896
        %v9957 = vadd.f32 %v9571, %v9899
        %v9958 = vadd.f32 %v9572, %v9904
        %v9959 = vadd.f32 %v9573, %v9907
        %v9960 = vadd.f32 %v9574, %v9912
        %v9961 = vadd.f32 %v9575, %v9915
        %v9962 = vadd.f32 %v9576, %v9920
        %v9963 = vadd.f32 %v9577, %v9923
        %v9964 = vadd.f32 %v9578, %v9928
        %v9965 = vadd.f32 %v9579, %v9931
        %v9966 = vld [vmem:[%s9580] sm:$0xf]
        %v9967 = vld [vmem:[%s9580 + $0x4] sm:$0xf]
        %v9968 = vld [vmem:[%s9580 + $0x8] sm:$0x1]
        %v9969 = vld [vmem:[%s9580 + $0xc] sm:$0xf]
        %v9970 = vld [vmem:[%s9580 + $0x10] sm:$0xf]
        %v9971 = vld [vmem:[%s9580 + $0x14] sm:$0x1]
        %v9972 = vld [vmem:[%s9580 + $0x18] sm:$0xf]
        %v9973 = vld [vmem:[%s9580 + $0x1c] sm:$0xf]
        %v9974 = vld [vmem:[%s9580 + $0x20] sm:$0x1]
        %v9975 = vld [vmem:[%s9580 + $0x24] sm:$0xf]
        %v9976 = vld [vmem:[%s9580 + $0x28] sm:$0xf]
        %v9977 = vld [vmem:[%s9580 + $0x2c] sm:$0x1]
        %v9978 = vld [vmem:[%s9580 + $0x30] sm:$0xf]
        %v9979 = vld [vmem:[%s9580 + $0x34] sm:$0xf]
        %v9980 = vld [vmem:[%s9580 + $0x38] sm:$0x1]
        %v9981 = vld [vmem:[%s9580 + $0x3c] sm:$0xf]
        %v9982 = vld [vmem:[%s9580 + $0x40] sm:$0xf]
        %v9983 = vld [vmem:[%s9580 + $0x44] sm:$0x1]
        %v9984 = vld [vmem:[%s9580 + $0x48] sm:$0xf]
        %v9985 = vld [vmem:[%s9580 + $0x4c] sm:$0xf]
        %v9986 = vld [vmem:[%s9580 + $0x50] sm:$0x1]
        %v9987 = vld [vmem:[%s9580 + $0x54] sm:$0xf]
        %v9988 = vld [vmem:[%s9580 + $0x58] sm:$0xf]
        %v9989 = vld [vmem:[%s9580 + $0x5c] sm:$0x1]
        %v9990 = vld [vmem:[%s9580 + $0x60] sm:$0xf]
        %v9991 = vld [vmem:[%s9580 + $0x64] sm:$0xf]
        %v9992 = vld [vmem:[%s9580 + $0x68] sm:$0x1]
        %v9993 = vld [vmem:[%s9580 + $0x6c] sm:$0xf]
        %v9994 = vld [vmem:[%s9580 + $0x70] sm:$0xf]
        %v9995 = vld [vmem:[%s9580 + $0x74] sm:$0x1]
        %v9996 = vld [vmem:[%s9580 + $0x78] sm:$0xf]
        %v9997 = vld [vmem:[%s9580 + $0x7c] sm:$0xf]
        %v9998 = vld [vmem:[%s9580 + $0x80] sm:$0x1]
        %v9999 = vld [vmem:[%s9580 + $0x84] sm:$0xf]
        %v10000 = vld [vmem:[%s9580 + $0x88] sm:$0xf]
        %v10001 = vld [vmem:[%s9580 + $0x8c] sm:$0x1]
        %v10002 = vld [vmem:[%s9580 + $0x90] sm:$0xf]
        %v10003 = vld [vmem:[%s9580 + $0x94] sm:$0xf]
        %v10004 = vld [vmem:[%s9580 + $0x98] sm:$0x1]
        %v10005 = vld [vmem:[%s9580 + $0x9c] sm:$0xf]
        %v10006 = vld [vmem:[%s9580 + $0xa0] sm:$0xf]
        %v10007 = vld [vmem:[%s9580 + $0xa4] sm:$0x1]
        %v10008 = vld [vmem:[%s9580 + $0xa8] sm:$0xf]
        %v10009 = vld [vmem:[%s9580 + $0xac] sm:$0xf]
        %v10010 = vld [vmem:[%s9580 + $0xb0] sm:$0x1]
        %v10011 = vld [vmem:[%s9580 + $0xb4] sm:$0xf]
        %v10012 = vld [vmem:[%s9580 + $0xb8] sm:$0xf]
        %v10013 = vld [vmem:[%s9580 + $0xbc] sm:$0x1]
        %v10015 = vshrl.u32 %v9966, 16
        %v10017 = vrot.slane %v10015, 4
        %v10018 = vshll.u32 %v9966, 16
        %v10020 = vrot.slane %v10018, 5
        %v10021 = vor.u32 %v10017, %v10020
        %v10022 = vrot.slane %v10021, 4
        %v10024 = vshll.u32 %v9967, 16
        %v10026 = vrot.slane %v10024, 5
        %v10027 = vsel %vm1089, %v10022, %v10026
        %v10028 = vshrl.u32 %v9967, 16
        %v10030 = vrot.slane %v10028, 4
        %v10031 = vor.u32 %v10030, %v10026
        %v10032 = vrot.slane %v10031, 4
        %v10034 = vshll.u32 %v9968, 16
        %v10036 = vrot.slane %v10034, 5
        %v10037 = vsel %vm1089, %v10032, %v10036
        %v10039 = vshrl.u32 %v9969, 16
        %v10041 = vrot.slane %v10039, 4
        %v10042 = vshll.u32 %v9969, 16
        %v10044 = vrot.slane %v10042, 5
        %v10045 = vor.u32 %v10041, %v10044
        %v10046 = vrot.slane %v10045, 4
        %v10048 = vshll.u32 %v9970, 16
        %v10050 = vrot.slane %v10048, 5
        %v10051 = vsel %vm1089, %v10046, %v10050
        %v10052 = vshrl.u32 %v9970, 16
        %v10054 = vrot.slane %v10052, 4
        %v10055 = vor.u32 %v10054, %v10050
        %v10056 = vrot.slane %v10055, 4
        %v10058 = vshll.u32 %v9971, 16
        %v10060 = vrot.slane %v10058, 5
        %v10061 = vsel %vm1089, %v10056, %v10060
        %v10063 = vshrl.u32 %v9972, 16
        %v10065 = vrot.slane %v10063, 4
        %v10066 = vshll.u32 %v9972, 16
        %v10068 = vrot.slane %v10066, 5
        %v10069 = vor.u32 %v10065, %v10068
        %v10070 = vrot.slane %v10069, 4
        %v10072 = vshll.u32 %v9973, 16
        %v10074 = vrot.slane %v10072, 5
        %v10075 = vsel %vm1089, %v10070, %v10074
        %v10076 = vshrl.u32 %v9973, 16
        %v10078 = vrot.slane %v10076, 4
        %v10079 = vor.u32 %v10078, %v10074
        %v10080 = vrot.slane %v10079, 4
        %v10082 = vshll.u32 %v9974, 16
        %v10084 = vrot.slane %v10082, 5
        %v10085 = vsel %vm1089, %v10080, %v10084
        %v10087 = vshrl.u32 %v9975, 16
        %v10089 = vrot.slane %v10087, 4
        %v10090 = vshll.u32 %v9975, 16
        %v10092 = vrot.slane %v10090, 5
        %v10093 = vor.u32 %v10089, %v10092
        %v10094 = vrot.slane %v10093, 4
        %v10096 = vshll.u32 %v9976, 16
        %v10098 = vrot.slane %v10096, 5
        %v10099 = vsel %vm1089, %v10094, %v10098
        %v10100 = vshrl.u32 %v9976, 16
        %v10102 = vrot.slane %v10100, 4
        %v10103 = vor.u32 %v10102, %v10098
        %v10104 = vrot.slane %v10103, 4
        %v10106 = vshll.u32 %v9977, 16
        %v10108 = vrot.slane %v10106, 5
        %v10109 = vsel %vm1089, %v10104, %v10108
        %v10111 = vshrl.u32 %v9978, 16
        %v10113 = vrot.slane %v10111, 4
        %v10114 = vshll.u32 %v9978, 16
        %v10116 = vrot.slane %v10114, 5
        %v10117 = vor.u32 %v10113, %v10116
        %v10118 = vrot.slane %v10117, 4
        %v10120 = vshll.u32 %v9979, 16
        %v10122 = vrot.slane %v10120, 5
        %v10123 = vsel %vm1089, %v10118, %v10122
        %v10124 = vshrl.u32 %v9979, 16
        %v10126 = vrot.slane %v10124, 4
        %v10127 = vor.u32 %v10126, %v10122
        %v10128 = vrot.slane %v10127, 4
        %v10130 = vshll.u32 %v9980, 16
        %v10132 = vrot.slane %v10130, 5
        %v10133 = vsel %vm1089, %v10128, %v10132
        %v10135 = vshrl.u32 %v9981, 16
        %v10137 = vrot.slane %v10135, 4
        %v10138 = vshll.u32 %v9981, 16
        %v10140 = vrot.slane %v10138, 5
        %v10141 = vor.u32 %v10137, %v10140
        %v10142 = vrot.slane %v10141, 4
        %v10144 = vshll.u32 %v9982, 16
        %v10146 = vrot.slane %v10144, 5
        %v10147 = vsel %vm1089, %v10142, %v10146
        %v10148 = vshrl.u32 %v9982, 16
        %v10150 = vrot.slane %v10148, 4
        %v10151 = vor.u32 %v10150, %v10146
        %v10152 = vrot.slane %v10151, 4
        %v10154 = vshll.u32 %v9983, 16
        %v10156 = vrot.slane %v10154, 5
        %v10157 = vsel %vm1089, %v10152, %v10156
        %v10159 = vshrl.u32 %v9984, 16
        %v10161 = vrot.slane %v10159, 4
        %v10162 = vshll.u32 %v9984, 16
        %v10164 = vrot.slane %v10162, 5
        %v10165 = vor.u32 %v10161, %v10164
        %v10166 = vrot.slane %v10165, 4
        %v10168 = vshll.u32 %v9985, 16
        %v10170 = vrot.slane %v10168, 5
        %v10171 = vsel %vm1089, %v10166, %v10170
        %v10172 = vshrl.u32 %v9985, 16
        %v10174 = vrot.slane %v10172, 4
        %v10175 = vor.u32 %v10174, %v10170
        %v10176 = vrot.slane %v10175, 4
        %v10178 = vshll.u32 %v9986, 16
        %v10180 = vrot.slane %v10178, 5
        %v10181 = vsel %vm1089, %v10176, %v10180
        %v10183 = vshrl.u32 %v9987, 16
        %v10185 = vrot.slane %v10183, 4
        %v10186 = vshll.u32 %v9987, 16
        %v10188 = vrot.slane %v10186, 5
        %v10189 = vor.u32 %v10185, %v10188
        %v10190 = vrot.slane %v10189, 4
        %v10192 = vshll.u32 %v9988, 16
        %v10194 = vrot.slane %v10192, 5
        %v10195 = vsel %vm1089, %v10190, %v10194
        %v10196 = vshrl.u32 %v9988, 16
        %v10198 = vrot.slane %v10196, 4
        %v10199 = vor.u32 %v10198, %v10194
        %v10200 = vrot.slane %v10199, 4
        %v10202 = vshll.u32 %v9989, 16
        %v10204 = vrot.slane %v10202, 5
        %v10205 = vsel %vm1089, %v10200, %v10204
        %v10207 = vshrl.u32 %v9990, 16
        %v10209 = vrot.slane %v10207, 4
        %v10210 = vshll.u32 %v9990, 16
        %v10212 = vrot.slane %v10210, 5
        %v10213 = vor.u32 %v10209, %v10212
        %v10214 = vrot.slane %v10213, 4
        %v10216 = vshll.u32 %v9991, 16
        %v10218 = vrot.slane %v10216, 5
        %v10219 = vsel %vm1089, %v10214, %v10218
        %v10220 = vshrl.u32 %v9991, 16
        %v10222 = vrot.slane %v10220, 4
        %v10223 = vor.u32 %v10222, %v10218
        %v10224 = vrot.slane %v10223, 4
        %v10226 = vshll.u32 %v9992, 16
        %v10228 = vrot.slane %v10226, 5
        %v10229 = vsel %vm1089, %v10224, %v10228
        %v10231 = vshrl.u32 %v9993, 16
        %v10233 = vrot.slane %v10231, 4
        %v10234 = vshll.u32 %v9993, 16
        %v10236 = vrot.slane %v10234, 5
        %v10237 = vor.u32 %v10233, %v10236
        %v10238 = vrot.slane %v10237, 4
        %v10240 = vshll.u32 %v9994, 16
        %v10242 = vrot.slane %v10240, 5
        %v10243 = vsel %vm1089, %v10238, %v10242
        %v10244 = vshrl.u32 %v9994, 16
        %v10246 = vrot.slane %v10244, 4
        %v10247 = vor.u32 %v10246, %v10242
        %v10248 = vrot.slane %v10247, 4
        %v10250 = vshll.u32 %v9995, 16
        %v10252 = vrot.slane %v10250, 5
        %v10253 = vsel %vm1089, %v10248, %v10252
        %v10255 = vshrl.u32 %v9996, 16
        %v10257 = vrot.slane %v10255, 4
        %v10258 = vshll.u32 %v9996, 16
        %v10260 = vrot.slane %v10258, 5
        %v10261 = vor.u32 %v10257, %v10260
        %v10262 = vrot.slane %v10261, 4
        %v10264 = vshll.u32 %v9997, 16
        %v10266 = vrot.slane %v10264, 5
        %v10267 = vsel %vm1089, %v10262, %v10266
        %v10268 = vshrl.u32 %v9997, 16
        %v10270 = vrot.slane %v10268, 4
        %v10271 = vor.u32 %v10270, %v10266
        %v10272 = vrot.slane %v10271, 4
        %v10274 = vshll.u32 %v9998, 16
        %v10276 = vrot.slane %v10274, 5
        %v10277 = vsel %vm1089, %v10272, %v10276
        %v10279 = vshrl.u32 %v9999, 16
        %v10281 = vrot.slane %v10279, 4
        %v10282 = vshll.u32 %v9999, 16
        %v10284 = vrot.slane %v10282, 5
        %v10285 = vor.u32 %v10281, %v10284
        %v10286 = vrot.slane %v10285, 4
        %v10288 = vshll.u32 %v10000, 16
        %v10290 = vrot.slane %v10288, 5
        %v10291 = vsel %vm1089, %v10286, %v10290
        %v10292 = vshrl.u32 %v10000, 16
        %v10294 = vrot.slane %v10292, 4
        %v10295 = vor.u32 %v10294, %v10290
        %v10296 = vrot.slane %v10295, 4
        %v10298 = vshll.u32 %v10001, 16
        %v10300 = vrot.slane %v10298, 5
        %v10301 = vsel %vm1089, %v10296, %v10300
        %v10303 = vshrl.u32 %v10002, 16
        %v10305 = vrot.slane %v10303, 4
        %v10306 = vshll.u32 %v10002, 16
        %v10308 = vrot.slane %v10306, 5
        %v10309 = vor.u32 %v10305, %v10308
        %v10310 = vrot.slane %v10309, 4
        %v10312 = vshll.u32 %v10003, 16
        %v10314 = vrot.slane %v10312, 5
        %v10315 = vsel %vm1089, %v10310, %v10314
        %v10316 = vshrl.u32 %v10003, 16
        %v10318 = vrot.slane %v10316, 4
        %v10319 = vor.u32 %v10318, %v10314
        %v10320 = vrot.slane %v10319, 4
        %v10322 = vshll.u32 %v10004, 16
        %v10324 = vrot.slane %v10322, 5
        %v10325 = vsel %vm1089, %v10320, %v10324
        %v10327 = vshrl.u32 %v10005, 16
        %v10329 = vrot.slane %v10327, 4
        %v10330 = vshll.u32 %v10005, 16
        %v10332 = vrot.slane %v10330, 5
        %v10333 = vor.u32 %v10329, %v10332
        %v10334 = vrot.slane %v10333, 4
        %v10336 = vshll.u32 %v10006, 16
        %v10338 = vrot.slane %v10336, 5
        %v10339 = vsel %vm1089, %v10334, %v10338
        %v10340 = vshrl.u32 %v10006, 16
        %v10342 = vrot.slane %v10340, 4
        %v10343 = vor.u32 %v10342, %v10338
        %v10344 = vrot.slane %v10343, 4
        %v10346 = vshll.u32 %v10007, 16
        %v10348 = vrot.slane %v10346, 5
        %v10349 = vsel %vm1089, %v10344, %v10348
        %v10351 = vshrl.u32 %v10008, 16
        %v10353 = vrot.slane %v10351, 4
        %v10354 = vshll.u32 %v10008, 16
        %v10356 = vrot.slane %v10354, 5
        %v10357 = vor.u32 %v10353, %v10356
        %v10358 = vrot.slane %v10357, 4
        %v10360 = vshll.u32 %v10009, 16
        %v10362 = vrot.slane %v10360, 5
        %v10363 = vsel %vm1089, %v10358, %v10362
        %v10364 = vshrl.u32 %v10009, 16
        %v10366 = vrot.slane %v10364, 4
        %v10367 = vor.u32 %v10366, %v10362
        %v10368 = vrot.slane %v10367, 4
        %v10370 = vshll.u32 %v10010, 16
        %v10372 = vrot.slane %v10370, 5
        %v10373 = vsel %vm1089, %v10368, %v10372
        %v10375 = vshrl.u32 %v10011, 16
        %v10377 = vrot.slane %v10375, 4
        %v10378 = vshll.u32 %v10011, 16
        %v10380 = vrot.slane %v10378, 5
        %v10381 = vor.u32 %v10377, %v10380
        %v10382 = vrot.slane %v10381, 4
        %v10384 = vshll.u32 %v10012, 16
        %v10386 = vrot.slane %v10384, 5
        %v10387 = vsel %vm1089, %v10382, %v10386
        %v10388 = vshrl.u32 %v10012, 16
        %v10390 = vrot.slane %v10388, 4
        %v10391 = vor.u32 %v10390, %v10386
        %v10392 = vrot.slane %v10391, 4
        %v10394 = vshll.u32 %v10013, 16
        %v10396 = vrot.slane %v10394, 5
        %v10397 = vsel %vm1089, %v10392, %v10396
        %v10398 = vld [vmem:[#allocation9 + $0x1c0] sm:$0xf]
        %v10399 = vld [vmem:[#allocation9 + $0x1c4] sm:$0xf]
        %v10400 = vld [vmem:[#allocation9 + $0x1c8] sm:$0xf]
        %v10401 = vld [vmem:[#allocation9 + $0x1cc] sm:$0xf]
        %v10402 = vld [vmem:[#allocation9 + $0x1d0] sm:$0xf]
        %v10403 = vld [vmem:[#allocation9 + $0x1d4] sm:$0xf]
        %v10404 = vld [vmem:[#allocation9 + $0x1d8] sm:$0xf]
        %v10405 = vld [vmem:[#allocation9 + $0x1dc] sm:$0xf]
        %v10406 = vld [vmem:[#allocation9 + $0x1e0] sm:$0xf]
        %v10407 = vld [vmem:[#allocation9 + $0x1e4] sm:$0xf]
        %v10408 = vld [vmem:[#allocation9 + $0x1e8] sm:$0xf]
        %v10409 = vld [vmem:[#allocation9 + $0x1ec] sm:$0xf]
        %v10410 = vld [vmem:[#allocation9 + $0x1f0] sm:$0xf]
        %v10411 = vld [vmem:[#allocation9 + $0x1f4] sm:$0xf]
        %v10412 = vld [vmem:[#allocation9 + $0x1f8] sm:$0xf]
        %v10413 = vld [vmem:[#allocation9 + $0x1fc] sm:$0xf]
        %v10414 = vunpack.c.l.b16 %v10027
        %v10415 = vunpack.c.l.b16 %v10037
        %v10416 = vunpack.c.l.b16 %v10051
        %v10417 = vunpack.c.l.b16 %v10061
        %v10418 = vunpack.c.l.b16 %v10075
        %v10419 = vunpack.c.l.b16 %v10085
        %v10420 = vunpack.c.l.b16 %v10099
        %v10421 = vunpack.c.l.b16 %v10109
        %v10422 = vunpack.c.l.b16 %v10123
        %v10423 = vunpack.c.l.b16 %v10133
        %v10424 = vunpack.c.l.b16 %v10147
        %v10425 = vunpack.c.l.b16 %v10157
        %v10426 = vunpack.c.l.b16 %v10171
        %v10427 = vunpack.c.l.b16 %v10181
        %v10428 = vunpack.c.l.b16 %v10195
        %v10429 = vunpack.c.l.b16 %v10205
        %v10430 = vunpack.c.l.b16 %v10219
        %v10431 = vunpack.c.l.b16 %v10229
        %v10432 = vunpack.c.l.b16 %v10243
        %v10433 = vunpack.c.l.b16 %v10253
        %v10434 = vunpack.c.l.b16 %v10267
        %v10435 = vunpack.c.l.b16 %v10277
        %v10436 = vunpack.c.l.b16 %v10291
        %v10437 = vunpack.c.l.b16 %v10301
        %v10438 = vunpack.c.l.b16 %v10315
        %v10439 = vunpack.c.l.b16 %v10325
        %v10440 = vunpack.c.l.b16 %v10339
        %v10441 = vunpack.c.l.b16 %v10349
        %v10442 = vunpack.c.l.b16 %v10363
        %v10443 = vunpack.c.l.b16 %v10373
        %v10444 = vunpack.c.l.b16 %v10387
        %v10445 = vunpack.c.l.b16 %v10397
        %v10446 = vpack.c.b16 %v10415, %v10414
        %v10447 = vpack.c.b16 %v10417, %v10416
        %v10448 = vpack.c.b16 %v10419, %v10418
        %v10449 = vpack.c.b16 %v10421, %v10420
        %v10450 = vpack.c.b16 %v10423, %v10422
        %v10451 = vpack.c.b16 %v10425, %v10424
        %v10452 = vpack.c.b16 %v10427, %v10426
        %v10453 = vpack.c.b16 %v10429, %v10428
        %v10454 = vpack.c.b16 %v10431, %v10430
        %v10455 = vpack.c.b16 %v10433, %v10432
        %v10456 = vpack.c.b16 %v10435, %v10434
        %v10457 = vpack.c.b16 %v10437, %v10436
        %v10458 = vpack.c.b16 %v10439, %v10438
        %v10459 = vpack.c.b16 %v10441, %v10440
        %v10460 = vpack.c.b16 %v10443, %v10442
        %v10461 = vpack.c.b16 %v10445, %v10444
        %v10494 = vunpack.c.l.b16 %v10398
        %v10495 = vunpack.c.l.b16 %v10399
        %v10496 = vunpack.c.l.b16 %v10400
        %v10497 = vunpack.c.l.b16 %v10401
        %v10498 = vunpack.c.l.b16 %v10402
        %v10499 = vunpack.c.l.b16 %v10403
        %v10500 = vunpack.c.l.b16 %v10404
        %v10501 = vunpack.c.l.b16 %v10405
        %v10502 = vunpack.c.l.b16 %v10406
        %v10503 = vunpack.c.l.b16 %v10407
        %v10504 = vunpack.c.l.b16 %v10408
        %v10505 = vunpack.c.l.b16 %v10409
        %v10506 = vunpack.c.l.b16 %v10410
        %v10507 = vunpack.c.l.b16 %v10411
        %v10508 = vunpack.c.l.b16 %v10412
        %v10509 = vunpack.c.l.b16 %v10413
        %v10510 = vpack.c.b16 %v10495, %v10494
        %v10511 = vpack.c.b16 %v10497, %v10496
        %v10512 = vpack.c.b16 %v10499, %v10498
        %v10513 = vpack.c.b16 %v10501, %v10500
        %v10514 = vpack.c.b16 %v10503, %v10502
        %v10515 = vpack.c.b16 %v10505, %v10504
        %v10516 = vpack.c.b16 %v10507, %v10506
        %v10517 = vpack.c.b16 %v10509, %v10508
        %10526 = vmatprep.subr.bf16.mxu0 0
        %10527 = vmatpush1.bf16.msra.mxu0 %v10517
        %10528 = vmatprep.subr.bf16.mxu0 0
        %10529 = vmatpush1.bf16.msra.mxu0 %v10516
        %10530 = vmatprep.subr.bf16.mxu0 0
        %10531 = vmatpush1.bf16.msra.mxu0 %v10515
        %10532 = vmatprep.subr.bf16.mxu0 0
        %10533 = vmatpush1.bf16.msra.mxu0 %v10514
        %10534 = vmatprep.subr.bf16.mxu0 0
        %10535 = vmatpush1.bf16.msra.mxu0 %v10513
        %10536 = vmatprep.subr.bf16.mxu0 0
        %10537 = vmatpush1.bf16.msra.mxu0 %v10512
        %10538 = vmatprep.subr.bf16.mxu0 0
        %10539 = vmatpush1.bf16.msra.mxu0 %v10511
        %10540 = vmatprep.subr.bf16.mxu0 0
        %10541 = vmatpush1.bf16.msra.mxu0 %v10510
        %10542 = vmatprep.subr.bf16.mxu0 0
        %10543 = vmatpush2.bf16.msra.mxu0 0
        %10544 = vmatprep.subr.bf16.mxu0 0
        %10545 = vmatpush2.bf16.msra.mxu0 0
        %10546 = vmatprep.subr.bf16.mxu0 0
        %10547 = vmatpush2.bf16.msra.mxu0 0
        %10548 = vmatprep.subr.bf16.mxu0 0
        %10549 = vmatpush2.bf16.msra.mxu0 0
        %10550 = vmatprep.subr.bf16.mxu0 0
        %10551 = vmatpush2.bf16.msra.mxu0 0
        %10552 = vmatprep.subr.bf16.mxu0 0
        %10553 = vmatpush2.bf16.msra.mxu0 0
        %10554 = vmatprep.subr.bf16.mxu0 0
        %10555 = vmatpush2.bf16.msra.mxu0 0
        %10556 = vmatprep.subr.bf16.mxu0 0
        %10557 = vmatpush2.bf16.msra.mxu0 0
        %10558 = vmatprep.mubr.bf16.mxu0 0
        %10559 = vmatmul.mubr.bf16.gmra.mxu0 %v10446
        %v10560 = vpop.f32.mrf.mxu0
        %v10561 = vadd.f32 0.0, %v10560
        %v10562 = vpop.f32.mrf.mxu0
        %v10563 = vpop.f32.mrf.mxu0
        %v10564 = vadd.f32 0.0, %v10563
        %v10565 = vpop.f32.mrf.mxu0
        %10566 = vmatprep.mubr.bf16.mxu0 0
        %10567 = vmatmul.mubr.bf16.gmra.mxu0 %v10447
        %v10568 = vpop.f32.mrf.mxu0
        %v10569 = vadd.f32 0.0, %v10568
        %v10570 = vpop.f32.mrf.mxu0
        %v10571 = vpop.f32.mrf.mxu0
        %v10572 = vadd.f32 0.0, %v10571
        %v10573 = vpop.f32.mrf.mxu0
        %10574 = vmatprep.mubr.bf16.mxu0 0
        %10575 = vmatmul.mubr.bf16.gmra.mxu0 %v10448
        %v10576 = vpop.f32.mrf.mxu0
        %v10577 = vadd.f32 0.0, %v10576
        %v10578 = vpop.f32.mrf.mxu0
        %v10579 = vpop.f32.mrf.mxu0
        %v10580 = vadd.f32 0.0, %v10579
        %v10581 = vpop.f32.mrf.mxu0
        %10582 = vmatprep.mubr.bf16.mxu0 0
        %10583 = vmatmul.mubr.bf16.gmra.mxu0 %v10449
        %v10584 = vpop.f32.mrf.mxu0
        %v10585 = vadd.f32 0.0, %v10584
        %v10586 = vpop.f32.mrf.mxu0
        %v10587 = vpop.f32.mrf.mxu0
        %v10588 = vadd.f32 0.0, %v10587
        %v10589 = vpop.f32.mrf.mxu0
        %10590 = vmatprep.mubr.bf16.mxu0 0
        %10591 = vmatmul.mubr.bf16.gmra.mxu0 %v10450
        %v10592 = vpop.f32.mrf.mxu0
        %v10593 = vadd.f32 0.0, %v10592
        %v10594 = vpop.f32.mrf.mxu0
        %v10595 = vpop.f32.mrf.mxu0
        %v10596 = vadd.f32 0.0, %v10595
        %v10597 = vpop.f32.mrf.mxu0
        %10598 = vmatprep.mubr.bf16.mxu0 0
        %10599 = vmatmul.mubr.bf16.gmra.mxu0 %v10451
        %v10600 = vpop.f32.mrf.mxu0
        %v10601 = vadd.f32 0.0, %v10600
        %v10602 = vpop.f32.mrf.mxu0
        %v10603 = vpop.f32.mrf.mxu0
        %v10604 = vadd.f32 0.0, %v10603
        %v10605 = vpop.f32.mrf.mxu0
        %10606 = vmatprep.mubr.bf16.mxu0 0
        %10607 = vmatmul.mubr.bf16.gmra.mxu0 %v10452
        %v10608 = vpop.f32.mrf.mxu0
        %v10609 = vadd.f32 0.0, %v10608
        %v10610 = vpop.f32.mrf.mxu0
        %v10611 = vpop.f32.mrf.mxu0
        %v10612 = vadd.f32 0.0, %v10611
        %v10613 = vpop.f32.mrf.mxu0
        %10614 = vmatprep.mubr.bf16.mxu0 0
        %10615 = vmatmul.mubr.bf16.gmra.mxu0 %v10453
        %v10616 = vpop.f32.mrf.mxu0
        %v10617 = vadd.f32 0.0, %v10616
        %v10618 = vpop.f32.mrf.mxu0
        %v10619 = vpop.f32.mrf.mxu0
        %v10620 = vadd.f32 0.0, %v10619
        %v10621 = vpop.f32.mrf.mxu0
        %10622 = vmatprep.mubr.bf16.mxu0 0
        %10623 = vmatmul.mubr.bf16.gmra.mxu0 %v10454
        %v10624 = vpop.f32.mrf.mxu0
        %v10625 = vadd.f32 0.0, %v10624
        %v10626 = vpop.f32.mrf.mxu0
        %v10627 = vpop.f32.mrf.mxu0
        %v10628 = vadd.f32 0.0, %v10627
        %v10629 = vpop.f32.mrf.mxu0
        %10630 = vmatprep.mubr.bf16.mxu0 0
        %10631 = vmatmul.mubr.bf16.gmra.mxu0 %v10455
        %v10632 = vpop.f32.mrf.mxu0
        %v10633 = vadd.f32 0.0, %v10632
        %v10634 = vpop.f32.mrf.mxu0
        %v10635 = vpop.f32.mrf.mxu0
        %v10636 = vadd.f32 0.0, %v10635
        %v10637 = vpop.f32.mrf.mxu0
        %10638 = vmatprep.mubr.bf16.mxu0 0
        %10639 = vmatmul.mubr.bf16.gmra.mxu0 %v10456
        %v10640 = vpop.f32.mrf.mxu0
        %v10641 = vadd.f32 0.0, %v10640
        %v10642 = vpop.f32.mrf.mxu0
        %v10643 = vpop.f32.mrf.mxu0
        %v10644 = vadd.f32 0.0, %v10643
        %v10645 = vpop.f32.mrf.mxu0
        %10646 = vmatprep.mubr.bf16.mxu0 0
        %10647 = vmatmul.mubr.bf16.gmra.mxu0 %v10457
        %v10648 = vpop.f32.mrf.mxu0
        %v10649 = vadd.f32 0.0, %v10648
        %v10650 = vpop.f32.mrf.mxu0
        %v10651 = vpop.f32.mrf.mxu0
        %v10652 = vadd.f32 0.0, %v10651
        %v10653 = vpop.f32.mrf.mxu0
        %10654 = vmatprep.mubr.bf16.mxu0 0
        %10655 = vmatmul.mubr.bf16.gmra.mxu0 %v10458
        %v10656 = vpop.f32.mrf.mxu0
        %v10657 = vadd.f32 0.0, %v10656
        %v10658 = vpop.f32.mrf.mxu0
        %v10659 = vpop.f32.mrf.mxu0
        %v10660 = vadd.f32 0.0, %v10659
        %v10661 = vpop.f32.mrf.mxu0
        %10662 = vmatprep.mubr.bf16.mxu0 0
        %10663 = vmatmul.mubr.bf16.gmra.mxu0 %v10459
        %v10664 = vpop.f32.mrf.mxu0
        %v10665 = vadd.f32 0.0, %v10664
        %v10666 = vpop.f32.mrf.mxu0
        %v10667 = vpop.f32.mrf.mxu0
        %v10668 = vadd.f32 0.0, %v10667
        %v10669 = vpop.f32.mrf.mxu0
        %10670 = vmatprep.mubr.bf16.mxu0 0
        %10671 = vmatmul.mubr.bf16.gmra.mxu0 %v10460
        %v10672 = vpop.f32.mrf.mxu0
        %v10673 = vadd.f32 0.0, %v10672
        %v10674 = vpop.f32.mrf.mxu0
        %v10675 = vpop.f32.mrf.mxu0
        %v10676 = vadd.f32 0.0, %v10675
        %v10677 = vpop.f32.mrf.mxu0
        %10678 = vmatprep.mubr.bf16.mxu0 0
        %10679 = vmatmul.mubr.bf16.gmra.mxu0 %v10461
        %v10680 = vpop.f32.mrf.mxu0
        %v10681 = vadd.f32 0.0, %v10680
        %v10682 = vpop.f32.mrf.mxu0
        %v10683 = vpop.f32.mrf.mxu0
        %v10684 = vadd.f32 0.0, %v10683
        %v10685 = vpop.f32.mrf.mxu0
        %10686 = vdwg.mxu0
        %v10687 = vadd.f32 %v9934, %v10561
        %v10688 = vadd.f32 %v9935, %v10564
        %v10689 = vadd.f32 %v9936, %v10569
        %v10690 = vadd.f32 %v9937, %v10572
        %v10691 = vadd.f32 %v9938, %v10577
        %v10692 = vadd.f32 %v9939, %v10580
        %v10693 = vadd.f32 %v9940, %v10585
        %v10694 = vadd.f32 %v9941, %v10588
        %v10695 = vadd.f32 %v9942, %v10593
        %v10696 = vadd.f32 %v9943, %v10596
        %v10697 = vadd.f32 %v9944, %v10601
        %v10698 = vadd.f32 %v9945, %v10604
        %v10699 = vadd.f32 %v9946, %v10609
        %v10700 = vadd.f32 %v9947, %v10612
        %v10701 = vadd.f32 %v9948, %v10617
        %v10702 = vadd.f32 %v9949, %v10620
        %v10703 = vadd.f32 %v9950, %v10625
        %v10704 = vadd.f32 %v9951, %v10628
        %v10705 = vadd.f32 %v9952, %v10633
        %v10706 = vadd.f32 %v9953, %v10636
        %v10707 = vadd.f32 %v9954, %v10641
        %v10708 = vadd.f32 %v9955, %v10644
        %v10709 = vadd.f32 %v9956, %v10649
        %v10710 = vadd.f32 %v9957, %v10652
        %v10711 = vadd.f32 %v9958, %v10657
        %v10712 = vadd.f32 %v9959, %v10660
        %v10713 = vadd.f32 %v9960, %v10665
        %v10714 = vadd.f32 %v9961, %v10668
        %v10715 = vadd.f32 %v9962, %v10673
        %v10716 = vadd.f32 %v9963, %v10676
        %v10717 = vadd.f32 %v9964, %v10681
        %v10718 = vadd.f32 %v9965, %v10684
        %v10719 = vld [vmem:[%s9580] sm:$0xe]
        %v10720 = vld [vmem:[%s9580 + $0xc] sm:$0xe]
        %v10721 = vld [vmem:[%s9580 + $0x18] sm:$0xe]
        %v10722 = vld [vmem:[%s9580 + $0x24] sm:$0xe]
        %v10723 = vld [vmem:[%s9580 + $0x30] sm:$0xe]
        %v10724 = vld [vmem:[%s9580 + $0x3c] sm:$0xe]
        %v10725 = vld [vmem:[%s9580 + $0x48] sm:$0xe]
        %v10726 = vld [vmem:[%s9580 + $0x54] sm:$0xe]
        %v10727 = vld [vmem:[%s9580 + $0x60] sm:$0xe]
        %v10728 = vld [vmem:[%s9580 + $0x6c] sm:$0xe]
        %v10729 = vld [vmem:[%s9580 + $0x78] sm:$0xe]
        %v10730 = vld [vmem:[%s9580 + $0x84] sm:$0xe]
        %v10731 = vld [vmem:[%s9580 + $0x90] sm:$0xe]
        %v10732 = vld [vmem:[%s9580 + $0x9c] sm:$0xe]
        %v10733 = vld [vmem:[%s9580 + $0xa8] sm:$0xe]
        %v10734 = vld [vmem:[%s9580 + $0xb4] sm:$0xe]
        %v10783 = vrot.slane %v10719, 5
        %v10784 = vrot.slane %v10783, 4
        %v10785 = vrot.slane %v9967, 5
        %v10786 = vsel %vm2118, %v10784, %v10785
        %v10787 = vrot.slane %v10785, 4
        %v10788 = vrot.slane %v9968, 5
        %v10789 = vsel %vm2118, %v10787, %v10788
        %v10790 = vrot.slane %v10720, 5
        %v10791 = vrot.slane %v10790, 4
        %v10792 = vrot.slane %v9970, 5
        %v10793 = vsel %vm2118, %v10791, %v10792
        %v10794 = vrot.slane %v10792, 4
        %v10795 = vrot.slane %v9971, 5
        %v10796 = vsel %vm2118, %v10794, %v10795
        %v10797 = vrot.slane %v10721, 5
        %v10798 = vrot.slane %v10797, 4
        %v10799 = vrot.slane %v9973, 5
        %v10800 = vsel %vm2118, %v10798, %v10799
        %v10801 = vrot.slane %v10799, 4
        %v10802 = vrot.slane %v9974, 5
        %v10803 = vsel %vm2118, %v10801, %v10802
        %v10804 = vrot.slane %v10722, 5
        %v10805 = vrot.slane %v10804, 4
        %v10806 = vrot.slane %v9976, 5
        %v10807 = vsel %vm2118, %v10805, %v10806
        %v10808 = vrot.slane %v10806, 4
        %v10809 = vrot.slane %v9977, 5
        %v10810 = vsel %vm2118, %v10808, %v10809
        %v10811 = vrot.slane %v10723, 5
        %v10812 = vrot.slane %v10811, 4
        %v10813 = vrot.slane %v9979, 5
        %v10814 = vsel %vm2118, %v10812, %v10813
        %v10815 = vrot.slane %v10813, 4
        %v10816 = vrot.slane %v9980, 5
        %v10817 = vsel %vm2118, %v10815, %v10816
        %v10818 = vrot.slane %v10724, 5
        %v10819 = vrot.slane %v10818, 4
        %v10820 = vrot.slane %v9982, 5
        %v10821 = vsel %vm2118, %v10819, %v10820
        %v10822 = vrot.slane %v10820, 4
        %v10823 = vrot.slane %v9983, 5
        %v10824 = vsel %vm2118, %v10822, %v10823
        %v10825 = vrot.slane %v10725, 5
        %v10826 = vrot.slane %v10825, 4
        %v10827 = vrot.slane %v9985, 5
        %v10828 = vsel %vm2118, %v10826, %v10827
        %v10829 = vrot.slane %v10827, 4
        %v10830 = vrot.slane %v9986, 5
        %v10831 = vsel %vm2118, %v10829, %v10830
        %v10832 = vrot.slane %v10726, 5
        %v10833 = vrot.slane %v10832, 4
        %v10834 = vrot.slane %v9988, 5
        %v10835 = vsel %vm2118, %v10833, %v10834
        %v10836 = vrot.slane %v10834, 4
        %v10837 = vrot.slane %v9989, 5
        %v10838 = vsel %vm2118, %v10836, %v10837
        %v10839 = vrot.slane %v10727, 5
        %v10840 = vrot.slane %v10839, 4
        %v10841 = vrot.slane %v9991, 5
        %v10842 = vsel %vm2118, %v10840, %v10841
        %v10843 = vrot.slane %v10841, 4
        %v10844 = vrot.slane %v9992, 5
        %v10845 = vsel %vm2118, %v10843, %v10844
        %v10846 = vrot.slane %v10728, 5
        %v10847 = vrot.slane %v10846, 4
        %v10848 = vrot.slane %v9994, 5
        %v10849 = vsel %vm2118, %v10847, %v10848
        %v10850 = vrot.slane %v10848, 4
        %v10851 = vrot.slane %v9995, 5
        %v10852 = vsel %vm2118, %v10850, %v10851
        %v10853 = vrot.slane %v10729, 5
        %v10854 = vrot.slane %v10853, 4
        %v10855 = vrot.slane %v9997, 5
        %v10856 = vsel %vm2118, %v10854, %v10855
        %v10857 = vrot.slane %v10855, 4
        %v10858 = vrot.slane %v9998, 5
        %v10859 = vsel %vm2118, %v10857, %v10858
        %v10860 = vrot.slane %v10730, 5
        %v10861 = vrot.slane %v10860, 4
        %v10862 = vrot.slane %v10000, 5
        %v10863 = vsel %vm2118, %v10861, %v10862
        %v10864 = vrot.slane %v10862, 4
        %v10865 = vrot.slane %v10001, 5
        %v10866 = vsel %vm2118, %v10864, %v10865
        %v10867 = vrot.slane %v10731, 5
        %v10868 = vrot.slane %v10867, 4
        %v10869 = vrot.slane %v10003, 5
        %v10870 = vsel %vm2118, %v10868, %v10869
        %v10871 = vrot.slane %v10869, 4
        %v10872 = vrot.slane %v10004, 5
        %v10873 = vsel %vm2118, %v10871, %v10872
        %v10874 = vrot.slane %v10732, 5
        %v10875 = vrot.slane %v10874, 4
        %v10876 = vrot.slane %v10006, 5
        %v10877 = vsel %vm2118, %v10875, %v10876
        %v10878 = vrot.slane %v10876, 4
        %v10879 = vrot.slane %v10007, 5
        %v10880 = vsel %vm2118, %v10878, %v10879
        %v10881 = vrot.slane %v10733, 5
        %v10882 = vrot.slane %v10881, 4
        %v10883 = vrot.slane %v10009, 5
        %v10884 = vsel %vm2118, %v10882, %v10883
        %v10885 = vrot.slane %v10883, 4
        %v10886 = vrot.slane %v10010, 5
        %v10887 = vsel %vm2118, %v10885, %v10886
        %v10888 = vrot.slane %v10734, 5
        %v10889 = vrot.slane %v10888, 4
        %v10890 = vrot.slane %v10012, 5
        %v10891 = vsel %vm2118, %v10889, %v10890
        %v10892 = vrot.slane %v10890, 4
        %v10893 = vrot.slane %v10013, 5
        %v10894 = vsel %vm2118, %v10892, %v10893
        %v10895 = vld [vmem:[#allocation9 + $0x200] sm:$0xf]
        %v10896 = vld [vmem:[#allocation9 + $0x204] sm:$0xf]
        %v10897 = vld [vmem:[#allocation9 + $0x208] sm:$0xf]
        %v10898 = vld [vmem:[#allocation9 + $0x20c] sm:$0xf]
        %v10899 = vld [vmem:[#allocation9 + $0x210] sm:$0xf]
        %v10900 = vld [vmem:[#allocation9 + $0x214] sm:$0xf]
        %v10901 = vld [vmem:[#allocation9 + $0x218] sm:$0xf]
        %v10902 = vld [vmem:[#allocation9 + $0x21c] sm:$0xf]
        %v10903 = vld [vmem:[#allocation9 + $0x220] sm:$0xf]
        %v10904 = vld [vmem:[#allocation9 + $0x224] sm:$0xf]
        %v10905 = vld [vmem:[#allocation9 + $0x228] sm:$0xf]
        %v10906 = vld [vmem:[#allocation9 + $0x22c] sm:$0xf]
        %v10907 = vld [vmem:[#allocation9 + $0x230] sm:$0xf]
        %v10908 = vld [vmem:[#allocation9 + $0x234] sm:$0xf]
        %v10909 = vld [vmem:[#allocation9 + $0x238] sm:$0xf]
        %v10910 = vld [vmem:[#allocation9 + $0x23c] sm:$0xf]
        %v10911 = vunpack.c.l.b16 %v10786
        %v10912 = vunpack.c.l.b16 %v10789
        %v10913 = vunpack.c.l.b16 %v10793
        %v10914 = vunpack.c.l.b16 %v10796
        %v10915 = vunpack.c.l.b16 %v10800
        %v10916 = vunpack.c.l.b16 %v10803
        %v10917 = vunpack.c.l.b16 %v10807
        %v10918 = vunpack.c.l.b16 %v10810
        %v10919 = vunpack.c.l.b16 %v10814
        %v10920 = vunpack.c.l.b16 %v10817
        %v10921 = vunpack.c.l.b16 %v10821
        %v10922 = vunpack.c.l.b16 %v10824
        %v10923 = vunpack.c.l.b16 %v10828
        %v10924 = vunpack.c.l.b16 %v10831
        %v10925 = vunpack.c.l.b16 %v10835
        %v10926 = vunpack.c.l.b16 %v10838
        %v10927 = vunpack.c.l.b16 %v10842
        %v10928 = vunpack.c.l.b16 %v10845
        %v10929 = vunpack.c.l.b16 %v10849
        %v10930 = vunpack.c.l.b16 %v10852
        %v10931 = vunpack.c.l.b16 %v10856
        %v10932 = vunpack.c.l.b16 %v10859
        %v10933 = vunpack.c.l.b16 %v10863
        %v10934 = vunpack.c.l.b16 %v10866
        %v10935 = vunpack.c.l.b16 %v10870
        %v10936 = vunpack.c.l.b16 %v10873
        %v10937 = vunpack.c.l.b16 %v10877
        %v10938 = vunpack.c.l.b16 %v10880
        %v10939 = vunpack.c.l.b16 %v10884
        %v10940 = vunpack.c.l.b16 %v10887
        %v10941 = vunpack.c.l.b16 %v10891
        %v10942 = vunpack.c.l.b16 %v10894
        %v10943 = vpack.c.b16 %v10912, %v10911
        %v10944 = vpack.c.b16 %v10914, %v10913
        %v10945 = vpack.c.b16 %v10916, %v10915
        %v10946 = vpack.c.b16 %v10918, %v10917
        %v10947 = vpack.c.b16 %v10920, %v10919
        %v10948 = vpack.c.b16 %v10922, %v10921
        %v10949 = vpack.c.b16 %v10924, %v10923
        %v10950 = vpack.c.b16 %v10926, %v10925
        %v10951 = vpack.c.b16 %v10928, %v10927
        %v10952 = vpack.c.b16 %v10930, %v10929
        %v10953 = vpack.c.b16 %v10932, %v10931
        %v10954 = vpack.c.b16 %v10934, %v10933
        %v10955 = vpack.c.b16 %v10936, %v10935
        %v10956 = vpack.c.b16 %v10938, %v10937
        %v10957 = vpack.c.b16 %v10940, %v10939
        %v10958 = vpack.c.b16 %v10942, %v10941
        %v10991 = vunpack.c.l.b16 %v10895
        %v10992 = vunpack.c.l.b16 %v10896
        %v10993 = vunpack.c.l.b16 %v10897
        %v10994 = vunpack.c.l.b16 %v10898
        %v10995 = vunpack.c.l.b16 %v10899
        %v10996 = vunpack.c.l.b16 %v10900
        %v10997 = vunpack.c.l.b16 %v10901
        %v10998 = vunpack.c.l.b16 %v10902
        %v10999 = vunpack.c.l.b16 %v10903
        %v11000 = vunpack.c.l.b16 %v10904
        %v11001 = vunpack.c.l.b16 %v10905
        %v11002 = vunpack.c.l.b16 %v10906
        %v11003 = vunpack.c.l.b16 %v10907
        %v11004 = vunpack.c.l.b16 %v10908
        %v11005 = vunpack.c.l.b16 %v10909
        %v11006 = vunpack.c.l.b16 %v10910
        %v11007 = vpack.c.b16 %v10992, %v10991
        %v11008 = vpack.c.b16 %v10994, %v10993
        %v11009 = vpack.c.b16 %v10996, %v10995
        %v11010 = vpack.c.b16 %v10998, %v10997
        %v11011 = vpack.c.b16 %v11000, %v10999
        %v11012 = vpack.c.b16 %v11002, %v11001
        %v11013 = vpack.c.b16 %v11004, %v11003
        %v11014 = vpack.c.b16 %v11006, %v11005
        %11023 = vmatprep.subr.bf16.mxu0 0
        %11024 = vmatpush1.bf16.msra.mxu0 %v11014
        %11025 = vmatprep.subr.bf16.mxu0 0
        %11026 = vmatpush1.bf16.msra.mxu0 %v11013
        %11027 = vmatprep.subr.bf16.mxu0 0
        %11028 = vmatpush1.bf16.msra.mxu0 %v11012
        %11029 = vmatprep.subr.bf16.mxu0 0
        %11030 = vmatpush1.bf16.msra.mxu0 %v11011
        %11031 = vmatprep.subr.bf16.mxu0 0
        %11032 = vmatpush1.bf16.msra.mxu0 %v11010
        %11033 = vmatprep.subr.bf16.mxu0 0
        %11034 = vmatpush1.bf16.msra.mxu0 %v11009
        %11035 = vmatprep.subr.bf16.mxu0 0
        %11036 = vmatpush1.bf16.msra.mxu0 %v11008
        %11037 = vmatprep.subr.bf16.mxu0 0
        %11038 = vmatpush1.bf16.msra.mxu0 %v11007
        %11039 = vmatprep.subr.bf16.mxu0 0
        %11040 = vmatpush2.bf16.msra.mxu0 0
        %11041 = vmatprep.subr.bf16.mxu0 0
        %11042 = vmatpush2.bf16.msra.mxu0 0
        %11043 = vmatprep.subr.bf16.mxu0 0
        %11044 = vmatpush2.bf16.msra.mxu0 0
        %11045 = vmatprep.subr.bf16.mxu0 0
        %11046 = vmatpush2.bf16.msra.mxu0 0
        %11047 = vmatprep.subr.bf16.mxu0 0
        %11048 = vmatpush2.bf16.msra.mxu0 0
        %11049 = vmatprep.subr.bf16.mxu0 0
        %11050 = vmatpush2.bf16.msra.mxu0 0
        %11051 = vmatprep.subr.bf16.mxu0 0
        %11052 = vmatpush2.bf16.msra.mxu0 0
        %11053 = vmatprep.subr.bf16.mxu0 0
        %11054 = vmatpush2.bf16.msra.mxu0 0
        %11055 = vmatprep.mubr.bf16.mxu0 0
        %11056 = vmatmul.mubr.bf16.gmra.mxu0 %v10943
        %v11057 = vpop.f32.mrf.mxu0
        %v11058 = vadd.f32 0.0, %v11057
        %v11059 = vpop.f32.mrf.mxu0
        %v11060 = vpop.f32.mrf.mxu0
        %v11061 = vadd.f32 0.0, %v11060
        %v11062 = vpop.f32.mrf.mxu0
        %11063 = vmatprep.mubr.bf16.mxu0 0
        %11064 = vmatmul.mubr.bf16.gmra.mxu0 %v10944
        %v11065 = vpop.f32.mrf.mxu0
        %v11066 = vadd.f32 0.0, %v11065
        %v11067 = vpop.f32.mrf.mxu0
        %v11068 = vpop.f32.mrf.mxu0
        %v11069 = vadd.f32 0.0, %v11068
        %v11070 = vpop.f32.mrf.mxu0
        %11071 = vmatprep.mubr.bf16.mxu0 0
        %11072 = vmatmul.mubr.bf16.gmra.mxu0 %v10945
        %v11073 = vpop.f32.mrf.mxu0
        %v11074 = vadd.f32 0.0, %v11073
        %v11075 = vpop.f32.mrf.mxu0
        %v11076 = vpop.f32.mrf.mxu0
        %v11077 = vadd.f32 0.0, %v11076
        %v11078 = vpop.f32.mrf.mxu0
        %11079 = vmatprep.mubr.bf16.mxu0 0
        %11080 = vmatmul.mubr.bf16.gmra.mxu0 %v10946
        %v11081 = vpop.f32.mrf.mxu0
        %v11082 = vadd.f32 0.0, %v11081
        %v11083 = vpop.f32.mrf.mxu0
        %v11084 = vpop.f32.mrf.mxu0
        %v11085 = vadd.f32 0.0, %v11084
        %v11086 = vpop.f32.mrf.mxu0
        %11087 = vmatprep.mubr.bf16.mxu0 0
        %11088 = vmatmul.mubr.bf16.gmra.mxu0 %v10947
        %v11089 = vpop.f32.mrf.mxu0
        %v11090 = vadd.f32 0.0, %v11089
        %v11091 = vpop.f32.mrf.mxu0
        %v11092 = vpop.f32.mrf.mxu0
        %v11093 = vadd.f32 0.0, %v11092
        %v11094 = vpop.f32.mrf.mxu0
        %11095 = vmatprep.mubr.bf16.mxu0 0
        %11096 = vmatmul.mubr.bf16.gmra.mxu0 %v10948
        %v11097 = vpop.f32.mrf.mxu0
        %v11098 = vadd.f32 0.0, %v11097
        %v11099 = vpop.f32.mrf.mxu0
        %v11100 = vpop.f32.mrf.mxu0
        %v11101 = vadd.f32 0.0, %v11100
        %v11102 = vpop.f32.mrf.mxu0
        %11103 = vmatprep.mubr.bf16.mxu0 0
        %11104 = vmatmul.mubr.bf16.gmra.mxu0 %v10949
        %v11105 = vpop.f32.mrf.mxu0
        %v11106 = vadd.f32 0.0, %v11105
        %v11107 = vpop.f32.mrf.mxu0
        %v11108 = vpop.f32.mrf.mxu0
        %v11109 = vadd.f32 0.0, %v11108
        %v11110 = vpop.f32.mrf.mxu0
        %11111 = vmatprep.mubr.bf16.mxu0 0
        %11112 = vmatmul.mubr.bf16.gmra.mxu0 %v10950
        %v11113 = vpop.f32.mrf.mxu0
        %v11114 = vadd.f32 0.0, %v11113
        %v11115 = vpop.f32.mrf.mxu0
        %v11116 = vpop.f32.mrf.mxu0
        %v11117 = vadd.f32 0.0, %v11116
        %v11118 = vpop.f32.mrf.mxu0
        %11119 = vmatprep.mubr.bf16.mxu0 0
        %11120 = vmatmul.mubr.bf16.gmra.mxu0 %v10951
        %v11121 = vpop.f32.mrf.mxu0
        %v11122 = vadd.f32 0.0, %v11121
        %v11123 = vpop.f32.mrf.mxu0
        %v11124 = vpop.f32.mrf.mxu0
        %v11125 = vadd.f32 0.0, %v11124
        %v11126 = vpop.f32.mrf.mxu0
        %11127 = vmatprep.mubr.bf16.mxu0 0
        %11128 = vmatmul.mubr.bf16.gmra.mxu0 %v10952
        %v11129 = vpop.f32.mrf.mxu0
        %v11130 = vadd.f32 0.0, %v11129
        %v11131 = vpop.f32.mrf.mxu0
        %v11132 = vpop.f32.mrf.mxu0
        %v11133 = vadd.f32 0.0, %v11132
        %v11134 = vpop.f32.mrf.mxu0
        %11135 = vmatprep.mubr.bf16.mxu0 0
        %11136 = vmatmul.mubr.bf16.gmra.mxu0 %v10953
        %v11137 = vpop.f32.mrf.mxu0
        %v11138 = vadd.f32 0.0, %v11137
        %v11139 = vpop.f32.mrf.mxu0
        %v11140 = vpop.f32.mrf.mxu0
        %v11141 = vadd.f32 0.0, %v11140
        %v11142 = vpop.f32.mrf.mxu0
        %11143 = vmatprep.mubr.bf16.mxu0 0
        %11144 = vmatmul.mubr.bf16.gmra.mxu0 %v10954
        %v11145 = vpop.f32.mrf.mxu0
        %v11146 = vadd.f32 0.0, %v11145
        %v11147 = vpop.f32.mrf.mxu0
        %v11148 = vpop.f32.mrf.mxu0
        %v11149 = vadd.f32 0.0, %v11148
        %v11150 = vpop.f32.mrf.mxu0
        %11151 = vmatprep.mubr.bf16.mxu0 0
        %11152 = vmatmul.mubr.bf16.gmra.mxu0 %v10955
        %v11153 = vpop.f32.mrf.mxu0
        %v11154 = vadd.f32 0.0, %v11153
        %v11155 = vpop.f32.mrf.mxu0
        %v11156 = vpop.f32.mrf.mxu0
        %v11157 = vadd.f32 0.0, %v11156
        %v11158 = vpop.f32.mrf.mxu0
        %11159 = vmatprep.mubr.bf16.mxu0 0
        %11160 = vmatmul.mubr.bf16.gmra.mxu0 %v10956
        %v11161 = vpop.f32.mrf.mxu0
        %v11162 = vadd.f32 0.0, %v11161
        %v11163 = vpop.f32.mrf.mxu0
        %v11164 = vpop.f32.mrf.mxu0
        %v11165 = vadd.f32 0.0, %v11164
        %v11166 = vpop.f32.mrf.mxu0
        %11167 = vmatprep.mubr.bf16.mxu0 0
        %11168 = vmatmul.mubr.bf16.gmra.mxu0 %v10957
        %v11169 = vpop.f32.mrf.mxu0
        %v11170 = vadd.f32 0.0, %v11169
        %v11171 = vpop.f32.mrf.mxu0
        %v11172 = vpop.f32.mrf.mxu0
        %v11173 = vadd.f32 0.0, %v11172
        %v11174 = vpop.f32.mrf.mxu0
        %11175 = vmatprep.mubr.bf16.mxu0 0
        %11176 = vmatmul.mubr.bf16.gmra.mxu0 %v10958
        %v11177 = vpop.f32.mrf.mxu0
        %v11178 = vadd.f32 0.0, %v11177
        %v11179 = vpop.f32.mrf.mxu0
        %v11180 = vpop.f32.mrf.mxu0
        %v11181 = vadd.f32 0.0, %v11180
        %v11182 = vpop.f32.mrf.mxu0
        %11183 = vdwg.mxu0
        %v11184 = vadd.f32 %v10687, %v11058
        %v11185 = vadd.f32 %v10688, %v11061
        %v11186 = vadd.f32 %v10689, %v11066
        %v11187 = vadd.f32 %v10690, %v11069
        %v11188 = vadd.f32 %v10691, %v11074
        %v11189 = vadd.f32 %v10692, %v11077
        %v11190 = vadd.f32 %v10693, %v11082
        %v11191 = vadd.f32 %v10694, %v11085
        %v11192 = vadd.f32 %v10695, %v11090
        %v11193 = vadd.f32 %v10696, %v11093
        %v11194 = vadd.f32 %v10697, %v11098
        %v11195 = vadd.f32 %v10698, %v11101
        %v11196 = vadd.f32 %v10699, %v11106
        %v11197 = vadd.f32 %v10700, %v11109
        %v11198 = vadd.f32 %v10701, %v11114
        %v11199 = vadd.f32 %v10702, %v11117
        %v11200 = vadd.f32 %v10703, %v11122
        %v11201 = vadd.f32 %v10704, %v11125
        %v11202 = vadd.f32 %v10705, %v11130
        %v11203 = vadd.f32 %v10706, %v11133
        %v11204 = vadd.f32 %v10707, %v11138
        %v11205 = vadd.f32 %v10708, %v11141
        %v11206 = vadd.f32 %v10709, %v11146
        %v11207 = vadd.f32 %v10710, %v11149
        %v11208 = vadd.f32 %v10711, %v11154
        %v11209 = vadd.f32 %v10712, %v11157
        %v11210 = vadd.f32 %v10713, %v11162
        %v11211 = vadd.f32 %v10714, %v11165
        %v11212 = vadd.f32 %v10715, %v11170
        %v11213 = vadd.f32 %v10716, %v11173
        %v11214 = vadd.f32 %v10717, %v11178
        %v11215 = vadd.f32 %v10718, %v11181
        %v11216 = vld [vmem:[%s4] sm:$0x1]
        %v11218 = vlaneseq
        %v11219 = vshrl.u32 %v11218, 7
        %v11220 = vsub.s32 0, %v11219
        %v11221 = vrot.slane %v11216, %v11220
        %v11223 = vadd.f32 %v11184, %v11221
        %v11224 = vadd.f32 %v11185, %v11221
        %v11225 = vadd.f32 %v11186, %v11221
        %v11226 = vadd.f32 %v11187, %v11221
        %v11227 = vadd.f32 %v11188, %v11221
        %v11228 = vadd.f32 %v11189, %v11221
        %v11229 = vadd.f32 %v11190, %v11221
        %v11230 = vadd.f32 %v11191, %v11221
        %v11231 = vadd.f32 %v11192, %v11221
        %v11232 = vadd.f32 %v11193, %v11221
        %v11233 = vadd.f32 %v11194, %v11221
        %v11234 = vadd.f32 %v11195, %v11221
        %v11235 = vadd.f32 %v11196, %v11221
        %v11236 = vadd.f32 %v11197, %v11221
        %v11237 = vadd.f32 %v11198, %v11221
        %v11238 = vadd.f32 %v11199, %v11221
        %v11239 = vadd.f32 %v11200, %v11221
        %v11240 = vadd.f32 %v11201, %v11221
        %v11241 = vadd.f32 %v11202, %v11221
        %v11242 = vadd.f32 %v11203, %v11221
        %v11243 = vadd.f32 %v11204, %v11221
        %v11244 = vadd.f32 %v11205, %v11221
        %v11245 = vadd.f32 %v11206, %v11221
        %v11246 = vadd.f32 %v11207, %v11221
        %v11247 = vadd.f32 %v11208, %v11221
        %v11248 = vadd.f32 %v11209, %v11221
        %v11249 = vadd.f32 %v11210, %v11221
        %v11250 = vadd.f32 %v11211, %v11221
        %v11251 = vadd.f32 %v11212, %v11221
        %v11252 = vadd.f32 %v11213, %v11221
        %v11253 = vadd.f32 %v11214, %v11221
        %v11254 = vadd.f32 %v11215, %v11221
        %v11255 = vmax.f32 %v11223, 0.0
        %v11256 = vmax.f32 %v11224, 0.0
        %v11257 = vmax.f32 %v11225, 0.0
        %v11258 = vmax.f32 %v11226, 0.0
        %v11259 = vmax.f32 %v11227, 0.0
        %v11260 = vmax.f32 %v11228, 0.0
        %v11261 = vmax.f32 %v11229, 0.0
        %v11262 = vmax.f32 %v11230, 0.0
        %v11263 = vmax.f32 %v11231, 0.0
        %v11264 = vmax.f32 %v11232, 0.0
        %v11265 = vmax.f32 %v11233, 0.0
        %v11266 = vmax.f32 %v11234, 0.0
        %v11267 = vmax.f32 %v11235, 0.0
        %v11268 = vmax.f32 %v11236, 0.0
        %v11269 = vmax.f32 %v11237, 0.0
        %v11270 = vmax.f32 %v11238, 0.0
        %v11271 = vmax.f32 %v11239, 0.0
        %v11272 = vmax.f32 %v11240, 0.0
        %v11273 = vmax.f32 %v11241, 0.0
        %v11274 = vmax.f32 %v11242, 0.0
        %v11275 = vmax.f32 %v11243, 0.0
        %v11276 = vmax.f32 %v11244, 0.0
        %v11277 = vmax.f32 %v11245, 0.0
        %v11278 = vmax.f32 %v11246, 0.0
        %v11279 = vmax.f32 %v11247, 0.0
        %v11280 = vmax.f32 %v11248, 0.0
        %v11281 = vmax.f32 %v11249, 0.0
        %v11282 = vmax.f32 %v11250, 0.0
        %v11283 = vmax.f32 %v11251, 0.0
        %v11284 = vmax.f32 %v11252, 0.0
        %v11285 = vmax.f32 %v11253, 0.0
        %v11286 = vmax.f32 %v11254, 0.0
        %v11287 = vpack.c.bf16 %v11256, %v11255
        %v11288 = vpack.c.bf16 %v11258, %v11257
        %v11289 = vpack.c.bf16 %v11260, %v11259
        %v11290 = vpack.c.bf16 %v11262, %v11261
        %v11291 = vpack.c.bf16 %v11264, %v11263
        %v11292 = vpack.c.bf16 %v11266, %v11265
        %v11293 = vpack.c.bf16 %v11268, %v11267
        %v11294 = vpack.c.bf16 %v11270, %v11269
        %v11295 = vpack.c.bf16 %v11272, %v11271
        %v11296 = vpack.c.bf16 %v11274, %v11273
        %v11297 = vpack.c.bf16 %v11276, %v11275
        %v11298 = vpack.c.bf16 %v11278, %v11277
        %v11299 = vpack.c.bf16 %v11280, %v11279
        %v11300 = vpack.c.bf16 %v11282, %v11281
        %v11301 = vpack.c.bf16 %v11284, %v11283
        %v11302 = vpack.c.bf16 %v11286, %v11285
        %v11303 = vld [vmem:[#allocation10] sm:$0xf]
        %v11304 = vld [vmem:[#allocation10 + $0x4] sm:$0xf]
        %v11305 = vld [vmem:[#allocation10 + $0x8] sm:$0xf]
        %v11306 = vld [vmem:[#allocation10 + $0xc] sm:$0xf]
        %v11307 = vld [vmem:[#allocation10 + $0x10] sm:$0xf]
        %v11308 = vld [vmem:[#allocation10 + $0x14] sm:$0xf]
        %v11309 = vld [vmem:[#allocation10 + $0x18] sm:$0xf]
        %v11310 = vld [vmem:[#allocation10 + $0x1c] sm:$0xf]
        %v11311 = vld [vmem:[#allocation10 + $0x20] sm:$0xf]
        %v11312 = vld [vmem:[#allocation10 + $0x24] sm:$0xf]
        %v11313 = vld [vmem:[#allocation10 + $0x28] sm:$0xf]
        %v11314 = vld [vmem:[#allocation10 + $0x2c] sm:$0xf]
        %v11315 = vld [vmem:[#allocation10 + $0x30] sm:$0xf]
        %v11316 = vld [vmem:[#allocation10 + $0x34] sm:$0xf]
        %v11317 = vld [vmem:[#allocation10 + $0x38] sm:$0xf]
        %v11318 = vld [vmem:[#allocation10 + $0x3c] sm:$0xf]
        %v11319 = vld [vmem:[%s6] sm:$0x1]
        %v11321 = vlaneseq
        %v11322 = vshrl.u32 %v11321, 7
        %v11323 = vsub.s32 0, %v11322
        %v11324 = vrot.slane %v11319, %v11323
        %v11342 = vunpack.c.l.b16 %v11303
        %v11343 = vunpack.c.l.b16 %v11304
        %v11344 = vunpack.c.l.b16 %v11305
        %v11345 = vunpack.c.l.b16 %v11306
        %v11346 = vunpack.c.l.b16 %v11307
        %v11347 = vunpack.c.l.b16 %v11308
        %v11348 = vunpack.c.l.b16 %v11309
        %v11349 = vunpack.c.l.b16 %v11310
        %v11350 = vunpack.c.l.b16 %v11311
        %v11351 = vunpack.c.l.b16 %v11312
        %v11352 = vunpack.c.l.b16 %v11313
        %v11353 = vunpack.c.l.b16 %v11314
        %v11354 = vunpack.c.l.b16 %v11315
        %v11355 = vunpack.c.l.b16 %v11316
        %v11356 = vunpack.c.l.b16 %v11317
        %v11357 = vunpack.c.l.b16 %v11318
        %v11358 = vpack.c.b16 %v11343, %v11342
        %v11359 = vpack.c.b16 %v11345, %v11344
        %v11360 = vpack.c.b16 %v11347, %v11346
        %v11361 = vpack.c.b16 %v11349, %v11348
        %v11362 = vpack.c.b16 %v11351, %v11350
        %v11363 = vpack.c.b16 %v11353, %v11352
        %v11364 = vpack.c.b16 %v11355, %v11354
        %v11365 = vpack.c.b16 %v11357, %v11356
        %11374 = vmatprep.subr.bf16.mxu0 0
        %11375 = vmatpush1.bf16.msra.mxu0 %v11365
        %11376 = vmatprep.subr.bf16.mxu0 0
        %11377 = vmatpush1.bf16.msra.mxu0 %v11364
        %11378 = vmatprep.subr.bf16.mxu0 0
        %11379 = vmatpush1.bf16.msra.mxu0 %v11363
        %11380 = vmatprep.subr.bf16.mxu0 0
        %11381 = vmatpush1.bf16.msra.mxu0 %v11362
        %11382 = vmatprep.subr.bf16.mxu0 0
        %11383 = vmatpush1.bf16.msra.mxu0 %v11361
        %11384 = vmatprep.subr.bf16.mxu0 0
        %11385 = vmatpush1.bf16.msra.mxu0 %v11360
        %11386 = vmatprep.subr.bf16.mxu0 0
        %11387 = vmatpush1.bf16.msra.mxu0 %v11359
        %11388 = vmatprep.subr.bf16.mxu0 0
        %11389 = vmatpush1.bf16.msra.mxu0 %v11358
        %11390 = vmatprep.subr.bf16.mxu0 0
        %11391 = vmatpush2.bf16.msra.mxu0 0
        %11392 = vmatprep.subr.bf16.mxu0 0
        %11393 = vmatpush2.bf16.msra.mxu0 0
        %11394 = vmatprep.subr.bf16.mxu0 0
        %11395 = vmatpush2.bf16.msra.mxu0 0
        %11396 = vmatprep.subr.bf16.mxu0 0
        %11397 = vmatpush2.bf16.msra.mxu0 0
        %11398 = vmatprep.subr.bf16.mxu0 0
        %11399 = vmatpush2.bf16.msra.mxu0 0
        %11400 = vmatprep.subr.bf16.mxu0 0
        %11401 = vmatpush2.bf16.msra.mxu0 0
        %11402 = vmatprep.subr.bf16.mxu0 0
        %11403 = vmatpush2.bf16.msra.mxu0 0
        %11404 = vmatprep.subr.bf16.mxu0 0
        %11405 = vmatpush2.bf16.msra.mxu0 0
        %11406 = vmatprep.mubr.bf16.mxu0 0
        %11407 = vmatmul.mubr.bf16.gmra.mxu0 %v11287
        %v11408 = vpop.f32.mrf.mxu0
        %v11409 = vadd.f32 %v11324, %v11408
        %v11410 = vpop.f32.mrf.mxu0
        %v11411 = vpop.f32.mrf.mxu0
        %v11412 = vadd.f32 %v11324, %v11411
        %v11413 = vpop.f32.mrf.mxu0
        %11414 = vmatprep.mubr.bf16.mxu0 0
        %11415 = vmatmul.mubr.bf16.gmra.mxu0 %v11288
        %v11416 = vpop.f32.mrf.mxu0
        %v11417 = vadd.f32 %v11324, %v11416
        %v11418 = vpop.f32.mrf.mxu0
        %v11419 = vpop.f32.mrf.mxu0
        %v11420 = vadd.f32 %v11324, %v11419
        %v11421 = vpop.f32.mrf.mxu0
        %11422 = vmatprep.mubr.bf16.mxu0 0
        %11423 = vmatmul.mubr.bf16.gmra.mxu0 %v11289
        %v11424 = vpop.f32.mrf.mxu0
        %v11425 = vadd.f32 %v11324, %v11424
        %v11426 = vpop.f32.mrf.mxu0
        %v11427 = vpop.f32.mrf.mxu0
        %v11428 = vadd.f32 %v11324, %v11427
        %v11429 = vpop.f32.mrf.mxu0
        %11430 = vmatprep.mubr.bf16.mxu0 0
        %11431 = vmatmul.mubr.bf16.gmra.mxu0 %v11290
        %v11432 = vpop.f32.mrf.mxu0
        %v11433 = vadd.f32 %v11324, %v11432
        %v11434 = vpop.f32.mrf.mxu0
        %v11435 = vpop.f32.mrf.mxu0
        %v11436 = vadd.f32 %v11324, %v11435
        %v11437 = vpop.f32.mrf.mxu0
        %11438 = vmatprep.mubr.bf16.mxu0 0
        %11439 = vmatmul.mubr.bf16.gmra.mxu0 %v11291
        %v11440 = vpop.f32.mrf.mxu0
        %v11441 = vadd.f32 %v11324, %v11440
        %v11442 = vpop.f32.mrf.mxu0
        %v11443 = vpop.f32.mrf.mxu0
        %v11444 = vadd.f32 %v11324, %v11443
        %v11445 = vpop.f32.mrf.mxu0
        %11446 = vmatprep.mubr.bf16.mxu0 0
        %11447 = vmatmul.mubr.bf16.gmra.mxu0 %v11292
        %v11448 = vpop.f32.mrf.mxu0
        %v11449 = vadd.f32 %v11324, %v11448
        %v11450 = vpop.f32.mrf.mxu0
        %v11451 = vpop.f32.mrf.mxu0
        %v11452 = vadd.f32 %v11324, %v11451
        %v11453 = vpop.f32.mrf.mxu0
        %11454 = vmatprep.mubr.bf16.mxu0 0
        %11455 = vmatmul.mubr.bf16.gmra.mxu0 %v11293
        %v11456 = vpop.f32.mrf.mxu0
        %v11457 = vadd.f32 %v11324, %v11456
        %v11458 = vpop.f32.mrf.mxu0
        %v11459 = vpop.f32.mrf.mxu0
        %v11460 = vadd.f32 %v11324, %v11459
        %v11461 = vpop.f32.mrf.mxu0
        %11462 = vmatprep.mubr.bf16.mxu0 0
        %11463 = vmatmul.mubr.bf16.gmra.mxu0 %v11294
        %v11464 = vpop.f32.mrf.mxu0
        %v11465 = vadd.f32 %v11324, %v11464
        %v11466 = vpop.f32.mrf.mxu0
        %v11467 = vpop.f32.mrf.mxu0
        %v11468 = vadd.f32 %v11324, %v11467
        %v11469 = vpop.f32.mrf.mxu0
        %11470 = vmatprep.mubr.bf16.mxu0 0
        %11471 = vmatmul.mubr.bf16.gmra.mxu0 %v11295
        %v11472 = vpop.f32.mrf.mxu0
        %v11473 = vadd.f32 %v11324, %v11472
        %v11474 = vpop.f32.mrf.mxu0
        %v11475 = vpop.f32.mrf.mxu0
        %v11476 = vadd.f32 %v11324, %v11475
        %v11477 = vpop.f32.mrf.mxu0
        %11478 = vmatprep.mubr.bf16.mxu0 0
        %11479 = vmatmul.mubr.bf16.gmra.mxu0 %v11296
        %v11480 = vpop.f32.mrf.mxu0
        %v11481 = vadd.f32 %v11324, %v11480
        %v11482 = vpop.f32.mrf.mxu0
        %v11483 = vpop.f32.mrf.mxu0
        %v11484 = vadd.f32 %v11324, %v11483
        %v11485 = vpop.f32.mrf.mxu0
        %11486 = vmatprep.mubr.bf16.mxu0 0
        %11487 = vmatmul.mubr.bf16.gmra.mxu0 %v11297
        %v11488 = vpop.f32.mrf.mxu0
        %v11489 = vadd.f32 %v11324, %v11488
        %v11490 = vpop.f32.mrf.mxu0
        %v11491 = vpop.f32.mrf.mxu0
        %v11492 = vadd.f32 %v11324, %v11491
        %v11493 = vpop.f32.mrf.mxu0
        %11494 = vmatprep.mubr.bf16.mxu0 0
        %11495 = vmatmul.mubr.bf16.gmra.mxu0 %v11298
        %v11496 = vpop.f32.mrf.mxu0
        %v11497 = vadd.f32 %v11324, %v11496
        %v11498 = vpop.f32.mrf.mxu0
        %v11499 = vpop.f32.mrf.mxu0
        %v11500 = vadd.f32 %v11324, %v11499
        %v11501 = vpop.f32.mrf.mxu0
        %11502 = vmatprep.mubr.bf16.mxu0 0
        %11503 = vmatmul.mubr.bf16.gmra.mxu0 %v11299
        %v11504 = vpop.f32.mrf.mxu0
        %v11505 = vadd.f32 %v11324, %v11504
        %v11506 = vpop.f32.mrf.mxu0
        %v11507 = vpop.f32.mrf.mxu0
        %v11508 = vadd.f32 %v11324, %v11507
        %v11509 = vpop.f32.mrf.mxu0
        %11510 = vmatprep.mubr.bf16.mxu0 0
        %11511 = vmatmul.mubr.bf16.gmra.mxu0 %v11300
        %v11512 = vpop.f32.mrf.mxu0
        %v11513 = vadd.f32 %v11324, %v11512
        %v11514 = vpop.f32.mrf.mxu0
        %v11515 = vpop.f32.mrf.mxu0
        %v11516 = vadd.f32 %v11324, %v11515
        %v11517 = vpop.f32.mrf.mxu0
        %11518 = vmatprep.mubr.bf16.mxu0 0
        %11519 = vmatmul.mubr.bf16.gmra.mxu0 %v11301
        %v11520 = vpop.f32.mrf.mxu0
        %v11521 = vadd.f32 %v11324, %v11520
        %v11522 = vpop.f32.mrf.mxu0
        %v11523 = vpop.f32.mrf.mxu0
        %v11524 = vadd.f32 %v11324, %v11523
        %v11525 = vpop.f32.mrf.mxu0
        %11526 = vmatprep.mubr.bf16.mxu0 0
        %11527 = vmatmul.mubr.bf16.gmra.mxu0 %v11302
        %v11528 = vpop.f32.mrf.mxu0
        %v11529 = vadd.f32 %v11324, %v11528
        %v11530 = vpop.f32.mrf.mxu0
        %v11531 = vpop.f32.mrf.mxu0
        %v11532 = vadd.f32 %v11324, %v11531
        %v11533 = vpop.f32.mrf.mxu0
        %11534 = vdwg.mxu0
        %11535 = vst [vmem:[%s340] sm:$0xff] %v11409
        %11536 = vst [vmem:[%s340 + $0x8] sm:$0xff] %v11412
        %11537 = vst [vmem:[%s340 + $0x10] sm:$0xff] %v11417
        %11538 = vst [vmem:[%s340 + $0x18] sm:$0xff] %v11420
        %11539 = vst [vmem:[%s340 + $0x20] sm:$0xff] %v11425
        %11540 = vst [vmem:[%s340 + $0x28] sm:$0xff] %v11428
        %11541 = vst [vmem:[%s340 + $0x30] sm:$0xff] %v11433
        %11542 = vst [vmem:[%s340 + $0x38] sm:$0xff] %v11436
        %11543 = vst [vmem:[%s340 + $0x40] sm:$0xff] %v11441
        %11544 = vst [vmem:[%s340 + $0x48] sm:$0xff] %v11444
        %11545 = vst [vmem:[%s340 + $0x50] sm:$0xff] %v11449
        %11546 = vst [vmem:[%s340 + $0x58] sm:$0xff] %v11452
        %11547 = vst [vmem:[%s340 + $0x60] sm:$0xff] %v11457
        %11548 = vst [vmem:[%s340 + $0x68] sm:$0xff] %v11460
        %11549 = vst [vmem:[%s340 + $0x70] sm:$0xff] %v11465
        %11550 = vst [vmem:[%s340 + $0x78] sm:$0xff] %v11468
        %11551 = vst [vmem:[%s340 + $0x80] sm:$0xff] %v11473
        %11552 = vst [vmem:[%s340 + $0x88] sm:$0xff] %v11476
        %11553 = vst [vmem:[%s340 + $0x90] sm:$0xff] %v11481
        %11554 = vst [vmem:[%s340 + $0x98] sm:$0xff] %v11484
        %11555 = vst [vmem:[%s340 + $0xa0] sm:$0xff] %v11489
        %11556 = vst [vmem:[%s340 + $0xa8] sm:$0xff] %v11492
        %11557 = vst [vmem:[%s340 + $0xb0] sm:$0xff] %v11497
        %11558 = vst [vmem:[%s340 + $0xb8] sm:$0xff] %v11500
        %11559 = vst [vmem:[%s340 + $0xc0] sm:$0xff] %v11505
        %11560 = vst [vmem:[%s340 + $0xc8] sm:$0xff] %v11508
        %11561 = vst [vmem:[%s340 + $0xd0] sm:$0xff] %v11513
        %11562 = vst [vmem:[%s340 + $0xd8] sm:$0xff] %v11516
        %11563 = vst [vmem:[%s340 + $0xe0] sm:$0xff] %v11521
        %11564 = vst [vmem:[%s340 + $0xe8] sm:$0xff] %v11524
        %11565 = vst [vmem:[%s340 + $0xf0] sm:$0xff] %v11529
        %11566 = vst [vmem:[%s340 + $0xf8] sm:$0xff] %v11532
        %s11567 = sand.u32 %s186, 1
        %s11568 = scalar_lea.sflag [#allocation6], %s11567
        %s11569 = sand.u32 %s186, 1
        %s11570 = smul.addr %s11569, 256
        %s11571 = scalar_lea.vmem [#allocation12], %s11570
        // Predicated region
        $region65: #{tpu_custom_call.1} parent=47 // pred_check
          %p11572 = pneg %p196
        $region66: #{tpu_custom_call.1} parent=47 // pred_check_branch
          %11574 = sbr.rel (%p11572) target = $region68
        $region67: #{tpu_custom_call.1} parent=47 // pred_region
          %s11576 = ssub.s32 4096, 4096
          %11577 = vsyncadd %s11568, %s11576
          %s11578 = smul.addr %s26, 32
          %s11579 = smul.addr %s11578, 128
          %s11580 = scalar_lea.hbm %s7, %s11579
          %s11581 = sshll.u32 %s11571, 4
          %s11582 = int_to_ptr.vmem [resolvable:$true] %s11581
          %11587 = dma.vmem_to_hbm [thread:$0]  %s11582, 4096, %s11580, %s11568, 128, 128, 8
        $region68: #{tpu_custom_call.1} parent=47 // pred_fallthru
          _
      $region48: #{tpu_custom_call.1} parent=5 // pred_fallthru
        _
      %p11588 = scmp.le.s32.totalorder 2, %s21
      // Predicated region
      $region69: #{tpu_custom_call.1} parent=5 // pred_check
        %p11589 = pneg %p11588
      $region70: #{tpu_custom_call.1} parent=5 // pred_check_branch
        %11591 = sbr.rel (%p11589) target = $region72
      $region71: #{tpu_custom_call.1} parent=5 // pred_region
        %s11592 = ssub.s32 %s21, 2
        // Predicated region
        $region73: #{tpu_custom_call.1} parent=71 // pred_check
          %p11593 = pneg %p202
        $region74: #{tpu_custom_call.1} parent=71 // pred_check_branch
          %11595 = sbr.rel (%p11593) target = $region76
        $region75: #{tpu_custom_call.1} parent=71 // pred_region
          %s11596 = sand.u32 %s187, 1
          %s11597 = scalar_lea.sflag [#allocation6], %s11596
          %s11598 = sand.u32 %s187, 1
          %s11599 = smul.addr %s11598, 256
          %s11600 = scalar_lea.vmem [#allocation12], %s11599
          %11601 = dma.done %s11597, 4096
        $region76: #{tpu_custom_call.1} parent=71 // pred_fallthru
          _
      $region72: #{tpu_custom_call.1} parent=5 // pred_fallthru
        _
    $region6: #{tpu_custom_call.1} parent=1 // loop_footer
      %s25 = sadd.s32 1, %s21
    $region7: #{tpu_custom_call.1} parent=1 // loop_footer_branch
      %20 = sbr.rel target = $region3
    $region8: #{tpu_custom_call.1} parent=1 // loop_exit
      _
    %11602 = vsyncpa [#allocation5], 1
    %s11603 = scalar_lea.sflag [#allocation5], 1
    %11604 = vsyncpa %s11603, 1
    %11605 = vsyncpa [#allocation8], 1
    %11606 = vsyncpa [#allocation11], 1
    %11607 = vsyncpa [#allocation6], 1
    %s11608 = scalar_lea.sflag [#allocation6], 1
    %11609 = vsyncpa %s11608, 1

</llo_original>
